<compile_context>
chip_gen: v7x
topology: tpu7x:2x2x1
jax: 0.10.0
libtpu: 0.0.40
codegen_flags: <defaults>
</compile_context>

<pallas_src>
import functools

import jax
import jax.numpy as jnp
from jax.experimental import pallas as pl
from jax.experimental.pallas import tpu as pltpu

LANE = 128                      # TPU lane width; channels padded to this.
VMEM_LIMIT = 48 * 1024 * 1024   # explicit scoped-VMEM budget (safe on v5e/v6e/v7x)


def _round_up(x, m):
    return (x + m - 1) // m * m


def _pad_axis(a, axis, target):
    if a.shape[axis] == target:
        return a
    pad = [(0, 0)] * a.ndim
    pad[axis] = (0, target - a.shape[axis])
    return jnp.pad(a, pad)


# ---------------------------------------------------------------------------
# Kernel 1: direct conv — TH output rows per grid step, resident weights
# ---------------------------------------------------------------------------
def _conv_kernel(x_ref, w_ref, o_ref, acc_ref, *, k, s, th, wo_pad):
    # x_ref : (s*s, Hg, Wg, Cin)  row/col parity groups of one padded image
    # w_ref : (k*k, Cin, Cout)    all taps, resident
    # o_ref : (1, th, wo_pad, Cout) bf16
    # acc_ref: (th*wo_pad, Cout)  f32 scratch accumulator
    ho0 = pl.multiple_of(pl.program_id(1) * th, th)
    cin = x_ref.shape[-1]
    first = True
    for di in range(k):
        rg, roff = di % s, di // s
        for dj in range(k):
            cg, coff = dj % s, dj // s
            lhs = x_ref[rg * s + cg, pl.ds(ho0 + roff, th),
                        coff:coff + wo_pad, :]                    # (th, wo_pad, Cin)
            lhs = lhs.reshape(th * wo_pad, cin)                   # big MXU M-dim
            contrib = jnp.dot(lhs, w_ref[di * k + dj],
                              preferred_element_type=jnp.float32)
            if first:
                acc_ref[...] = contrib
                first = False
            else:
                acc_ref[...] += contrib
    o_ref[...] = acc_ref[...].reshape(o_ref.shape).astype(o_ref.dtype)


def conv2d(x_nhwc, w_oihw, stride, pad):
    """Direct NHWC conv (bias=False); channels already lane-padded. bf16 out."""
    N, H, W, Cin = x_nhwc.shape
    Cout, Cin_w, k, _ = w_oihw.shape
    assert Cin == Cin_w
    s = stride
    Ho = (H + 2 * pad - k) // s + 1
    Wo = (W + 2 * pad - k) // s + 1
    wo_pad = _round_up(Wo, 8)                 # sublane-aligned, unmasked stores
    max_off = (k - 1) // s
    hg = Ho + max_off                         # rows needed per row-parity group
    wg = wo_pad + max_off

    # TH = largest divisor of Ho with TH*wo_pad <= ~512 (fills the MXU M dim,
    # keeps the output un-padded along H).
    max_th = max(1, 512 // wo_pad)
    th = 1
    for d in range(1, min(Ho, max_th) + 1):
        if Ho % d == 0:
            th = d

    x_p = jnp.pad(x_nhwc.astype(jnp.bfloat16),
                  ((0, 0), (pad, pad), (pad, pad), (0, 0)))
    # Row/column parity grouping: every in-kernel tap slice becomes a
    # contiguous (th, wo_pad, Cin) window (no strided loads for stride > 1).
    groups = []
    for rg in range(s):
        for cg in range(s):
            g = x_p[:, rg::s, cg::s, :]
            g = _pad_axis(_pad_axis(g, 1, hg), 2, wg)
            groups.append(g)
    xg = jnp.stack(groups, axis=1).reshape(N * s * s, hg, wg, Cin)

    w_taps = jnp.transpose(w_oihw, (2, 3, 1, 0)).reshape(k * k, Cin, Cout)
    w_taps = w_taps.astype(jnp.bfloat16)

    kern = functools.partial(_conv_kernel, k=k, s=s, th=th, wo_pad=wo_pad)
    out = pl.pallas_call(
        kern,
        grid=(N, Ho // th),
        in_specs=[
            # full parity-grouped image; constant across the row-tile axis ->
            # DMA'd once per batch image.
            pl.BlockSpec((s * s, hg, wg, Cin), lambda n, m: (n, 0, 0, 0)),
            # full weight slab, resident (constant index map).
            pl.BlockSpec((k * k, Cin, Cout), lambda n, m: (0, 0, 0)),
        ],
        out_specs=pl.BlockSpec((1, th, wo_pad, Cout), lambda n, m: (n, m, 0, 0)),
        out_shape=jax.ShapeDtypeStruct((N, Ho, wo_pad, Cout), jnp.bfloat16),
        scratch_shapes=[pltpu.VMEM((th * wo_pad, Cout), jnp.float32)],
        compiler_params=pltpu.CompilerParams(
            dimension_semantics=("parallel", "parallel"),
            vmem_limit_bytes=VMEM_LIMIT),
        cost_estimate=pl.CostEstimate(
            flops=2 * N * Ho * wo_pad * Cin * Cout * k * k,
            transcendentals=0,
            bytes_accessed=(xg.size * 2 + w_taps.size * 2
                            + N * Ho * wo_pad * Cout * 2)),
    )(xg, w_taps)
    if wo_pad != Wo:
        out = out[:, :, :Wo, :]
    return out


# ---------------------------------------------------------------------------
# Kernel 2: tiled MXU matmul (1x1 stride-s projection conv)
# ---------------------------------------------------------------------------
def _matmul_kernel(a_ref, b_ref, o_ref, acc_ref):
    @pl.when(pl.program_id(2) == 0)
    def _():
        acc_ref[...] = jnp.zeros_like(acc_ref)

    acc_ref[...] += jnp.dot(a_ref[...], b_ref[...],
                            preferred_element_type=jnp.float32)

    @pl.when(pl.program_id(2) == pl.num_programs(2) - 1)
    def _():
        o_ref[...] = acc_ref[...].astype(o_ref.dtype)


def pallas_matmul(a, b):
    """(M, K) @ (K, N) -> (M, N) bf16.  bf16 MXU operands, f32 accumulation."""
    M, K = a.shape
    K2, N = b.shape
    assert K == K2
    tm = min(256, _round_up(M, 8))
    tn = min(256, _round_up(N, LANE))
    tk = min(512, _round_up(K, LANE))
    Mp, Kp, Np = _round_up(M, tm), _round_up(K, tk), _round_up(N, tn)
    a_p = _pad_axis(_pad_axis(a, 0, Mp), 1, Kp).astype(jnp.bfloat16)
    b_p = _pad_axis(_pad_axis(b, 0, Kp), 1, Np).astype(jnp.bfloat16)

    out = pl.pallas_call(
        _matmul_kernel,
        grid=(Mp // tm, Np // tn, Kp // tk),
        in_specs=[pl.BlockSpec((tm, tk), lambda i, j, kk: (i, kk)),
                  pl.BlockSpec((tk, tn), lambda i, j, kk: (kk, j))],
        out_specs=pl.BlockSpec((tm, tn), lambda i, j, kk: (i, j)),
        out_shape=jax.ShapeDtypeStruct((Mp, Np), jnp.bfloat16),
        scratch_shapes=[pltpu.VMEM((tm, tn), jnp.float32)],
        compiler_params=pltpu.CompilerParams(
            dimension_semantics=("parallel", "parallel", "arbitrary"),
            vmem_limit_bytes=VMEM_LIMIT),
        cost_estimate=pl.CostEstimate(
            flops=2 * Mp * Np * Kp, transcendentals=0,
            bytes_accessed=Mp * Kp * 2 + Kp * Np * 2 + Mp * Np * 2),
    )(a_p, b_p)
    return out[:M, :N]


# ---------------------------------------------------------------------------
# Kernel 3: training-mode BatchNorm (stats+fold pass, apply pass) + res + ReLU
# ---------------------------------------------------------------------------
def _bn_stats_kernel(h_ref, g_ref, b_ref, scale_ref, shift_ref,
                     sum_sc, sq_sc, *, inv_m, eps):
    mi = pl.program_id(1)

    @pl.when(mi == 0)
    def _():
        sum_sc[...] = jnp.zeros_like(sum_sc)
        sq_sc[...] = jnp.zeros_like(sq_sc)

    h = h_ref[...].astype(jnp.float32)          # f32 accumulation of bf16 input
    sum_sc[...] += jnp.sum(h, axis=0, keepdims=True)
    sq_sc[...] += jnp.sum(h * h, axis=0, keepdims=True)

    @pl.when(mi == pl.num_programs(1) - 1)
    def _():
        mean = sum_sc[...] * inv_m
        var = jnp.maximum(sq_sc[...] * inv_m - mean * mean, 0.0)
        # exact module formula: z = (x - mean) / (sqrt(var) + eps)
        scale = g_ref[...] / (jnp.sqrt(var) + eps)
        scale_ref[...] = scale
        shift_ref[...] = b_ref[...] - mean * scale


def _bn_apply_kernel(*refs, relu, has_residual):
    if has_residual:
        h_ref, res_ref, scale_ref, shift_ref, o_ref = refs
    else:
        h_ref, scale_ref, shift_ref, o_ref = refs
    out = h_ref[...].astype(jnp.float32) * scale_ref[...] + shift_ref[...]
    if has_residual:
        out = out + res_ref[...].astype(jnp.float32)
    if relu:
        out = jnp.maximum(out, 0.0)
    o_ref[...] = out.astype(o_ref.dtype)


def pallas_batchnorm(h, gamma, beta, residual=None, relu=True, eps=1e-5):
    """BatchNorm (batch stats) over rows of h:(M, C) bf16, fused +res +ReLU."""
    M, C = h.shape
    tm = min(512, _round_up(M, 8))              # large HBM-roofline tile
    Mp = _round_up(M, tm)
    nm = Mp // tm
    h_p = _pad_axis(h, 0, Mp)                   # zero rows: safe for sums
    g_row = gamma.reshape(1, C).astype(jnp.float32)
    b_row = beta.reshape(1, C).astype(jnp.float32)

    # Pass 1: per-channel sum / sum-of-squares + folded scale/shift.
    # Channel-block axis is "parallel" so both v7x TensorCores participate.
    cb = 256 if C % 256 == 0 else C
    nc = C // cb
    scale_row, shift_row = pl.pallas_call(
        functools.partial(_bn_stats_kernel, inv_m=1.0 / M, eps=eps),
        grid=(nc, nm),
        in_specs=[pl.BlockSpec((tm, cb), lambda c, m: (m, c)),
                  pl.BlockSpec((1, cb), lambda c, m: (0, c)),
                  pl.BlockSpec((1, cb), lambda c, m: (0, c))],
        out_specs=(pl.BlockSpec((1, cb), lambda c, m: (0, c)),
                   pl.BlockSpec((1, cb), lambda c, m: (0, c))),
        out_shape=(jax.ShapeDtypeStruct((1, C), jnp.float32),
                   jax.ShapeDtypeStruct((1, C), jnp.float32)),
        scratch_shapes=[pltpu.VMEM((1, cb), jnp.float32),
                        pltpu.VMEM((1, cb), jnp.float32)],
        compiler_params=pltpu.CompilerParams(
            dimension_semantics=("parallel", "arbitrary"),
            vmem_limit_bytes=VMEM_LIMIT),
    )(h_p, g_row, b_row)

    # Pass 2: tiled parallel apply (+ residual, + ReLU), bf16 out.
    has_res = residual is not None
    inputs = [h_p]
    in_specs = [pl.BlockSpec((tm, C), lambda m: (m, 0))]
    if has_res:
        inputs.append(_pad_axis(residual, 0, Mp))
        in_specs.append(pl.BlockSpec((tm, C), lambda m: (m, 0)))
    inputs += [scale_row, shift_row]
    in_specs += [pl.BlockSpec((1, C), lambda m: (0, 0)) for _ in range(2)]

    out = pl.pallas_call(
        functools.partial(_bn_apply_kernel, relu=relu, has_residual=has_res),
        grid=(nm,),
        in_specs=in_specs,
        out_specs=pl.BlockSpec((tm, C), lambda m: (m, 0)),
        out_shape=jax.ShapeDtypeStruct((Mp, C), jnp.bfloat16),
        compiler_params=pltpu.CompilerParams(
            dimension_semantics=("parallel",),
            vmem_limit_bytes=VMEM_LIMIT),
    )(*inputs)
    return out[:M]


# ---------------------------------------------------------------------------
# ResidualBlock / BlockGroup forward (channels lane-padded, bf16 activations)
# ---------------------------------------------------------------------------
def residual_block_forward(x_nhwc, p, first_stride):
    N = x_nhwc.shape[0]

    # left branch: conv1 -> bn1 -> relu -> conv2 -> bn2
    h1 = conv2d(x_nhwc, p["conv1_w"], first_stride, 1)       # (N,Ho,Wo,Cp) bf16
    _, Ho, Wo, Cp = h1.shape
    M = N * Ho * Wo
    h1n = pallas_batchnorm(h1.reshape(M, Cp), p["bn1_w"], p["bn1_b"], relu=True)
    h2 = conv2d(h1n.reshape(N, Ho, Wo, Cp), p["conv2_w"], 1, 1).reshape(M, Cp)

    # right branch
    if first_stride > 1:
        # 1x1 stride-s conv == channel matmul on the pre-strided input.
        xs = x_nhwc[:, ::first_stride, ::first_stride, :]
        w_mat = p["convr_w"][:, :, 0, 0].T                     # (Cin_p, Cout_p)
        r = pallas_matmul(xs.reshape(M, xs.shape[-1]), w_mat)
        r = pallas_batchnorm(r, p["bnr_w"], p["bnr_b"], relu=False)
    else:
        # identity shortcut (module semantics: requires in_feats == out_feats)
        r = x_nhwc.reshape(M, Cp)

    # bn2 + residual add + relu, fused in the BN apply kernel
    out = pallas_batchnorm(h2, p["bn2_w"], p["bn2_b"], residual=r, relu=True)
    return out.reshape(N, Ho, Wo, Cp)


def _pad_block_params(p):
    q = {}
    for name, w in p.items():
        if name.startswith("conv"):
            op = _round_up(w.shape[0], LANE)
            ip = _round_up(w.shape[1], LANE)
            q[name] = _pad_axis(_pad_axis(w, 0, op), 1, ip)
        else:  # bn weight / bias: pad with zeros (padded channels stay 0)
            q[name] = _pad_axis(w, 0, _round_up(w.shape[0], LANE))
    return q


def block_group_forward(x_nchw, block_params, first_stride):
    out_feats = block_params[0]["conv1_w"].shape[0]
    x = jnp.transpose(x_nchw, (0, 2, 3, 1))                        # NCHW -> NHWC
    x = _pad_axis(x, 3, _round_up(x.shape[3], LANE)).astype(jnp.bfloat16)
    for i, p in enumerate(block_params):
        stride = first_stride if i == 0 else 1
        x = residual_block_forward(x, _pad_block_params(p), stride)
    x = x[..., :out_feats].astype(jnp.float32)                     # drop pad, f32
    return jnp.transpose(x, (0, 3, 1, 2))                          # NHWC -> NCHW


# ---------------------------------------------------------------------------
# Deterministic parameter initialization (mirrors module __init__ shapes)
# ---------------------------------------------------------------------------
def _init_conv(key, out_c, in_c, k):
    lim = (in_c * k * k) ** (-0.5)
    return jax.random.uniform(key, (out_c, in_c, k, k),
                              minval=-lim, maxval=lim, dtype=jnp.float32)


def init_block_group_params(key, n_blocks, in_feats, out_feats, first_stride):
    params = []
    for i in range(n_blocks):
        ic = in_feats if i == 0 else out_feats
        stride = first_stride if i == 0 else 1
        key, k1, k2, k3 = jax.random.split(key, 4)
        p = {
            "conv1_w": _init_conv(k1, out_feats, ic, 3),
            "bn1_w": jnp.ones((out_feats,), jnp.float32),
            "bn1_b": jnp.zeros((out_feats,), jnp.float32),
            "conv2_w": _init_conv(k2, out_feats, out_feats, 3),
            "bn2_w": jnp.ones((out_feats,), jnp.float32),
            "bn2_b": jnp.zeros((out_feats,), jnp.float32),
        }
        if stride > 1:
            p["convr_w"] = _init_conv(k3, out_feats, ic, 1)
            p["bnr_w"] = jnp.ones((out_feats,), jnp.float32)
            p["bnr_b"] = jnp.zeros((out_feats,), jnp.float32)
        params.append(p)
    return params


# ---------------------------------------------------------------------------
if __name__ == "__main__":
    key = jax.random.PRNGKey(0)
    kx, kp = jax.random.split(key)

    # Small shapes consistent with the module's NCHW forward.
    n_blocks, in_feats, out_feats, first_stride = 2, 4, 8, 2
    x = jax.random.normal(kx, (2, in_feats, 16, 16), dtype=jnp.float32)
    params = init_block_group_params(kp, n_blocks, in_feats, out_feats,
                                     first_stride)

    fwd = jax.jit(functools.partial(block_group_forward,
                                    first_stride=first_stride))
    out = fwd(x, params)
    out = jax.block_until_ready(out)

    expected_shape = (2, out_feats, 16 // first_stride, 16 // first_stride)
    assert out.shape == expected_shape, (out.shape, expected_shape)
    assert bool(jnp.all(jnp.isfinite(out)))
    print("KERNEL_OK")
</pallas_src>

<mosaic_0001>
module attributes {stable_mosaic.version = 11 : i64} {
  func.func @_bn_stats_kernel(%arg0: i32, %arg1: i32, %arg2: memref<128x128xbf16, #tpu.memory_space<vmem>>, %arg3: memref<1x128xf32, #tpu.memory_space<vmem>>, %arg4: memref<1x128xf32, #tpu.memory_space<vmem>>, %arg5: memref<1x128xf32, #tpu.memory_space<vmem>>, %arg6: memref<1x128xf32, #tpu.memory_space<vmem>>, %arg7: memref<1x128xf32, #tpu.memory_space<vmem>>, %arg8: memref<1x128xf32, #tpu.memory_space<vmem>>) attributes {dimension_semantics = [#tpu.dimension_semantics<parallel>, #tpu.dimension_semantics<arbitrary>], iteration_bounds = array<i64: 1, 1>, scalar_prefetch = 0 : i64, scratch_operands = 2 : i64, tpu.core_type = #tpu.core_type<tc>, window_params = [{transform_indices = @transform_0, window_bounds = array<i64: 128, 128>}, {transform_indices = @transform_1, window_bounds = array<i64: 1, 128>}, {transform_indices = @transform_2, window_bounds = array<i64: 1, 128>}, {transform_indices = @transform_3, window_bounds = array<i64: 1, 128>}, {transform_indices = @transform_4, window_bounds = array<i64: 1, 128>}]} {
    %c0_i32 = arith.constant 0 : i32
    %0 = arith.cmpi eq, %arg1, %c0_i32 : i32
    %1 = arith.extui %0 : i1 to i32
    %c0_i32_0 = arith.constant 0 : i32
    %2 = arith.cmpi ne, %1, %c0_i32_0 : i32
    scf.if %2 {
      %cst_13 = arith.constant 0.000000e+00 : f32
      %19 = vector.broadcast %cst_13 : f32 to vector<1x128xf32>
      %c0_14 = arith.constant 0 : index
      %c0_15 = arith.constant 0 : index
      %20 = vector.load %arg7[%c0_14, %c0_15] : memref<1x128xf32, #tpu.memory_space<vmem>>, vector<1x128xf32>
      tpu.vector_store %arg7[%c0_14, %c0_15], %19 {strides = array<i32>} : memref<1x128xf32, #tpu.memory_space<vmem>>, vector<1x128xf32>,
      %cst_16 = arith.constant 0.000000e+00 : f32
      %21 = vector.broadcast %cst_16 : f32 to vector<1x128xf32>
      %c0_17 = arith.constant 0 : index
      %c0_18 = arith.constant 0 : index
      %22 = vector.load %arg8[%c0_17, %c0_18] : memref<1x128xf32, #tpu.memory_space<vmem>>, vector<1x128xf32>
      tpu.vector_store %arg8[%c0_17, %c0_18], %21 {strides = array<i32>} : memref<1x128xf32, #tpu.memory_space<vmem>>, vector<1x128xf32>,
    } else {
    }
    %c0 = arith.constant 0 : index
    %c0_1 = arith.constant 0 : index
    %3 = vector.load %arg2[%c0, %c0_1] : memref<128x128xbf16, #tpu.memory_space<vmem>>, vector<128x128xbf16>
    %4 = arith.extf %3 : vector<128x128xbf16> to vector<128x128xf32>
    %c0_2 = arith.constant 0 : index
    %c0_3 = arith.constant 0 : index
    %5 = vector.load %arg7[%c0_2, %c0_3] : memref<1x128xf32, #tpu.memory_space<vmem>>, vector<1x128xf32>
    %cst = arith.constant dense<0.000000e+00> : vector<128xf32>
    %6 = vector.multi_reduction <add>, %4, %cst [0] : vector<128x128xf32> to vector<128xf32>
    %7 = vector.shape_cast %6 : vector<128xf32> to vector<1x128xf32>
    %8 = arith.addf %5, %7 : vector<1x128xf32>
    %c0_4 = arith.constant 0 : index
    %c0_5 = arith.constant 0 : index
    %9 = vector.load %arg7[%c0_4, %c0_5] : memref<1x128xf32, #tpu.memory_space<vmem>>, vector<1x128xf32>
    tpu.vector_store %arg7[%c0_4, %c0_5], %8 {strides = array<i32>} : memref<1x128xf32, #tpu.memory_space<vmem>>, vector<1x128xf32>,
    %c0_6 = arith.constant 0 : index
    %c0_7 = arith.constant 0 : index
    %10 = vector.load %arg8[%c0_6, %c0_7] : memref<1x128xf32, #tpu.memory_space<vmem>>, vector<1x128xf32>
    %11 = arith.mulf %4, %4 : vector<128x128xf32>
    %cst_8 = arith.constant dense<0.000000e+00> : vector<128xf32>
    %12 = vector.multi_reduction <add>, %11, %cst_8 [0] : vector<128x128xf32> to vector<128xf32>
    %13 = vector.shape_cast %12 : vector<128xf32> to vector<1x128xf32>
    %14 = arith.addf %10, %13 : vector<1x128xf32>
    %c0_9 = arith.constant 0 : index
    %c0_10 = arith.constant 0 : index
    %15 = vector.load %arg8[%c0_9, %c0_10] : memref<1x128xf32, #tpu.memory_space<vmem>>, vector<1x128xf32>
    tpu.vector_store %arg8[%c0_9, %c0_10], %14 {strides = array<i32>} : memref<1x128xf32, #tpu.memory_space<vmem>>, vector<1x128xf32>,
    %c0_i32_11 = arith.constant 0 : i32
    %16 = arith.cmpi eq, %arg1, %c0_i32_11 : i32
    %17 = arith.extui %16 : i1 to i32
    %c0_i32_12 = arith.constant 0 : i32
    %18 = arith.cmpi ne, %17, %c0_i32_12 : i32
    scf.if %18 {
      %c0_13 = arith.constant 0 : index
      %c0_14 = arith.constant 0 : index
      %19 = vector.load %arg7[%c0_13, %c0_14] : memref<1x128xf32, #tpu.memory_space<vmem>>, vector<1x128xf32>
      %cst_15 = arith.constant 7.812500e-03 : f32
      %20 = vector.broadcast %cst_15 : f32 to vector<1x128xf32>
      %21 = arith.mulf %19, %20 : vector<1x128xf32>
      %c0_16 = arith.constant 0 : index
      %c0_17 = arith.constant 0 : index
      %22 = vector.load %arg8[%c0_16, %c0_17] : memref<1x128xf32, #tpu.memory_space<vmem>>, vector<1x128xf32>
      %cst_18 = arith.constant 7.812500e-03 : f32
      %23 = vector.broadcast %cst_18 : f32 to vector<1x128xf32>
      %24 = arith.mulf %22, %23 : vector<1x128xf32>
      %25 = arith.mulf %21, %21 : vector<1x128xf32>
      %26 = arith.subf %24, %25 : vector<1x128xf32>
      %cst_19 = arith.constant 0.000000e+00 : f32
      %27 = vector.broadcast %cst_19 : f32 to vector<1x128xf32>
      %28 = arith.maximumf %26, %27 : vector<1x128xf32>
      %c0_20 = arith.constant 0 : index
      %c0_21 = arith.constant 0 : index
      %29 = vector.load %arg3[%c0_20, %c0_21] : memref<1x128xf32, #tpu.memory_space<vmem>>, vector<1x128xf32>
      %30 = math.sqrt %28 : vector<1x128xf32>
      %cst_22 = arith.constant 9.99999974E-6 : f32
      %31 = vector.broadcast %cst_22 : f32 to vector<1x128xf32>
      %32 = arith.addf %30, %31 : vector<1x128xf32>
      %33 = arith.divf %29, %32 : vector<1x128xf32>
      %c0_23 = arith.constant 0 : index
      %c0_24 = arith.constant 0 : index
      %34 = vector.load %arg5[%c0_23, %c0_24] : memref<1x128xf32, #tpu.memory_space<vmem>>, vector<1x128xf32>
      tpu.vector_store %arg5[%c0_23, %c0_24], %33 {strides = array<i32>} : memref<1x128xf32, #tpu.memory_space<vmem>>, vector<1x128xf32>,
      %c0_25 = arith.constant 0 : index
      %c0_26 = arith.constant 0 : index
      %35 = vector.load %arg4[%c0_25, %c0_26] : memref<1x128xf32, #tpu.memory_space<vmem>>, vector<1x128xf32>
      %36 = arith.mulf %21, %33 : vector<1x128xf32>
      %37 = arith.subf %35, %36 : vector<1x128xf32>
      %c0_27 = arith.constant 0 : index
      %c0_28 = arith.constant 0 : index
      %38 = vector.load %arg6[%c0_27, %c0_28] : memref<1x128xf32, #tpu.memory_space<vmem>>, vector<1x128xf32>
      tpu.vector_store %arg6[%c0_27, %c0_28], %37 {strides = array<i32>} : memref<1x128xf32, #tpu.memory_space<vmem>>, vector<1x128xf32>,
    } else {
    }
    return
  }
  func.func @transform_0(%arg0: i32, %arg1: i32) -> (i32, i32) {
    %c0_i32 = arith.constant 0 : i32
    return %arg1, %arg0 : i32, i32
  }
  func.func @transform_1(%arg0: i32, %arg1: i32) -> (i32, i32) {
    %c0_i32 = arith.constant 0 : i32
    %c0_i32_0 = arith.constant 0 : i32
    return %c0_i32, %arg0 : i32, i32
  }
  func.func @transform_2(%arg0: i32, %arg1: i32) -> (i32, i32) {
    %c0_i32 = arith.constant 0 : i32
    %c0_i32_0 = arith.constant 0 : i32
    return %c0_i32, %arg0 : i32, i32
  }
  func.func @transform_3(%arg0: i32, %arg1: i32) -> (i32, i32) {
    %c0_i32 = arith.constant 0 : i32
    %c0_i32_0 = arith.constant 0 : i32
    return %c0_i32, %arg0 : i32, i32
  }
  func.func @transform_4(%arg0: i32, %arg1: i32) -> (i32, i32) {
    %c0_i32 = arith.constant 0 : i32
    %c0_i32_0 = arith.constant 0 : i32
    return %c0_i32, %arg0 : i32, i32
  }
}

module attributes {stable_mosaic.version = 11 : i64} {
  func.func @_conv_kernel(%arg0: i32, %arg1: i32, %arg2: memref<4x9x9x128xbf16, #tpu.memory_space<vmem>>, %arg3: memref<9x128x128xbf16, #tpu.memory_space<vmem>>, %arg4: memref<1x8x8x128xbf16, #tpu.memory_space<vmem>>, %arg5: memref<64x128xf32, #tpu.memory_space<vmem>>) attributes {dimension_semantics = [#tpu.dimension_semantics<parallel>, #tpu.dimension_semantics<parallel>], iteration_bounds = array<i64: 2, 1>, scalar_prefetch = 0 : i64, scratch_operands = 1 : i64, tpu.core_type = #tpu.core_type<tc>, window_params = [{transform_indices = @transform_0, window_bounds = array<i64: 4, 9, 9, 128>}, {pipeline_mode = #tpu.pipeline_mode<synchronous>, transform_indices = @transform_1, window_bounds = array<i64: 9, 128, 128>}, {transform_indices = @transform_2, window_bounds = array<i64: 1, 8, 8, 128>}]} {
    %c8_i32 = arith.constant 8 : i32
    %0 = arith.muli %arg1, %c8_i32 : i32
    %1 = tpu.assume_multiple %0, 8 : i32
    %c0_i32 = arith.constant 0 : i32
    %2 = arith.addi %1, %c0_i32 : i32
    %c0 = arith.constant 0 : index
    %3 = arith.index_cast %2 : i32 to index
    %c0_0 = arith.constant 0 : index
    %c0_1 = arith.constant 0 : index
    %4 = vector.load %arg2[%c0, %3, %c0_0, %c0_1] : memref<4x9x9x128xbf16, #tpu.memory_space<vmem>>, vector<1x8x8x128xbf16>
    %5 = vector.shape_cast %4 : vector<1x8x8x128xbf16> to vector<8x8x128xbf16>
    %6 = vector.shape_cast %5 : vector<8x8x128xbf16> to vector<64x128xbf16>
    %c0_2 = arith.constant 0 : index
    %c0_3 = arith.constant 0 : index
    %c0_4 = arith.constant 0 : index
    %7 = vector.load %arg3[%c0_2, %c0_3, %c0_4] : memref<9x128x128xbf16, #tpu.memory_space<vmem>>, vector<1x128x128xbf16>
    %8 = vector.shape_cast %7 : vector<1x128x128xbf16> to vector<128x128xbf16>
    %cst = arith.constant dense<0.000000e+00> : vector<64x128xf32>
    %9 = tpu.matmul %6, %8, %cst {dimension_numbers = #tpu.dot_dimension_numbers<[1], [0], [0], [1], [0, 0, 1, 1], [], []>} : vector<64x128xbf16>, vector<128x128xbf16>, vector<64x128xf32> -> vector<64x128xf32>
    %c0_5 = arith.constant 0 : index
    %c0_6 = arith.constant 0 : index
    %10 = vector.load %arg5[%c0_5, %c0_6] : memref<64x128xf32, #tpu.memory_space<vmem>>, vector<64x128xf32>
    tpu.vector_store %arg5[%c0_5, %c0_6], %9 {strides = array<i32>} : memref<64x128xf32, #tpu.memory_space<vmem>>, vector<64x128xf32>,
    %c0_i32_7 = arith.constant 0 : i32
    %11 = arith.addi %1, %c0_i32_7 : i32
    %c1 = arith.constant 1 : index
    %12 = arith.index_cast %11 : i32 to index
    %c0_8 = arith.constant 0 : index
    %c0_9 = arith.constant 0 : index
    %13 = vector.load %arg2[%c1, %12, %c0_8, %c0_9] : memref<4x9x9x128xbf16, #tpu.memory_space<vmem>>, vector<1x8x8x128xbf16>
    %14 = vector.shape_cast %13 : vector<1x8x8x128xbf16> to vector<8x8x128xbf16>
    %15 = vector.shape_cast %14 : vector<8x8x128xbf16> to vector<64x128xbf16>
    %c1_10 = arith.constant 1 : index
    %c0_11 = arith.constant 0 : index
    %c0_12 = arith.constant 0 : index
    %16 = vector.load %arg3[%c1_10, %c0_11, %c0_12] : memref<9x128x128xbf16, #tpu.memory_space<vmem>>, vector<1x128x128xbf16>
    %17 = vector.shape_cast %16 : vector<1x128x128xbf16> to vector<128x128xbf16>
    %cst_13 = arith.constant dense<0.000000e+00> : vector<64x128xf32>
    %18 = tpu.matmul %15, %17, %cst_13 {dimension_numbers = #tpu.dot_dimension_numbers<[1], [0], [0], [1], [0, 0, 1, 1], [], []>} : vector<64x128xbf16>, vector<128x128xbf16>, vector<64x128xf32> -> vector<64x128xf32>
    %c0_14 = arith.constant 0 : index
    %c0_15 = arith.constant 0 : index
    %19 = vector.load %arg5[%c0_14, %c0_15] : memref<64x128xf32, #tpu.memory_space<vmem>>, vector<64x128xf32>
    %20 = arith.addf %19, %18 : vector<64x128xf32>
    %c0_16 = arith.constant 0 : index
    %c0_17 = arith.constant 0 : index
    %21 = vector.load %arg5[%c0_16, %c0_17] : memref<64x128xf32, #tpu.memory_space<vmem>>, vector<64x128xf32>
    tpu.vector_store %arg5[%c0_16, %c0_17], %20 {strides = array<i32>} : memref<64x128xf32, #tpu.memory_space<vmem>>, vector<64x128xf32>,
    %c0_i32_18 = arith.constant 0 : i32
    %22 = arith.addi %1, %c0_i32_18 : i32
    %c0_19 = arith.constant 0 : index
    %23 = arith.index_cast %22 : i32 to index
    %c1_20 = arith.constant 1 : index
    %c0_21 = arith.constant 0 : index
    %24 = vector.load %arg2[%c0_19, %23, %c1_20, %c0_21] : memref<4x9x9x128xbf16, #tpu.memory_space<vmem>>, vector<1x8x8x128xbf16>
    %25 = vector.shape_cast %24 : vector<1x8x8x128xbf16> to vector<8x8x128xbf16>
    %26 = vector.shape_cast %25 : vector<8x8x128xbf16> to vector<64x128xbf16>
    %c2 = arith.constant 2 : index
    %c0_22 = arith.constant 0 : index
    %c0_23 = arith.constant 0 : index
    %27 = vector.load %arg3[%c2, %c0_22, %c0_23] : memref<9x128x128xbf16, #tpu.memory_space<vmem>>, vector<1x128x128xbf16>
    %28 = vector.shape_cast %27 : vector<1x128x128xbf16> to vector<128x128xbf16>
    %cst_24 = arith.constant dense<0.000000e+00> : vector<64x128xf32>
    %29 = tpu.matmul %26, %28, %cst_24 {dimension_numbers = #tpu.dot_dimension_numbers<[1], [0], [0], [1], [0, 0, 1, 1], [], []>} : vector<64x128xbf16>, vector<128x128xbf16>, vector<64x128xf32> -> vector<64x128xf32>
    %c0_25 = arith.constant 0 : index
    %c0_26 = arith.constant 0 : index
    %30 = vector.load %arg5[%c0_25, %c0_26] : memref<64x128xf32, #tpu.memory_space<vmem>>, vector<64x128xf32>
    %31 = arith.addf %30, %29 : vector<64x128xf32>
    %c0_27 = arith.constant 0 : index
    %c0_28 = arith.constant 0 : index
    %32 = vector.load %arg5[%c0_27, %c0_28] : memref<64x128xf32, #tpu.memory_space<vmem>>, vector<64x128xf32>
    tpu.vector_store %arg5[%c0_27, %c0_28], %31 {strides = array<i32>} : memref<64x128xf32, #tpu.memory_space<vmem>>, vector<64x128xf32>,
    %c0_i32_29 = arith.constant 0 : i32
    %33 = arith.addi %1, %c0_i32_29 : i32
    %c2_30 = arith.constant 2 : index
    %34 = arith.index_cast %33 : i32 to index
    %c0_31 = arith.constant 0 : index
    %c0_32 = arith.constant 0 : index
    %35 = vector.load %arg2[%c2_30, %34, %c0_31, %c0_32] : memref<4x9x9x128xbf16, #tpu.memory_space<vmem>>, vector<1x8x8x128xbf16>
    %36 = vector.shape_cast %35 : vector<1x8x8x128xbf16> to vector<8x8x128xbf16>
    %37 = vector.shape_cast %36 : vector<8x8x128xbf16> to vector<64x128xbf16>
    %c3 = arith.constant 3 : index
    %c0_33 = arith.constant 0 : index
    %c0_34 = arith.constant 0 : index
    %38 = vector.load %arg3[%c3, %c0_33, %c0_34] : memref<9x128x128xbf16, #tpu.memory_space<vmem>>, vector<1x128x128xbf16>
    %39 = vector.shape_cast %38 : vector<1x128x128xbf16> to vector<128x128xbf16>
    %cst_35 = arith.constant dense<0.000000e+00> : vector<64x128xf32>
    %40 = tpu.matmul %37, %39, %cst_35 {dimension_numbers = #tpu.dot_dimension_numbers<[1], [0], [0], [1], [0, 0, 1, 1], [], []>} : vector<64x128xbf16>, vector<128x128xbf16>, vector<64x128xf32> -> vector<64x128xf32>
    %c0_36 = arith.constant 0 : index
    %c0_37 = arith.constant 0 : index
    %41 = vector.load %arg5[%c0_36, %c0_37] : memref<64x128xf32, #tpu.memory_space<vmem>>, vector<64x128xf32>
    %42 = arith.addf %41, %40 : vector<64x128xf32>
    %c0_38 = arith.constant 0 : index
    %c0_39 = arith.constant 0 : index
    %43 = vector.load %arg5[%c0_38, %c0_39] : memref<64x128xf32, #tpu.memory_space<vmem>>, vector<64x128xf32>
    tpu.vector_store %arg5[%c0_38, %c0_39], %42 {strides = array<i32>} : memref<64x128xf32, #tpu.memory_space<vmem>>, vector<64x128xf32>,
    %c0_i32_40 = arith.constant 0 : i32
    %44 = arith.addi %1, %c0_i32_40 : i32
    %c3_41 = arith.constant 3 : index
    %45 = arith.index_cast %44 : i32 to index
    %c0_42 = arith.constant 0 : index
    %c0_43 = arith.constant 0 : index
    %46 = vector.load %arg2[%c3_41, %45, %c0_42, %c0_43] : memref<4x9x9x128xbf16, #tpu.memory_space<vmem>>, vector<1x8x8x128xbf16>
    %47 = vector.shape_cast %46 : vector<1x8x8x128xbf16> to vector<8x8x128xbf16>
    %48 = vector.shape_cast %47 : vector<8x8x128xbf16> to vector<64x128xbf16>
    %c4 = arith.constant 4 : index
    %c0_44 = arith.constant 0 : index
    %c0_45 = arith.constant 0 : index
    %49 = vector.load %arg3[%c4, %c0_44, %c0_45] : memref<9x128x128xbf16, #tpu.memory_space<vmem>>, vector<1x128x128xbf16>
    %50 = vector.shape_cast %49 : vector<1x128x128xbf16> to vector<128x128xbf16>
    %cst_46 = arith.constant dense<0.000000e+00> : vector<64x128xf32>
    %51 = tpu.matmul %48, %50, %cst_46 {dimension_numbers = #tpu.dot_dimension_numbers<[1], [0], [0], [1], [0, 0, 1, 1], [], []>} : vector<64x128xbf16>, vector<128x128xbf16>, vector<64x128xf32> -> vector<64x128xf32>
    %c0_47 = arith.constant 0 : index
    %c0_48 = arith.constant 0 : index
    %52 = vector.load %arg5[%c0_47, %c0_48] : memref<64x128xf32, #tpu.memory_space<vmem>>, vector<64x128xf32>
    %53 = arith.addf %52, %51 : vector<64x128xf32>
    %c0_49 = arith.constant 0 : index
    %c0_50 = arith.constant 0 : index
    %54 = vector.load %arg5[%c0_49, %c0_50] : memref<64x128xf32, #tpu.memory_space<vmem>>, vector<64x128xf32>
    tpu.vector_store %arg5[%c0_49, %c0_50], %53 {strides = array<i32>} : memref<64x128xf32, #tpu.memory_space<vmem>>, vector<64x128xf32>,
    %c0_i32_51 = arith.constant 0 : i32
    %55 = arith.addi %1, %c0_i32_51 : i32
    %c2_52 = arith.constant 2 : index
    %56 = arith.index_cast %55 : i32 to index
    %c1_53 = arith.constant 1 : index
    %c0_54 = arith.constant 0 : index
    %57 = vector.load %arg2[%c2_52, %56, %c1_53, %c0_54] : memref<4x9x9x128xbf16, #tpu.memory_space<vmem>>, vector<1x8x8x128xbf16>
    %58 = vector.shape_cast %57 : vector<1x8x8x128xbf16> to vector<8x8x128xbf16>
    %59 = vector.shape_cast %58 : vector<8x8x128xbf16> to vector<64x128xbf16>
    %c5 = arith.constant 5 : index
    %c0_55 = arith.constant 0 : index
    %c0_56 = arith.constant 0 : index
    %60 = vector.load %arg3[%c5, %c0_55, %c0_56] : memref<9x128x128xbf16, #tpu.memory_space<vmem>>, vector<1x128x128xbf16>
    %61 = vector.shape_cast %60 : vector<1x128x128xbf16> to vector<128x128xbf16>
    %cst_57 = arith.constant dense<0.000000e+00> : vector<64x128xf32>
    %62 = tpu.matmul %59, %61, %cst_57 {dimension_numbers = #tpu.dot_dimension_numbers<[1], [0], [0], [1], [0, 0, 1, 1], [], []>} : vector<64x128xbf16>, vector<128x128xbf16>, vector<64x128xf32> -> vector<64x128xf32>
    %c0_58 = arith.constant 0 : index
    %c0_59 = arith.constant 0 : index
    %63 = vector.load %arg5[%c0_58, %c0_59] : memref<64x128xf32, #tpu.memory_space<vmem>>, vector<64x128xf32>
    %64 = arith.addf %63, %62 : vector<64x128xf32>
    %c0_60 = arith.constant 0 : index
    %c0_61 = arith.constant 0 : index
    %65 = vector.load %arg5[%c0_60, %c0_61] : memref<64x128xf32, #tpu.memory_space<vmem>>, vector<64x128xf32>
    tpu.vector_store %arg5[%c0_60, %c0_61], %64 {strides = array<i32>} : memref<64x128xf32, #tpu.memory_space<vmem>>, vector<64x128xf32>,
    %c1_i32 = arith.constant 1 : i32
    %66 = arith.addi %1, %c1_i32 : i32
    %c0_62 = arith.constant 0 : index
    %67 = arith.index_cast %66 : i32 to index
    %c0_63 = arith.constant 0 : index
    %c0_64 = arith.constant 0 : index
    %68 = vector.load %arg2[%c0_62, %67, %c0_63, %c0_64] : memref<4x9x9x128xbf16, #tpu.memory_space<vmem>>, vector<1x8x8x128xbf16>
    %69 = vector.shape_cast %68 : vector<1x8x8x128xbf16> to vector<8x8x128xbf16>
    %70 = vector.shape_cast %69 : vector<8x8x128xbf16> to vector<64x128xbf16>
    %c6 = arith.constant 6 : index
    %c0_65 = arith.constant 0 : index
    %c0_66 = arith.constant 0 : index
    %71 = vector.load %arg3[%c6, %c0_65, %c0_66] : memref<9x128x128xbf16, #tpu.memory_space<vmem>>, vector<1x128x128xbf16>
    %72 = vector.shape_cast %71 : vector<1x128x128xbf16> to vector<128x128xbf16>
    %cst_67 = arith.constant dense<0.000000e+00> : vector<64x128xf32>
    %73 = tpu.matmul %70, %72, %cst_67 {dimension_numbers = #tpu.dot_dimension_numbers<[1], [0], [0], [1], [0, 0, 1, 1], [], []>} : vector<64x128xbf16>, vector<128x128xbf16>, vector<64x128xf32> -> vector<64x128xf32>
    %c0_68 = arith.constant 0 : index
    %c0_69 = arith.constant 0 : index
    %74 = vector.load %arg5[%c0_68, %c0_69] : memref<64x128xf32, #tpu.memory_space<vmem>>, vector<64x128xf32>
    %75 = arith.addf %74, %73 : vector<64x128xf32>
    %c0_70 = arith.constant 0 : index
    %c0_71 = arith.constant 0 : index
    %76 = vector.load %arg5[%c0_70, %c0_71] : memref<64x128xf32, #tpu.memory_space<vmem>>, vector<64x128xf32>
    tpu.vector_store %arg5[%c0_70, %c0_71], %75 {strides = array<i32>} : memref<64x128xf32, #tpu.memory_space<vmem>>, vector<64x128xf32>,
    %c1_i32_72 = arith.constant 1 : i32
    %77 = arith.addi %1, %c1_i32_72 : i32
    %c1_73 = arith.constant 1 : index
    %78 = arith.index_cast %77 : i32 to index
    %c0_74 = arith.constant 0 : index
    %c0_75 = arith.constant 0 : index
    %79 = vector.load %arg2[%c1_73, %78, %c0_74, %c0_75] : memref<4x9x9x128xbf16, #tpu.memory_space<vmem>>, vector<1x8x8x128xbf16>
    %80 = vector.shape_cast %79 : vector<1x8x8x128xbf16> to vector<8x8x128xbf16>
    %81 = vector.shape_cast %80 : vector<8x8x128xbf16> to vector<64x128xbf16>
    %c7 = arith.constant 7 : index
    %c0_76 = arith.constant 0 : index
    %c0_77 = arith.constant 0 : index
    %82 = vector.load %arg3[%c7, %c0_76, %c0_77] : memref<9x128x128xbf16, #tpu.memory_space<vmem>>, vector<1x128x128xbf16>
    %83 = vector.shape_cast %82 : vector<1x128x128xbf16> to vector<128x128xbf16>
    %cst_78 = arith.constant dense<0.000000e+00> : vector<64x128xf32>
    %84 = tpu.matmul %81, %83, %cst_78 {dimension_numbers = #tpu.dot_dimension_numbers<[1], [0], [0], [1], [0, 0, 1, 1], [], []>} : vector<64x128xbf16>, vector<128x128xbf16>, vector<64x128xf32> -> vector<64x128xf32>
    %c0_79 = arith.constant 0 : index
    %c0_80 = arith.constant 0 : index
    %85 = vector.load %arg5[%c0_79, %c0_80] : memref<64x128xf32, #tpu.memory_space<vmem>>, vector<64x128xf32>
    %86 = arith.addf %85, %84 : vector<64x128xf32>
    %c0_81 = arith.constant 0 : index
    %c0_82 = arith.constant 0 : index
    %87 = vector.load %arg5[%c0_81, %c0_82] : memref<64x128xf32, #tpu.memory_space<vmem>>, vector<64x128xf32>
    tpu.vector_store %arg5[%c0_81, %c0_82], %86 {strides = array<i32>} : memref<64x128xf32, #tpu.memory_space<vmem>>, vector<64x128xf32>,
    %c1_i32_83 = arith.constant 1 : i32
    %88 = arith.addi %1, %c1_i32_83 : i32
    %c0_84 = arith.constant 0 : index
    %89 = arith.index_cast %88 : i32 to index
    %c1_85 = arith.constant 1 : index
    %c0_86 = arith.constant 0 : index
    %90 = vector.load %arg2[%c0_84, %89, %c1_85, %c0_86] : memref<4x9x9x128xbf16, #tpu.memory_space<vmem>>, vector<1x8x8x128xbf16>
    %91 = vector.shape_cast %90 : vector<1x8x8x128xbf16> to vector<8x8x128xbf16>
    %92 = vector.shape_cast %91 : vector<8x8x128xbf16> to vector<64x128xbf16>
    %c8 = arith.constant 8 : index
    %c0_87 = arith.constant 0 : index
    %c0_88 = arith.constant 0 : index
    %93 = vector.load %arg3[%c8, %c0_87, %c0_88] : memref<9x128x128xbf16, #tpu.memory_space<vmem>>, vector<1x128x128xbf16>
    %94 = vector.shape_cast %93 : vector<1x128x128xbf16> to vector<128x128xbf16>
    %cst_89 = arith.constant dense<0.000000e+00> : vector<64x128xf32>
    %95 = tpu.matmul %92, %94, %cst_89 {dimension_numbers = #tpu.dot_dimension_numbers<[1], [0], [0], [1], [0, 0, 1, 1], [], []>} : vector<64x128xbf16>, vector<128x128xbf16>, vector<64x128xf32> -> vector<64x128xf32>
    %c0_90 = arith.constant 0 : index
    %c0_91 = arith.constant 0 : index
    %96 = vector.load %arg5[%c0_90, %c0_91] : memref<64x128xf32, #tpu.memory_space<vmem>>, vector<64x128xf32>
    %97 = arith.addf %96, %95 : vector<64x128xf32>
    %c0_92 = arith.constant 0 : index
    %c0_93 = arith.constant 0 : index
    %98 = vector.load %arg5[%c0_92, %c0_93] : memref<64x128xf32, #tpu.memory_space<vmem>>, vector<64x128xf32>
    tpu.vector_store %arg5[%c0_92, %c0_93], %97 {strides = array<i32>} : memref<64x128xf32, #tpu.memory_space<vmem>>, vector<64x128xf32>,
    %c0_94 = arith.constant 0 : index
    %c0_95 = arith.constant 0 : index
    %99 = vector.load %arg5[%c0_94, %c0_95] : memref<64x128xf32, #tpu.memory_space<vmem>>, vector<64x128xf32>
    %100 = vector.shape_cast %99 : vector<64x128xf32> to vector<1x8x8x128xf32>
    %101 = arith.truncf %100 : vector<1x8x8x128xf32> to vector<1x8x8x128xbf16>
    %c0_96 = arith.constant 0 : index
    %c0_97 = arith.constant 0 : index
    %c0_98 = arith.constant 0 : index
    %c0_99 = arith.constant 0 : index
    %102 = vector.load %arg4[%c0_96, %c0_97, %c0_98, %c0_99] : memref<1x8x8x128xbf16, #tpu.memory_space<vmem>>, vector<1x8x8x128xbf16>
    tpu.vector_store %arg4[%c0_96, %c0_97, %c0_98, %c0_99], %101 {strides = array<i32>} : memref<1x8x8x128xbf16, #tpu.memory_space<vmem>>, vector<1x8x8x128xbf16>,
    return
  }
  func.func @transform_0(%arg0: i32, %arg1: i32) -> (i32, i32, i32, i32) {
    %c0_i32 = arith.constant 0 : i32
    %c0_i32_0 = arith.constant 0 : i32
    %c0_i32_1 = arith.constant 0 : i32
    %c0_i32_2 = arith.constant 0 : i32
    return %arg0, %c0_i32, %c0_i32_0, %c0_i32_1 : i32, i32, i32, i32
  }
  func.func @transform_1(%arg0: i32, %arg1: i32) -> (i32, i32, i32) {
    %c0_i32 = arith.constant 0 : i32
    %c0_i32_0 = arith.constant 0 : i32
    %c0_i32_1 = arith.constant 0 : i32
    %c0_i32_2 = arith.constant 0 : i32
    return %c0_i32, %c0_i32_0, %c0_i32_1 : i32, i32, i32
  }
  func.func @transform_2(%arg0: i32, %arg1: i32) -> (i32, i32, i32, i32) {
    %c0_i32 = arith.constant 0 : i32
    %c0_i32_0 = arith.constant 0 : i32
    %c0_i32_1 = arith.constant 0 : i32
    return %arg0, %arg1, %c0_i32, %c0_i32_0 : i32, i32, i32, i32
  }
}

module attributes {stable_mosaic.version = 11 : i64} {
  func.func @_bn_apply_kernel(%arg0: i32, %arg1: memref<128x128xbf16, #tpu.memory_space<vmem>>, %arg2: memref<1x128xf32, #tpu.memory_space<vmem>>, %arg3: memref<1x128xf32, #tpu.memory_space<vmem>>, %arg4: memref<128x128xbf16, #tpu.memory_space<vmem>>) attributes {dimension_semantics = [#tpu.dimension_semantics<parallel>], iteration_bounds = array<i64: 1>, scalar_prefetch = 0 : i64, scratch_operands = 0 : i64, tpu.core_type = #tpu.core_type<tc>, window_params = [{transform_indices = @transform_0, window_bounds = array<i64: 128, 128>}, {pipeline_mode = #tpu.pipeline_mode<synchronous>, transform_indices = @transform_1, window_bounds = array<i64: 1, 128>}, {pipeline_mode = #tpu.pipeline_mode<synchronous>, transform_indices = @transform_2, window_bounds = array<i64: 1, 128>}, {transform_indices = @transform_3, window_bounds = array<i64: 128, 128>}]} {
    %c0 = arith.constant 0 : index
    %c0_0 = arith.constant 0 : index
    %0 = vector.load %arg1[%c0, %c0_0] : memref<128x128xbf16, #tpu.memory_space<vmem>>, vector<128x128xbf16>
    %1 = arith.extf %0 : vector<128x128xbf16> to vector<128x128xf32>
    %c0_1 = arith.constant 0 : index
    %c0_2 = arith.constant 0 : index
    %2 = vector.load %arg2[%c0_1, %c0_2] : memref<1x128xf32, #tpu.memory_space<vmem>>, vector<1x128xf32>
    %3 = vector.broadcast %2 : vector<1x128xf32> to vector<128x128xf32>
    %4 = arith.mulf %1, %3 : vector<128x128xf32>
    %c0_3 = arith.constant 0 : index
    %c0_4 = arith.constant 0 : index
    %5 = vector.load %arg3[%c0_3, %c0_4] : memref<1x128xf32, #tpu.memory_space<vmem>>, vector<1x128xf32>
    %6 = vector.broadcast %5 : vector<1x128xf32> to vector<128x128xf32>
    %7 = arith.addf %4, %6 : vector<128x128xf32>
    %cst = arith.constant 0.000000e+00 : f32
    %8 = vector.broadcast %cst : f32 to vector<128x128xf32>
    %9 = arith.maximumf %7, %8 : vector<128x128xf32>
    %10 = arith.truncf %9 : vector<128x128xf32> to vector<128x128xbf16>
    %c0_5 = arith.constant 0 : index
    %c0_6 = arith.constant 0 : index
    %11 = vector.load %arg4[%c0_5, %c0_6] : memref<128x128xbf16, #tpu.memory_space<vmem>>, vector<128x128xbf16>
    tpu.vector_store %arg4[%c0_5, %c0_6], %10 {strides = array<i32>} : memref<128x128xbf16, #tpu.memory_space<vmem>>, vector<128x128xbf16>,
    return
  }
  func.func @transform_0(%arg0: i32) -> (i32, i32) {
    %c0_i32 = arith.constant 0 : i32
    %c0_i32_0 = arith.constant 0 : i32
    return %arg0, %c0_i32 : i32, i32
  }
  func.func @transform_1(%arg0: i32) -> (i32, i32) {
    %c0_i32 = arith.constant 0 : i32
    %c0_i32_0 = arith.constant 0 : i32
    %c0_i32_1 = arith.constant 0 : i32
    return %c0_i32, %c0_i32_0 : i32, i32
  }
  func.func @transform_2(%arg0: i32) -> (i32, i32) {
    %c0_i32 = arith.constant 0 : i32
    %c0_i32_0 = arith.constant 0 : i32
    %c0_i32_1 = arith.constant 0 : i32
    return %c0_i32, %c0_i32_0 : i32, i32
  }
  func.func @transform_3(%arg0: i32) -> (i32, i32) {
    %c0_i32 = arith.constant 0 : i32
    %c0_i32_0 = arith.constant 0 : i32
    return %arg0, %c0_i32 : i32, i32
  }
}

module attributes {stable_mosaic.version = 11 : i64} {
  func.func @_conv_kernel(%arg0: i32, %arg1: i32, %arg2: memref<1x10x10x128xbf16, #tpu.memory_space<vmem>>, %arg3: memref<9x128x128xbf16, #tpu.memory_space<vmem>>, %arg4: memref<1x8x8x128xbf16, #tpu.memory_space<vmem>>, %arg5: memref<64x128xf32, #tpu.memory_space<vmem>>) attributes {dimension_semantics = [#tpu.dimension_semantics<parallel>, #tpu.dimension_semantics<parallel>], iteration_bounds = array<i64: 2, 1>, scalar_prefetch = 0 : i64, scratch_operands = 1 : i64, tpu.core_type = #tpu.core_type<tc>, window_params = [{transform_indices = @transform_0, window_bounds = array<i64: 1, 10, 10, 128>}, {pipeline_mode = #tpu.pipeline_mode<synchronous>, transform_indices = @transform_1, window_bounds = array<i64: 9, 128, 128>}, {transform_indices = @transform_2, window_bounds = array<i64: 1, 8, 8, 128>}]} {
    %c8_i32 = arith.constant 8 : i32
    %0 = arith.muli %arg1, %c8_i32 : i32
    %1 = tpu.assume_multiple %0, 8 : i32
    %c0_i32 = arith.constant 0 : i32
    %2 = arith.addi %1, %c0_i32 : i32
    %c0 = arith.constant 0 : index
    %3 = arith.index_cast %2 : i32 to index
    %c0_0 = arith.constant 0 : index
    %c0_1 = arith.constant 0 : index
    %4 = vector.load %arg2[%c0, %3, %c0_0, %c0_1] : memref<1x10x10x128xbf16, #tpu.memory_space<vmem>>, vector<1x8x8x128xbf16>
    %5 = vector.shape_cast %4 : vector<1x8x8x128xbf16> to vector<8x8x128xbf16>
    %6 = vector.shape_cast %5 : vector<8x8x128xbf16> to vector<64x128xbf16>
    %c0_2 = arith.constant 0 : index
    %c0_3 = arith.constant 0 : index
    %c0_4 = arith.constant 0 : index
    %7 = vector.load %arg3[%c0_2, %c0_3, %c0_4] : memref<9x128x128xbf16, #tpu.memory_space<vmem>>, vector<1x128x128xbf16>
    %8 = vector.shape_cast %7 : vector<1x128x128xbf16> to vector<128x128xbf16>
    %cst = arith.constant dense<0.000000e+00> : vector<64x128xf32>
    %9 = tpu.matmul %6, %8, %cst {dimension_numbers = #tpu.dot_dimension_numbers<[1], [0], [0], [1], [0, 0, 1, 1], [], []>} : vector<64x128xbf16>, vector<128x128xbf16>, vector<64x128xf32> -> vector<64x128xf32>
    %c0_5 = arith.constant 0 : index
    %c0_6 = arith.constant 0 : index
    %10 = vector.load %arg5[%c0_5, %c0_6] : memref<64x128xf32, #tpu.memory_space<vmem>>, vector<64x128xf32>
    tpu.vector_store %arg5[%c0_5, %c0_6], %9 {strides = array<i32>} : memref<64x128xf32, #tpu.memory_space<vmem>>, vector<64x128xf32>,
    %c0_i32_7 = arith.constant 0 : i32
    %11 = arith.addi %1, %c0_i32_7 : i32
    %c0_8 = arith.constant 0 : index
    %12 = arith.index_cast %11 : i32 to index
    %c1 = arith.constant 1 : index
    %c0_9 = arith.constant 0 : index
    %13 = vector.load %arg2[%c0_8, %12, %c1, %c0_9] : memref<1x10x10x128xbf16, #tpu.memory_space<vmem>>, vector<1x8x8x128xbf16>
    %14 = vector.shape_cast %13 : vector<1x8x8x128xbf16> to vector<8x8x128xbf16>
    %15 = vector.shape_cast %14 : vector<8x8x128xbf16> to vector<64x128xbf16>
    %c1_10 = arith.constant 1 : index
    %c0_11 = arith.constant 0 : index
    %c0_12 = arith.constant 0 : index
    %16 = vector.load %arg3[%c1_10, %c0_11, %c0_12] : memref<9x128x128xbf16, #tpu.memory_space<vmem>>, vector<1x128x128xbf16>
    %17 = vector.shape_cast %16 : vector<1x128x128xbf16> to vector<128x128xbf16>
    %cst_13 = arith.constant dense<0.000000e+00> : vector<64x128xf32>
    %18 = tpu.matmul %15, %17, %cst_13 {dimension_numbers = #tpu.dot_dimension_numbers<[1], [0], [0], [1], [0, 0, 1, 1], [], []>} : vector<64x128xbf16>, vector<128x128xbf16>, vector<64x128xf32> -> vector<64x128xf32>
    %c0_14 = arith.constant 0 : index
    %c0_15 = arith.constant 0 : index
    %19 = vector.load %arg5[%c0_14, %c0_15] : memref<64x128xf32, #tpu.memory_space<vmem>>, vector<64x128xf32>
    %20 = arith.addf %19, %18 : vector<64x128xf32>
    %c0_16 = arith.constant 0 : index
    %c0_17 = arith.constant 0 : index
    %21 = vector.load %arg5[%c0_16, %c0_17] : memref<64x128xf32, #tpu.memory_space<vmem>>, vector<64x128xf32>
    tpu.vector_store %arg5[%c0_16, %c0_17], %20 {strides = array<i32>} : memref<64x128xf32, #tpu.memory_space<vmem>>, vector<64x128xf32>,
    %c0_i32_18 = arith.constant 0 : i32
    %22 = arith.addi %1, %c0_i32_18 : i32
    %c0_19 = arith.constant 0 : index
    %23 = arith.index_cast %22 : i32 to index
    %c2 = arith.constant 2 : index
    %c0_20 = arith.constant 0 : index
    %24 = vector.load %arg2[%c0_19, %23, %c2, %c0_20] : memref<1x10x10x128xbf16, #tpu.memory_space<vmem>>, vector<1x8x8x128xbf16>
    %25 = vector.shape_cast %24 : vector<1x8x8x128xbf16> to vector<8x8x128xbf16>
    %26 = vector.shape_cast %25 : vector<8x8x128xbf16> to vector<64x128xbf16>
    %c2_21 = arith.constant 2 : index
    %c0_22 = arith.constant 0 : index
    %c0_23 = arith.constant 0 : index
    %27 = vector.load %arg3[%c2_21, %c0_22, %c0_23] : memref<9x128x128xbf16, #tpu.memory_space<vmem>>, vector<1x128x128xbf16>
    %28 = vector.shape_cast %27 : vector<1x128x128xbf16> to vector<128x128xbf16>
    %cst_24 = arith.constant dense<0.000000e+00> : vector<64x128xf32>
    %29 = tpu.matmul %26, %28, %cst_24 {dimension_numbers = #tpu.dot_dimension_numbers<[1], [0], [0], [1], [0, 0, 1, 1], [], []>} : vector<64x128xbf16>, vector<128x128xbf16>, vector<64x128xf32> -> vector<64x128xf32>
    %c0_25 = arith.constant 0 : index
    %c0_26 = arith.constant 0 : index
    %30 = vector.load %arg5[%c0_25, %c0_26] : memref<64x128xf32, #tpu.memory_space<vmem>>, vector<64x128xf32>
    %31 = arith.addf %30, %29 : vector<64x128xf32>
    %c0_27 = arith.constant 0 : index
    %c0_28 = arith.constant 0 : index
    %32 = vector.load %arg5[%c0_27, %c0_28] : memref<64x128xf32, #tpu.memory_space<vmem>>, vector<64x128xf32>
    tpu.vector_store %arg5[%c0_27, %c0_28], %31 {strides = array<i32>} : memref<64x128xf32, #tpu.memory_space<vmem>>, vector<64x128xf32>,
    %c1_i32 = arith.constant 1 : i32
    %33 = arith.addi %1, %c1_i32 : i32
    %c0_29 = arith.constant 0 : index
    %34 = arith.index_cast %33 : i32 to index
    %c0_30 = arith.constant 0 : index
    %c0_31 = arith.constant 0 : index
    %35 = vector.load %arg2[%c0_29, %34, %c0_30, %c0_31] : memref<1x10x10x128xbf16, #tpu.memory_space<vmem>>, vector<1x8x8x128xbf16>
    %36 = vector.shape_cast %35 : vector<1x8x8x128xbf16> to vector<8x8x128xbf16>
    %37 = vector.shape_cast %36 : vector<8x8x128xbf16> to vector<64x128xbf16>
    %c3 = arith.constant 3 : index
    %c0_32 = arith.constant 0 : index
    %c0_33 = arith.constant 0 : index
    %38 = vector.load %arg3[%c3, %c0_32, %c0_33] : memref<9x128x128xbf16, #tpu.memory_space<vmem>>, vector<1x128x128xbf16>
    %39 = vector.shape_cast %38 : vector<1x128x128xbf16> to vector<128x128xbf16>
    %cst_34 = arith.constant dense<0.000000e+00> : vector<64x128xf32>
    %40 = tpu.matmul %37, %39, %cst_34 {dimension_numbers = #tpu.dot_dimension_numbers<[1], [0], [0], [1], [0, 0, 1, 1], [], []>} : vector<64x128xbf16>, vector<128x128xbf16>, vector<64x128xf32> -> vector<64x128xf32>
    %c0_35 = arith.constant 0 : index
    %c0_36 = arith.constant 0 : index
    %41 = vector.load %arg5[%c0_35, %c0_36] : memref<64x128xf32, #tpu.memory_space<vmem>>, vector<64x128xf32>
    %42 = arith.addf %41, %40 : vector<64x128xf32>
    %c0_37 = arith.constant 0 : index
    %c0_38 = arith.constant 0 : index
    %43 = vector.load %arg5[%c0_37, %c0_38] : memref<64x128xf32, #tpu.memory_space<vmem>>, vector<64x128xf32>
    tpu.vector_store %arg5[%c0_37, %c0_38], %42 {strides = array<i32>} : memref<64x128xf32, #tpu.memory_space<vmem>>, vector<64x128xf32>,
    %c1_i32_39 = arith.constant 1 : i32
    %44 = arith.addi %1, %c1_i32_39 : i32
    %c0_40 = arith.constant 0 : index
    %45 = arith.index_cast %44 : i32 to index
    %c1_41 = arith.constant 1 : index
    %c0_42 = arith.constant 0 : index
    %46 = vector.load %arg2[%c0_40, %45, %c1_41, %c0_42] : memref<1x10x10x128xbf16, #tpu.memory_space<vmem>>, vector<1x8x8x128xbf16>
    %47 = vector.shape_cast %46 : vector<1x8x8x128xbf16> to vector<8x8x128xbf16>
    %48 = vector.shape_cast %47 : vector<8x8x128xbf16> to vector<64x128xbf16>
    %c4 = arith.constant 4 : index
    %c0_43 = arith.constant 0 : index
    %c0_44 = arith.constant 0 : index
    %49 = vector.load %arg3[%c4, %c0_43, %c0_44] : memref<9x128x128xbf16, #tpu.memory_space<vmem>>, vector<1x128x128xbf16>
    %50 = vector.shape_cast %49 : vector<1x128x128xbf16> to vector<128x128xbf16>
    %cst_45 = arith.constant dense<0.000000e+00> : vector<64x128xf32>
    %51 = tpu.matmul %48, %50, %cst_45 {dimension_numbers = #tpu.dot_dimension_numbers<[1], [0], [0], [1], [0, 0, 1, 1], [], []>} : vector<64x128xbf16>, vector<128x128xbf16>, vector<64x128xf32> -> vector<64x128xf32>
    %c0_46 = arith.constant 0 : index
    %c0_47 = arith.constant 0 : index
    %52 = vector.load %arg5[%c0_46, %c0_47] : memref<64x128xf32, #tpu.memory_space<vmem>>, vector<64x128xf32>
    %53 = arith.addf %52, %51 : vector<64x128xf32>
    %c0_48 = arith.constant 0 : index
    %c0_49 = arith.constant 0 : index
    %54 = vector.load %arg5[%c0_48, %c0_49] : memref<64x128xf32, #tpu.memory_space<vmem>>, vector<64x128xf32>
    tpu.vector_store %arg5[%c0_48, %c0_49], %53 {strides = array<i32>} : memref<64x128xf32, #tpu.memory_space<vmem>>, vector<64x128xf32>,
    %c1_i32_50 = arith.constant 1 : i32
    %55 = arith.addi %1, %c1_i32_50 : i32
    %c0_51 = arith.constant 0 : index
    %56 = arith.index_cast %55 : i32 to index
    %c2_52 = arith.constant 2 : index
    %c0_53 = arith.constant 0 : index
    %57 = vector.load %arg2[%c0_51, %56, %c2_52, %c0_53] : memref<1x10x10x128xbf16, #tpu.memory_space<vmem>>, vector<1x8x8x128xbf16>
    %58 = vector.shape_cast %57 : vector<1x8x8x128xbf16> to vector<8x8x128xbf16>
    %59 = vector.shape_cast %58 : vector<8x8x128xbf16> to vector<64x128xbf16>
    %c5 = arith.constant 5 : index
    %c0_54 = arith.constant 0 : index
    %c0_55 = arith.constant 0 : index
    %60 = vector.load %arg3[%c5, %c0_54, %c0_55] : memref<9x128x128xbf16, #tpu.memory_space<vmem>>, vector<1x128x128xbf16>
    %61 = vector.shape_cast %60 : vector<1x128x128xbf16> to vector<128x128xbf16>
    %cst_56 = arith.constant dense<0.000000e+00> : vector<64x128xf32>
    %62 = tpu.matmul %59, %61, %cst_56 {dimension_numbers = #tpu.dot_dimension_numbers<[1], [0], [0], [1], [0, 0, 1, 1], [], []>} : vector<64x128xbf16>, vector<128x128xbf16>, vector<64x128xf32> -> vector<64x128xf32>
    %c0_57 = arith.constant 0 : index
    %c0_58 = arith.constant 0 : index
    %63 = vector.load %arg5[%c0_57, %c0_58] : memref<64x128xf32, #tpu.memory_space<vmem>>, vector<64x128xf32>
    %64 = arith.addf %63, %62 : vector<64x128xf32>
    %c0_59 = arith.constant 0 : index
    %c0_60 = arith.constant 0 : index
    %65 = vector.load %arg5[%c0_59, %c0_60] : memref<64x128xf32, #tpu.memory_space<vmem>>, vector<64x128xf32>
    tpu.vector_store %arg5[%c0_59, %c0_60], %64 {strides = array<i32>} : memref<64x128xf32, #tpu.memory_space<vmem>>, vector<64x128xf32>,
    %c2_i32 = arith.constant 2 : i32
    %66 = arith.addi %1, %c2_i32 : i32
    %c0_61 = arith.constant 0 : index
    %67 = arith.index_cast %66 : i32 to index
    %c0_62 = arith.constant 0 : index
    %c0_63 = arith.constant 0 : index
    %68 = vector.load %arg2[%c0_61, %67, %c0_62, %c0_63] : memref<1x10x10x128xbf16, #tpu.memory_space<vmem>>, vector<1x8x8x128xbf16>
    %69 = vector.shape_cast %68 : vector<1x8x8x128xbf16> to vector<8x8x128xbf16>
    %70 = vector.shape_cast %69 : vector<8x8x128xbf16> to vector<64x128xbf16>
    %c6 = arith.constant 6 : index
    %c0_64 = arith.constant 0 : index
    %c0_65 = arith.constant 0 : index
    %71 = vector.load %arg3[%c6, %c0_64, %c0_65] : memref<9x128x128xbf16, #tpu.memory_space<vmem>>, vector<1x128x128xbf16>
    %72 = vector.shape_cast %71 : vector<1x128x128xbf16> to vector<128x128xbf16>
    %cst_66 = arith.constant dense<0.000000e+00> : vector<64x128xf32>
    %73 = tpu.matmul %70, %72, %cst_66 {dimension_numbers = #tpu.dot_dimension_numbers<[1], [0], [0], [1], [0, 0, 1, 1], [], []>} : vector<64x128xbf16>, vector<128x128xbf16>, vector<64x128xf32> -> vector<64x128xf32>
    %c0_67 = arith.constant 0 : index
    %c0_68 = arith.constant 0 : index
    %74 = vector.load %arg5[%c0_67, %c0_68] : memref<64x128xf32, #tpu.memory_space<vmem>>, vector<64x128xf32>
    %75 = arith.addf %74, %73 : vector<64x128xf32>
    %c0_69 = arith.constant 0 : index
    %c0_70 = arith.constant 0 : index
    %76 = vector.load %arg5[%c0_69, %c0_70] : memref<64x128xf32, #tpu.memory_space<vmem>>, vector<64x128xf32>
    tpu.vector_store %arg5[%c0_69, %c0_70], %75 {strides = array<i32>} : memref<64x128xf32, #tpu.memory_space<vmem>>, vector<64x128xf32>,
    %c2_i32_71 = arith.constant 2 : i32
    %77 = arith.addi %1, %c2_i32_71 : i32
    %c0_72 = arith.constant 0 : index
    %78 = arith.index_cast %77 : i32 to index
    %c1_73 = arith.constant 1 : index
    %c0_74 = arith.constant 0 : index
    %79 = vector.load %arg2[%c0_72, %78, %c1_73, %c0_74] : memref<1x10x10x128xbf16, #tpu.memory_space<vmem>>, vector<1x8x8x128xbf16>
    %80 = vector.shape_cast %79 : vector<1x8x8x128xbf16> to vector<8x8x128xbf16>
    %81 = vector.shape_cast %80 : vector<8x8x128xbf16> to vector<64x128xbf16>
    %c7 = arith.constant 7 : index
    %c0_75 = arith.constant 0 : index
    %c0_76 = arith.constant 0 : index
    %82 = vector.load %arg3[%c7, %c0_75, %c0_76] : memref<9x128x128xbf16, #tpu.memory_space<vmem>>, vector<1x128x128xbf16>
    %83 = vector.shape_cast %82 : vector<1x128x128xbf16> to vector<128x128xbf16>
    %cst_77 = arith.constant dense<0.000000e+00> : vector<64x128xf32>
    %84 = tpu.matmul %81, %83, %cst_77 {dimension_numbers = #tpu.dot_dimension_numbers<[1], [0], [0], [1], [0, 0, 1, 1], [], []>} : vector<64x128xbf16>, vector<128x128xbf16>, vector<64x128xf32> -> vector<64x128xf32>
    %c0_78 = arith.constant 0 : index
    %c0_79 = arith.constant 0 : index
    %85 = vector.load %arg5[%c0_78, %c0_79] : memref<64x128xf32, #tpu.memory_space<vmem>>, vector<64x128xf32>
    %86 = arith.addf %85, %84 : vector<64x128xf32>
    %c0_80 = arith.constant 0 : index
    %c0_81 = arith.constant 0 : index
    %87 = vector.load %arg5[%c0_80, %c0_81] : memref<64x128xf32, #tpu.memory_space<vmem>>, vector<64x128xf32>
    tpu.vector_store %arg5[%c0_80, %c0_81], %86 {strides = array<i32>} : memref<64x128xf32, #tpu.memory_space<vmem>>, vector<64x128xf32>,
    %c2_i32_82 = arith.constant 2 : i32
    %88 = arith.addi %1, %c2_i32_82 : i32
    %c0_83 = arith.constant 0 : index
    %89 = arith.index_cast %88 : i32 to index
    %c2_84 = arith.constant 2 : index
    %c0_85 = arith.constant 0 : index
    %90 = vector.load %arg2[%c0_83, %89, %c2_84, %c0_85] : memref<1x10x10x128xbf16, #tpu.memory_space<vmem>>, vector<1x8x8x128xbf16>
    %91 = vector.shape_cast %90 : vector<1x8x8x128xbf16> to vector<8x8x128xbf16>
    %92 = vector.shape_cast %91 : vector<8x8x128xbf16> to vector<64x128xbf16>
    %c8 = arith.constant 8 : index
    %c0_86 = arith.constant 0 : index
    %c0_87 = arith.constant 0 : index
    %93 = vector.load %arg3[%c8, %c0_86, %c0_87] : memref<9x128x128xbf16, #tpu.memory_space<vmem>>, vector<1x128x128xbf16>
    %94 = vector.shape_cast %93 : vector<1x128x128xbf16> to vector<128x128xbf16>
    %cst_88 = arith.constant dense<0.000000e+00> : vector<64x128xf32>
    %95 = tpu.matmul %92, %94, %cst_88 {dimension_numbers = #tpu.dot_dimension_numbers<[1], [0], [0], [1], [0, 0, 1, 1], [], []>} : vector<64x128xbf16>, vector<128x128xbf16>, vector<64x128xf32> -> vector<64x128xf32>
    %c0_89 = arith.constant 0 : index
    %c0_90 = arith.constant 0 : index
    %96 = vector.load %arg5[%c0_89, %c0_90] : memref<64x128xf32, #tpu.memory_space<vmem>>, vector<64x128xf32>
    %97 = arith.addf %96, %95 : vector<64x128xf32>
    %c0_91 = arith.constant 0 : index
    %c0_92 = arith.constant 0 : index
    %98 = vector.load %arg5[%c0_91, %c0_92] : memref<64x128xf32, #tpu.memory_space<vmem>>, vector<64x128xf32>
    tpu.vector_store %arg5[%c0_91, %c0_92], %97 {strides = array<i32>} : memref<64x128xf32, #tpu.memory_space<vmem>>, vector<64x128xf32>,
    %c0_93 = arith.constant 0 : index
    %c0_94 = arith.constant 0 : index
    %99 = vector.load %arg5[%c0_93, %c0_94] : memref<64x128xf32, #tpu.memory_space<vmem>>, vector<64x128xf32>
    %100 = vector.shape_cast %99 : vector<64x128xf32> to vector<1x8x8x128xf32>
    %101 = arith.truncf %100 : vector<1x8x8x128xf32> to vector<1x8x8x128xbf16>
    %c0_95 = arith.constant 0 : index
    %c0_96 = arith.constant 0 : index
    %c0_97 = arith.constant 0 : index
    %c0_98 = arith.constant 0 : index
    %102 = vector.load %arg4[%c0_95, %c0_96, %c0_97, %c0_98] : memref<1x8x8x128xbf16, #tpu.memory_space<vmem>>, vector<1x8x8x128xbf16>
    tpu.vector_store %arg4[%c0_95, %c0_96, %c0_97, %c0_98], %101 {strides = array<i32>} : memref<1x8x8x128xbf16, #tpu.memory_space<vmem>>, vector<1x8x8x128xbf16>,
    return
  }
  func.func @transform_0(%arg0: i32, %arg1: i32) -> (i32, i32, i32, i32) {
    %c0_i32 = arith.constant 0 : i32
    %c0_i32_0 = arith.constant 0 : i32
    %c0_i32_1 = arith.constant 0 : i32
    %c0_i32_2 = arith.constant 0 : i32
    return %arg0, %c0_i32, %c0_i32_0, %c0_i32_1 : i32, i32, i32, i32
  }
  func.func @transform_1(%arg0: i32, %arg1: i32) -> (i32, i32, i32) {
    %c0_i32 = arith.constant 0 : i32
    %c0_i32_0 = arith.constant 0 : i32
    %c0_i32_1 = arith.constant 0 : i32
    %c0_i32_2 = arith.constant 0 : i32
    return %c0_i32, %c0_i32_0, %c0_i32_1 : i32, i32, i32
  }
  func.func @transform_2(%arg0: i32, %arg1: i32) -> (i32, i32, i32, i32) {
    %c0_i32 = arith.constant 0 : i32
    %c0_i32_0 = arith.constant 0 : i32
    %c0_i32_1 = arith.constant 0 : i32
    return %arg0, %arg1, %c0_i32, %c0_i32_0 : i32, i32, i32, i32
  }
}

module attributes {stable_mosaic.version = 11 : i64} {
  func.func @_bn_apply_kernel(%arg0: i32, %arg1: memref<128x128xbf16, #tpu.memory_space<vmem>>, %arg2: memref<1x128xf32, #tpu.memory_space<vmem>>, %arg3: memref<1x128xf32, #tpu.memory_space<vmem>>, %arg4: memref<128x128xbf16, #tpu.memory_space<vmem>>) attributes {dimension_semantics = [#tpu.dimension_semantics<parallel>], iteration_bounds = array<i64: 1>, scalar_prefetch = 0 : i64, scratch_operands = 0 : i64, tpu.core_type = #tpu.core_type<tc>, window_params = [{transform_indices = @transform_0, window_bounds = array<i64: 128, 128>}, {pipeline_mode = #tpu.pipeline_mode<synchronous>, transform_indices = @transform_1, window_bounds = array<i64: 1, 128>}, {pipeline_mode = #tpu.pipeline_mode<synchronous>, transform_indices = @transform_2, window_bounds = array<i64: 1, 128>}, {transform_indices = @transform_3, window_bounds = array<i64: 128, 128>}]} {
    %c0 = arith.constant 0 : index
    %c0_0 = arith.constant 0 : index
    %0 = vector.load %arg1[%c0, %c0_0] : memref<128x128xbf16, #tpu.memory_space<vmem>>, vector<128x128xbf16>
    %1 = arith.extf %0 : vector<128x128xbf16> to vector<128x128xf32>
    %c0_1 = arith.constant 0 : index
    %c0_2 = arith.constant 0 : index
    %2 = vector.load %arg2[%c0_1, %c0_2] : memref<1x128xf32, #tpu.memory_space<vmem>>, vector<1x128xf32>
    %3 = vector.broadcast %2 : vector<1x128xf32> to vector<128x128xf32>
    %4 = arith.mulf %1, %3 : vector<128x128xf32>
    %c0_3 = arith.constant 0 : index
    %c0_4 = arith.constant 0 : index
    %5 = vector.load %arg3[%c0_3, %c0_4] : memref<1x128xf32, #tpu.memory_space<vmem>>, vector<1x128xf32>
    %6 = vector.broadcast %5 : vector<1x128xf32> to vector<128x128xf32>
    %7 = arith.addf %4, %6 : vector<128x128xf32>
    %8 = arith.truncf %7 : vector<128x128xf32> to vector<128x128xbf16>
    %c0_5 = arith.constant 0 : index
    %c0_6 = arith.constant 0 : index
    %9 = vector.load %arg4[%c0_5, %c0_6] : memref<128x128xbf16, #tpu.memory_space<vmem>>, vector<128x128xbf16>
    tpu.vector_store %arg4[%c0_5, %c0_6], %8 {strides = array<i32>} : memref<128x128xbf16, #tpu.memory_space<vmem>>, vector<128x128xbf16>,
    return
  }
  func.func @transform_0(%arg0: i32) -> (i32, i32) {
    %c0_i32 = arith.constant 0 : i32
    %c0_i32_0 = arith.constant 0 : i32
    return %arg0, %c0_i32 : i32, i32
  }
  func.func @transform_1(%arg0: i32) -> (i32, i32) {
    %c0_i32 = arith.constant 0 : i32
    %c0_i32_0 = arith.constant 0 : i32
    %c0_i32_1 = arith.constant 0 : i32
    return %c0_i32, %c0_i32_0 : i32, i32
  }
  func.func @transform_2(%arg0: i32) -> (i32, i32) {
    %c0_i32 = arith.constant 0 : i32
    %c0_i32_0 = arith.constant 0 : i32
    %c0_i32_1 = arith.constant 0 : i32
    return %c0_i32, %c0_i32_0 : i32, i32
  }
  func.func @transform_3(%arg0: i32) -> (i32, i32) {
    %c0_i32 = arith.constant 0 : i32
    %c0_i32_0 = arith.constant 0 : i32
    return %arg0, %c0_i32 : i32, i32
  }
}

module attributes {stable_mosaic.version = 11 : i64} {
  func.func @_matmul_kernel(%arg0: i32, %arg1: i32, %arg2: i32, %arg3: memref<128x128xbf16, #tpu.memory_space<vmem>>, %arg4: memref<128x128xbf16, #tpu.memory_space<vmem>>, %arg5: memref<128x128xbf16, #tpu.memory_space<vmem>>, %arg6: memref<128x128xf32, #tpu.memory_space<vmem>>) attributes {dimension_semantics = [#tpu.dimension_semantics<parallel>, #tpu.dimension_semantics<parallel>, #tpu.dimension_semantics<arbitrary>], iteration_bounds = array<i64: 1, 1, 1>, scalar_prefetch = 0 : i64, scratch_operands = 1 : i64, tpu.core_type = #tpu.core_type<tc>, window_params = [{transform_indices = @transform_0, window_bounds = array<i64: 128, 128>}, {transform_indices = @transform_1, window_bounds = array<i64: 128, 128>}, {transform_indices = @transform_2, window_bounds = array<i64: 128, 128>}]} {
    %c0_i32 = arith.constant 0 : i32
    %0 = arith.cmpi eq, %arg2, %c0_i32 : i32
    %1 = arith.extui %0 : i1 to i32
    %c0_i32_0 = arith.constant 0 : i32
    %2 = arith.cmpi ne, %1, %c0_i32_0 : i32
    scf.if %2 {
      %cst_10 = arith.constant 0.000000e+00 : f32
      %12 = vector.broadcast %cst_10 : f32 to vector<128x128xf32>
      %c0_11 = arith.constant 0 : index
      %c0_12 = arith.constant 0 : index
      %13 = vector.load %arg6[%c0_11, %c0_12] : memref<128x128xf32, #tpu.memory_space<vmem>>, vector<128x128xf32>
      tpu.vector_store %arg6[%c0_11, %c0_12], %12 {strides = array<i32>} : memref<128x128xf32, #tpu.memory_space<vmem>>, vector<128x128xf32>,
    } else {
    }
    %c0 = arith.constant 0 : index
    %c0_1 = arith.constant 0 : index
    %3 = vector.load %arg6[%c0, %c0_1] : memref<128x128xf32, #tpu.memory_space<vmem>>, vector<128x128xf32>
    %c0_2 = arith.constant 0 : index
    %c0_3 = arith.constant 0 : index
    %4 = vector.load %arg3[%c0_2, %c0_3] : memref<128x128xbf16, #tpu.memory_space<vmem>>, vector<128x128xbf16>
    %c0_4 = arith.constant 0 : index
    %c0_5 = arith.constant 0 : index
    %5 = vector.load %arg4[%c0_4, %c0_5] : memref<128x128xbf16, #tpu.memory_space<vmem>>, vector<128x128xbf16>
    %cst = arith.constant dense<0.000000e+00> : vector<128x128xf32>
    %6 = tpu.matmul %4, %5, %cst {dimension_numbers = #tpu.dot_dimension_numbers<[1], [0], [0], [1], [0, 0, 1, 1], [], []>} : vector<128x128xbf16>, vector<128x128xbf16>, vector<128x128xf32> -> vector<128x128xf32>
    %7 = arith.addf %3, %6 : vector<128x128xf32>
    %c0_6 = arith.constant 0 : index
    %c0_7 = arith.constant 0 : index
    %8 = vector.load %arg6[%c0_6, %c0_7] : memref<128x128xf32, #tpu.memory_space<vmem>>, vector<128x128xf32>
    tpu.vector_store %arg6[%c0_6, %c0_7], %7 {strides = array<i32>} : memref<128x128xf32, #tpu.memory_space<vmem>>, vector<128x128xf32>,
    %c0_i32_8 = arith.constant 0 : i32
    %9 = arith.cmpi eq, %arg2, %c0_i32_8 : i32
    %10 = arith.extui %9 : i1 to i32
    %c0_i32_9 = arith.constant 0 : i32
    %11 = arith.cmpi ne, %10, %c0_i32_9 : i32
    scf.if %11 {
      %c0_10 = arith.constant 0 : index
      %c0_11 = arith.constant 0 : index
      %12 = vector.load %arg6[%c0_10, %c0_11] : memref<128x128xf32, #tpu.memory_space<vmem>>, vector<128x128xf32>
      %13 = arith.truncf %12 : vector<128x128xf32> to vector<128x128xbf16>
      %c0_12 = arith.constant 0 : index
      %c0_13 = arith.constant 0 : index
      %14 = vector.load %arg5[%c0_12, %c0_13] : memref<128x128xbf16, #tpu.memory_space<vmem>>, vector<128x128xbf16>
      tpu.vector_store %arg5[%c0_12, %c0_13], %13 {strides = array<i32>} : memref<128x128xbf16, #tpu.memory_space<vmem>>, vector<128x128xbf16>,
    } else {
    }
    return
  }
  func.func @transform_0(%arg0: i32, %arg1: i32, %arg2: i32) -> (i32, i32) {
    %c0_i32 = arith.constant 0 : i32
    return %arg0, %arg2 : i32, i32
  }
  func.func @transform_1(%arg0: i32, %arg1: i32, %arg2: i32) -> (i32, i32) {
    %c0_i32 = arith.constant 0 : i32
    return %arg2, %arg1 : i32, i32
  }
  func.func @transform_2(%arg0: i32, %arg1: i32, %arg2: i32) -> (i32, i32) {
    %c0_i32 = arith.constant 0 : i32
    return %arg0, %arg1 : i32, i32
  }
}

module attributes {stable_mosaic.version = 11 : i64} {
  func.func @_bn_apply_kernel(%arg0: i32, %arg1: memref<128x128xbf16, #tpu.memory_space<vmem>>, %arg2: memref<128x128xbf16, #tpu.memory_space<vmem>>, %arg3: memref<1x128xf32, #tpu.memory_space<vmem>>, %arg4: memref<1x128xf32, #tpu.memory_space<vmem>>, %arg5: memref<128x128xbf16, #tpu.memory_space<vmem>>) attributes {dimension_semantics = [#tpu.dimension_semantics<parallel>], iteration_bounds = array<i64: 1>, scalar_prefetch = 0 : i64, scratch_operands = 0 : i64, tpu.core_type = #tpu.core_type<tc>, window_params = [{transform_indices = @transform_0, window_bounds = array<i64: 128, 128>}, {transform_indices = @transform_1, window_bounds = array<i64: 128, 128>}, {pipeline_mode = #tpu.pipeline_mode<synchronous>, transform_indices = @transform_2, window_bounds = array<i64: 1, 128>}, {pipeline_mode = #tpu.pipeline_mode<synchronous>, transform_indices = @transform_3, window_bounds = array<i64: 1, 128>}, {transform_indices = @transform_4, window_bounds = array<i64: 128, 128>}]} {
    %c0 = arith.constant 0 : index
    %c0_0 = arith.constant 0 : index
    %0 = vector.load %arg1[%c0, %c0_0] : memref<128x128xbf16, #tpu.memory_space<vmem>>, vector<128x128xbf16>
    %1 = arith.extf %0 : vector<128x128xbf16> to vector<128x128xf32>
    %c0_1 = arith.constant 0 : index
    %c0_2 = arith.constant 0 : index
    %2 = vector.load %arg3[%c0_1, %c0_2] : memref<1x128xf32, #tpu.memory_space<vmem>>, vector<1x128xf32>
    %3 = vector.broadcast %2 : vector<1x128xf32> to vector<128x128xf32>
    %4 = arith.mulf %1, %3 : vector<128x128xf32>
    %c0_3 = arith.constant 0 : index
    %c0_4 = arith.constant 0 : index
    %5 = vector.load %arg4[%c0_3, %c0_4] : memref<1x128xf32, #tpu.memory_space<vmem>>, vector<1x128xf32>
    %6 = vector.broadcast %5 : vector<1x128xf32> to vector<128x128xf32>
    %7 = arith.addf %4, %6 : vector<128x128xf32>
    %c0_5 = arith.constant 0 : index
    %c0_6 = arith.constant 0 : index
    %8 = vector.load %arg2[%c0_5, %c0_6] : memref<128x128xbf16, #tpu.memory_space<vmem>>, vector<128x128xbf16>
    %9 = arith.extf %8 : vector<128x128xbf16> to vector<128x128xf32>
    %10 = arith.addf %7, %9 : vector<128x128xf32>
    %cst = arith.constant 0.000000e+00 : f32
    %11 = vector.broadcast %cst : f32 to vector<128x128xf32>
    %12 = arith.maximumf %10, %11 : vector<128x128xf32>
    %13 = arith.truncf %12 : vector<128x128xf32> to vector<128x128xbf16>
    %c0_7 = arith.constant 0 : index
    %c0_8 = arith.constant 0 : index
    %14 = vector.load %arg5[%c0_7, %c0_8] : memref<128x128xbf16, #tpu.memory_space<vmem>>, vector<128x128xbf16>
    tpu.vector_store %arg5[%c0_7, %c0_8], %13 {strides = array<i32>} : memref<128x128xbf16, #tpu.memory_space<vmem>>, vector<128x128xbf16>,
    return
  }
  func.func @transform_0(%arg0: i32) -> (i32, i32) {
    %c0_i32 = arith.constant 0 : i32
    %c0_i32_0 = arith.constant 0 : i32
    return %arg0, %c0_i32 : i32, i32
  }
  func.func @transform_1(%arg0: i32) -> (i32, i32) {
    %c0_i32 = arith.constant 0 : i32
    %c0_i32_0 = arith.constant 0 : i32
    return %arg0, %c0_i32 : i32, i32
  }
  func.func @transform_2(%arg0: i32) -> (i32, i32) {
    %c0_i32 = arith.constant 0 : i32
    %c0_i32_0 = arith.constant 0 : i32
    %c0_i32_1 = arith.constant 0 : i32
    return %c0_i32, %c0_i32_0 : i32, i32
  }
  func.func @transform_3(%arg0: i32) -> (i32, i32) {
    %c0_i32 = arith.constant 0 : i32
    %c0_i32_0 = arith.constant 0 : i32
    %c0_i32_1 = arith.constant 0 : i32
    return %c0_i32, %c0_i32_0 : i32, i32
  }
  func.func @transform_4(%arg0: i32) -> (i32, i32) {
    %c0_i32 = arith.constant 0 : i32
    %c0_i32_0 = arith.constant 0 : i32
    return %arg0, %c0_i32 : i32, i32
  }
}

</mosaic_0001>

<llo_original>
// kernel: block_group_forward.16
$region0: #{block_group_forward.16}
  #allocation0 [shape = 'u32[]', space=smem, size = 0x4, offset = 0x4, fixed_abs, tag = 'smem constant byte address 0x4 - core index']
  #allocation1 [shape = 'u32[144,128]{1,0:T(1,128)}', space=vmem, size = 0x12000, scoped, tag = 'internal scratch']
  #allocation2 [shape = 'f32[1,128]{1,0:T(1,128)}', space=vmem, size = 0x200, scoped, tag = 'scratch operand']
  #allocation3 [shape = 'f32[1,128]{1,0:T(1,128)}', space=vmem, size = 0x200, scoped, tag = 'scratch operand']
  %s0 = inlined_call_operand.vmem [shape: bf16[128,128], index: 0, kind: input, shape index: {}]
  %s1 = inlined_call_operand.vmem [shape: f32[1,128], index: 1, kind: input, shape index: {}]
  %s2 = inlined_call_operand.vmem [shape: f32[1,128], index: 2, kind: input, shape index: {}]
  %s3 = inlined_call_operand.vmem [shape: f32[1,128], index: 3, kind: output, shape index: {0}]
  %s4 = inlined_call_operand.vmem [shape: f32[1,128], index: 4, kind: output, shape index: {1}]
  %5 = xla_tuple %s3, %s4
  %s6 = sld [smem:[#allocation0]]
  $region38: #{block_group_forward.16} parent=0
    _
  %s8 = ssub.s32 1, %s6
  %s9 = scalar_select 0, %s8, %s6
  // Predicated region
  $region2: #{block_group_forward.16} parent=0 // pred_check
    _
  $region3: #{block_group_forward.16} parent=0 // pred_check_branch
    %11 = sbr.rel (0) target = $region5
  $region4: #{block_group_forward.16} parent=0 // pred_region
    _
  $region5: #{block_group_forward.16} parent=0 // pred_fallthru
    _
  // Predicated region
  $region6: #{block_group_forward.16} parent=0 // pred_check
    _
  $region7: #{block_group_forward.16} parent=0 // pred_check_branch
    %13 = sbr.rel (0) target = $region9
  $region8: #{block_group_forward.16} parent=0 // pred_region
    _
  $region9: #{block_group_forward.16} parent=0 // pred_fallthru
    _
  // Predicated region
  $region10: #{block_group_forward.16} parent=0 // pred_check
    _
  $region11: #{block_group_forward.16} parent=0 // pred_check_branch
    %15 = sbr.rel (0) target = $region13
  $region12: #{block_group_forward.16} parent=0 // pred_region
    _
  $region13: #{block_group_forward.16} parent=0 // pred_fallthru
    _
  %p16 = scmp.eq.s32.totalorder 0, 0
  // Predicated region
  $region14: #{block_group_forward.16} parent=0 // pred_check
    %p17 = pneg %p16
  $region15: #{block_group_forward.16} parent=0 // pred_check_branch
    %19 = sbr.rel (%p17) target = $region17
  $region16: #{block_group_forward.16} parent=0 // pred_region
    %20 = vst [vmem:[#allocation2] sm:$0x1] 0.0
    %21 = vst [vmem:[#allocation3] sm:$0x1] 0.0
  $region17: #{block_group_forward.16} parent=0 // pred_fallthru
    _
  %v22 = vld [vmem:[%s0] sm:$0xf]
  %v23 = vld [vmem:[%s0 + $0x4] sm:$0xf]
  %v24 = vld [vmem:[%s0 + $0x8] sm:$0xf]
  %v25 = vld [vmem:[%s0 + $0xc] sm:$0xf]
  %v26 = vld [vmem:[%s0 + $0x10] sm:$0xf]
  %v27 = vld [vmem:[%s0 + $0x14] sm:$0xf]
  %v28 = vld [vmem:[%s0 + $0x18] sm:$0xf]
  %v29 = vld [vmem:[%s0 + $0x1c] sm:$0xf]
  %v30 = vld [vmem:[%s0 + $0x20] sm:$0xf]
  %v31 = vld [vmem:[%s0 + $0x24] sm:$0xf]
  %v32 = vld [vmem:[%s0 + $0x28] sm:$0xf]
  %v33 = vld [vmem:[%s0 + $0x2c] sm:$0xf]
  %v34 = vld [vmem:[%s0 + $0x30] sm:$0xf]
  %v35 = vld [vmem:[%s0 + $0x34] sm:$0xf]
  %v36 = vld [vmem:[%s0 + $0x38] sm:$0xf]
  %v37 = vld [vmem:[%s0 + $0x3c] sm:$0xf]
  %v38 = vunpack.c.l.bf16 %v22
  %v39 = vunpack.c.l.bf16 %v23
  %v40 = vunpack.c.l.bf16 %v24
  %v41 = vunpack.c.l.bf16 %v25
  %v42 = vunpack.c.l.bf16 %v26
  %v43 = vunpack.c.l.bf16 %v27
  %v44 = vunpack.c.l.bf16 %v28
  %v45 = vunpack.c.l.bf16 %v29
  %v46 = vunpack.c.l.bf16 %v30
  %v47 = vunpack.c.l.bf16 %v31
  %v48 = vunpack.c.l.bf16 %v32
  %v49 = vunpack.c.l.bf16 %v33
  %v50 = vunpack.c.l.bf16 %v34
  %v51 = vunpack.c.l.bf16 %v35
  %v52 = vunpack.c.l.bf16 %v36
  %v53 = vunpack.c.l.bf16 %v37
  %v54 = vld [vmem:[#allocation2] sm:$0x1]
  %v55 = vadd.f32 %v38, %v39
  %v56 = vadd.f32 %v55, %v40
  %v57 = vadd.f32 %v56, %v41
  %v58 = vadd.f32 %v57, %v42
  %v59 = vadd.f32 %v58, %v43
  %v60 = vadd.f32 %v59, %v44
  %v61 = vadd.f32 %v60, %v45
  %v62 = vadd.f32 %v61, %v46
  %v63 = vadd.f32 %v62, %v47
  %v64 = vadd.f32 %v63, %v48
  %v65 = vadd.f32 %v64, %v49
  %v66 = vadd.f32 %v65, %v50
  %v67 = vadd.f32 %v66, %v51
  %v68 = vadd.f32 %v67, %v52
  %v69 = vadd.f32 %v68, %v53
  %v70 = vrot.slane %v69, 4
  %v71 = vadd.f32 %v69, %v70
  %v72 = vrot.slane %v71, 2
  %v73 = vadd.f32 %v71, %v72
  %v74 = vrot.slane %v73, 1
  %v75 = vadd.f32 %v73, %v74
  %v76 = vadd.f32 %v54, %v75
  %77 = vst [vmem:[#allocation2] sm:$0x1] %v76
  %v78 = vld [vmem:[#allocation3] sm:$0x1]
  %v79 = vmul.f32 %v38, %v38
  %v80 = vmul.f32 %v39, %v39
  %v81 = vmul.f32 %v40, %v40
  %v82 = vmul.f32 %v41, %v41
  %v83 = vmul.f32 %v42, %v42
  %v84 = vmul.f32 %v43, %v43
  %v85 = vmul.f32 %v44, %v44
  %v86 = vmul.f32 %v45, %v45
  %v87 = vmul.f32 %v46, %v46
  %v88 = vmul.f32 %v47, %v47
  %v89 = vmul.f32 %v48, %v48
  %v90 = vmul.f32 %v49, %v49
  %v91 = vmul.f32 %v50, %v50
  %v92 = vmul.f32 %v51, %v51
  %v93 = vmul.f32 %v52, %v52
  %v94 = vmul.f32 %v53, %v53
  %v95 = vadd.f32 %v79, %v80
  %v96 = vadd.f32 %v95, %v81
  %v97 = vadd.f32 %v96, %v82
  %v98 = vadd.f32 %v97, %v83
  %v99 = vadd.f32 %v98, %v84
  %v100 = vadd.f32 %v99, %v85
  %v101 = vadd.f32 %v100, %v86
  %v102 = vadd.f32 %v101, %v87
  %v103 = vadd.f32 %v102, %v88
  %v104 = vadd.f32 %v103, %v89
  %v105 = vadd.f32 %v104, %v90
  %v106 = vadd.f32 %v105, %v91
  %v107 = vadd.f32 %v106, %v92
  %v108 = vadd.f32 %v107, %v93
  %v109 = vadd.f32 %v108, %v94
  %v110 = vrot.slane %v109, 4
  %v111 = vadd.f32 %v109, %v110
  %v112 = vrot.slane %v111, 2
  %v113 = vadd.f32 %v111, %v112
  %v114 = vrot.slane %v113, 1
  %v115 = vadd.f32 %v113, %v114
  %v116 = vadd.f32 %v78, %v115
  %117 = vst [vmem:[#allocation3] sm:$0x1] %v116
  // Predicated region
  $region18: #{block_group_forward.16} parent=0 // pred_check
    %p118 = pneg %p16
  $region19: #{block_group_forward.16} parent=0 // pred_check_branch
    %120 = sbr.rel (%p118) target = $region21
  $region20: #{block_group_forward.16} parent=0 // pred_region
    %v121 = vld [vmem:[#allocation2] sm:$0x1]
    %v122 = vmul.f32 %v121, 0.0078125
    %v123 = vld [vmem:[#allocation3] sm:$0x1]
    %v124 = vmul.f32 %v123, 0.0078125
    %v125 = vmul.f32 %v122, %v122
    %v126 = vsub.f32 %v124, %v125
    %v127 = vmax.f32 %v126, 0.0
    %v128 = vld [vmem:[%s1] sm:$0x1]
    %v129 = vrsqrt.pop %v127
    %v130 = vmul.f32 %v127, %v129
    %vm131 = vcmp.eq.f32.partialorder %v127, inf
    %v132 = vsel %vm131, %v127, %v130
    %vm133 = vcmp.eq.f32.partialorder %v127, 0.0
    %v134 = vand.u32 %v127, 2147483648
    %v135 = vsel %vm133, %v134, %v132
    %v136 = vadd.f32 %v135, 1e-05
    %v137 = vrcp.pop %v136
    %v138 = vmul.f32 %v128, %v137
    %139 = vst [vmem:[%s3] sm:$0x1] %v138
    %v140 = vld [vmem:[%s2] sm:$0x1]
    %v141 = vmul.f32 %v122, %v138
    %v142 = vsub.f32 %v140, %v141
    %143 = vst [vmem:[%s4] sm:$0x1] %v142
  $region21: #{block_group_forward.16} parent=0 // pred_fallthru
    _
  // Predicated region
  $region22: #{block_group_forward.16} parent=0 // pred_check
    _
  $region23: #{block_group_forward.16} parent=0 // pred_check_branch
    %145 = sbr.rel (0) target = $region25
  $region24: #{block_group_forward.16} parent=0 // pred_region
    _
  $region25: #{block_group_forward.16} parent=0 // pred_fallthru
    _
  // Predicated region
  $region26: #{block_group_forward.16} parent=0 // pred_check
    _
  $region27: #{block_group_forward.16} parent=0 // pred_check_branch
    %147 = sbr.rel (0) target = $region29
  $region28: #{block_group_forward.16} parent=0 // pred_region
    _
  $region29: #{block_group_forward.16} parent=0 // pred_fallthru
    _
  // Predicated region
  $region30: #{block_group_forward.16} parent=0 // pred_check
    _
  $region31: #{block_group_forward.16} parent=0 // pred_check_branch
    %149 = sbr.rel (0) target = $region33
  $region32: #{block_group_forward.16} parent=0 // pred_region
    _
  $region33: #{block_group_forward.16} parent=0 // pred_fallthru
    _
  // Predicated region
  $region34: #{block_group_forward.16} parent=0 // pred_check
    _
  $region35: #{block_group_forward.16} parent=0 // pred_check_branch
    %151 = sbr.rel (0) target = $region37
  $region36: #{block_group_forward.16} parent=0 // pred_region
    _
  $region37: #{block_group_forward.16} parent=0 // pred_fallthru
    _

// kernel: block_group_forward.17
$region0: #{block_group_forward.17}
  #allocation0 [shape = 'u32[]', space=smem, size = 0x4, offset = 0x4, fixed_abs, tag = 'smem constant byte address 0x4 - core index']
  #allocation1 [shape = 'u32[144,128]{1,0:T(1,128)}', space=vmem, size = 0x12000, scoped, tag = 'internal scratch']
  %s0 = inlined_call_operand.vmem [shape: bf16[128,128], index: 0, kind: input, shape index: {}]
  %s1 = inlined_call_operand.vmem [shape: f32[1,128], index: 1, kind: input, shape index: {}]
  %s2 = inlined_call_operand.vmem [shape: f32[1,128], index: 2, kind: input, shape index: {}]
  %s3 = inlined_call_operand.vmem [shape: bf16[128,128], index: 3, kind: output, shape index: {}]
  %s4 = sld [smem:[#allocation0]]
  $region22: #{block_group_forward.17} parent=0
    _
  %s6 = ssub.s32 1, %s4
  %s7 = scalar_select 0, %s6, %s4
  // Predicated region
  $region2: #{block_group_forward.17} parent=0 // pred_check
    _
  $region3: #{block_group_forward.17} parent=0 // pred_check_branch
    %9 = sbr.rel (0) target = $region5
  $region4: #{block_group_forward.17} parent=0 // pred_region
    _
  $region5: #{block_group_forward.17} parent=0 // pred_fallthru
    _
  // Predicated region
  $region6: #{block_group_forward.17} parent=0 // pred_check
    _
  $region7: #{block_group_forward.17} parent=0 // pred_check_branch
    %11 = sbr.rel (0) target = $region9
  $region8: #{block_group_forward.17} parent=0 // pred_region
    _
  $region9: #{block_group_forward.17} parent=0 // pred_fallthru
    _
  // Predicated region
  $region10: #{block_group_forward.17} parent=0 // pred_check
    _
  $region11: #{block_group_forward.17} parent=0 // pred_check_branch
    %13 = sbr.rel (0) target = $region13
  $region12: #{block_group_forward.17} parent=0 // pred_region
    _
  $region13: #{block_group_forward.17} parent=0 // pred_fallthru
    _
  %v14 = vld [vmem:[%s0] sm:$0xf]
  %v15 = vld [vmem:[%s0 + $0x4] sm:$0xf]
  %v16 = vld [vmem:[%s0 + $0x8] sm:$0xf]
  %v17 = vld [vmem:[%s0 + $0xc] sm:$0xf]
  %v18 = vld [vmem:[%s0 + $0x10] sm:$0xf]
  %v19 = vld [vmem:[%s0 + $0x14] sm:$0xf]
  %v20 = vld [vmem:[%s0 + $0x18] sm:$0xf]
  %v21 = vld [vmem:[%s0 + $0x1c] sm:$0xf]
  %v22 = vld [vmem:[%s0 + $0x20] sm:$0xf]
  %v23 = vld [vmem:[%s0 + $0x24] sm:$0xf]
  %v24 = vld [vmem:[%s0 + $0x28] sm:$0xf]
  %v25 = vld [vmem:[%s0 + $0x2c] sm:$0xf]
  %v26 = vld [vmem:[%s0 + $0x30] sm:$0xf]
  %v27 = vld [vmem:[%s0 + $0x34] sm:$0xf]
  %v28 = vld [vmem:[%s0 + $0x38] sm:$0xf]
  %v29 = vld [vmem:[%s0 + $0x3c] sm:$0xf]
  %v30 = vunpack.c.l.bf16 %v14
  %v31 = vunpack.c.l.bf16 %v15
  %v32 = vunpack.c.l.bf16 %v16
  %v33 = vunpack.c.l.bf16 %v17
  %v34 = vunpack.c.l.bf16 %v18
  %v35 = vunpack.c.l.bf16 %v19
  %v36 = vunpack.c.l.bf16 %v20
  %v37 = vunpack.c.l.bf16 %v21
  %v38 = vunpack.c.l.bf16 %v22
  %v39 = vunpack.c.l.bf16 %v23
  %v40 = vunpack.c.l.bf16 %v24
  %v41 = vunpack.c.l.bf16 %v25
  %v42 = vunpack.c.l.bf16 %v26
  %v43 = vunpack.c.l.bf16 %v27
  %v44 = vunpack.c.l.bf16 %v28
  %v45 = vunpack.c.l.bf16 %v29
  %v46 = vld [vmem:[%s1] sm:$0x1]
  %v48 = vlaneseq
  %v49 = vshrl.u32 %v48, 7
  %v50 = vsub.s32 0, %v49
  %v51 = vrot.slane %v46, %v50
  %v53 = vmul.f32 %v30, %v51
  %v54 = vmul.f32 %v31, %v51
  %v55 = vmul.f32 %v32, %v51
  %v56 = vmul.f32 %v33, %v51
  %v57 = vmul.f32 %v34, %v51
  %v58 = vmul.f32 %v35, %v51
  %v59 = vmul.f32 %v36, %v51
  %v60 = vmul.f32 %v37, %v51
  %v61 = vmul.f32 %v38, %v51
  %v62 = vmul.f32 %v39, %v51
  %v63 = vmul.f32 %v40, %v51
  %v64 = vmul.f32 %v41, %v51
  %v65 = vmul.f32 %v42, %v51
  %v66 = vmul.f32 %v43, %v51
  %v67 = vmul.f32 %v44, %v51
  %v68 = vmul.f32 %v45, %v51
  %v69 = vld [vmem:[%s2] sm:$0x1]
  %v71 = vlaneseq
  %v72 = vshrl.u32 %v71, 7
  %v73 = vsub.s32 0, %v72
  %v74 = vrot.slane %v69, %v73
  %v76 = vadd.f32 %v53, %v74
  %v77 = vadd.f32 %v54, %v74
  %v78 = vadd.f32 %v55, %v74
  %v79 = vadd.f32 %v56, %v74
  %v80 = vadd.f32 %v57, %v74
  %v81 = vadd.f32 %v58, %v74
  %v82 = vadd.f32 %v59, %v74
  %v83 = vadd.f32 %v60, %v74
  %v84 = vadd.f32 %v61, %v74
  %v85 = vadd.f32 %v62, %v74
  %v86 = vadd.f32 %v63, %v74
  %v87 = vadd.f32 %v64, %v74
  %v88 = vadd.f32 %v65, %v74
  %v89 = vadd.f32 %v66, %v74
  %v90 = vadd.f32 %v67, %v74
  %v91 = vadd.f32 %v68, %v74
  %v92 = vmax.f32 %v76, 0.0
  %v93 = vmax.f32 %v77, 0.0
  %v94 = vmax.f32 %v78, 0.0
  %v95 = vmax.f32 %v79, 0.0
  %v96 = vmax.f32 %v80, 0.0
  %v97 = vmax.f32 %v81, 0.0
  %v98 = vmax.f32 %v82, 0.0
  %v99 = vmax.f32 %v83, 0.0
  %v100 = vmax.f32 %v84, 0.0
  %v101 = vmax.f32 %v85, 0.0
  %v102 = vmax.f32 %v86, 0.0
  %v103 = vmax.f32 %v87, 0.0
  %v104 = vmax.f32 %v88, 0.0
  %v105 = vmax.f32 %v89, 0.0
  %v106 = vmax.f32 %v90, 0.0
  %v107 = vmax.f32 %v91, 0.0
  %v108 = vpack.c.bf16 %v93, %v92
  %v109 = vpack.c.bf16 %v95, %v94
  %v110 = vpack.c.bf16 %v97, %v96
  %v111 = vpack.c.bf16 %v99, %v98
  %v112 = vpack.c.bf16 %v101, %v100
  %v113 = vpack.c.bf16 %v103, %v102
  %v114 = vpack.c.bf16 %v105, %v104
  %v115 = vpack.c.bf16 %v107, %v106
  %v124 = vunpack.c.l.b16 %v108
  %v125 = vunpack.c.h.b16 %v108
  %v126 = vunpack.c.l.b16 %v109
  %v127 = vunpack.c.h.b16 %v109
  %v128 = vunpack.c.l.b16 %v110
  %v129 = vunpack.c.h.b16 %v110
  %v130 = vunpack.c.l.b16 %v111
  %v131 = vunpack.c.h.b16 %v111
  %v132 = vunpack.c.l.b16 %v112
  %v133 = vunpack.c.h.b16 %v112
  %v134 = vunpack.c.l.b16 %v113
  %v135 = vunpack.c.h.b16 %v113
  %v136 = vunpack.c.l.b16 %v114
  %v137 = vunpack.c.h.b16 %v114
  %v138 = vunpack.c.l.b16 %v115
  %v139 = vunpack.c.h.b16 %v115
  %v140 = vpack.c.b16 %v124, %v124
  %v141 = vpack.c.b16 %v125, %v125
  %v142 = vpack.c.b16 %v126, %v126
  %v143 = vpack.c.b16 %v127, %v127
  %v144 = vpack.c.b16 %v128, %v128
  %v145 = vpack.c.b16 %v129, %v129
  %v146 = vpack.c.b16 %v130, %v130
  %v147 = vpack.c.b16 %v131, %v131
  %v148 = vpack.c.b16 %v132, %v132
  %v149 = vpack.c.b16 %v133, %v133
  %v150 = vpack.c.b16 %v134, %v134
  %v151 = vpack.c.b16 %v135, %v135
  %v152 = vpack.c.b16 %v136, %v136
  %v153 = vpack.c.b16 %v137, %v137
  %v154 = vpack.c.b16 %v138, %v138
  %v155 = vpack.c.b16 %v139, %v139
  %172 = vst [vmem:[%s3] sm:$0xf] %v140
  %173 = vst [vmem:[%s3 + $0x4] sm:$0xf] %v141
  %174 = vst [vmem:[%s3 + $0x8] sm:$0xf] %v142
  %175 = vst [vmem:[%s3 + $0xc] sm:$0xf] %v143
  %176 = vst [vmem:[%s3 + $0x10] sm:$0xf] %v144
  %177 = vst [vmem:[%s3 + $0x14] sm:$0xf] %v145
  %178 = vst [vmem:[%s3 + $0x18] sm:$0xf] %v146
  %179 = vst [vmem:[%s3 + $0x1c] sm:$0xf] %v147
  %180 = vst [vmem:[%s3 + $0x20] sm:$0xf] %v148
  %181 = vst [vmem:[%s3 + $0x24] sm:$0xf] %v149
  %182 = vst [vmem:[%s3 + $0x28] sm:$0xf] %v150
  %183 = vst [vmem:[%s3 + $0x2c] sm:$0xf] %v151
  %184 = vst [vmem:[%s3 + $0x30] sm:$0xf] %v152
  %185 = vst [vmem:[%s3 + $0x34] sm:$0xf] %v153
  %186 = vst [vmem:[%s3 + $0x38] sm:$0xf] %v154
  %187 = vst [vmem:[%s3 + $0x3c] sm:$0xf] %v155
  // Predicated region
  $region14: #{block_group_forward.17} parent=0 // pred_check
    _
  $region15: #{block_group_forward.17} parent=0 // pred_check_branch
    %189 = sbr.rel (0) target = $region17
  $region16: #{block_group_forward.17} parent=0 // pred_region
    _
  $region17: #{block_group_forward.17} parent=0 // pred_fallthru
    _
  // Predicated region
  $region18: #{block_group_forward.17} parent=0 // pred_check
    _
  $region19: #{block_group_forward.17} parent=0 // pred_check_branch
    %191 = sbr.rel (0) target = $region21
  $region20: #{block_group_forward.17} parent=0 // pred_region
    _
  $region21: #{block_group_forward.17} parent=0 // pred_fallthru
    _

// kernel: block_group_forward.15
$region0: #{block_group_forward.15}
  #allocation0 [shape = 'u32[]', space=smem, size = 0x4, offset = 0x4, fixed_abs, tag = 'smem constant byte address 0x4 - core index']
  #allocation1 [shape = 'u32[144,128]{1,0:T(1,128)}', space=vmem, size = 0x12000, scoped, tag = 'internal scratch']
  #allocation2 [shape = 'f32[64,128]{1,0:T(8,128)}', space=vmem, size = 0x8000, scoped, tag = 'scratch operand']
  %s0 = inlined_call_operand.vmem [shape: bf16[8,9,9,128], index: 0, kind: input, shape index: {}]
  %s1 = inlined_call_operand.vmem [shape: bf16[9,128,128], index: 1, kind: input, shape index: {}]
  %s2 = inlined_call_operand.vmem [shape: bf16[2,8,8,128], index: 2, kind: output, shape index: {}]
  %s3 = sld [smem:[#allocation0]]
  $region41: #{block_group_forward.15} parent=0
    _
  %s5 = ssub.s32 1, %s3
  %s6 = scalar_select 0, %s5, %s3
  loop: start=0, step=1, limit=4
  $region2: #{block_group_forward.15} parent=0 // loop_pre_header
    _
  $region3: #{block_group_forward.15} parent=0 // loop_header
    %s8 = sphi 0, %s12
    %p9 = scmp.ge.s32.totalorder %s8, 4
    %s15 = sphi 0, %s27
    %s16 = sphi 0, %s23
    %s17 = sphi 0, %s15
    %s18 = sphi 0, %s16
    %s19 = sphi 0, %s17
    %s20 = sphi 0, %s18
    %s30 = sphi 0, %s32
    %s33 = sphi 0, %s30
    %s34 = sphi 0, %s33
    %s50 = sphi 0, %s34
    %s54 = sphi 0, %s54
    %s56 = sphi 0, %s54
    %s57 = sphi 0, %s56
    %s71 = sphi 0, %s57
    %s79 = sphi 0, %s81
    %s82 = sphi 0, %s79
    %s83 = sphi 0, %s82
    %s99 = sphi 0, %s83
  $region4: #{block_group_forward.15} parent=0 // loop_header_branch
    %11 = sbr.rel (%p9) target = $region8
  $region5: #{block_group_forward.15} parent=0 // loop_body
    %s13 = ssub.s32 %s8, 1
    %s14 = ssub.s32 %s8, 2
    %s21 = sadd.s32 1, %s16
    %p22 = scmp.ge.s32.totalorder %s21, 1
    %s23 = scalar_select %p22, 0, %s21
    %s24 = sadd.s32 1, %s15
    %s25 = scalar_select %p22, %s24, %s15
    %p26 = scmp.ge.s32.totalorder %s25, 2
    %s27 = scalar_select %p26, 0, %s25
    %s28 = ssub.s32 %s15, %s27
    %p29 = scmp.eq.s32.totalorder %s28, 0
    %s31 = sadd.s32 %s30, 1
    %s32 = scalar_select %p29, %s30, %s31
    %p35 = pneg %p29
    %p36 = scmp.eq.s32.totalorder %s8, 1
    %p37 = por %p35, %p36
    %p38 = scmp.ne.s32.totalorder %s30, %s33
    %p39 = scmp.eq.s32.totalorder %s8, 0
    %p40 = por %p38, %p39
    %p41 = scmp.ne.s32.totalorder %s30, %s33
    %p42 = scmp.eq.s32.totalorder %s13, 1
    %p43 = por %p41, %p42
    %p44 = scmp.ne.s32.totalorder %s33, %s34
    %p45 = scmp.eq.s32.totalorder %s13, 0
    %p46 = por %p44, %p45
    %p47 = scmp.ne.s32.totalorder %s33, %s34
    %p48 = scmp.eq.s32.totalorder %s14, 1
    %p49 = por %p47, %p48
    %p51 = scmp.ne.s32.totalorder %s34, %s50
    %p52 = scmp.eq.s32.totalorder %s14, 0
    %p53 = por %p51, %p52
    %s55 = sadd.s32 %s54, 1
    %p58 = scmp.eq.s32.totalorder %s8, 1
    %p59 = scmp.ne.s32.totalorder %s54, %s56
    %p60 = scmp.eq.s32.totalorder %s8, 0
    %p61 = por %p59, %p60
    %p62 = scmp.ne.s32.totalorder %s54, %s56
    %p63 = scmp.eq.s32.totalorder %s13, 1
    %p64 = por %p62, %p63
    %p65 = scmp.ne.s32.totalorder %s56, %s57
    %p66 = scmp.eq.s32.totalorder %s13, 0
    %p67 = por %p65, %p66
    %p68 = scmp.ne.s32.totalorder %s56, %s57
    %p69 = scmp.eq.s32.totalorder %s14, 1
    %p70 = por %p68, %p69
    %p72 = scmp.ne.s32.totalorder %s57, %s71
    %p73 = scmp.eq.s32.totalorder %s14, 0
    %p74 = por %p72, %p73
    %s75 = ssub.s32 %s15, %s27
    %s76 = ssub.s32 %s16, %s23
    %s77 = sor.u32 %s75, %s76
    %p78 = scmp.eq.s32.totalorder %s77, 0
    %s80 = sadd.s32 %s79, 1
    %s81 = scalar_select %p78, %s79, %s80
    %p84 = pneg %p78
    %p85 = scmp.eq.s32.totalorder %s8, 1
    %p86 = por %p84, %p85
    %p87 = scmp.ne.s32.totalorder %s79, %s82
    %p88 = scmp.eq.s32.totalorder %s8, 0
    %p89 = por %p87, %p88
    %p90 = scmp.ne.s32.totalorder %s79, %s82
    %p91 = scmp.eq.s32.totalorder %s13, 1
    %p92 = por %p90, %p91
    %p93 = scmp.ne.s32.totalorder %s82, %s83
    %p94 = scmp.eq.s32.totalorder %s13, 0
    %p95 = por %p93, %p94
    %p96 = scmp.ne.s32.totalorder %s82, %s83
    %p97 = scmp.eq.s32.totalorder %s14, 1
    %p98 = por %p96, %p97
    %p100 = scmp.ne.s32.totalorder %s83, %s99
    %p101 = scmp.eq.s32.totalorder %s14, 0
    %p102 = por %p100, %p101
    %p103 = scmp.le.s32.totalorder 1, %s8
    %p104 = scmp.lt.s32.totalorder %s8, 3
    %p105 = pnand %p103, %p104
    %p106 = pneg %p105
    // Predicated region
    $region9: #{block_group_forward.15} parent=5 // pred_check
      _
    $region10: #{block_group_forward.15} parent=5 // pred_check_branch
      %108 = sbr.rel (%p105) target = $region12
    $region11: #{block_group_forward.15} parent=5 // pred_region
      %s109 = ssub.s32 %s8, 1
      // Predicated region
      $region13: #{block_group_forward.15} parent=11 // pred_check
        %p110 = pneg %p67
      $region14: #{block_group_forward.15} parent=11 // pred_check_branch
        %112 = sbr.rel (%p110) target = $region16
      $region15: #{block_group_forward.15} parent=11 // pred_region
        _
      $region16: #{block_group_forward.15} parent=11 // pred_fallthru
        _
    $region12: #{block_group_forward.15} parent=5 // pred_fallthru
      _
    %p113 = scmp.lt.s32.totalorder %s8, 2
    // Predicated region
    $region17: #{block_group_forward.15} parent=5 // pred_check
      %p114 = pneg %p113
    $region18: #{block_group_forward.15} parent=5 // pred_check_branch
      %116 = sbr.rel (%p114) target = $region20
    $region19: #{block_group_forward.15} parent=5 // pred_region
      // Predicated region
      $region21: #{block_group_forward.15} parent=19 // pred_check
        %p117 = pneg %p40
      $region22: #{block_group_forward.15} parent=19 // pred_check_branch
        %119 = sbr.rel (%p117) target = $region24
      $region23: #{block_group_forward.15} parent=19 // pred_region
        %s120 = smul.u32 4, %s15
        %p121 = scmp.lt.s32.totalorder %s120, 7
        %s122 = scalar_select %p121, %s120, 7
        %s123 = smul.addr %s122, 18
        %s124 = smul.addr %s123, 4
        %s125 = scalar_lea.vmem %s0, %s124
        %s126 = smul.u32 4, %s15
      $region24: #{block_group_forward.15} parent=19 // pred_fallthru
        _
    $region20: #{block_group_forward.15} parent=5 // pred_fallthru
      _
    %p127 = scmp.le.s32.totalorder 1, %s8
    %p128 = scmp.lt.s32.totalorder %s8, 3
    %p129 = pnand %p127, %p128
    %p130 = pneg %p129
    // Predicated region
    $region25: #{block_group_forward.15} parent=5 // pred_check
      _
    $region26: #{block_group_forward.15} parent=5 // pred_check_branch
      %132 = sbr.rel (%p129) target = $region28
    $region27: #{block_group_forward.15} parent=5 // pred_region
      %s133 = ssub.s32 %s8, 1
      %s134 = smul.u32 4, %s17
      %p135 = scmp.lt.s32.totalorder %s134, 7
      %s136 = scalar_select %p135, %s134, 7
      %s137 = smul.addr %s136, 18
      %s138 = smul.addr %s137, 4
      %s139 = scalar_lea.vmem %s0, %s138
      %p140 = pneg %p46
      %p141 = pneg %p43
      %p142 = pneg %p67
      %p143 = pneg %p64
      %p144 = pneg %p95
      %p145 = pneg %p92
      %s146 = smul.u32 8, %s18
      %p147 = scmp.lt.s32.totalorder %s17, 1
      %s148 = scalar_select %p147, %s17, 1
      %p149 = scmp.lt.s32.totalorder %s146, 7
      %s150 = scalar_select %p149, %s146, 7
      %s151 = smul.addr %s148, 8
      %s152 = sadd.s32 %s150, %s151
      %s153 = smul.addr %s152, 4
      %s154 = scalar_lea.vmem %s2, %s153
      %s155 = smul.u32 4, %s17
      %p156 = scmp.lt.s32.totalorder %s155, 7
      %s157 = scalar_select %p156, %s155, 7
      %s158 = smul.addr %s157, 18
      %s159 = smul.addr %s158, 4
      %s160 = scalar_lea.vmem %s0, %s159
      %s161 = smul.u32 4, %s17
      %s162 = smul.u32 8, %s18
      %p163 = scmp.lt.s32.totalorder %s17, 1
      %s164 = scalar_select %p163, %s17, 1
      %p165 = scmp.lt.s32.totalorder %s162, 7
      %s166 = scalar_select %p165, %s162, 7
      %s167 = smul.addr %s164, 8
      %s168 = sadd.s32 %s166, %s167
      %s169 = smul.addr %s168, 4
      %s170 = scalar_lea.vmem %s2, %s169
      %s171 = smul.u32 8, %s18
      %s173 = smul.u32 %s18, 8
      %s174 = smul.u32 %s173, 2
      %s175 = smul.addr %s174, 4
      %s176 = scalar_lea.vmem %s160, %s175
      %v177 = vld [vmem:[%s176] sm:$0xf]
      %v178 = vld [vmem:[%s176 + $0x8] sm:$0xf]
      %v179 = vld [vmem:[%s176 + $0x10] sm:$0xf]
      %v180 = vld [vmem:[%s176 + $0x18] sm:$0xf]
      %v181 = vld [vmem:[%s176 + $0x20] sm:$0xf]
      %v182 = vld [vmem:[%s176 + $0x28] sm:$0xf]
      %v183 = vld [vmem:[%s176 + $0x30] sm:$0xf]
      %v184 = vld [vmem:[%s176 + $0x38] sm:$0xf]
      %v185 = vld [vmem:[%s1] sm:$0xf]
      %v186 = vld [vmem:[%s1 + $0x4] sm:$0xf]
      %v187 = vld [vmem:[%s1 + $0x8] sm:$0xf]
      %v188 = vld [vmem:[%s1 + $0xc] sm:$0xf]
      %v189 = vld [vmem:[%s1 + $0x10] sm:$0xf]
      %v190 = vld [vmem:[%s1 + $0x14] sm:$0xf]
      %v191 = vld [vmem:[%s1 + $0x18] sm:$0xf]
      %v192 = vld [vmem:[%s1 + $0x1c] sm:$0xf]
      %v193 = vld [vmem:[%s1 + $0x20] sm:$0xf]
      %v194 = vld [vmem:[%s1 + $0x24] sm:$0xf]
      %v195 = vld [vmem:[%s1 + $0x28] sm:$0xf]
      %v196 = vld [vmem:[%s1 + $0x2c] sm:$0xf]
      %v197 = vld [vmem:[%s1 + $0x30] sm:$0xf]
      %v198 = vld [vmem:[%s1 + $0x34] sm:$0xf]
      %v199 = vld [vmem:[%s1 + $0x38] sm:$0xf]
      %v200 = vld [vmem:[%s1 + $0x3c] sm:$0xf]
      %v209 = vunpack.c.l.b16 %v177
      %v210 = vunpack.c.l.b16 %v178
      %v211 = vunpack.c.l.b16 %v179
      %v212 = vunpack.c.l.b16 %v180
      %v213 = vunpack.c.l.b16 %v181
      %v214 = vunpack.c.l.b16 %v182
      %v215 = vunpack.c.l.b16 %v183
      %v216 = vunpack.c.l.b16 %v184
      %v217 = vpack.c.b16 %v210, %v209
      %v218 = vpack.c.b16 %v212, %v211
      %v219 = vpack.c.b16 %v214, %v213
      %v220 = vpack.c.b16 %v216, %v215
      %v241 = vunpack.c.l.b16 %v185
      %v242 = vunpack.c.l.b16 %v186
      %v243 = vunpack.c.l.b16 %v187
      %v244 = vunpack.c.l.b16 %v188
      %v245 = vunpack.c.l.b16 %v189
      %v246 = vunpack.c.l.b16 %v190
      %v247 = vunpack.c.l.b16 %v191
      %v248 = vunpack.c.l.b16 %v192
      %v249 = vunpack.c.l.b16 %v193
      %v250 = vunpack.c.l.b16 %v194
      %v251 = vunpack.c.l.b16 %v195
      %v252 = vunpack.c.l.b16 %v196
      %v253 = vunpack.c.l.b16 %v197
      %v254 = vunpack.c.l.b16 %v198
      %v255 = vunpack.c.l.b16 %v199
      %v256 = vunpack.c.l.b16 %v200
      %v257 = vpack.c.b16 %v242, %v241
      %v258 = vpack.c.b16 %v244, %v243
      %v259 = vpack.c.b16 %v246, %v245
      %v260 = vpack.c.b16 %v248, %v247
      %v261 = vpack.c.b16 %v250, %v249
      %v262 = vpack.c.b16 %v252, %v251
      %v263 = vpack.c.b16 %v254, %v253
      %v264 = vpack.c.b16 %v256, %v255
      %273 = vmatprep.subr.bf16.mxu0 0
      %274 = vmatpush1.bf16.msra.mxu0 %v257
      %275 = vmatprep.subr.bf16.mxu0 0
      %276 = vmatpush1.bf16.msra.mxu0 %v258
      %277 = vmatprep.subr.bf16.mxu0 0
      %278 = vmatpush1.bf16.msra.mxu0 %v259
      %279 = vmatprep.subr.bf16.mxu0 0
      %280 = vmatpush1.bf16.msra.mxu0 %v260
      %281 = vmatprep.subr.bf16.mxu0 0
      %282 = vmatpush1.bf16.msra.mxu0 %v261
      %283 = vmatprep.subr.bf16.mxu0 0
      %284 = vmatpush1.bf16.msra.mxu0 %v262
      %285 = vmatprep.subr.bf16.mxu0 0
      %286 = vmatpush1.bf16.msra.mxu0 %v263
      %287 = vmatprep.subr.bf16.mxu0 0
      %288 = vmatpush1.bf16.msra.mxu0 %v264
      %289 = vmatprep.subr.bf16.mxu0 0
      %290 = vmatpush1.bf16.msra.mxu0 0
      %291 = vmatprep.subr.bf16.mxu0 0
      %292 = vmatpush1.bf16.msra.mxu0 0
      %293 = vmatprep.subr.bf16.mxu0 0
      %294 = vmatpush1.bf16.msra.mxu0 0
      %295 = vmatprep.subr.bf16.mxu0 0
      %296 = vmatpush1.bf16.msra.mxu0 0
      %297 = vmatprep.subr.bf16.mxu0 0
      %298 = vmatpush1.bf16.msra.mxu0 0
      %299 = vmatprep.subr.bf16.mxu0 0
      %300 = vmatpush1.bf16.msra.mxu0 0
      %301 = vmatprep.subr.bf16.mxu0 0
      %302 = vmatpush1.bf16.msra.mxu0 0
      %303 = vmatprep.subr.bf16.mxu0 0
      %304 = vmatpush1.bf16.msra.mxu0 0
      %305 = vmatprep.mubr.bf16.mxu0 0
      %306 = vmatmul.mubr.bf16.gmra.mrb[0].mxu0 %v217
      %v307 = vpop.f32.mrb[0].mxu0
      %v308 = vadd.f32 0.0, %v307
      %v309 = vpop.f32.mrb[0].mxu0
      %v310 = vpop.f32.mrb[0].mxu0
      %v311 = vadd.f32 0.0, %v310
      %v312 = vpop.f32.mrb[0].mxu0
      %313 = vmatprep.mubr.bf16.mxu0 0
      %314 = vmatmul.mubr.bf16.gmra.mrb[0].mxu0 %v218
      %v315 = vpop.f32.mrb[0].mxu0
      %v316 = vadd.f32 0.0, %v315
      %v317 = vpop.f32.mrb[0].mxu0
      %v318 = vpop.f32.mrb[0].mxu0
      %v319 = vadd.f32 0.0, %v318
      %v320 = vpop.f32.mrb[0].mxu0
      %321 = vmatprep.mubr.bf16.mxu0 0
      %322 = vmatmul.mubr.bf16.gmra.mrb[0].mxu0 %v219
      %v323 = vpop.f32.mrb[0].mxu0
      %v324 = vadd.f32 0.0, %v323
      %v325 = vpop.f32.mrb[0].mxu0
      %v326 = vpop.f32.mrb[0].mxu0
      %v327 = vadd.f32 0.0, %v326
      %v328 = vpop.f32.mrb[0].mxu0
      %329 = vmatprep.mubr.bf16.mxu0 0
      %330 = vmatmul.mubr.bf16.gmra.mrb[0].mxu0 %v220
      %v331 = vpop.f32.mrb[0].mxu0
      %v332 = vadd.f32 0.0, %v331
      %v333 = vpop.f32.mrb[0].mxu0
      %v334 = vpop.f32.mrb[0].mxu0
      %v335 = vadd.f32 0.0, %v334
      %v336 = vpop.f32.mrb[0].mxu0
      %337 = vdwg.mxu0
      %338 = vst [vmem:[#allocation2] sm:$0xff] %v308
      %339 = vst [vmem:[#allocation2 + $0x8] sm:$0xff] %v311
      %340 = vst [vmem:[#allocation2 + $0x10] sm:$0xff] %v316
      %341 = vst [vmem:[#allocation2 + $0x18] sm:$0xff] %v319
      %342 = vst [vmem:[#allocation2 + $0x20] sm:$0xff] %v324
      %343 = vst [vmem:[#allocation2 + $0x28] sm:$0xff] %v327
      %344 = vst [vmem:[#allocation2 + $0x30] sm:$0xff] %v332
      %345 = vst [vmem:[#allocation2 + $0x38] sm:$0xff] %v335
      %s346 = sadd.s32 %s174, 18
      %s347 = smul.addr %s346, 4
      %s348 = scalar_lea.vmem %s160, %s347
      %v349 = vld [vmem:[%s348] sm:$0xf]
      %v350 = vld [vmem:[%s348 + $0x8] sm:$0xf]
      %v351 = vld [vmem:[%s348 + $0x10] sm:$0xf]
      %v352 = vld [vmem:[%s348 + $0x18] sm:$0xf]
      %v353 = vld [vmem:[%s348 + $0x20] sm:$0xf]
      %v354 = vld [vmem:[%s348 + $0x28] sm:$0xf]
      %v355 = vld [vmem:[%s348 + $0x30] sm:$0xf]
      %v356 = vld [vmem:[%s348 + $0x38] sm:$0xf]
      %s357 = scalar_lea.vmem %s1, 64
      %v358 = vld [vmem:[%s357] sm:$0xf]
      %v359 = vld [vmem:[%s357 + $0x4] sm:$0xf]
      %v360 = vld [vmem:[%s357 + $0x8] sm:$0xf]
      %v361 = vld [vmem:[%s357 + $0xc] sm:$0xf]
      %v362 = vld [vmem:[%s357 + $0x10] sm:$0xf]
      %v363 = vld [vmem:[%s357 + $0x14] sm:$0xf]
      %v364 = vld [vmem:[%s357 + $0x18] sm:$0xf]
      %v365 = vld [vmem:[%s357 + $0x1c] sm:$0xf]
      %v366 = vld [vmem:[%s357 + $0x20] sm:$0xf]
      %v367 = vld [vmem:[%s357 + $0x24] sm:$0xf]
      %v368 = vld [vmem:[%s357 + $0x28] sm:$0xf]
      %v369 = vld [vmem:[%s357 + $0x2c] sm:$0xf]
      %v370 = vld [vmem:[%s357 + $0x30] sm:$0xf]
      %v371 = vld [vmem:[%s357 + $0x34] sm:$0xf]
      %v372 = vld [vmem:[%s357 + $0x38] sm:$0xf]
      %v373 = vld [vmem:[%s357 + $0x3c] sm:$0xf]
      %v382 = vunpack.c.l.b16 %v349
      %v383 = vunpack.c.l.b16 %v350
      %v384 = vunpack.c.l.b16 %v351
      %v385 = vunpack.c.l.b16 %v352
      %v386 = vunpack.c.l.b16 %v353
      %v387 = vunpack.c.l.b16 %v354
      %v388 = vunpack.c.l.b16 %v355
      %v389 = vunpack.c.l.b16 %v356
      %v390 = vpack.c.b16 %v383, %v382
      %v391 = vpack.c.b16 %v385, %v384
      %v392 = vpack.c.b16 %v387, %v386
      %v393 = vpack.c.b16 %v389, %v388
      %v414 = vunpack.c.l.b16 %v358
      %v415 = vunpack.c.l.b16 %v359
      %v416 = vunpack.c.l.b16 %v360
      %v417 = vunpack.c.l.b16 %v361
      %v418 = vunpack.c.l.b16 %v362
      %v419 = vunpack.c.l.b16 %v363
      %v420 = vunpack.c.l.b16 %v364
      %v421 = vunpack.c.l.b16 %v365
      %v422 = vunpack.c.l.b16 %v366
      %v423 = vunpack.c.l.b16 %v367
      %v424 = vunpack.c.l.b16 %v368
      %v425 = vunpack.c.l.b16 %v369
      %v426 = vunpack.c.l.b16 %v370
      %v427 = vunpack.c.l.b16 %v371
      %v428 = vunpack.c.l.b16 %v372
      %v429 = vunpack.c.l.b16 %v373
      %v430 = vpack.c.b16 %v415, %v414
      %v431 = vpack.c.b16 %v417, %v416
      %v432 = vpack.c.b16 %v419, %v418
      %v433 = vpack.c.b16 %v421, %v420
      %v434 = vpack.c.b16 %v423, %v422
      %v435 = vpack.c.b16 %v425, %v424
      %v436 = vpack.c.b16 %v427, %v426
      %v437 = vpack.c.b16 %v429, %v428
      %446 = vmatprep.subr.bf16.mxu0 0
      %447 = vmatpush1.bf16.msra.mxu0 %v430
      %448 = vmatprep.subr.bf16.mxu0 0
      %449 = vmatpush1.bf16.msra.mxu0 %v431
      %450 = vmatprep.subr.bf16.mxu0 0
      %451 = vmatpush1.bf16.msra.mxu0 %v432
      %452 = vmatprep.subr.bf16.mxu0 0
      %453 = vmatpush1.bf16.msra.mxu0 %v433
      %454 = vmatprep.subr.bf16.mxu0 0
      %455 = vmatpush1.bf16.msra.mxu0 %v434
      %456 = vmatprep.subr.bf16.mxu0 0
      %457 = vmatpush1.bf16.msra.mxu0 %v435
      %458 = vmatprep.subr.bf16.mxu0 0
      %459 = vmatpush1.bf16.msra.mxu0 %v436
      %460 = vmatprep.subr.bf16.mxu0 0
      %461 = vmatpush1.bf16.msra.mxu0 %v437
      %462 = vmatprep.subr.bf16.mxu0 0
      %463 = vmatpush1.bf16.msra.mxu0 0
      %464 = vmatprep.subr.bf16.mxu0 0
      %465 = vmatpush1.bf16.msra.mxu0 0
      %466 = vmatprep.subr.bf16.mxu0 0
      %467 = vmatpush1.bf16.msra.mxu0 0
      %468 = vmatprep.subr.bf16.mxu0 0
      %469 = vmatpush1.bf16.msra.mxu0 0
      %470 = vmatprep.subr.bf16.mxu0 0
      %471 = vmatpush1.bf16.msra.mxu0 0
      %472 = vmatprep.subr.bf16.mxu0 0
      %473 = vmatpush1.bf16.msra.mxu0 0
      %474 = vmatprep.subr.bf16.mxu0 0
      %475 = vmatpush1.bf16.msra.mxu0 0
      %476 = vmatprep.subr.bf16.mxu0 0
      %477 = vmatpush1.bf16.msra.mxu0 0
      %478 = vmatprep.mubr.bf16.mxu0 0
      %479 = vmatmul.mubr.bf16.gmra.mrb[0].mxu0 %v390
      %v480 = vpop.f32.mrb[0].mxu0
      %v481 = vadd.f32 0.0, %v480
      %v482 = vpop.f32.mrb[0].mxu0
      %v483 = vpop.f32.mrb[0].mxu0
      %v484 = vadd.f32 0.0, %v483
      %v485 = vpop.f32.mrb[0].mxu0
      %486 = vmatprep.mubr.bf16.mxu0 0
      %487 = vmatmul.mubr.bf16.gmra.mrb[0].mxu0 %v391
      %v488 = vpop.f32.mrb[0].mxu0
      %v489 = vadd.f32 0.0, %v488
      %v490 = vpop.f32.mrb[0].mxu0
      %v491 = vpop.f32.mrb[0].mxu0
      %v492 = vadd.f32 0.0, %v491
      %v493 = vpop.f32.mrb[0].mxu0
      %494 = vmatprep.mubr.bf16.mxu0 0
      %495 = vmatmul.mubr.bf16.gmra.mrb[0].mxu0 %v392
      %v496 = vpop.f32.mrb[0].mxu0
      %v497 = vadd.f32 0.0, %v496
      %v498 = vpop.f32.mrb[0].mxu0
      %v499 = vpop.f32.mrb[0].mxu0
      %v500 = vadd.f32 0.0, %v499
      %v501 = vpop.f32.mrb[0].mxu0
      %502 = vmatprep.mubr.bf16.mxu0 0
      %503 = vmatmul.mubr.bf16.gmra.mrb[0].mxu0 %v393
      %v504 = vpop.f32.mrb[0].mxu0
      %v505 = vadd.f32 0.0, %v504
      %v506 = vpop.f32.mrb[0].mxu0
      %v507 = vpop.f32.mrb[0].mxu0
      %v508 = vadd.f32 0.0, %v507
      %v509 = vpop.f32.mrb[0].mxu0
      %510 = vdwg.mxu0
      %v511 = vld [vmem:[#allocation2] sm:$0xff]
      %v512 = vld [vmem:[#allocation2 + $0x8] sm:$0xff]
      %v513 = vld [vmem:[#allocation2 + $0x10] sm:$0xff]
      %v514 = vld [vmem:[#allocation2 + $0x18] sm:$0xff]
      %v515 = vld [vmem:[#allocation2 + $0x20] sm:$0xff]
      %v516 = vld [vmem:[#allocation2 + $0x28] sm:$0xff]
      %v517 = vld [vmem:[#allocation2 + $0x30] sm:$0xff]
      %v518 = vld [vmem:[#allocation2 + $0x38] sm:$0xff]
      %v519 = vadd.f32 %v511, %v481
      %v520 = vadd.f32 %v512, %v484
      %v521 = vadd.f32 %v513, %v489
      %v522 = vadd.f32 %v514, %v492
      %v523 = vadd.f32 %v515, %v497
      %v524 = vadd.f32 %v516, %v500
      %v525 = vadd.f32 %v517, %v505
      %v526 = vadd.f32 %v518, %v508
      %527 = vst [vmem:[#allocation2] sm:$0xff] %v519
      %528 = vst [vmem:[#allocation2 + $0x8] sm:$0xff] %v520
      %529 = vst [vmem:[#allocation2 + $0x10] sm:$0xff] %v521
      %530 = vst [vmem:[#allocation2 + $0x18] sm:$0xff] %v522
      %531 = vst [vmem:[#allocation2 + $0x20] sm:$0xff] %v523
      %532 = vst [vmem:[#allocation2 + $0x28] sm:$0xff] %v524
      %533 = vst [vmem:[#allocation2 + $0x30] sm:$0xff] %v525
      %534 = vst [vmem:[#allocation2 + $0x38] sm:$0xff] %v526
      %v535 = vld [vmem:[%s176] sm:$0xf]
      %v536 = vld [vmem:[%s176 + $0x4] sm:$0x1]
      %v537 = vld [vmem:[%s176 + $0x8] sm:$0xf]
      %v538 = vld [vmem:[%s176 + $0xc] sm:$0x1]
      %v539 = vld [vmem:[%s176 + $0x10] sm:$0xf]
      %v540 = vld [vmem:[%s176 + $0x14] sm:$0x1]
      %v541 = vld [vmem:[%s176 + $0x18] sm:$0xf]
      %v542 = vld [vmem:[%s176 + $0x1c] sm:$0x1]
      %v543 = vld [vmem:[%s176 + $0x20] sm:$0xf]
      %v544 = vld [vmem:[%s176 + $0x24] sm:$0x1]
      %v545 = vld [vmem:[%s176 + $0x28] sm:$0xf]
      %v546 = vld [vmem:[%s176 + $0x2c] sm:$0x1]
      %v547 = vld [vmem:[%s176 + $0x30] sm:$0xf]
      %v548 = vld [vmem:[%s176 + $0x34] sm:$0x1]
      %v549 = vld [vmem:[%s176 + $0x38] sm:$0xf]
      %v550 = vld [vmem:[%s176 + $0x3c] sm:$0x1]
      %vm551 = vsmask.f32 3328
      %vm552 = vsmask.f32 7440
      %vm553 = vmor %vm551, %vm552
      %v555 = vshrl.u32 %v535, 16
      %v557 = vrot.slane %v555, 4
      %v558 = vshll.u32 %v535, 16
      %v560 = vrot.slane %v558, 5
      %v561 = vor.u32 %v557, %v560
      %v562 = vrot.slane %v561, 4
      %v564 = vshll.u32 %v536, 16
      %v566 = vrot.slane %v564, 5
      %v567 = vsel %vm553, %v562, %v566
      %v569 = vshrl.u32 %v537, 16
      %v571 = vrot.slane %v569, 4
      %v572 = vshll.u32 %v537, 16
      %v574 = vrot.slane %v572, 5
      %v575 = vor.u32 %v571, %v574
      %v576 = vrot.slane %v575, 4
      %v578 = vshll.u32 %v538, 16
      %v580 = vrot.slane %v578, 5
      %v581 = vsel %vm553, %v576, %v580
      %v583 = vshrl.u32 %v539, 16
      %v585 = vrot.slane %v583, 4
      %v586 = vshll.u32 %v539, 16
      %v588 = vrot.slane %v586, 5
      %v589 = vor.u32 %v585, %v588
      %v590 = vrot.slane %v589, 4
      %v592 = vshll.u32 %v540, 16
      %v594 = vrot.slane %v592, 5
      %v595 = vsel %vm553, %v590, %v594
      %v597 = vshrl.u32 %v541, 16
      %v599 = vrot.slane %v597, 4
      %v600 = vshll.u32 %v541, 16
      %v602 = vrot.slane %v600, 5
      %v603 = vor.u32 %v599, %v602
      %v604 = vrot.slane %v603, 4
      %v606 = vshll.u32 %v542, 16
      %v608 = vrot.slane %v606, 5
      %v609 = vsel %vm553, %v604, %v608
      %v611 = vshrl.u32 %v543, 16
      %v613 = vrot.slane %v611, 4
      %v614 = vshll.u32 %v543, 16
      %v616 = vrot.slane %v614, 5
      %v617 = vor.u32 %v613, %v616
      %v618 = vrot.slane %v617, 4
      %v620 = vshll.u32 %v544, 16
      %v622 = vrot.slane %v620, 5
      %v623 = vsel %vm553, %v618, %v622
      %v625 = vshrl.u32 %v545, 16
      %v627 = vrot.slane %v625, 4
      %v628 = vshll.u32 %v545, 16
      %v630 = vrot.slane %v628, 5
      %v631 = vor.u32 %v627, %v630
      %v632 = vrot.slane %v631, 4
      %v634 = vshll.u32 %v546, 16
      %v636 = vrot.slane %v634, 5
      %v637 = vsel %vm553, %v632, %v636
      %v639 = vshrl.u32 %v547, 16
      %v641 = vrot.slane %v639, 4
      %v642 = vshll.u32 %v547, 16
      %v644 = vrot.slane %v642, 5
      %v645 = vor.u32 %v641, %v644
      %v646 = vrot.slane %v645, 4
      %v648 = vshll.u32 %v548, 16
      %v650 = vrot.slane %v648, 5
      %v651 = vsel %vm553, %v646, %v650
      %v653 = vshrl.u32 %v549, 16
      %v655 = vrot.slane %v653, 4
      %v656 = vshll.u32 %v549, 16
      %v658 = vrot.slane %v656, 5
      %v659 = vor.u32 %v655, %v658
      %v660 = vrot.slane %v659, 4
      %v662 = vshll.u32 %v550, 16
      %v664 = vrot.slane %v662, 5
      %v665 = vsel %vm553, %v660, %v664
      %s666 = scalar_lea.vmem %s1, 128
      %v667 = vld [vmem:[%s666] sm:$0xf]
      %v668 = vld [vmem:[%s666 + $0x4] sm:$0xf]
      %v669 = vld [vmem:[%s666 + $0x8] sm:$0xf]
      %v670 = vld [vmem:[%s666 + $0xc] sm:$0xf]
      %v671 = vld [vmem:[%s666 + $0x10] sm:$0xf]
      %v672 = vld [vmem:[%s666 + $0x14] sm:$0xf]
      %v673 = vld [vmem:[%s666 + $0x18] sm:$0xf]
      %v674 = vld [vmem:[%s666 + $0x1c] sm:$0xf]
      %v675 = vld [vmem:[%s666 + $0x20] sm:$0xf]
      %v676 = vld [vmem:[%s666 + $0x24] sm:$0xf]
      %v677 = vld [vmem:[%s666 + $0x28] sm:$0xf]
      %v678 = vld [vmem:[%s666 + $0x2c] sm:$0xf]
      %v679 = vld [vmem:[%s666 + $0x30] sm:$0xf]
      %v680 = vld [vmem:[%s666 + $0x34] sm:$0xf]
      %v681 = vld [vmem:[%s666 + $0x38] sm:$0xf]
      %v682 = vld [vmem:[%s666 + $0x3c] sm:$0xf]
      %v683 = vunpack.c.l.b16 %v567
      %v684 = vunpack.c.l.b16 %v581
      %v685 = vunpack.c.l.b16 %v595
      %v686 = vunpack.c.l.b16 %v609
      %v687 = vunpack.c.l.b16 %v623
      %v688 = vunpack.c.l.b16 %v637
      %v689 = vunpack.c.l.b16 %v651
      %v690 = vunpack.c.l.b16 %v665
      %v691 = vpack.c.b16 %v684, %v683
      %v692 = vpack.c.b16 %v686, %v685
      %v693 = vpack.c.b16 %v688, %v687
      %v694 = vpack.c.b16 %v690, %v689
      %v715 = vunpack.c.l.b16 %v667
      %v716 = vunpack.c.l.b16 %v668
      %v717 = vunpack.c.l.b16 %v669
      %v718 = vunpack.c.l.b16 %v670
      %v719 = vunpack.c.l.b16 %v671
      %v720 = vunpack.c.l.b16 %v672
      %v721 = vunpack.c.l.b16 %v673
      %v722 = vunpack.c.l.b16 %v674
      %v723 = vunpack.c.l.b16 %v675
      %v724 = vunpack.c.l.b16 %v676
      %v725 = vunpack.c.l.b16 %v677
      %v726 = vunpack.c.l.b16 %v678
      %v727 = vunpack.c.l.b16 %v679
      %v728 = vunpack.c.l.b16 %v680
      %v729 = vunpack.c.l.b16 %v681
      %v730 = vunpack.c.l.b16 %v682
      %v731 = vpack.c.b16 %v716, %v715
      %v732 = vpack.c.b16 %v718, %v717
      %v733 = vpack.c.b16 %v720, %v719
      %v734 = vpack.c.b16 %v722, %v721
      %v735 = vpack.c.b16 %v724, %v723
      %v736 = vpack.c.b16 %v726, %v725
      %v737 = vpack.c.b16 %v728, %v727
      %v738 = vpack.c.b16 %v730, %v729
      %747 = vmatprep.subr.bf16.mxu0 0
      %748 = vmatpush1.bf16.msra.mxu0 %v731
      %749 = vmatprep.subr.bf16.mxu0 0
      %750 = vmatpush1.bf16.msra.mxu0 %v732
      %751 = vmatprep.subr.bf16.mxu0 0
      %752 = vmatpush1.bf16.msra.mxu0 %v733
      %753 = vmatprep.subr.bf16.mxu0 0
      %754 = vmatpush1.bf16.msra.mxu0 %v734
      %755 = vmatprep.subr.bf16.mxu0 0
      %756 = vmatpush1.bf16.msra.mxu0 %v735
      %757 = vmatprep.subr.bf16.mxu0 0
      %758 = vmatpush1.bf16.msra.mxu0 %v736
      %759 = vmatprep.subr.bf16.mxu0 0
      %760 = vmatpush1.bf16.msra.mxu0 %v737
      %761 = vmatprep.subr.bf16.mxu0 0
      %762 = vmatpush1.bf16.msra.mxu0 %v738
      %763 = vmatprep.subr.bf16.mxu0 0
      %764 = vmatpush1.bf16.msra.mxu0 0
      %765 = vmatprep.subr.bf16.mxu0 0
      %766 = vmatpush1.bf16.msra.mxu0 0
      %767 = vmatprep.subr.bf16.mxu0 0
      %768 = vmatpush1.bf16.msra.mxu0 0
      %769 = vmatprep.subr.bf16.mxu0 0
      %770 = vmatpush1.bf16.msra.mxu0 0
      %771 = vmatprep.subr.bf16.mxu0 0
      %772 = vmatpush1.bf16.msra.mxu0 0
      %773 = vmatprep.subr.bf16.mxu0 0
      %774 = vmatpush1.bf16.msra.mxu0 0
      %775 = vmatprep.subr.bf16.mxu0 0
      %776 = vmatpush1.bf16.msra.mxu0 0
      %777 = vmatprep.subr.bf16.mxu0 0
      %778 = vmatpush1.bf16.msra.mxu0 0
      %779 = vmatprep.mubr.bf16.mxu0 0
      %780 = vmatmul.mubr.bf16.gmra.mrb[0].mxu0 %v691
      %v781 = vpop.f32.mrb[0].mxu0
      %v782 = vadd.f32 0.0, %v781
      %v783 = vpop.f32.mrb[0].mxu0
      %v784 = vpop.f32.mrb[0].mxu0
      %v785 = vadd.f32 0.0, %v784
      %v786 = vpop.f32.mrb[0].mxu0
      %787 = vmatprep.mubr.bf16.mxu0 0
      %788 = vmatmul.mubr.bf16.gmra.mrb[0].mxu0 %v692
      %v789 = vpop.f32.mrb[0].mxu0
      %v790 = vadd.f32 0.0, %v789
      %v791 = vpop.f32.mrb[0].mxu0
      %v792 = vpop.f32.mrb[0].mxu0
      %v793 = vadd.f32 0.0, %v792
      %v794 = vpop.f32.mrb[0].mxu0
      %795 = vmatprep.mubr.bf16.mxu0 0
      %796 = vmatmul.mubr.bf16.gmra.mrb[0].mxu0 %v693
      %v797 = vpop.f32.mrb[0].mxu0
      %v798 = vadd.f32 0.0, %v797
      %v799 = vpop.f32.mrb[0].mxu0
      %v800 = vpop.f32.mrb[0].mxu0
      %v801 = vadd.f32 0.0, %v800
      %v802 = vpop.f32.mrb[0].mxu0
      %803 = vmatprep.mubr.bf16.mxu0 0
      %804 = vmatmul.mubr.bf16.gmra.mrb[0].mxu0 %v694
      %v805 = vpop.f32.mrb[0].mxu0
      %v806 = vadd.f32 0.0, %v805
      %v807 = vpop.f32.mrb[0].mxu0
      %v808 = vpop.f32.mrb[0].mxu0
      %v809 = vadd.f32 0.0, %v808
      %v810 = vpop.f32.mrb[0].mxu0
      %811 = vdwg.mxu0
      %v812 = vld [vmem:[#allocation2] sm:$0xff]
      %v813 = vld [vmem:[#allocation2 + $0x8] sm:$0xff]
      %v814 = vld [vmem:[#allocation2 + $0x10] sm:$0xff]
      %v815 = vld [vmem:[#allocation2 + $0x18] sm:$0xff]
      %v816 = vld [vmem:[#allocation2 + $0x20] sm:$0xff]
      %v817 = vld [vmem:[#allocation2 + $0x28] sm:$0xff]
      %v818 = vld [vmem:[#allocation2 + $0x30] sm:$0xff]
      %v819 = vld [vmem:[#allocation2 + $0x38] sm:$0xff]
      %v820 = vadd.f32 %v812, %v782
      %v821 = vadd.f32 %v813, %v785
      %v822 = vadd.f32 %v814, %v790
      %v823 = vadd.f32 %v815, %v793
      %v824 = vadd.f32 %v816, %v798
      %v825 = vadd.f32 %v817, %v801
      %v826 = vadd.f32 %v818, %v806
      %v827 = vadd.f32 %v819, %v809
      %828 = vst [vmem:[#allocation2] sm:$0xff] %v820
      %829 = vst [vmem:[#allocation2 + $0x8] sm:$0xff] %v821
      %830 = vst [vmem:[#allocation2 + $0x10] sm:$0xff] %v822
      %831 = vst [vmem:[#allocation2 + $0x18] sm:$0xff] %v823
      %832 = vst [vmem:[#allocation2 + $0x20] sm:$0xff] %v824
      %833 = vst [vmem:[#allocation2 + $0x28] sm:$0xff] %v825
      %834 = vst [vmem:[#allocation2 + $0x30] sm:$0xff] %v826
      %835 = vst [vmem:[#allocation2 + $0x38] sm:$0xff] %v827
      %s836 = sadd.s32 %s174, 36
      %s837 = smul.addr %s836, 4
      %s838 = scalar_lea.vmem %s160, %s837
      %v839 = vld [vmem:[%s838] sm:$0xf]
      %v840 = vld [vmem:[%s838 + $0x8] sm:$0xf]
      %v841 = vld [vmem:[%s838 + $0x10] sm:$0xf]
      %v842 = vld [vmem:[%s838 + $0x18] sm:$0xf]
      %v843 = vld [vmem:[%s838 + $0x20] sm:$0xf]
      %v844 = vld [vmem:[%s838 + $0x28] sm:$0xf]
      %v845 = vld [vmem:[%s838 + $0x30] sm:$0xf]
      %v846 = vld [vmem:[%s838 + $0x38] sm:$0xf]
      %s847 = scalar_lea.vmem %s1, 192
      %v848 = vld [vmem:[%s847] sm:$0xf]
      %v849 = vld [vmem:[%s847 + $0x4] sm:$0xf]
      %v850 = vld [vmem:[%s847 + $0x8] sm:$0xf]
      %v851 = vld [vmem:[%s847 + $0xc] sm:$0xf]
      %v852 = vld [vmem:[%s847 + $0x10] sm:$0xf]
      %v853 = vld [vmem:[%s847 + $0x14] sm:$0xf]
      %v854 = vld [vmem:[%s847 + $0x18] sm:$0xf]
      %v855 = vld [vmem:[%s847 + $0x1c] sm:$0xf]
      %v856 = vld [vmem:[%s847 + $0x20] sm:$0xf]
      %v857 = vld [vmem:[%s847 + $0x24] sm:$0xf]
      %v858 = vld [vmem:[%s847 + $0x28] sm:$0xf]
      %v859 = vld [vmem:[%s847 + $0x2c] sm:$0xf]
      %v860 = vld [vmem:[%s847 + $0x30] sm:$0xf]
      %v861 = vld [vmem:[%s847 + $0x34] sm:$0xf]
      %v862 = vld [vmem:[%s847 + $0x38] sm:$0xf]
      %v863 = vld [vmem:[%s847 + $0x3c] sm:$0xf]
      %v872 = vunpack.c.l.b16 %v839
      %v873 = vunpack.c.l.b16 %v840
      %v874 = vunpack.c.l.b16 %v841
      %v875 = vunpack.c.l.b16 %v842
      %v876 = vunpack.c.l.b16 %v843
      %v877 = vunpack.c.l.b16 %v844
      %v878 = vunpack.c.l.b16 %v845
      %v879 = vunpack.c.l.b16 %v846
      %v880 = vpack.c.b16 %v873, %v872
      %v881 = vpack.c.b16 %v875, %v874
      %v882 = vpack.c.b16 %v877, %v876
      %v883 = vpack.c.b16 %v879, %v878
      %v904 = vunpack.c.l.b16 %v848
      %v905 = vunpack.c.l.b16 %v849
      %v906 = vunpack.c.l.b16 %v850
      %v907 = vunpack.c.l.b16 %v851
      %v908 = vunpack.c.l.b16 %v852
      %v909 = vunpack.c.l.b16 %v853
      %v910 = vunpack.c.l.b16 %v854
      %v911 = vunpack.c.l.b16 %v855
      %v912 = vunpack.c.l.b16 %v856
      %v913 = vunpack.c.l.b16 %v857
      %v914 = vunpack.c.l.b16 %v858
      %v915 = vunpack.c.l.b16 %v859
      %v916 = vunpack.c.l.b16 %v860
      %v917 = vunpack.c.l.b16 %v861
      %v918 = vunpack.c.l.b16 %v862
      %v919 = vunpack.c.l.b16 %v863
      %v920 = vpack.c.b16 %v905, %v904
      %v921 = vpack.c.b16 %v907, %v906
      %v922 = vpack.c.b16 %v909, %v908
      %v923 = vpack.c.b16 %v911, %v910
      %v924 = vpack.c.b16 %v913, %v912
      %v925 = vpack.c.b16 %v915, %v914
      %v926 = vpack.c.b16 %v917, %v916
      %v927 = vpack.c.b16 %v919, %v918
      %936 = vmatprep.subr.bf16.mxu0 0
      %937 = vmatpush1.bf16.msra.mxu0 %v920
      %938 = vmatprep.subr.bf16.mxu0 0
      %939 = vmatpush1.bf16.msra.mxu0 %v921
      %940 = vmatprep.subr.bf16.mxu0 0
      %941 = vmatpush1.bf16.msra.mxu0 %v922
      %942 = vmatprep.subr.bf16.mxu0 0
      %943 = vmatpush1.bf16.msra.mxu0 %v923
      %944 = vmatprep.subr.bf16.mxu0 0
      %945 = vmatpush1.bf16.msra.mxu0 %v924
      %946 = vmatprep.subr.bf16.mxu0 0
      %947 = vmatpush1.bf16.msra.mxu0 %v925
      %948 = vmatprep.subr.bf16.mxu0 0
      %949 = vmatpush1.bf16.msra.mxu0 %v926
      %950 = vmatprep.subr.bf16.mxu0 0
      %951 = vmatpush1.bf16.msra.mxu0 %v927
      %952 = vmatprep.subr.bf16.mxu0 0
      %953 = vmatpush1.bf16.msra.mxu0 0
      %954 = vmatprep.subr.bf16.mxu0 0
      %955 = vmatpush1.bf16.msra.mxu0 0
      %956 = vmatprep.subr.bf16.mxu0 0
      %957 = vmatpush1.bf16.msra.mxu0 0
      %958 = vmatprep.subr.bf16.mxu0 0
      %959 = vmatpush1.bf16.msra.mxu0 0
      %960 = vmatprep.subr.bf16.mxu0 0
      %961 = vmatpush1.bf16.msra.mxu0 0
      %962 = vmatprep.subr.bf16.mxu0 0
      %963 = vmatpush1.bf16.msra.mxu0 0
      %964 = vmatprep.subr.bf16.mxu0 0
      %965 = vmatpush1.bf16.msra.mxu0 0
      %966 = vmatprep.subr.bf16.mxu0 0
      %967 = vmatpush1.bf16.msra.mxu0 0
      %968 = vmatprep.mubr.bf16.mxu0 0
      %969 = vmatmul.mubr.bf16.gmra.mrb[0].mxu0 %v880
      %v970 = vpop.f32.mrb[0].mxu0
      %v971 = vadd.f32 0.0, %v970
      %v972 = vpop.f32.mrb[0].mxu0
      %v973 = vpop.f32.mrb[0].mxu0
      %v974 = vadd.f32 0.0, %v973
      %v975 = vpop.f32.mrb[0].mxu0
      %976 = vmatprep.mubr.bf16.mxu0 0
      %977 = vmatmul.mubr.bf16.gmra.mrb[0].mxu0 %v881
      %v978 = vpop.f32.mrb[0].mxu0
      %v979 = vadd.f32 0.0, %v978
      %v980 = vpop.f32.mrb[0].mxu0
      %v981 = vpop.f32.mrb[0].mxu0
      %v982 = vadd.f32 0.0, %v981
      %v983 = vpop.f32.mrb[0].mxu0
      %984 = vmatprep.mubr.bf16.mxu0 0
      %985 = vmatmul.mubr.bf16.gmra.mrb[0].mxu0 %v882
      %v986 = vpop.f32.mrb[0].mxu0
      %v987 = vadd.f32 0.0, %v986
      %v988 = vpop.f32.mrb[0].mxu0
      %v989 = vpop.f32.mrb[0].mxu0
      %v990 = vadd.f32 0.0, %v989
      %v991 = vpop.f32.mrb[0].mxu0
      %992 = vmatprep.mubr.bf16.mxu0 0
      %993 = vmatmul.mubr.bf16.gmra.mrb[0].mxu0 %v883
      %v994 = vpop.f32.mrb[0].mxu0
      %v995 = vadd.f32 0.0, %v994
      %v996 = vpop.f32.mrb[0].mxu0
      %v997 = vpop.f32.mrb[0].mxu0
      %v998 = vadd.f32 0.0, %v997
      %v999 = vpop.f32.mrb[0].mxu0
      %1000 = vdwg.mxu0
      %v1001 = vld [vmem:[#allocation2] sm:$0xff]
      %v1002 = vld [vmem:[#allocation2 + $0x8] sm:$0xff]
      %v1003 = vld [vmem:[#allocation2 + $0x10] sm:$0xff]
      %v1004 = vld [vmem:[#allocation2 + $0x18] sm:$0xff]
      %v1005 = vld [vmem:[#allocation2 + $0x20] sm:$0xff]
      %v1006 = vld [vmem:[#allocation2 + $0x28] sm:$0xff]
      %v1007 = vld [vmem:[#allocation2 + $0x30] sm:$0xff]
      %v1008 = vld [vmem:[#allocation2 + $0x38] sm:$0xff]
      %v1009 = vadd.f32 %v1001, %v971
      %v1010 = vadd.f32 %v1002, %v974
      %v1011 = vadd.f32 %v1003, %v979
      %v1012 = vadd.f32 %v1004, %v982
      %v1013 = vadd.f32 %v1005, %v987
      %v1014 = vadd.f32 %v1006, %v990
      %v1015 = vadd.f32 %v1007, %v995
      %v1016 = vadd.f32 %v1008, %v998
      %1017 = vst [vmem:[#allocation2] sm:$0xff] %v1009
      %1018 = vst [vmem:[#allocation2 + $0x8] sm:$0xff] %v1010
      %1019 = vst [vmem:[#allocation2 + $0x10] sm:$0xff] %v1011
      %1020 = vst [vmem:[#allocation2 + $0x18] sm:$0xff] %v1012
      %1021 = vst [vmem:[#allocation2 + $0x20] sm:$0xff] %v1013
      %1022 = vst [vmem:[#allocation2 + $0x28] sm:$0xff] %v1014
      %1023 = vst [vmem:[#allocation2 + $0x30] sm:$0xff] %v1015
      %1024 = vst [vmem:[#allocation2 + $0x38] sm:$0xff] %v1016
      %s1025 = sadd.s32 %s174, 54
      %s1026 = smul.addr %s1025, 4
      %s1027 = scalar_lea.vmem %s160, %s1026
      %v1028 = vld [vmem:[%s1027] sm:$0xf]
      %v1029 = vld [vmem:[%s1027 + $0x8] sm:$0xf]
      %v1030 = vld [vmem:[%s1027 + $0x10] sm:$0xf]
      %v1031 = vld [vmem:[%s1027 + $0x18] sm:$0xf]
      %v1032 = vld [vmem:[%s1027 + $0x20] sm:$0xf]
      %v1033 = vld [vmem:[%s1027 + $0x28] sm:$0xf]
      %v1034 = vld [vmem:[%s1027 + $0x30] sm:$0xf]
      %v1035 = vld [vmem:[%s1027 + $0x38] sm:$0xf]
      %s1036 = scalar_lea.vmem %s1, 256
      %v1037 = vld [vmem:[%s1036] sm:$0xf]
      %v1038 = vld [vmem:[%s1036 + $0x4] sm:$0xf]
      %v1039 = vld [vmem:[%s1036 + $0x8] sm:$0xf]
      %v1040 = vld [vmem:[%s1036 + $0xc] sm:$0xf]
      %v1041 = vld [vmem:[%s1036 + $0x10] sm:$0xf]
      %v1042 = vld [vmem:[%s1036 + $0x14] sm:$0xf]
      %v1043 = vld [vmem:[%s1036 + $0x18] sm:$0xf]
      %v1044 = vld [vmem:[%s1036 + $0x1c] sm:$0xf]
      %v1045 = vld [vmem:[%s1036 + $0x20] sm:$0xf]
      %v1046 = vld [vmem:[%s1036 + $0x24] sm:$0xf]
      %v1047 = vld [vmem:[%s1036 + $0x28] sm:$0xf]
      %v1048 = vld [vmem:[%s1036 + $0x2c] sm:$0xf]
      %v1049 = vld [vmem:[%s1036 + $0x30] sm:$0xf]
      %v1050 = vld [vmem:[%s1036 + $0x34] sm:$0xf]
      %v1051 = vld [vmem:[%s1036 + $0x38] sm:$0xf]
      %v1052 = vld [vmem:[%s1036 + $0x3c] sm:$0xf]
      %v1061 = vunpack.c.l.b16 %v1028
      %v1062 = vunpack.c.l.b16 %v1029
      %v1063 = vunpack.c.l.b16 %v1030
      %v1064 = vunpack.c.l.b16 %v1031
      %v1065 = vunpack.c.l.b16 %v1032
      %v1066 = vunpack.c.l.b16 %v1033
      %v1067 = vunpack.c.l.b16 %v1034
      %v1068 = vunpack.c.l.b16 %v1035
      %v1069 = vpack.c.b16 %v1062, %v1061
      %v1070 = vpack.c.b16 %v1064, %v1063
      %v1071 = vpack.c.b16 %v1066, %v1065
      %v1072 = vpack.c.b16 %v1068, %v1067
      %v1093 = vunpack.c.l.b16 %v1037
      %v1094 = vunpack.c.l.b16 %v1038
      %v1095 = vunpack.c.l.b16 %v1039
      %v1096 = vunpack.c.l.b16 %v1040
      %v1097 = vunpack.c.l.b16 %v1041
      %v1098 = vunpack.c.l.b16 %v1042
      %v1099 = vunpack.c.l.b16 %v1043
      %v1100 = vunpack.c.l.b16 %v1044
      %v1101 = vunpack.c.l.b16 %v1045
      %v1102 = vunpack.c.l.b16 %v1046
      %v1103 = vunpack.c.l.b16 %v1047
      %v1104 = vunpack.c.l.b16 %v1048
      %v1105 = vunpack.c.l.b16 %v1049
      %v1106 = vunpack.c.l.b16 %v1050
      %v1107 = vunpack.c.l.b16 %v1051
      %v1108 = vunpack.c.l.b16 %v1052
      %v1109 = vpack.c.b16 %v1094, %v1093
      %v1110 = vpack.c.b16 %v1096, %v1095
      %v1111 = vpack.c.b16 %v1098, %v1097
      %v1112 = vpack.c.b16 %v1100, %v1099
      %v1113 = vpack.c.b16 %v1102, %v1101
      %v1114 = vpack.c.b16 %v1104, %v1103
      %v1115 = vpack.c.b16 %v1106, %v1105
      %v1116 = vpack.c.b16 %v1108, %v1107
      %1125 = vmatprep.subr.bf16.mxu0 0
      %1126 = vmatpush1.bf16.msra.mxu0 %v1109
      %1127 = vmatprep.subr.bf16.mxu0 0
      %1128 = vmatpush1.bf16.msra.mxu0 %v1110
      %1129 = vmatprep.subr.bf16.mxu0 0
      %1130 = vmatpush1.bf16.msra.mxu0 %v1111
      %1131 = vmatprep.subr.bf16.mxu0 0
      %1132 = vmatpush1.bf16.msra.mxu0 %v1112
      %1133 = vmatprep.subr.bf16.mxu0 0
      %1134 = vmatpush1.bf16.msra.mxu0 %v1113
      %1135 = vmatprep.subr.bf16.mxu0 0
      %1136 = vmatpush1.bf16.msra.mxu0 %v1114
      %1137 = vmatprep.subr.bf16.mxu0 0
      %1138 = vmatpush1.bf16.msra.mxu0 %v1115
      %1139 = vmatprep.subr.bf16.mxu0 0
      %1140 = vmatpush1.bf16.msra.mxu0 %v1116
      %1141 = vmatprep.subr.bf16.mxu0 0
      %1142 = vmatpush1.bf16.msra.mxu0 0
      %1143 = vmatprep.subr.bf16.mxu0 0
      %1144 = vmatpush1.bf16.msra.mxu0 0
      %1145 = vmatprep.subr.bf16.mxu0 0
      %1146 = vmatpush1.bf16.msra.mxu0 0
      %1147 = vmatprep.subr.bf16.mxu0 0
      %1148 = vmatpush1.bf16.msra.mxu0 0
      %1149 = vmatprep.subr.bf16.mxu0 0
      %1150 = vmatpush1.bf16.msra.mxu0 0
      %1151 = vmatprep.subr.bf16.mxu0 0
      %1152 = vmatpush1.bf16.msra.mxu0 0
      %1153 = vmatprep.subr.bf16.mxu0 0
      %1154 = vmatpush1.bf16.msra.mxu0 0
      %1155 = vmatprep.subr.bf16.mxu0 0
      %1156 = vmatpush1.bf16.msra.mxu0 0
      %1157 = vmatprep.mubr.bf16.mxu0 0
      %1158 = vmatmul.mubr.bf16.gmra.mrb[0].mxu0 %v1069
      %v1159 = vpop.f32.mrb[0].mxu0
      %v1160 = vadd.f32 0.0, %v1159
      %v1161 = vpop.f32.mrb[0].mxu0
      %v1162 = vpop.f32.mrb[0].mxu0
      %v1163 = vadd.f32 0.0, %v1162
      %v1164 = vpop.f32.mrb[0].mxu0
      %1165 = vmatprep.mubr.bf16.mxu0 0
      %1166 = vmatmul.mubr.bf16.gmra.mrb[0].mxu0 %v1070
      %v1167 = vpop.f32.mrb[0].mxu0
      %v1168 = vadd.f32 0.0, %v1167
      %v1169 = vpop.f32.mrb[0].mxu0
      %v1170 = vpop.f32.mrb[0].mxu0
      %v1171 = vadd.f32 0.0, %v1170
      %v1172 = vpop.f32.mrb[0].mxu0
      %1173 = vmatprep.mubr.bf16.mxu0 0
      %1174 = vmatmul.mubr.bf16.gmra.mrb[0].mxu0 %v1071
      %v1175 = vpop.f32.mrb[0].mxu0
      %v1176 = vadd.f32 0.0, %v1175
      %v1177 = vpop.f32.mrb[0].mxu0
      %v1178 = vpop.f32.mrb[0].mxu0
      %v1179 = vadd.f32 0.0, %v1178
      %v1180 = vpop.f32.mrb[0].mxu0
      %1181 = vmatprep.mubr.bf16.mxu0 0
      %1182 = vmatmul.mubr.bf16.gmra.mrb[0].mxu0 %v1072
      %v1183 = vpop.f32.mrb[0].mxu0
      %v1184 = vadd.f32 0.0, %v1183
      %v1185 = vpop.f32.mrb[0].mxu0
      %v1186 = vpop.f32.mrb[0].mxu0
      %v1187 = vadd.f32 0.0, %v1186
      %v1188 = vpop.f32.mrb[0].mxu0
      %1189 = vdwg.mxu0
      %v1190 = vld [vmem:[#allocation2] sm:$0xff]
      %v1191 = vld [vmem:[#allocation2 + $0x8] sm:$0xff]
      %v1192 = vld [vmem:[#allocation2 + $0x10] sm:$0xff]
      %v1193 = vld [vmem:[#allocation2 + $0x18] sm:$0xff]
      %v1194 = vld [vmem:[#allocation2 + $0x20] sm:$0xff]
      %v1195 = vld [vmem:[#allocation2 + $0x28] sm:$0xff]
      %v1196 = vld [vmem:[#allocation2 + $0x30] sm:$0xff]
      %v1197 = vld [vmem:[#allocation2 + $0x38] sm:$0xff]
      %v1198 = vadd.f32 %v1190, %v1160
      %v1199 = vadd.f32 %v1191, %v1163
      %v1200 = vadd.f32 %v1192, %v1168
      %v1201 = vadd.f32 %v1193, %v1171
      %v1202 = vadd.f32 %v1194, %v1176
      %v1203 = vadd.f32 %v1195, %v1179
      %v1204 = vadd.f32 %v1196, %v1184
      %v1205 = vadd.f32 %v1197, %v1187
      %1206 = vst [vmem:[#allocation2] sm:$0xff] %v1198
      %1207 = vst [vmem:[#allocation2 + $0x8] sm:$0xff] %v1199
      %1208 = vst [vmem:[#allocation2 + $0x10] sm:$0xff] %v1200
      %1209 = vst [vmem:[#allocation2 + $0x18] sm:$0xff] %v1201
      %1210 = vst [vmem:[#allocation2 + $0x20] sm:$0xff] %v1202
      %1211 = vst [vmem:[#allocation2 + $0x28] sm:$0xff] %v1203
      %1212 = vst [vmem:[#allocation2 + $0x30] sm:$0xff] %v1204
      %1213 = vst [vmem:[#allocation2 + $0x38] sm:$0xff] %v1205
      %v1214 = vld [vmem:[%s838] sm:$0xf]
      %v1215 = vld [vmem:[%s838 + $0x4] sm:$0x1]
      %v1216 = vld [vmem:[%s838 + $0x8] sm:$0xf]
      %v1217 = vld [vmem:[%s838 + $0xc] sm:$0x1]
      %v1218 = vld [vmem:[%s838 + $0x10] sm:$0xf]
      %v1219 = vld [vmem:[%s838 + $0x14] sm:$0x1]
      %v1220 = vld [vmem:[%s838 + $0x18] sm:$0xf]
      %v1221 = vld [vmem:[%s838 + $0x1c] sm:$0x1]
      %v1222 = vld [vmem:[%s838 + $0x20] sm:$0xf]
      %v1223 = vld [vmem:[%s838 + $0x24] sm:$0x1]
      %v1224 = vld [vmem:[%s838 + $0x28] sm:$0xf]
      %v1225 = vld [vmem:[%s838 + $0x2c] sm:$0x1]
      %v1226 = vld [vmem:[%s838 + $0x30] sm:$0xf]
      %v1227 = vld [vmem:[%s838 + $0x34] sm:$0x1]
      %v1228 = vld [vmem:[%s838 + $0x38] sm:$0xf]
      %v1229 = vld [vmem:[%s838 + $0x3c] sm:$0x1]
      %v1231 = vshrl.u32 %v1214, 16
      %v1233 = vrot.slane %v1231, 4
      %v1234 = vshll.u32 %v1214, 16
      %v1236 = vrot.slane %v1234, 5
      %v1237 = vor.u32 %v1233, %v1236
      %v1238 = vrot.slane %v1237, 4
      %v1240 = vshll.u32 %v1215, 16
      %v1242 = vrot.slane %v1240, 5
      %v1243 = vsel %vm553, %v1238, %v1242
      %v1245 = vshrl.u32 %v1216, 16
      %v1247 = vrot.slane %v1245, 4
      %v1248 = vshll.u32 %v1216, 16
      %v1250 = vrot.slane %v1248, 5
      %v1251 = vor.u32 %v1247, %v1250
      %v1252 = vrot.slane %v1251, 4
      %v1254 = vshll.u32 %v1217, 16
      %v1256 = vrot.slane %v1254, 5
      %v1257 = vsel %vm553, %v1252, %v1256
      %v1259 = vshrl.u32 %v1218, 16
      %v1261 = vrot.slane %v1259, 4
      %v1262 = vshll.u32 %v1218, 16
      %v1264 = vrot.slane %v1262, 5
      %v1265 = vor.u32 %v1261, %v1264
      %v1266 = vrot.slane %v1265, 4
      %v1268 = vshll.u32 %v1219, 16
      %v1270 = vrot.slane %v1268, 5
      %v1271 = vsel %vm553, %v1266, %v1270
      %v1273 = vshrl.u32 %v1220, 16
      %v1275 = vrot.slane %v1273, 4
      %v1276 = vshll.u32 %v1220, 16
      %v1278 = vrot.slane %v1276, 5
      %v1279 = vor.u32 %v1275, %v1278
      %v1280 = vrot.slane %v1279, 4
      %v1282 = vshll.u32 %v1221, 16
      %v1284 = vrot.slane %v1282, 5
      %v1285 = vsel %vm553, %v1280, %v1284
      %v1287 = vshrl.u32 %v1222, 16
      %v1289 = vrot.slane %v1287, 4
      %v1290 = vshll.u32 %v1222, 16
      %v1292 = vrot.slane %v1290, 5
      %v1293 = vor.u32 %v1289, %v1292
      %v1294 = vrot.slane %v1293, 4
      %v1296 = vshll.u32 %v1223, 16
      %v1298 = vrot.slane %v1296, 5
      %v1299 = vsel %vm553, %v1294, %v1298
      %v1301 = vshrl.u32 %v1224, 16
      %v1303 = vrot.slane %v1301, 4
      %v1304 = vshll.u32 %v1224, 16
      %v1306 = vrot.slane %v1304, 5
      %v1307 = vor.u32 %v1303, %v1306
      %v1308 = vrot.slane %v1307, 4
      %v1310 = vshll.u32 %v1225, 16
      %v1312 = vrot.slane %v1310, 5
      %v1313 = vsel %vm553, %v1308, %v1312
      %v1315 = vshrl.u32 %v1226, 16
      %v1317 = vrot.slane %v1315, 4
      %v1318 = vshll.u32 %v1226, 16
      %v1320 = vrot.slane %v1318, 5
      %v1321 = vor.u32 %v1317, %v1320
      %v1322 = vrot.slane %v1321, 4
      %v1324 = vshll.u32 %v1227, 16
      %v1326 = vrot.slane %v1324, 5
      %v1327 = vsel %vm553, %v1322, %v1326
      %v1329 = vshrl.u32 %v1228, 16
      %v1331 = vrot.slane %v1329, 4
      %v1332 = vshll.u32 %v1228, 16
      %v1334 = vrot.slane %v1332, 5
      %v1335 = vor.u32 %v1331, %v1334
      %v1336 = vrot.slane %v1335, 4
      %v1338 = vshll.u32 %v1229, 16
      %v1340 = vrot.slane %v1338, 5
      %v1341 = vsel %vm553, %v1336, %v1340
      %s1342 = scalar_lea.vmem %s1, 320
      %v1343 = vld [vmem:[%s1342] sm:$0xf]
      %v1344 = vld [vmem:[%s1342 + $0x4] sm:$0xf]
      %v1345 = vld [vmem:[%s1342 + $0x8] sm:$0xf]
      %v1346 = vld [vmem:[%s1342 + $0xc] sm:$0xf]
      %v1347 = vld [vmem:[%s1342 + $0x10] sm:$0xf]
      %v1348 = vld [vmem:[%s1342 + $0x14] sm:$0xf]
      %v1349 = vld [vmem:[%s1342 + $0x18] sm:$0xf]
      %v1350 = vld [vmem:[%s1342 + $0x1c] sm:$0xf]
      %v1351 = vld [vmem:[%s1342 + $0x20] sm:$0xf]
      %v1352 = vld [vmem:[%s1342 + $0x24] sm:$0xf]
      %v1353 = vld [vmem:[%s1342 + $0x28] sm:$0xf]
      %v1354 = vld [vmem:[%s1342 + $0x2c] sm:$0xf]
      %v1355 = vld [vmem:[%s1342 + $0x30] sm:$0xf]
      %v1356 = vld [vmem:[%s1342 + $0x34] sm:$0xf]
      %v1357 = vld [vmem:[%s1342 + $0x38] sm:$0xf]
      %v1358 = vld [vmem:[%s1342 + $0x3c] sm:$0xf]
      %v1359 = vunpack.c.l.b16 %v1243
      %v1360 = vunpack.c.l.b16 %v1257
      %v1361 = vunpack.c.l.b16 %v1271
      %v1362 = vunpack.c.l.b16 %v1285
      %v1363 = vunpack.c.l.b16 %v1299
      %v1364 = vunpack.c.l.b16 %v1313
      %v1365 = vunpack.c.l.b16 %v1327
      %v1366 = vunpack.c.l.b16 %v1341
      %v1367 = vpack.c.b16 %v1360, %v1359
      %v1368 = vpack.c.b16 %v1362, %v1361
      %v1369 = vpack.c.b16 %v1364, %v1363
      %v1370 = vpack.c.b16 %v1366, %v1365
      %v1391 = vunpack.c.l.b16 %v1343
      %v1392 = vunpack.c.l.b16 %v1344
      %v1393 = vunpack.c.l.b16 %v1345
      %v1394 = vunpack.c.l.b16 %v1346
      %v1395 = vunpack.c.l.b16 %v1347
      %v1396 = vunpack.c.l.b16 %v1348
      %v1397 = vunpack.c.l.b16 %v1349
      %v1398 = vunpack.c.l.b16 %v1350
      %v1399 = vunpack.c.l.b16 %v1351
      %v1400 = vunpack.c.l.b16 %v1352
      %v1401 = vunpack.c.l.b16 %v1353
      %v1402 = vunpack.c.l.b16 %v1354
      %v1403 = vunpack.c.l.b16 %v1355
      %v1404 = vunpack.c.l.b16 %v1356
      %v1405 = vunpack.c.l.b16 %v1357
      %v1406 = vunpack.c.l.b16 %v1358
      %v1407 = vpack.c.b16 %v1392, %v1391
      %v1408 = vpack.c.b16 %v1394, %v1393
      %v1409 = vpack.c.b16 %v1396, %v1395
      %v1410 = vpack.c.b16 %v1398, %v1397
      %v1411 = vpack.c.b16 %v1400, %v1399
      %v1412 = vpack.c.b16 %v1402, %v1401
      %v1413 = vpack.c.b16 %v1404, %v1403
      %v1414 = vpack.c.b16 %v1406, %v1405
      %1423 = vmatprep.subr.bf16.mxu0 0
      %1424 = vmatpush1.bf16.msra.mxu0 %v1407
      %1425 = vmatprep.subr.bf16.mxu0 0
      %1426 = vmatpush1.bf16.msra.mxu0 %v1408
      %1427 = vmatprep.subr.bf16.mxu0 0
      %1428 = vmatpush1.bf16.msra.mxu0 %v1409
      %1429 = vmatprep.subr.bf16.mxu0 0
      %1430 = vmatpush1.bf16.msra.mxu0 %v1410
      %1431 = vmatprep.subr.bf16.mxu0 0
      %1432 = vmatpush1.bf16.msra.mxu0 %v1411
      %1433 = vmatprep.subr.bf16.mxu0 0
      %1434 = vmatpush1.bf16.msra.mxu0 %v1412
      %1435 = vmatprep.subr.bf16.mxu0 0
      %1436 = vmatpush1.bf16.msra.mxu0 %v1413
      %1437 = vmatprep.subr.bf16.mxu0 0
      %1438 = vmatpush1.bf16.msra.mxu0 %v1414
      %1439 = vmatprep.subr.bf16.mxu0 0
      %1440 = vmatpush1.bf16.msra.mxu0 0
      %1441 = vmatprep.subr.bf16.mxu0 0
      %1442 = vmatpush1.bf16.msra.mxu0 0
      %1443 = vmatprep.subr.bf16.mxu0 0
      %1444 = vmatpush1.bf16.msra.mxu0 0
      %1445 = vmatprep.subr.bf16.mxu0 0
      %1446 = vmatpush1.bf16.msra.mxu0 0
      %1447 = vmatprep.subr.bf16.mxu0 0
      %1448 = vmatpush1.bf16.msra.mxu0 0
      %1449 = vmatprep.subr.bf16.mxu0 0
      %1450 = vmatpush1.bf16.msra.mxu0 0
      %1451 = vmatprep.subr.bf16.mxu0 0
      %1452 = vmatpush1.bf16.msra.mxu0 0
      %1453 = vmatprep.subr.bf16.mxu0 0
      %1454 = vmatpush1.bf16.msra.mxu0 0
      %1455 = vmatprep.mubr.bf16.mxu0 0
      %1456 = vmatmul.mubr.bf16.gmra.mrb[0].mxu0 %v1367
      %v1457 = vpop.f32.mrb[0].mxu0
      %v1458 = vadd.f32 0.0, %v1457
      %v1459 = vpop.f32.mrb[0].mxu0
      %v1460 = vpop.f32.mrb[0].mxu0
      %v1461 = vadd.f32 0.0, %v1460
      %v1462 = vpop.f32.mrb[0].mxu0
      %1463 = vmatprep.mubr.bf16.mxu0 0
      %1464 = vmatmul.mubr.bf16.gmra.mrb[0].mxu0 %v1368
      %v1465 = vpop.f32.mrb[0].mxu0
      %v1466 = vadd.f32 0.0, %v1465
      %v1467 = vpop.f32.mrb[0].mxu0
      %v1468 = vpop.f32.mrb[0].mxu0
      %v1469 = vadd.f32 0.0, %v1468
      %v1470 = vpop.f32.mrb[0].mxu0
      %1471 = vmatprep.mubr.bf16.mxu0 0
      %1472 = vmatmul.mubr.bf16.gmra.mrb[0].mxu0 %v1369
      %v1473 = vpop.f32.mrb[0].mxu0
      %v1474 = vadd.f32 0.0, %v1473
      %v1475 = vpop.f32.mrb[0].mxu0
      %v1476 = vpop.f32.mrb[0].mxu0
      %v1477 = vadd.f32 0.0, %v1476
      %v1478 = vpop.f32.mrb[0].mxu0
      %1479 = vmatprep.mubr.bf16.mxu0 0
      %1480 = vmatmul.mubr.bf16.gmra.mrb[0].mxu0 %v1370
      %v1481 = vpop.f32.mrb[0].mxu0
      %v1482 = vadd.f32 0.0, %v1481
      %v1483 = vpop.f32.mrb[0].mxu0
      %v1484 = vpop.f32.mrb[0].mxu0
      %v1485 = vadd.f32 0.0, %v1484
      %v1486 = vpop.f32.mrb[0].mxu0
      %1487 = vdwg.mxu0
      %v1488 = vld [vmem:[#allocation2] sm:$0xff]
      %v1489 = vld [vmem:[#allocation2 + $0x8] sm:$0xff]
      %v1490 = vld [vmem:[#allocation2 + $0x10] sm:$0xff]
      %v1491 = vld [vmem:[#allocation2 + $0x18] sm:$0xff]
      %v1492 = vld [vmem:[#allocation2 + $0x20] sm:$0xff]
      %v1493 = vld [vmem:[#allocation2 + $0x28] sm:$0xff]
      %v1494 = vld [vmem:[#allocation2 + $0x30] sm:$0xff]
      %v1495 = vld [vmem:[#allocation2 + $0x38] sm:$0xff]
      %v1496 = vadd.f32 %v1488, %v1458
      %v1497 = vadd.f32 %v1489, %v1461
      %v1498 = vadd.f32 %v1490, %v1466
      %v1499 = vadd.f32 %v1491, %v1469
      %v1500 = vadd.f32 %v1492, %v1474
      %v1501 = vadd.f32 %v1493, %v1477
      %v1502 = vadd.f32 %v1494, %v1482
      %v1503 = vadd.f32 %v1495, %v1485
      %1504 = vst [vmem:[#allocation2] sm:$0xff] %v1496
      %1505 = vst [vmem:[#allocation2 + $0x8] sm:$0xff] %v1497
      %1506 = vst [vmem:[#allocation2 + $0x10] sm:$0xff] %v1498
      %1507 = vst [vmem:[#allocation2 + $0x18] sm:$0xff] %v1499
      %1508 = vst [vmem:[#allocation2 + $0x20] sm:$0xff] %v1500
      %1509 = vst [vmem:[#allocation2 + $0x28] sm:$0xff] %v1501
      %1510 = vst [vmem:[#allocation2 + $0x30] sm:$0xff] %v1502
      %1511 = vst [vmem:[#allocation2 + $0x38] sm:$0xff] %v1503
      %s1512 = sadd.s32 %s173, 1
      %s1513 = smul.u32 %s1512, 2
      %s1514 = smul.addr %s1513, 4
      %s1515 = scalar_lea.vmem %s160, %s1514
      %v1516 = vld [vmem:[%s1515] sm:$0xf]
      %v1517 = vld [vmem:[%s1515 + $0x8] sm:$0xf]
      %v1518 = vld [vmem:[%s1515 + $0x10] sm:$0xf]
      %v1519 = vld [vmem:[%s1515 + $0x18] sm:$0xf]
      %v1520 = vld [vmem:[%s1515 + $0x20] sm:$0xf]
      %v1521 = vld [vmem:[%s1515 + $0x28] sm:$0xf]
      %v1522 = vld [vmem:[%s1515 + $0x30] sm:$0xf]
      %v1523 = vld [vmem:[%s1515 + $0x38] sm:$0xf]
      %s1524 = scalar_lea.vmem %s1, 384
      %v1525 = vld [vmem:[%s1524] sm:$0xf]
      %v1526 = vld [vmem:[%s1524 + $0x4] sm:$0xf]
      %v1527 = vld [vmem:[%s1524 + $0x8] sm:$0xf]
      %v1528 = vld [vmem:[%s1524 + $0xc] sm:$0xf]
      %v1529 = vld [vmem:[%s1524 + $0x10] sm:$0xf]
      %v1530 = vld [vmem:[%s1524 + $0x14] sm:$0xf]
      %v1531 = vld [vmem:[%s1524 + $0x18] sm:$0xf]
      %v1532 = vld [vmem:[%s1524 + $0x1c] sm:$0xf]
      %v1533 = vld [vmem:[%s1524 + $0x20] sm:$0xf]
      %v1534 = vld [vmem:[%s1524 + $0x24] sm:$0xf]
      %v1535 = vld [vmem:[%s1524 + $0x28] sm:$0xf]
      %v1536 = vld [vmem:[%s1524 + $0x2c] sm:$0xf]
      %v1537 = vld [vmem:[%s1524 + $0x30] sm:$0xf]
      %v1538 = vld [vmem:[%s1524 + $0x34] sm:$0xf]
      %v1539 = vld [vmem:[%s1524 + $0x38] sm:$0xf]
      %v1540 = vld [vmem:[%s1524 + $0x3c] sm:$0xf]
      %v1549 = vunpack.c.l.b16 %v1516
      %v1550 = vunpack.c.l.b16 %v1517
      %v1551 = vunpack.c.l.b16 %v1518
      %v1552 = vunpack.c.l.b16 %v1519
      %v1553 = vunpack.c.l.b16 %v1520
      %v1554 = vunpack.c.l.b16 %v1521
      %v1555 = vunpack.c.l.b16 %v1522
      %v1556 = vunpack.c.l.b16 %v1523
      %v1557 = vpack.c.b16 %v1550, %v1549
      %v1558 = vpack.c.b16 %v1552, %v1551
      %v1559 = vpack.c.b16 %v1554, %v1553
      %v1560 = vpack.c.b16 %v1556, %v1555
      %v1581 = vunpack.c.l.b16 %v1525
      %v1582 = vunpack.c.l.b16 %v1526
      %v1583 = vunpack.c.l.b16 %v1527
      %v1584 = vunpack.c.l.b16 %v1528
      %v1585 = vunpack.c.l.b16 %v1529
      %v1586 = vunpack.c.l.b16 %v1530
      %v1587 = vunpack.c.l.b16 %v1531
      %v1588 = vunpack.c.l.b16 %v1532
      %v1589 = vunpack.c.l.b16 %v1533
      %v1590 = vunpack.c.l.b16 %v1534
      %v1591 = vunpack.c.l.b16 %v1535
      %v1592 = vunpack.c.l.b16 %v1536
      %v1593 = vunpack.c.l.b16 %v1537
      %v1594 = vunpack.c.l.b16 %v1538
      %v1595 = vunpack.c.l.b16 %v1539
      %v1596 = vunpack.c.l.b16 %v1540
      %v1597 = vpack.c.b16 %v1582, %v1581
      %v1598 = vpack.c.b16 %v1584, %v1583
      %v1599 = vpack.c.b16 %v1586, %v1585
      %v1600 = vpack.c.b16 %v1588, %v1587
      %v1601 = vpack.c.b16 %v1590, %v1589
      %v1602 = vpack.c.b16 %v1592, %v1591
      %v1603 = vpack.c.b16 %v1594, %v1593
      %v1604 = vpack.c.b16 %v1596, %v1595
      %1613 = vmatprep.subr.bf16.mxu0 0
      %1614 = vmatpush1.bf16.msra.mxu0 %v1597
      %1615 = vmatprep.subr.bf16.mxu0 0
      %1616 = vmatpush1.bf16.msra.mxu0 %v1598
      %1617 = vmatprep.subr.bf16.mxu0 0
      %1618 = vmatpush1.bf16.msra.mxu0 %v1599
      %1619 = vmatprep.subr.bf16.mxu0 0
      %1620 = vmatpush1.bf16.msra.mxu0 %v1600
      %1621 = vmatprep.subr.bf16.mxu0 0
      %1622 = vmatpush1.bf16.msra.mxu0 %v1601
      %1623 = vmatprep.subr.bf16.mxu0 0
      %1624 = vmatpush1.bf16.msra.mxu0 %v1602
      %1625 = vmatprep.subr.bf16.mxu0 0
      %1626 = vmatpush1.bf16.msra.mxu0 %v1603
      %1627 = vmatprep.subr.bf16.mxu0 0
      %1628 = vmatpush1.bf16.msra.mxu0 %v1604
      %1629 = vmatprep.subr.bf16.mxu0 0
      %1630 = vmatpush1.bf16.msra.mxu0 0
      %1631 = vmatprep.subr.bf16.mxu0 0
      %1632 = vmatpush1.bf16.msra.mxu0 0
      %1633 = vmatprep.subr.bf16.mxu0 0
      %1634 = vmatpush1.bf16.msra.mxu0 0
      %1635 = vmatprep.subr.bf16.mxu0 0
      %1636 = vmatpush1.bf16.msra.mxu0 0
      %1637 = vmatprep.subr.bf16.mxu0 0
      %1638 = vmatpush1.bf16.msra.mxu0 0
      %1639 = vmatprep.subr.bf16.mxu0 0
      %1640 = vmatpush1.bf16.msra.mxu0 0
      %1641 = vmatprep.subr.bf16.mxu0 0
      %1642 = vmatpush1.bf16.msra.mxu0 0
      %1643 = vmatprep.subr.bf16.mxu0 0
      %1644 = vmatpush1.bf16.msra.mxu0 0
      %1645 = vmatprep.mubr.bf16.mxu0 0
      %1646 = vmatmul.mubr.bf16.gmra.mrb[0].mxu0 %v1557
      %v1647 = vpop.f32.mrb[0].mxu0
      %v1648 = vadd.f32 0.0, %v1647
      %v1649 = vpop.f32.mrb[0].mxu0
      %v1650 = vpop.f32.mrb[0].mxu0
      %v1651 = vadd.f32 0.0, %v1650
      %v1652 = vpop.f32.mrb[0].mxu0
      %1653 = vmatprep.mubr.bf16.mxu0 0
      %1654 = vmatmul.mubr.bf16.gmra.mrb[0].mxu0 %v1558
      %v1655 = vpop.f32.mrb[0].mxu0
      %v1656 = vadd.f32 0.0, %v1655
      %v1657 = vpop.f32.mrb[0].mxu0
      %v1658 = vpop.f32.mrb[0].mxu0
      %v1659 = vadd.f32 0.0, %v1658
      %v1660 = vpop.f32.mrb[0].mxu0
      %1661 = vmatprep.mubr.bf16.mxu0 0
      %1662 = vmatmul.mubr.bf16.gmra.mrb[0].mxu0 %v1559
      %v1663 = vpop.f32.mrb[0].mxu0
      %v1664 = vadd.f32 0.0, %v1663
      %v1665 = vpop.f32.mrb[0].mxu0
      %v1666 = vpop.f32.mrb[0].mxu0
      %v1667 = vadd.f32 0.0, %v1666
      %v1668 = vpop.f32.mrb[0].mxu0
      %1669 = vmatprep.mubr.bf16.mxu0 0
      %1670 = vmatmul.mubr.bf16.gmra.mrb[0].mxu0 %v1560
      %v1671 = vpop.f32.mrb[0].mxu0
      %v1672 = vadd.f32 0.0, %v1671
      %v1673 = vpop.f32.mrb[0].mxu0
      %v1674 = vpop.f32.mrb[0].mxu0
      %v1675 = vadd.f32 0.0, %v1674
      %v1676 = vpop.f32.mrb[0].mxu0
      %1677 = vdwg.mxu0
      %v1678 = vld [vmem:[#allocation2] sm:$0xff]
      %v1679 = vld [vmem:[#allocation2 + $0x8] sm:$0xff]
      %v1680 = vld [vmem:[#allocation2 + $0x10] sm:$0xff]
      %v1681 = vld [vmem:[#allocation2 + $0x18] sm:$0xff]
      %v1682 = vld [vmem:[#allocation2 + $0x20] sm:$0xff]
      %v1683 = vld [vmem:[#allocation2 + $0x28] sm:$0xff]
      %v1684 = vld [vmem:[#allocation2 + $0x30] sm:$0xff]
      %v1685 = vld [vmem:[#allocation2 + $0x38] sm:$0xff]
      %v1686 = vadd.f32 %v1678, %v1648
      %v1687 = vadd.f32 %v1679, %v1651
      %v1688 = vadd.f32 %v1680, %v1656
      %v1689 = vadd.f32 %v1681, %v1659
      %v1690 = vadd.f32 %v1682, %v1664
      %v1691 = vadd.f32 %v1683, %v1667
      %v1692 = vadd.f32 %v1684, %v1672
      %v1693 = vadd.f32 %v1685, %v1675
      %1694 = vst [vmem:[#allocation2] sm:$0xff] %v1686
      %1695 = vst [vmem:[#allocation2 + $0x8] sm:$0xff] %v1687
      %1696 = vst [vmem:[#allocation2 + $0x10] sm:$0xff] %v1688
      %1697 = vst [vmem:[#allocation2 + $0x18] sm:$0xff] %v1689
      %1698 = vst [vmem:[#allocation2 + $0x20] sm:$0xff] %v1690
      %1699 = vst [vmem:[#allocation2 + $0x28] sm:$0xff] %v1691
      %1700 = vst [vmem:[#allocation2 + $0x30] sm:$0xff] %v1692
      %1701 = vst [vmem:[#allocation2 + $0x38] sm:$0xff] %v1693
      %s1702 = sadd.s32 %s1513, 18
      %s1703 = smul.addr %s1702, 4
      %s1704 = scalar_lea.vmem %s160, %s1703
      %v1705 = vld [vmem:[%s1704] sm:$0xf]
      %v1706 = vld [vmem:[%s1704 + $0x8] sm:$0xf]
      %v1707 = vld [vmem:[%s1704 + $0x10] sm:$0xf]
      %v1708 = vld [vmem:[%s1704 + $0x18] sm:$0xf]
      %v1709 = vld [vmem:[%s1704 + $0x20] sm:$0xf]
      %v1710 = vld [vmem:[%s1704 + $0x28] sm:$0xf]
      %v1711 = vld [vmem:[%s1704 + $0x30] sm:$0xf]
      %v1712 = vld [vmem:[%s1704 + $0x38] sm:$0xf]
      %s1713 = scalar_lea.vmem %s1, 448
      %v1714 = vld [vmem:[%s1713] sm:$0xf]
      %v1715 = vld [vmem:[%s1713 + $0x4] sm:$0xf]
      %v1716 = vld [vmem:[%s1713 + $0x8] sm:$0xf]
      %v1717 = vld [vmem:[%s1713 + $0xc] sm:$0xf]
      %v1718 = vld [vmem:[%s1713 + $0x10] sm:$0xf]
      %v1719 = vld [vmem:[%s1713 + $0x14] sm:$0xf]
      %v1720 = vld [vmem:[%s1713 + $0x18] sm:$0xf]
      %v1721 = vld [vmem:[%s1713 + $0x1c] sm:$0xf]
      %v1722 = vld [vmem:[%s1713 + $0x20] sm:$0xf]
      %v1723 = vld [vmem:[%s1713 + $0x24] sm:$0xf]
      %v1724 = vld [vmem:[%s1713 + $0x28] sm:$0xf]
      %v1725 = vld [vmem:[%s1713 + $0x2c] sm:$0xf]
      %v1726 = vld [vmem:[%s1713 + $0x30] sm:$0xf]
      %v1727 = vld [vmem:[%s1713 + $0x34] sm:$0xf]
      %v1728 = vld [vmem:[%s1713 + $0x38] sm:$0xf]
      %v1729 = vld [vmem:[%s1713 + $0x3c] sm:$0xf]
      %v1738 = vunpack.c.l.b16 %v1705
      %v1739 = vunpack.c.l.b16 %v1706
      %v1740 = vunpack.c.l.b16 %v1707
      %v1741 = vunpack.c.l.b16 %v1708
      %v1742 = vunpack.c.l.b16 %v1709
      %v1743 = vunpack.c.l.b16 %v1710
      %v1744 = vunpack.c.l.b16 %v1711
      %v1745 = vunpack.c.l.b16 %v1712
      %v1746 = vpack.c.b16 %v1739, %v1738
      %v1747 = vpack.c.b16 %v1741, %v1740
      %v1748 = vpack.c.b16 %v1743, %v1742
      %v1749 = vpack.c.b16 %v1745, %v1744
      %v1770 = vunpack.c.l.b16 %v1714
      %v1771 = vunpack.c.l.b16 %v1715
      %v1772 = vunpack.c.l.b16 %v1716
      %v1773 = vunpack.c.l.b16 %v1717
      %v1774 = vunpack.c.l.b16 %v1718
      %v1775 = vunpack.c.l.b16 %v1719
      %v1776 = vunpack.c.l.b16 %v1720
      %v1777 = vunpack.c.l.b16 %v1721
      %v1778 = vunpack.c.l.b16 %v1722
      %v1779 = vunpack.c.l.b16 %v1723
      %v1780 = vunpack.c.l.b16 %v1724
      %v1781 = vunpack.c.l.b16 %v1725
      %v1782 = vunpack.c.l.b16 %v1726
      %v1783 = vunpack.c.l.b16 %v1727
      %v1784 = vunpack.c.l.b16 %v1728
      %v1785 = vunpack.c.l.b16 %v1729
      %v1786 = vpack.c.b16 %v1771, %v1770
      %v1787 = vpack.c.b16 %v1773, %v1772
      %v1788 = vpack.c.b16 %v1775, %v1774
      %v1789 = vpack.c.b16 %v1777, %v1776
      %v1790 = vpack.c.b16 %v1779, %v1778
      %v1791 = vpack.c.b16 %v1781, %v1780
      %v1792 = vpack.c.b16 %v1783, %v1782
      %v1793 = vpack.c.b16 %v1785, %v1784
      %1802 = vmatprep.subr.bf16.mxu0 0
      %1803 = vmatpush1.bf16.msra.mxu0 %v1786
      %1804 = vmatprep.subr.bf16.mxu0 0
      %1805 = vmatpush1.bf16.msra.mxu0 %v1787
      %1806 = vmatprep.subr.bf16.mxu0 0
      %1807 = vmatpush1.bf16.msra.mxu0 %v1788
      %1808 = vmatprep.subr.bf16.mxu0 0
      %1809 = vmatpush1.bf16.msra.mxu0 %v1789
      %1810 = vmatprep.subr.bf16.mxu0 0
      %1811 = vmatpush1.bf16.msra.mxu0 %v1790
      %1812 = vmatprep.subr.bf16.mxu0 0
      %1813 = vmatpush1.bf16.msra.mxu0 %v1791
      %1814 = vmatprep.subr.bf16.mxu0 0
      %1815 = vmatpush1.bf16.msra.mxu0 %v1792
      %1816 = vmatprep.subr.bf16.mxu0 0
      %1817 = vmatpush1.bf16.msra.mxu0 %v1793
      %1818 = vmatprep.subr.bf16.mxu0 0
      %1819 = vmatpush1.bf16.msra.mxu0 0
      %1820 = vmatprep.subr.bf16.mxu0 0
      %1821 = vmatpush1.bf16.msra.mxu0 0
      %1822 = vmatprep.subr.bf16.mxu0 0
      %1823 = vmatpush1.bf16.msra.mxu0 0
      %1824 = vmatprep.subr.bf16.mxu0 0
      %1825 = vmatpush1.bf16.msra.mxu0 0
      %1826 = vmatprep.subr.bf16.mxu0 0
      %1827 = vmatpush1.bf16.msra.mxu0 0
      %1828 = vmatprep.subr.bf16.mxu0 0
      %1829 = vmatpush1.bf16.msra.mxu0 0
      %1830 = vmatprep.subr.bf16.mxu0 0
      %1831 = vmatpush1.bf16.msra.mxu0 0
      %1832 = vmatprep.subr.bf16.mxu0 0
      %1833 = vmatpush1.bf16.msra.mxu0 0
      %1834 = vmatprep.mubr.bf16.mxu0 0
      %1835 = vmatmul.mubr.bf16.gmra.mrb[0].mxu0 %v1746
      %v1836 = vpop.f32.mrb[0].mxu0
      %v1837 = vadd.f32 0.0, %v1836
      %v1838 = vpop.f32.mrb[0].mxu0
      %v1839 = vpop.f32.mrb[0].mxu0
      %v1840 = vadd.f32 0.0, %v1839
      %v1841 = vpop.f32.mrb[0].mxu0
      %1842 = vmatprep.mubr.bf16.mxu0 0
      %1843 = vmatmul.mubr.bf16.gmra.mrb[0].mxu0 %v1747
      %v1844 = vpop.f32.mrb[0].mxu0
      %v1845 = vadd.f32 0.0, %v1844
      %v1846 = vpop.f32.mrb[0].mxu0
      %v1847 = vpop.f32.mrb[0].mxu0
      %v1848 = vadd.f32 0.0, %v1847
      %v1849 = vpop.f32.mrb[0].mxu0
      %1850 = vmatprep.mubr.bf16.mxu0 0
      %1851 = vmatmul.mubr.bf16.gmra.mrb[0].mxu0 %v1748
      %v1852 = vpop.f32.mrb[0].mxu0
      %v1853 = vadd.f32 0.0, %v1852
      %v1854 = vpop.f32.mrb[0].mxu0
      %v1855 = vpop.f32.mrb[0].mxu0
      %v1856 = vadd.f32 0.0, %v1855
      %v1857 = vpop.f32.mrb[0].mxu0
      %1858 = vmatprep.mubr.bf16.mxu0 0
      %1859 = vmatmul.mubr.bf16.gmra.mrb[0].mxu0 %v1749
      %v1860 = vpop.f32.mrb[0].mxu0
      %v1861 = vadd.f32 0.0, %v1860
      %v1862 = vpop.f32.mrb[0].mxu0
      %v1863 = vpop.f32.mrb[0].mxu0
      %v1864 = vadd.f32 0.0, %v1863
      %v1865 = vpop.f32.mrb[0].mxu0
      %1866 = vdwg.mxu0
      %v1867 = vld [vmem:[#allocation2] sm:$0xff]
      %v1868 = vld [vmem:[#allocation2 + $0x8] sm:$0xff]
      %v1869 = vld [vmem:[#allocation2 + $0x10] sm:$0xff]
      %v1870 = vld [vmem:[#allocation2 + $0x18] sm:$0xff]
      %v1871 = vld [vmem:[#allocation2 + $0x20] sm:$0xff]
      %v1872 = vld [vmem:[#allocation2 + $0x28] sm:$0xff]
      %v1873 = vld [vmem:[#allocation2 + $0x30] sm:$0xff]
      %v1874 = vld [vmem:[#allocation2 + $0x38] sm:$0xff]
      %v1875 = vadd.f32 %v1867, %v1837
      %v1876 = vadd.f32 %v1868, %v1840
      %v1877 = vadd.f32 %v1869, %v1845
      %v1878 = vadd.f32 %v1870, %v1848
      %v1879 = vadd.f32 %v1871, %v1853
      %v1880 = vadd.f32 %v1872, %v1856
      %v1881 = vadd.f32 %v1873, %v1861
      %v1882 = vadd.f32 %v1874, %v1864
      %1883 = vst [vmem:[#allocation2] sm:$0xff] %v1875
      %1884 = vst [vmem:[#allocation2 + $0x8] sm:$0xff] %v1876
      %1885 = vst [vmem:[#allocation2 + $0x10] sm:$0xff] %v1877
      %1886 = vst [vmem:[#allocation2 + $0x18] sm:$0xff] %v1878
      %1887 = vst [vmem:[#allocation2 + $0x20] sm:$0xff] %v1879
      %1888 = vst [vmem:[#allocation2 + $0x28] sm:$0xff] %v1880
      %1889 = vst [vmem:[#allocation2 + $0x30] sm:$0xff] %v1881
      %1890 = vst [vmem:[#allocation2 + $0x38] sm:$0xff] %v1882
      %v1891 = vld [vmem:[%s1515] sm:$0xf]
      %v1892 = vld [vmem:[%s1515 + $0x4] sm:$0x1]
      %v1893 = vld [vmem:[%s1515 + $0x8] sm:$0xf]
      %v1894 = vld [vmem:[%s1515 + $0xc] sm:$0x1]
      %v1895 = vld [vmem:[%s1515 + $0x10] sm:$0xf]
      %v1896 = vld [vmem:[%s1515 + $0x14] sm:$0x1]
      %v1897 = vld [vmem:[%s1515 + $0x18] sm:$0xf]
      %v1898 = vld [vmem:[%s1515 + $0x1c] sm:$0x1]
      %v1899 = vld [vmem:[%s1515 + $0x20] sm:$0xf]
      %v1900 = vld [vmem:[%s1515 + $0x24] sm:$0x1]
      %v1901 = vld [vmem:[%s1515 + $0x28] sm:$0xf]
      %v1902 = vld [vmem:[%s1515 + $0x2c] sm:$0x1]
      %v1903 = vld [vmem:[%s1515 + $0x30] sm:$0xf]
      %v1904 = vld [vmem:[%s1515 + $0x34] sm:$0x1]
      %v1905 = vld [vmem:[%s1515 + $0x38] sm:$0xf]
      %v1906 = vld [vmem:[%s1515 + $0x3c] sm:$0x1]
      %v1908 = vshrl.u32 %v1891, 16
      %v1910 = vrot.slane %v1908, 4
      %v1911 = vshll.u32 %v1891, 16
      %v1913 = vrot.slane %v1911, 5
      %v1914 = vor.u32 %v1910, %v1913
      %v1915 = vrot.slane %v1914, 4
      %v1917 = vshll.u32 %v1892, 16
      %v1919 = vrot.slane %v1917, 5
      %v1920 = vsel %vm553, %v1915, %v1919
      %v1922 = vshrl.u32 %v1893, 16
      %v1924 = vrot.slane %v1922, 4
      %v1925 = vshll.u32 %v1893, 16
      %v1927 = vrot.slane %v1925, 5
      %v1928 = vor.u32 %v1924, %v1927
      %v1929 = vrot.slane %v1928, 4
      %v1931 = vshll.u32 %v1894, 16
      %v1933 = vrot.slane %v1931, 5
      %v1934 = vsel %vm553, %v1929, %v1933
      %v1936 = vshrl.u32 %v1895, 16
      %v1938 = vrot.slane %v1936, 4
      %v1939 = vshll.u32 %v1895, 16
      %v1941 = vrot.slane %v1939, 5
      %v1942 = vor.u32 %v1938, %v1941
      %v1943 = vrot.slane %v1942, 4
      %v1945 = vshll.u32 %v1896, 16
      %v1947 = vrot.slane %v1945, 5
      %v1948 = vsel %vm553, %v1943, %v1947
      %v1950 = vshrl.u32 %v1897, 16
      %v1952 = vrot.slane %v1950, 4
      %v1953 = vshll.u32 %v1897, 16
      %v1955 = vrot.slane %v1953, 5
      %v1956 = vor.u32 %v1952, %v1955
      %v1957 = vrot.slane %v1956, 4
      %v1959 = vshll.u32 %v1898, 16
      %v1961 = vrot.slane %v1959, 5
      %v1962 = vsel %vm553, %v1957, %v1961
      %v1964 = vshrl.u32 %v1899, 16
      %v1966 = vrot.slane %v1964, 4
      %v1967 = vshll.u32 %v1899, 16
      %v1969 = vrot.slane %v1967, 5
      %v1970 = vor.u32 %v1966, %v1969
      %v1971 = vrot.slane %v1970, 4
      %v1973 = vshll.u32 %v1900, 16
      %v1975 = vrot.slane %v1973, 5
      %v1976 = vsel %vm553, %v1971, %v1975
      %v1978 = vshrl.u32 %v1901, 16
      %v1980 = vrot.slane %v1978, 4
      %v1981 = vshll.u32 %v1901, 16
      %v1983 = vrot.slane %v1981, 5
      %v1984 = vor.u32 %v1980, %v1983
      %v1985 = vrot.slane %v1984, 4
      %v1987 = vshll.u32 %v1902, 16
      %v1989 = vrot.slane %v1987, 5
      %v1990 = vsel %vm553, %v1985, %v1989
      %v1992 = vshrl.u32 %v1903, 16
      %v1994 = vrot.slane %v1992, 4
      %v1995 = vshll.u32 %v1903, 16
      %v1997 = vrot.slane %v1995, 5
      %v1998 = vor.u32 %v1994, %v1997
      %v1999 = vrot.slane %v1998, 4
      %v2001 = vshll.u32 %v1904, 16
      %v2003 = vrot.slane %v2001, 5
      %v2004 = vsel %vm553, %v1999, %v2003
      %v2006 = vshrl.u32 %v1905, 16
      %v2008 = vrot.slane %v2006, 4
      %v2009 = vshll.u32 %v1905, 16
      %v2011 = vrot.slane %v2009, 5
      %v2012 = vor.u32 %v2008, %v2011
      %v2013 = vrot.slane %v2012, 4
      %v2015 = vshll.u32 %v1906, 16
      %v2017 = vrot.slane %v2015, 5
      %v2018 = vsel %vm553, %v2013, %v2017
      %s2019 = scalar_lea.vmem %s1, 512
      %v2020 = vld [vmem:[%s2019] sm:$0xf]
      %v2021 = vld [vmem:[%s2019 + $0x4] sm:$0xf]
      %v2022 = vld [vmem:[%s2019 + $0x8] sm:$0xf]
      %v2023 = vld [vmem:[%s2019 + $0xc] sm:$0xf]
      %v2024 = vld [vmem:[%s2019 + $0x10] sm:$0xf]
      %v2025 = vld [vmem:[%s2019 + $0x14] sm:$0xf]
      %v2026 = vld [vmem:[%s2019 + $0x18] sm:$0xf]
      %v2027 = vld [vmem:[%s2019 + $0x1c] sm:$0xf]
      %v2028 = vld [vmem:[%s2019 + $0x20] sm:$0xf]
      %v2029 = vld [vmem:[%s2019 + $0x24] sm:$0xf]
      %v2030 = vld [vmem:[%s2019 + $0x28] sm:$0xf]
      %v2031 = vld [vmem:[%s2019 + $0x2c] sm:$0xf]
      %v2032 = vld [vmem:[%s2019 + $0x30] sm:$0xf]
      %v2033 = vld [vmem:[%s2019 + $0x34] sm:$0xf]
      %v2034 = vld [vmem:[%s2019 + $0x38] sm:$0xf]
      %v2035 = vld [vmem:[%s2019 + $0x3c] sm:$0xf]
      %v2036 = vunpack.c.l.b16 %v1920
      %v2037 = vunpack.c.l.b16 %v1934
      %v2038 = vunpack.c.l.b16 %v1948
      %v2039 = vunpack.c.l.b16 %v1962
      %v2040 = vunpack.c.l.b16 %v1976
      %v2041 = vunpack.c.l.b16 %v1990
      %v2042 = vunpack.c.l.b16 %v2004
      %v2043 = vunpack.c.l.b16 %v2018
      %v2044 = vpack.c.b16 %v2037, %v2036
      %v2045 = vpack.c.b16 %v2039, %v2038
      %v2046 = vpack.c.b16 %v2041, %v2040
      %v2047 = vpack.c.b16 %v2043, %v2042
      %v2068 = vunpack.c.l.b16 %v2020
      %v2069 = vunpack.c.l.b16 %v2021
      %v2070 = vunpack.c.l.b16 %v2022
      %v2071 = vunpack.c.l.b16 %v2023
      %v2072 = vunpack.c.l.b16 %v2024
      %v2073 = vunpack.c.l.b16 %v2025
      %v2074 = vunpack.c.l.b16 %v2026
      %v2075 = vunpack.c.l.b16 %v2027
      %v2076 = vunpack.c.l.b16 %v2028
      %v2077 = vunpack.c.l.b16 %v2029
      %v2078 = vunpack.c.l.b16 %v2030
      %v2079 = vunpack.c.l.b16 %v2031
      %v2080 = vunpack.c.l.b16 %v2032
      %v2081 = vunpack.c.l.b16 %v2033
      %v2082 = vunpack.c.l.b16 %v2034
      %v2083 = vunpack.c.l.b16 %v2035
      %v2084 = vpack.c.b16 %v2069, %v2068
      %v2085 = vpack.c.b16 %v2071, %v2070
      %v2086 = vpack.c.b16 %v2073, %v2072
      %v2087 = vpack.c.b16 %v2075, %v2074
      %v2088 = vpack.c.b16 %v2077, %v2076
      %v2089 = vpack.c.b16 %v2079, %v2078
      %v2090 = vpack.c.b16 %v2081, %v2080
      %v2091 = vpack.c.b16 %v2083, %v2082
      %2100 = vmatprep.subr.bf16.mxu0 0
      %2101 = vmatpush1.bf16.msra.mxu0 %v2084
      %2102 = vmatprep.subr.bf16.mxu0 0
      %2103 = vmatpush1.bf16.msra.mxu0 %v2085
      %2104 = vmatprep.subr.bf16.mxu0 0
      %2105 = vmatpush1.bf16.msra.mxu0 %v2086
      %2106 = vmatprep.subr.bf16.mxu0 0
      %2107 = vmatpush1.bf16.msra.mxu0 %v2087
      %2108 = vmatprep.subr.bf16.mxu0 0
      %2109 = vmatpush1.bf16.msra.mxu0 %v2088
      %2110 = vmatprep.subr.bf16.mxu0 0
      %2111 = vmatpush1.bf16.msra.mxu0 %v2089
      %2112 = vmatprep.subr.bf16.mxu0 0
      %2113 = vmatpush1.bf16.msra.mxu0 %v2090
      %2114 = vmatprep.subr.bf16.mxu0 0
      %2115 = vmatpush1.bf16.msra.mxu0 %v2091
      %2116 = vmatprep.subr.bf16.mxu0 0
      %2117 = vmatpush1.bf16.msra.mxu0 0
      %2118 = vmatprep.subr.bf16.mxu0 0
      %2119 = vmatpush1.bf16.msra.mxu0 0
      %2120 = vmatprep.subr.bf16.mxu0 0
      %2121 = vmatpush1.bf16.msra.mxu0 0
      %2122 = vmatprep.subr.bf16.mxu0 0
      %2123 = vmatpush1.bf16.msra.mxu0 0
      %2124 = vmatprep.subr.bf16.mxu0 0
      %2125 = vmatpush1.bf16.msra.mxu0 0
      %2126 = vmatprep.subr.bf16.mxu0 0
      %2127 = vmatpush1.bf16.msra.mxu0 0
      %2128 = vmatprep.subr.bf16.mxu0 0
      %2129 = vmatpush1.bf16.msra.mxu0 0
      %2130 = vmatprep.subr.bf16.mxu0 0
      %2131 = vmatpush1.bf16.msra.mxu0 0
      %2132 = vmatprep.mubr.bf16.mxu0 0
      %2133 = vmatmul.mubr.bf16.gmra.mrb[0].mxu0 %v2044
      %v2134 = vpop.f32.mrb[0].mxu0
      %v2135 = vadd.f32 0.0, %v2134
      %v2136 = vpop.f32.mrb[0].mxu0
      %v2137 = vpop.f32.mrb[0].mxu0
      %v2138 = vadd.f32 0.0, %v2137
      %v2139 = vpop.f32.mrb[0].mxu0
      %2140 = vmatprep.mubr.bf16.mxu0 0
      %2141 = vmatmul.mubr.bf16.gmra.mrb[0].mxu0 %v2045
      %v2142 = vpop.f32.mrb[0].mxu0
      %v2143 = vadd.f32 0.0, %v2142
      %v2144 = vpop.f32.mrb[0].mxu0
      %v2145 = vpop.f32.mrb[0].mxu0
      %v2146 = vadd.f32 0.0, %v2145
      %v2147 = vpop.f32.mrb[0].mxu0
      %2148 = vmatprep.mubr.bf16.mxu0 0
      %2149 = vmatmul.mubr.bf16.gmra.mrb[0].mxu0 %v2046
      %v2150 = vpop.f32.mrb[0].mxu0
      %v2151 = vadd.f32 0.0, %v2150
      %v2152 = vpop.f32.mrb[0].mxu0
      %v2153 = vpop.f32.mrb[0].mxu0
      %v2154 = vadd.f32 0.0, %v2153
      %v2155 = vpop.f32.mrb[0].mxu0
      %2156 = vmatprep.mubr.bf16.mxu0 0
      %2157 = vmatmul.mubr.bf16.gmra.mrb[0].mxu0 %v2047
      %v2158 = vpop.f32.mrb[0].mxu0
      %v2159 = vadd.f32 0.0, %v2158
      %v2160 = vpop.f32.mrb[0].mxu0
      %v2161 = vpop.f32.mrb[0].mxu0
      %v2162 = vadd.f32 0.0, %v2161
      %v2163 = vpop.f32.mrb[0].mxu0
      %2164 = vdwg.mxu0
      %v2165 = vld [vmem:[#allocation2] sm:$0xff]
      %v2166 = vld [vmem:[#allocation2 + $0x8] sm:$0xff]
      %v2167 = vld [vmem:[#allocation2 + $0x10] sm:$0xff]
      %v2168 = vld [vmem:[#allocation2 + $0x18] sm:$0xff]
      %v2169 = vld [vmem:[#allocation2 + $0x20] sm:$0xff]
      %v2170 = vld [vmem:[#allocation2 + $0x28] sm:$0xff]
      %v2171 = vld [vmem:[#allocation2 + $0x30] sm:$0xff]
      %v2172 = vld [vmem:[#allocation2 + $0x38] sm:$0xff]
      %v2173 = vadd.f32 %v2165, %v2135
      %v2174 = vadd.f32 %v2166, %v2138
      %v2175 = vadd.f32 %v2167, %v2143
      %v2176 = vadd.f32 %v2168, %v2146
      %v2177 = vadd.f32 %v2169, %v2151
      %v2178 = vadd.f32 %v2170, %v2154
      %v2179 = vadd.f32 %v2171, %v2159
      %v2180 = vadd.f32 %v2172, %v2162
      %2181 = vst [vmem:[#allocation2] sm:$0xff] %v2173
      %2182 = vst [vmem:[#allocation2 + $0x8] sm:$0xff] %v2174
      %2183 = vst [vmem:[#allocation2 + $0x10] sm:$0xff] %v2175
      %2184 = vst [vmem:[#allocation2 + $0x18] sm:$0xff] %v2176
      %2185 = vst [vmem:[#allocation2 + $0x20] sm:$0xff] %v2177
      %2186 = vst [vmem:[#allocation2 + $0x28] sm:$0xff] %v2178
      %2187 = vst [vmem:[#allocation2 + $0x30] sm:$0xff] %v2179
      %2188 = vst [vmem:[#allocation2 + $0x38] sm:$0xff] %v2180
      %v2189 = vld [vmem:[#allocation2] sm:$0xff]
      %v2190 = vld [vmem:[#allocation2 + $0x8] sm:$0xff]
      %v2191 = vld [vmem:[#allocation2 + $0x10] sm:$0xff]
      %v2192 = vld [vmem:[#allocation2 + $0x18] sm:$0xff]
      %v2193 = vld [vmem:[#allocation2 + $0x20] sm:$0xff]
      %v2194 = vld [vmem:[#allocation2 + $0x28] sm:$0xff]
      %v2195 = vld [vmem:[#allocation2 + $0x30] sm:$0xff]
      %v2196 = vld [vmem:[#allocation2 + $0x38] sm:$0xff]
      %v2197 = vpack.c.bf16 %v2189, %v2189
      %v2198 = vpack.c.bf16 %v2190, %v2190
      %v2199 = vpack.c.bf16 %v2191, %v2191
      %v2200 = vpack.c.bf16 %v2192, %v2192
      %v2201 = vpack.c.bf16 %v2193, %v2193
      %v2202 = vpack.c.bf16 %v2194, %v2194
      %v2203 = vpack.c.bf16 %v2195, %v2195
      %v2204 = vpack.c.bf16 %v2196, %v2196
      %2205 = vst [vmem:[%s170] sm:$0xf] %v2197
      %2206 = vst [vmem:[%s170 + $0x4] sm:$0xf] %v2198
      %2207 = vst [vmem:[%s170 + $0x8] sm:$0xf] %v2199
      %2208 = vst [vmem:[%s170 + $0xc] sm:$0xf] %v2200
      %2209 = vst [vmem:[%s170 + $0x10] sm:$0xf] %v2201
      %2210 = vst [vmem:[%s170 + $0x14] sm:$0xf] %v2202
      %2211 = vst [vmem:[%s170 + $0x18] sm:$0xf] %v2203
      %2212 = vst [vmem:[%s170 + $0x1c] sm:$0xf] %v2204
      %s2213 = smul.u32 8, %s18
      %p2214 = scmp.lt.s32.totalorder %s17, 1
      %s2215 = scalar_select %p2214, %s17, 1
      %p2216 = scmp.lt.s32.totalorder %s2213, 7
      %s2217 = scalar_select %p2216, %s2213, 7
      %s2218 = smul.addr %s2215, 8
      %s2219 = sadd.s32 %s2217, %s2218
      %s2220 = smul.addr %s2219, 4
      %s2221 = scalar_lea.vmem %s2, %s2220
      // Predicated region
      $region29: #{block_group_forward.15} parent=27 // pred_check
        %p2222 = pneg %p92
      $region30: #{block_group_forward.15} parent=27 // pred_check_branch
        %2224 = sbr.rel (%p2222) target = $region32
      $region31: #{block_group_forward.15} parent=27 // pred_region
        %s2225 = smul.u32 8, %s18
      $region32: #{block_group_forward.15} parent=27 // pred_fallthru
        _
    $region28: #{block_group_forward.15} parent=5 // pred_fallthru
      _
    %p2226 = scmp.le.s32.totalorder 2, %s8
    // Predicated region
    $region33: #{block_group_forward.15} parent=5 // pred_check
      %p2227 = pneg %p2226
    $region34: #{block_group_forward.15} parent=5 // pred_check_branch
      %2229 = sbr.rel (%p2227) target = $region36
    $region35: #{block_group_forward.15} parent=5 // pred_region
      %s2230 = ssub.s32 %s8, 2
      // Predicated region
      $region37: #{block_group_forward.15} parent=35 // pred_check
        %p2231 = pneg %p98
      $region38: #{block_group_forward.15} parent=35 // pred_check_branch
        %2233 = sbr.rel (%p2231) target = $region40
      $region39: #{block_group_forward.15} parent=35 // pred_region
        %s2234 = smul.u32 8, %s20
        %p2235 = scmp.lt.s32.totalorder %s19, 1
        %s2236 = scalar_select %p2235, %s19, 1
        %p2237 = scmp.lt.s32.totalorder %s2234, 7
        %s2238 = scalar_select %p2237, %s2234, 7
        %s2239 = smul.addr %s2236, 8
        %s2240 = sadd.s32 %s2238, %s2239
        %s2241 = smul.addr %s2240, 4
        %s2242 = scalar_lea.vmem %s2, %s2241
      $region40: #{block_group_forward.15} parent=35 // pred_fallthru
        _
    $region36: #{block_group_forward.15} parent=5 // pred_fallthru
      _
  $region6: #{block_group_forward.15} parent=0 // loop_footer
    %s12 = sadd.s32 1, %s8
  $region7: #{block_group_forward.15} parent=0 // loop_footer_branch
    %7 = sbr.rel target = $region3
  $region8: #{block_group_forward.15} parent=0 // loop_exit
    _

// kernel: block_group_forward.18
$region0: #{block_group_forward.18}
  #allocation0 [shape = 'u32[]', space=smem, size = 0x4, offset = 0x4, fixed_abs, tag = 'smem constant byte address 0x4 - core index']
  #allocation1 [shape = 'u32[144,128]{1,0:T(1,128)}', space=vmem, size = 0x12000, scoped, tag = 'internal scratch']
  #allocation2 [shape = 'f32[64,128]{1,0:T(8,128)}', space=vmem, size = 0x8000, scoped, tag = 'scratch operand']
  %s0 = inlined_call_operand.vmem [shape: bf16[2,10,10,128], index: 0, kind: input, shape index: {}]
  %s1 = inlined_call_operand.vmem [shape: bf16[9,128,128], index: 1, kind: input, shape index: {}]
  %s2 = inlined_call_operand.vmem [shape: bf16[2,8,8,128], index: 2, kind: output, shape index: {}]
  %s3 = sld [smem:[#allocation0]]
  $region41: #{block_group_forward.18} parent=0
    _
  %s5 = ssub.s32 1, %s3
  %s6 = scalar_select 0, %s5, %s3
  loop: start=0, step=1, limit=4
  $region2: #{block_group_forward.18} parent=0 // loop_pre_header
    _
  $region3: #{block_group_forward.18} parent=0 // loop_header
    %s8 = sphi 0, %s12
    %p9 = scmp.ge.s32.totalorder %s8, 4
    %s15 = sphi 0, %s27
    %s16 = sphi 0, %s23
    %s17 = sphi 0, %s15
    %s18 = sphi 0, %s16
    %s19 = sphi 0, %s17
    %s20 = sphi 0, %s18
    %s30 = sphi 0, %s32
    %s33 = sphi 0, %s30
    %s34 = sphi 0, %s33
    %s50 = sphi 0, %s34
    %s54 = sphi 0, %s54
    %s56 = sphi 0, %s54
    %s57 = sphi 0, %s56
    %s71 = sphi 0, %s57
    %s79 = sphi 0, %s81
    %s82 = sphi 0, %s79
    %s83 = sphi 0, %s82
    %s99 = sphi 0, %s83
  $region4: #{block_group_forward.18} parent=0 // loop_header_branch
    %11 = sbr.rel (%p9) target = $region8
  $region5: #{block_group_forward.18} parent=0 // loop_body
    %s13 = ssub.s32 %s8, 1
    %s14 = ssub.s32 %s8, 2
    %s21 = sadd.s32 1, %s16
    %p22 = scmp.ge.s32.totalorder %s21, 1
    %s23 = scalar_select %p22, 0, %s21
    %s24 = sadd.s32 1, %s15
    %s25 = scalar_select %p22, %s24, %s15
    %p26 = scmp.ge.s32.totalorder %s25, 2
    %s27 = scalar_select %p26, 0, %s25
    %s28 = ssub.s32 %s15, %s27
    %p29 = scmp.eq.s32.totalorder %s28, 0
    %s31 = sadd.s32 %s30, 1
    %s32 = scalar_select %p29, %s30, %s31
    %p35 = pneg %p29
    %p36 = scmp.eq.s32.totalorder %s8, 1
    %p37 = por %p35, %p36
    %p38 = scmp.ne.s32.totalorder %s30, %s33
    %p39 = scmp.eq.s32.totalorder %s8, 0
    %p40 = por %p38, %p39
    %p41 = scmp.ne.s32.totalorder %s30, %s33
    %p42 = scmp.eq.s32.totalorder %s13, 1
    %p43 = por %p41, %p42
    %p44 = scmp.ne.s32.totalorder %s33, %s34
    %p45 = scmp.eq.s32.totalorder %s13, 0
    %p46 = por %p44, %p45
    %p47 = scmp.ne.s32.totalorder %s33, %s34
    %p48 = scmp.eq.s32.totalorder %s14, 1
    %p49 = por %p47, %p48
    %p51 = scmp.ne.s32.totalorder %s34, %s50
    %p52 = scmp.eq.s32.totalorder %s14, 0
    %p53 = por %p51, %p52
    %s55 = sadd.s32 %s54, 1
    %p58 = scmp.eq.s32.totalorder %s8, 1
    %p59 = scmp.ne.s32.totalorder %s54, %s56
    %p60 = scmp.eq.s32.totalorder %s8, 0
    %p61 = por %p59, %p60
    %p62 = scmp.ne.s32.totalorder %s54, %s56
    %p63 = scmp.eq.s32.totalorder %s13, 1
    %p64 = por %p62, %p63
    %p65 = scmp.ne.s32.totalorder %s56, %s57
    %p66 = scmp.eq.s32.totalorder %s13, 0
    %p67 = por %p65, %p66
    %p68 = scmp.ne.s32.totalorder %s56, %s57
    %p69 = scmp.eq.s32.totalorder %s14, 1
    %p70 = por %p68, %p69
    %p72 = scmp.ne.s32.totalorder %s57, %s71
    %p73 = scmp.eq.s32.totalorder %s14, 0
    %p74 = por %p72, %p73
    %s75 = ssub.s32 %s15, %s27
    %s76 = ssub.s32 %s16, %s23
    %s77 = sor.u32 %s75, %s76
    %p78 = scmp.eq.s32.totalorder %s77, 0
    %s80 = sadd.s32 %s79, 1
    %s81 = scalar_select %p78, %s79, %s80
    %p84 = pneg %p78
    %p85 = scmp.eq.s32.totalorder %s8, 1
    %p86 = por %p84, %p85
    %p87 = scmp.ne.s32.totalorder %s79, %s82
    %p88 = scmp.eq.s32.totalorder %s8, 0
    %p89 = por %p87, %p88
    %p90 = scmp.ne.s32.totalorder %s79, %s82
    %p91 = scmp.eq.s32.totalorder %s13, 1
    %p92 = por %p90, %p91
    %p93 = scmp.ne.s32.totalorder %s82, %s83
    %p94 = scmp.eq.s32.totalorder %s13, 0
    %p95 = por %p93, %p94
    %p96 = scmp.ne.s32.totalorder %s82, %s83
    %p97 = scmp.eq.s32.totalorder %s14, 1
    %p98 = por %p96, %p97
    %p100 = scmp.ne.s32.totalorder %s83, %s99
    %p101 = scmp.eq.s32.totalorder %s14, 0
    %p102 = por %p100, %p101
    %p103 = scmp.le.s32.totalorder 1, %s8
    %p104 = scmp.lt.s32.totalorder %s8, 3
    %p105 = pnand %p103, %p104
    %p106 = pneg %p105
    // Predicated region
    $region9: #{block_group_forward.18} parent=5 // pred_check
      _
    $region10: #{block_group_forward.18} parent=5 // pred_check_branch
      %108 = sbr.rel (%p105) target = $region12
    $region11: #{block_group_forward.18} parent=5 // pred_region
      %s109 = ssub.s32 %s8, 1
      // Predicated region
      $region13: #{block_group_forward.18} parent=11 // pred_check
        %p110 = pneg %p67
      $region14: #{block_group_forward.18} parent=11 // pred_check_branch
        %112 = sbr.rel (%p110) target = $region16
      $region15: #{block_group_forward.18} parent=11 // pred_region
        _
      $region16: #{block_group_forward.18} parent=11 // pred_fallthru
        _
    $region12: #{block_group_forward.18} parent=5 // pred_fallthru
      _
    %p113 = scmp.lt.s32.totalorder %s8, 2
    // Predicated region
    $region17: #{block_group_forward.18} parent=5 // pred_check
      %p114 = pneg %p113
    $region18: #{block_group_forward.18} parent=5 // pred_check_branch
      %116 = sbr.rel (%p114) target = $region20
    $region19: #{block_group_forward.18} parent=5 // pred_region
      // Predicated region
      $region21: #{block_group_forward.18} parent=19 // pred_check
        %p117 = pneg %p40
      $region22: #{block_group_forward.18} parent=19 // pred_check_branch
        %119 = sbr.rel (%p117) target = $region24
      $region23: #{block_group_forward.18} parent=19 // pred_region
        %p120 = scmp.lt.s32.totalorder %s15, 1
        %s121 = scalar_select %p120, %s15, 1
        %s122 = smul.addr %s121, 20
        %s123 = smul.addr %s122, 4
        %s124 = scalar_lea.vmem %s0, %s123
      $region24: #{block_group_forward.18} parent=19 // pred_fallthru
        _
    $region20: #{block_group_forward.18} parent=5 // pred_fallthru
      _
    %p125 = scmp.le.s32.totalorder 1, %s8
    %p126 = scmp.lt.s32.totalorder %s8, 3
    %p127 = pnand %p125, %p126
    %p128 = pneg %p127
    // Predicated region
    $region25: #{block_group_forward.18} parent=5 // pred_check
      _
    $region26: #{block_group_forward.18} parent=5 // pred_check_branch
      %130 = sbr.rel (%p127) target = $region28
    $region27: #{block_group_forward.18} parent=5 // pred_region
      %s131 = ssub.s32 %s8, 1
      %p132 = scmp.lt.s32.totalorder %s17, 1
      %s133 = scalar_select %p132, %s17, 1
      %s134 = smul.addr %s133, 20
      %s135 = smul.addr %s134, 4
      %s136 = scalar_lea.vmem %s0, %s135
      %p137 = pneg %p46
      %p138 = pneg %p43
      %p139 = pneg %p67
      %p140 = pneg %p64
      %p141 = pneg %p95
      %p142 = pneg %p92
      %s143 = smul.u32 8, %s18
      %p144 = scmp.lt.s32.totalorder %s17, 1
      %s145 = scalar_select %p144, %s17, 1
      %p146 = scmp.lt.s32.totalorder %s143, 7
      %s147 = scalar_select %p146, %s143, 7
      %s148 = smul.addr %s145, 8
      %s149 = sadd.s32 %s147, %s148
      %s150 = smul.addr %s149, 4
      %s151 = scalar_lea.vmem %s2, %s150
      %p152 = scmp.lt.s32.totalorder %s17, 1
      %s153 = scalar_select %p152, %s17, 1
      %s154 = smul.addr %s153, 20
      %s155 = smul.addr %s154, 4
      %s156 = scalar_lea.vmem %s0, %s155
      %s157 = smul.u32 8, %s18
      %p158 = scmp.lt.s32.totalorder %s17, 1
      %s159 = scalar_select %p158, %s17, 1
      %p160 = scmp.lt.s32.totalorder %s157, 7
      %s161 = scalar_select %p160, %s157, 7
      %s162 = smul.addr %s159, 8
      %s163 = sadd.s32 %s161, %s162
      %s164 = smul.addr %s163, 4
      %s165 = scalar_lea.vmem %s2, %s164
      %s166 = smul.u32 8, %s18
      %s168 = smul.u32 %s18, 8
      %s169 = smul.u32 %s168, 2
      %s170 = smul.addr %s169, 4
      %s171 = scalar_lea.vmem %s156, %s170
      %v172 = vld [vmem:[%s171] sm:$0xf]
      %v173 = vld [vmem:[%s171 + $0x8] sm:$0xf]
      %v174 = vld [vmem:[%s171 + $0x10] sm:$0xf]
      %v175 = vld [vmem:[%s171 + $0x18] sm:$0xf]
      %v176 = vld [vmem:[%s171 + $0x20] sm:$0xf]
      %v177 = vld [vmem:[%s171 + $0x28] sm:$0xf]
      %v178 = vld [vmem:[%s171 + $0x30] sm:$0xf]
      %v179 = vld [vmem:[%s171 + $0x38] sm:$0xf]
      %v180 = vld [vmem:[%s1] sm:$0xf]
      %v181 = vld [vmem:[%s1 + $0x4] sm:$0xf]
      %v182 = vld [vmem:[%s1 + $0x8] sm:$0xf]
      %v183 = vld [vmem:[%s1 + $0xc] sm:$0xf]
      %v184 = vld [vmem:[%s1 + $0x10] sm:$0xf]
      %v185 = vld [vmem:[%s1 + $0x14] sm:$0xf]
      %v186 = vld [vmem:[%s1 + $0x18] sm:$0xf]
      %v187 = vld [vmem:[%s1 + $0x1c] sm:$0xf]
      %v188 = vld [vmem:[%s1 + $0x20] sm:$0xf]
      %v189 = vld [vmem:[%s1 + $0x24] sm:$0xf]
      %v190 = vld [vmem:[%s1 + $0x28] sm:$0xf]
      %v191 = vld [vmem:[%s1 + $0x2c] sm:$0xf]
      %v192 = vld [vmem:[%s1 + $0x30] sm:$0xf]
      %v193 = vld [vmem:[%s1 + $0x34] sm:$0xf]
      %v194 = vld [vmem:[%s1 + $0x38] sm:$0xf]
      %v195 = vld [vmem:[%s1 + $0x3c] sm:$0xf]
      %v204 = vunpack.c.l.b16 %v172
      %v205 = vunpack.c.l.b16 %v173
      %v206 = vunpack.c.l.b16 %v174
      %v207 = vunpack.c.l.b16 %v175
      %v208 = vunpack.c.l.b16 %v176
      %v209 = vunpack.c.l.b16 %v177
      %v210 = vunpack.c.l.b16 %v178
      %v211 = vunpack.c.l.b16 %v179
      %v212 = vpack.c.b16 %v205, %v204
      %v213 = vpack.c.b16 %v207, %v206
      %v214 = vpack.c.b16 %v209, %v208
      %v215 = vpack.c.b16 %v211, %v210
      %v236 = vunpack.c.l.b16 %v180
      %v237 = vunpack.c.l.b16 %v181
      %v238 = vunpack.c.l.b16 %v182
      %v239 = vunpack.c.l.b16 %v183
      %v240 = vunpack.c.l.b16 %v184
      %v241 = vunpack.c.l.b16 %v185
      %v242 = vunpack.c.l.b16 %v186
      %v243 = vunpack.c.l.b16 %v187
      %v244 = vunpack.c.l.b16 %v188
      %v245 = vunpack.c.l.b16 %v189
      %v246 = vunpack.c.l.b16 %v190
      %v247 = vunpack.c.l.b16 %v191
      %v248 = vunpack.c.l.b16 %v192
      %v249 = vunpack.c.l.b16 %v193
      %v250 = vunpack.c.l.b16 %v194
      %v251 = vunpack.c.l.b16 %v195
      %v252 = vpack.c.b16 %v237, %v236
      %v253 = vpack.c.b16 %v239, %v238
      %v254 = vpack.c.b16 %v241, %v240
      %v255 = vpack.c.b16 %v243, %v242
      %v256 = vpack.c.b16 %v245, %v244
      %v257 = vpack.c.b16 %v247, %v246
      %v258 = vpack.c.b16 %v249, %v248
      %v259 = vpack.c.b16 %v251, %v250
      %268 = vmatprep.subr.bf16.mxu0 0
      %269 = vmatpush1.bf16.msra.mxu0 %v252
      %270 = vmatprep.subr.bf16.mxu0 0
      %271 = vmatpush1.bf16.msra.mxu0 %v253
      %272 = vmatprep.subr.bf16.mxu0 0
      %273 = vmatpush1.bf16.msra.mxu0 %v254
      %274 = vmatprep.subr.bf16.mxu0 0
      %275 = vmatpush1.bf16.msra.mxu0 %v255
      %276 = vmatprep.subr.bf16.mxu0 0
      %277 = vmatpush1.bf16.msra.mxu0 %v256
      %278 = vmatprep.subr.bf16.mxu0 0
      %279 = vmatpush1.bf16.msra.mxu0 %v257
      %280 = vmatprep.subr.bf16.mxu0 0
      %281 = vmatpush1.bf16.msra.mxu0 %v258
      %282 = vmatprep.subr.bf16.mxu0 0
      %283 = vmatpush1.bf16.msra.mxu0 %v259
      %284 = vmatprep.subr.bf16.mxu0 0
      %285 = vmatpush1.bf16.msra.mxu0 0
      %286 = vmatprep.subr.bf16.mxu0 0
      %287 = vmatpush1.bf16.msra.mxu0 0
      %288 = vmatprep.subr.bf16.mxu0 0
      %289 = vmatpush1.bf16.msra.mxu0 0
      %290 = vmatprep.subr.bf16.mxu0 0
      %291 = vmatpush1.bf16.msra.mxu0 0
      %292 = vmatprep.subr.bf16.mxu0 0
      %293 = vmatpush1.bf16.msra.mxu0 0
      %294 = vmatprep.subr.bf16.mxu0 0
      %295 = vmatpush1.bf16.msra.mxu0 0
      %296 = vmatprep.subr.bf16.mxu0 0
      %297 = vmatpush1.bf16.msra.mxu0 0
      %298 = vmatprep.subr.bf16.mxu0 0
      %299 = vmatpush1.bf16.msra.mxu0 0
      %300 = vmatprep.mubr.bf16.mxu0 0
      %301 = vmatmul.mubr.bf16.gmra.mrb[0].mxu0 %v212
      %v302 = vpop.f32.mrb[0].mxu0
      %v303 = vadd.f32 0.0, %v302
      %v304 = vpop.f32.mrb[0].mxu0
      %v305 = vpop.f32.mrb[0].mxu0
      %v306 = vadd.f32 0.0, %v305
      %v307 = vpop.f32.mrb[0].mxu0
      %308 = vmatprep.mubr.bf16.mxu0 0
      %309 = vmatmul.mubr.bf16.gmra.mrb[0].mxu0 %v213
      %v310 = vpop.f32.mrb[0].mxu0
      %v311 = vadd.f32 0.0, %v310
      %v312 = vpop.f32.mrb[0].mxu0
      %v313 = vpop.f32.mrb[0].mxu0
      %v314 = vadd.f32 0.0, %v313
      %v315 = vpop.f32.mrb[0].mxu0
      %316 = vmatprep.mubr.bf16.mxu0 0
      %317 = vmatmul.mubr.bf16.gmra.mrb[0].mxu0 %v214
      %v318 = vpop.f32.mrb[0].mxu0
      %v319 = vadd.f32 0.0, %v318
      %v320 = vpop.f32.mrb[0].mxu0
      %v321 = vpop.f32.mrb[0].mxu0
      %v322 = vadd.f32 0.0, %v321
      %v323 = vpop.f32.mrb[0].mxu0
      %324 = vmatprep.mubr.bf16.mxu0 0
      %325 = vmatmul.mubr.bf16.gmra.mrb[0].mxu0 %v215
      %v326 = vpop.f32.mrb[0].mxu0
      %v327 = vadd.f32 0.0, %v326
      %v328 = vpop.f32.mrb[0].mxu0
      %v329 = vpop.f32.mrb[0].mxu0
      %v330 = vadd.f32 0.0, %v329
      %v331 = vpop.f32.mrb[0].mxu0
      %332 = vdwg.mxu0
      %333 = vst [vmem:[#allocation2] sm:$0xff] %v303
      %334 = vst [vmem:[#allocation2 + $0x8] sm:$0xff] %v306
      %335 = vst [vmem:[#allocation2 + $0x10] sm:$0xff] %v311
      %336 = vst [vmem:[#allocation2 + $0x18] sm:$0xff] %v314
      %337 = vst [vmem:[#allocation2 + $0x20] sm:$0xff] %v319
      %338 = vst [vmem:[#allocation2 + $0x28] sm:$0xff] %v322
      %339 = vst [vmem:[#allocation2 + $0x30] sm:$0xff] %v327
      %340 = vst [vmem:[#allocation2 + $0x38] sm:$0xff] %v330
      %v341 = vld [vmem:[%s171] sm:$0xf]
      %v342 = vld [vmem:[%s171 + $0x4] sm:$0x1]
      %v343 = vld [vmem:[%s171 + $0x8] sm:$0xf]
      %v344 = vld [vmem:[%s171 + $0xc] sm:$0x1]
      %v345 = vld [vmem:[%s171 + $0x10] sm:$0xf]
      %v346 = vld [vmem:[%s171 + $0x14] sm:$0x1]
      %v347 = vld [vmem:[%s171 + $0x18] sm:$0xf]
      %v348 = vld [vmem:[%s171 + $0x1c] sm:$0x1]
      %v349 = vld [vmem:[%s171 + $0x20] sm:$0xf]
      %v350 = vld [vmem:[%s171 + $0x24] sm:$0x1]
      %v351 = vld [vmem:[%s171 + $0x28] sm:$0xf]
      %v352 = vld [vmem:[%s171 + $0x2c] sm:$0x1]
      %v353 = vld [vmem:[%s171 + $0x30] sm:$0xf]
      %v354 = vld [vmem:[%s171 + $0x34] sm:$0x1]
      %v355 = vld [vmem:[%s171 + $0x38] sm:$0xf]
      %v356 = vld [vmem:[%s171 + $0x3c] sm:$0x1]
      %vm357 = vsmask.f32 3328
      %vm358 = vsmask.f32 7440
      %vm359 = vmor %vm357, %vm358
      %v361 = vshrl.u32 %v341, 16
      %v363 = vrot.slane %v361, 4
      %v364 = vshll.u32 %v341, 16
      %v366 = vrot.slane %v364, 5
      %v367 = vor.u32 %v363, %v366
      %v368 = vrot.slane %v367, 4
      %v370 = vshll.u32 %v342, 16
      %v372 = vrot.slane %v370, 5
      %v373 = vsel %vm359, %v368, %v372
      %v375 = vshrl.u32 %v343, 16
      %v377 = vrot.slane %v375, 4
      %v378 = vshll.u32 %v343, 16
      %v380 = vrot.slane %v378, 5
      %v381 = vor.u32 %v377, %v380
      %v382 = vrot.slane %v381, 4
      %v384 = vshll.u32 %v344, 16
      %v386 = vrot.slane %v384, 5
      %v387 = vsel %vm359, %v382, %v386
      %v389 = vshrl.u32 %v345, 16
      %v391 = vrot.slane %v389, 4
      %v392 = vshll.u32 %v345, 16
      %v394 = vrot.slane %v392, 5
      %v395 = vor.u32 %v391, %v394
      %v396 = vrot.slane %v395, 4
      %v398 = vshll.u32 %v346, 16
      %v400 = vrot.slane %v398, 5
      %v401 = vsel %vm359, %v396, %v400
      %v403 = vshrl.u32 %v347, 16
      %v405 = vrot.slane %v403, 4
      %v406 = vshll.u32 %v347, 16
      %v408 = vrot.slane %v406, 5
      %v409 = vor.u32 %v405, %v408
      %v410 = vrot.slane %v409, 4
      %v412 = vshll.u32 %v348, 16
      %v414 = vrot.slane %v412, 5
      %v415 = vsel %vm359, %v410, %v414
      %v417 = vshrl.u32 %v349, 16
      %v419 = vrot.slane %v417, 4
      %v420 = vshll.u32 %v349, 16
      %v422 = vrot.slane %v420, 5
      %v423 = vor.u32 %v419, %v422
      %v424 = vrot.slane %v423, 4
      %v426 = vshll.u32 %v350, 16
      %v428 = vrot.slane %v426, 5
      %v429 = vsel %vm359, %v424, %v428
      %v431 = vshrl.u32 %v351, 16
      %v433 = vrot.slane %v431, 4
      %v434 = vshll.u32 %v351, 16
      %v436 = vrot.slane %v434, 5
      %v437 = vor.u32 %v433, %v436
      %v438 = vrot.slane %v437, 4
      %v440 = vshll.u32 %v352, 16
      %v442 = vrot.slane %v440, 5
      %v443 = vsel %vm359, %v438, %v442
      %v445 = vshrl.u32 %v353, 16
      %v447 = vrot.slane %v445, 4
      %v448 = vshll.u32 %v353, 16
      %v450 = vrot.slane %v448, 5
      %v451 = vor.u32 %v447, %v450
      %v452 = vrot.slane %v451, 4
      %v454 = vshll.u32 %v354, 16
      %v456 = vrot.slane %v454, 5
      %v457 = vsel %vm359, %v452, %v456
      %v459 = vshrl.u32 %v355, 16
      %v461 = vrot.slane %v459, 4
      %v462 = vshll.u32 %v355, 16
      %v464 = vrot.slane %v462, 5
      %v465 = vor.u32 %v461, %v464
      %v466 = vrot.slane %v465, 4
      %v468 = vshll.u32 %v356, 16
      %v470 = vrot.slane %v468, 5
      %v471 = vsel %vm359, %v466, %v470
      %s472 = scalar_lea.vmem %s1, 64
      %v473 = vld [vmem:[%s472] sm:$0xf]
      %v474 = vld [vmem:[%s472 + $0x4] sm:$0xf]
      %v475 = vld [vmem:[%s472 + $0x8] sm:$0xf]
      %v476 = vld [vmem:[%s472 + $0xc] sm:$0xf]
      %v477 = vld [vmem:[%s472 + $0x10] sm:$0xf]
      %v478 = vld [vmem:[%s472 + $0x14] sm:$0xf]
      %v479 = vld [vmem:[%s472 + $0x18] sm:$0xf]
      %v480 = vld [vmem:[%s472 + $0x1c] sm:$0xf]
      %v481 = vld [vmem:[%s472 + $0x20] sm:$0xf]
      %v482 = vld [vmem:[%s472 + $0x24] sm:$0xf]
      %v483 = vld [vmem:[%s472 + $0x28] sm:$0xf]
      %v484 = vld [vmem:[%s472 + $0x2c] sm:$0xf]
      %v485 = vld [vmem:[%s472 + $0x30] sm:$0xf]
      %v486 = vld [vmem:[%s472 + $0x34] sm:$0xf]
      %v487 = vld [vmem:[%s472 + $0x38] sm:$0xf]
      %v488 = vld [vmem:[%s472 + $0x3c] sm:$0xf]
      %v489 = vunpack.c.l.b16 %v373
      %v490 = vunpack.c.l.b16 %v387
      %v491 = vunpack.c.l.b16 %v401
      %v492 = vunpack.c.l.b16 %v415
      %v493 = vunpack.c.l.b16 %v429
      %v494 = vunpack.c.l.b16 %v443
      %v495 = vunpack.c.l.b16 %v457
      %v496 = vunpack.c.l.b16 %v471
      %v497 = vpack.c.b16 %v490, %v489
      %v498 = vpack.c.b16 %v492, %v491
      %v499 = vpack.c.b16 %v494, %v493
      %v500 = vpack.c.b16 %v496, %v495
      %v521 = vunpack.c.l.b16 %v473
      %v522 = vunpack.c.l.b16 %v474
      %v523 = vunpack.c.l.b16 %v475
      %v524 = vunpack.c.l.b16 %v476
      %v525 = vunpack.c.l.b16 %v477
      %v526 = vunpack.c.l.b16 %v478
      %v527 = vunpack.c.l.b16 %v479
      %v528 = vunpack.c.l.b16 %v480
      %v529 = vunpack.c.l.b16 %v481
      %v530 = vunpack.c.l.b16 %v482
      %v531 = vunpack.c.l.b16 %v483
      %v532 = vunpack.c.l.b16 %v484
      %v533 = vunpack.c.l.b16 %v485
      %v534 = vunpack.c.l.b16 %v486
      %v535 = vunpack.c.l.b16 %v487
      %v536 = vunpack.c.l.b16 %v488
      %v537 = vpack.c.b16 %v522, %v521
      %v538 = vpack.c.b16 %v524, %v523
      %v539 = vpack.c.b16 %v526, %v525
      %v540 = vpack.c.b16 %v528, %v527
      %v541 = vpack.c.b16 %v530, %v529
      %v542 = vpack.c.b16 %v532, %v531
      %v543 = vpack.c.b16 %v534, %v533
      %v544 = vpack.c.b16 %v536, %v535
      %553 = vmatprep.subr.bf16.mxu0 0
      %554 = vmatpush1.bf16.msra.mxu0 %v537
      %555 = vmatprep.subr.bf16.mxu0 0
      %556 = vmatpush1.bf16.msra.mxu0 %v538
      %557 = vmatprep.subr.bf16.mxu0 0
      %558 = vmatpush1.bf16.msra.mxu0 %v539
      %559 = vmatprep.subr.bf16.mxu0 0
      %560 = vmatpush1.bf16.msra.mxu0 %v540
      %561 = vmatprep.subr.bf16.mxu0 0
      %562 = vmatpush1.bf16.msra.mxu0 %v541
      %563 = vmatprep.subr.bf16.mxu0 0
      %564 = vmatpush1.bf16.msra.mxu0 %v542
      %565 = vmatprep.subr.bf16.mxu0 0
      %566 = vmatpush1.bf16.msra.mxu0 %v543
      %567 = vmatprep.subr.bf16.mxu0 0
      %568 = vmatpush1.bf16.msra.mxu0 %v544
      %569 = vmatprep.subr.bf16.mxu0 0
      %570 = vmatpush1.bf16.msra.mxu0 0
      %571 = vmatprep.subr.bf16.mxu0 0
      %572 = vmatpush1.bf16.msra.mxu0 0
      %573 = vmatprep.subr.bf16.mxu0 0
      %574 = vmatpush1.bf16.msra.mxu0 0
      %575 = vmatprep.subr.bf16.mxu0 0
      %576 = vmatpush1.bf16.msra.mxu0 0
      %577 = vmatprep.subr.bf16.mxu0 0
      %578 = vmatpush1.bf16.msra.mxu0 0
      %579 = vmatprep.subr.bf16.mxu0 0
      %580 = vmatpush1.bf16.msra.mxu0 0
      %581 = vmatprep.subr.bf16.mxu0 0
      %582 = vmatpush1.bf16.msra.mxu0 0
      %583 = vmatprep.subr.bf16.mxu0 0
      %584 = vmatpush1.bf16.msra.mxu0 0
      %585 = vmatprep.mubr.bf16.mxu0 0
      %586 = vmatmul.mubr.bf16.gmra.mrb[0].mxu0 %v497
      %v587 = vpop.f32.mrb[0].mxu0
      %v588 = vadd.f32 0.0, %v587
      %v589 = vpop.f32.mrb[0].mxu0
      %v590 = vpop.f32.mrb[0].mxu0
      %v591 = vadd.f32 0.0, %v590
      %v592 = vpop.f32.mrb[0].mxu0
      %593 = vmatprep.mubr.bf16.mxu0 0
      %594 = vmatmul.mubr.bf16.gmra.mrb[0].mxu0 %v498
      %v595 = vpop.f32.mrb[0].mxu0
      %v596 = vadd.f32 0.0, %v595
      %v597 = vpop.f32.mrb[0].mxu0
      %v598 = vpop.f32.mrb[0].mxu0
      %v599 = vadd.f32 0.0, %v598
      %v600 = vpop.f32.mrb[0].mxu0
      %601 = vmatprep.mubr.bf16.mxu0 0
      %602 = vmatmul.mubr.bf16.gmra.mrb[0].mxu0 %v499
      %v603 = vpop.f32.mrb[0].mxu0
      %v604 = vadd.f32 0.0, %v603
      %v605 = vpop.f32.mrb[0].mxu0
      %v606 = vpop.f32.mrb[0].mxu0
      %v607 = vadd.f32 0.0, %v606
      %v608 = vpop.f32.mrb[0].mxu0
      %609 = vmatprep.mubr.bf16.mxu0 0
      %610 = vmatmul.mubr.bf16.gmra.mrb[0].mxu0 %v500
      %v611 = vpop.f32.mrb[0].mxu0
      %v612 = vadd.f32 0.0, %v611
      %v613 = vpop.f32.mrb[0].mxu0
      %v614 = vpop.f32.mrb[0].mxu0
      %v615 = vadd.f32 0.0, %v614
      %v616 = vpop.f32.mrb[0].mxu0
      %617 = vdwg.mxu0
      %v618 = vld [vmem:[#allocation2] sm:$0xff]
      %v619 = vld [vmem:[#allocation2 + $0x8] sm:$0xff]
      %v620 = vld [vmem:[#allocation2 + $0x10] sm:$0xff]
      %v621 = vld [vmem:[#allocation2 + $0x18] sm:$0xff]
      %v622 = vld [vmem:[#allocation2 + $0x20] sm:$0xff]
      %v623 = vld [vmem:[#allocation2 + $0x28] sm:$0xff]
      %v624 = vld [vmem:[#allocation2 + $0x30] sm:$0xff]
      %v625 = vld [vmem:[#allocation2 + $0x38] sm:$0xff]
      %v626 = vadd.f32 %v618, %v588
      %v627 = vadd.f32 %v619, %v591
      %v628 = vadd.f32 %v620, %v596
      %v629 = vadd.f32 %v621, %v599
      %v630 = vadd.f32 %v622, %v604
      %v631 = vadd.f32 %v623, %v607
      %v632 = vadd.f32 %v624, %v612
      %v633 = vadd.f32 %v625, %v615
      %634 = vst [vmem:[#allocation2] sm:$0xff] %v626
      %635 = vst [vmem:[#allocation2 + $0x8] sm:$0xff] %v627
      %636 = vst [vmem:[#allocation2 + $0x10] sm:$0xff] %v628
      %637 = vst [vmem:[#allocation2 + $0x18] sm:$0xff] %v629
      %638 = vst [vmem:[#allocation2 + $0x20] sm:$0xff] %v630
      %639 = vst [vmem:[#allocation2 + $0x28] sm:$0xff] %v631
      %640 = vst [vmem:[#allocation2 + $0x30] sm:$0xff] %v632
      %641 = vst [vmem:[#allocation2 + $0x38] sm:$0xff] %v633
      %v642 = vld [vmem:[%s171] sm:$0xe]
      %v643 = vld [vmem:[%s171 + $0x4] sm:$0x1]
      %v644 = vld [vmem:[%s171 + $0x8] sm:$0xe]
      %v645 = vld [vmem:[%s171 + $0xc] sm:$0x1]
      %v646 = vld [vmem:[%s171 + $0x10] sm:$0xe]
      %v647 = vld [vmem:[%s171 + $0x14] sm:$0x1]
      %v648 = vld [vmem:[%s171 + $0x18] sm:$0xe]
      %v649 = vld [vmem:[%s171 + $0x1c] sm:$0x1]
      %v650 = vld [vmem:[%s171 + $0x20] sm:$0xe]
      %v651 = vld [vmem:[%s171 + $0x24] sm:$0x1]
      %v652 = vld [vmem:[%s171 + $0x28] sm:$0xe]
      %v653 = vld [vmem:[%s171 + $0x2c] sm:$0x1]
      %v654 = vld [vmem:[%s171 + $0x30] sm:$0xe]
      %v655 = vld [vmem:[%s171 + $0x34] sm:$0x1]
      %v656 = vld [vmem:[%s171 + $0x38] sm:$0xe]
      %v657 = vld [vmem:[%s171 + $0x3c] sm:$0x1]
      %vm674 = vcmask 1042432
      %vm675 = vcmask 1046532
      %vm676 = vmor %vm674, %vm675
      %v677 = vrot.slane %v642, 5
      %v678 = vrot.slane %v677, 4
      %v679 = vrot.slane %v643, 5
      %v680 = vsel %vm676, %v678, %v679
      %v681 = vrot.slane %v644, 5
      %v682 = vrot.slane %v681, 4
      %v683 = vrot.slane %v645, 5
      %v684 = vsel %vm676, %v682, %v683
      %v685 = vrot.slane %v646, 5
      %v686 = vrot.slane %v685, 4
      %v687 = vrot.slane %v647, 5
      %v688 = vsel %vm676, %v686, %v687
      %v689 = vrot.slane %v648, 5
      %v690 = vrot.slane %v689, 4
      %v691 = vrot.slane %v649, 5
      %v692 = vsel %vm676, %v690, %v691
      %v693 = vrot.slane %v650, 5
      %v694 = vrot.slane %v693, 4
      %v695 = vrot.slane %v651, 5
      %v696 = vsel %vm676, %v694, %v695
      %v697 = vrot.slane %v652, 5
      %v698 = vrot.slane %v697, 4
      %v699 = vrot.slane %v653, 5
      %v700 = vsel %vm676, %v698, %v699
      %v701 = vrot.slane %v654, 5
      %v702 = vrot.slane %v701, 4
      %v703 = vrot.slane %v655, 5
      %v704 = vsel %vm676, %v702, %v703
      %v705 = vrot.slane %v656, 5
      %v706 = vrot.slane %v705, 4
      %v707 = vrot.slane %v657, 5
      %v708 = vsel %vm676, %v706, %v707
      %s709 = scalar_lea.vmem %s1, 128
      %v710 = vld [vmem:[%s709] sm:$0xf]
      %v711 = vld [vmem:[%s709 + $0x4] sm:$0xf]
      %v712 = vld [vmem:[%s709 + $0x8] sm:$0xf]
      %v713 = vld [vmem:[%s709 + $0xc] sm:$0xf]
      %v714 = vld [vmem:[%s709 + $0x10] sm:$0xf]
      %v715 = vld [vmem:[%s709 + $0x14] sm:$0xf]
      %v716 = vld [vmem:[%s709 + $0x18] sm:$0xf]
      %v717 = vld [vmem:[%s709 + $0x1c] sm:$0xf]
      %v718 = vld [vmem:[%s709 + $0x20] sm:$0xf]
      %v719 = vld [vmem:[%s709 + $0x24] sm:$0xf]
      %v720 = vld [vmem:[%s709 + $0x28] sm:$0xf]
      %v721 = vld [vmem:[%s709 + $0x2c] sm:$0xf]
      %v722 = vld [vmem:[%s709 + $0x30] sm:$0xf]
      %v723 = vld [vmem:[%s709 + $0x34] sm:$0xf]
      %v724 = vld [vmem:[%s709 + $0x38] sm:$0xf]
      %v725 = vld [vmem:[%s709 + $0x3c] sm:$0xf]
      %v726 = vunpack.c.l.b16 %v680
      %v727 = vunpack.c.l.b16 %v684
      %v728 = vunpack.c.l.b16 %v688
      %v729 = vunpack.c.l.b16 %v692
      %v730 = vunpack.c.l.b16 %v696
      %v731 = vunpack.c.l.b16 %v700
      %v732 = vunpack.c.l.b16 %v704
      %v733 = vunpack.c.l.b16 %v708
      %v734 = vpack.c.b16 %v727, %v726
      %v735 = vpack.c.b16 %v729, %v728
      %v736 = vpack.c.b16 %v731, %v730
      %v737 = vpack.c.b16 %v733, %v732
      %v758 = vunpack.c.l.b16 %v710
      %v759 = vunpack.c.l.b16 %v711
      %v760 = vunpack.c.l.b16 %v712
      %v761 = vunpack.c.l.b16 %v713
      %v762 = vunpack.c.l.b16 %v714
      %v763 = vunpack.c.l.b16 %v715
      %v764 = vunpack.c.l.b16 %v716
      %v765 = vunpack.c.l.b16 %v717
      %v766 = vunpack.c.l.b16 %v718
      %v767 = vunpack.c.l.b16 %v719
      %v768 = vunpack.c.l.b16 %v720
      %v769 = vunpack.c.l.b16 %v721
      %v770 = vunpack.c.l.b16 %v722
      %v771 = vunpack.c.l.b16 %v723
      %v772 = vunpack.c.l.b16 %v724
      %v773 = vunpack.c.l.b16 %v725
      %v774 = vpack.c.b16 %v759, %v758
      %v775 = vpack.c.b16 %v761, %v760
      %v776 = vpack.c.b16 %v763, %v762
      %v777 = vpack.c.b16 %v765, %v764
      %v778 = vpack.c.b16 %v767, %v766
      %v779 = vpack.c.b16 %v769, %v768
      %v780 = vpack.c.b16 %v771, %v770
      %v781 = vpack.c.b16 %v773, %v772
      %790 = vmatprep.subr.bf16.mxu0 0
      %791 = vmatpush1.bf16.msra.mxu0 %v774
      %792 = vmatprep.subr.bf16.mxu0 0
      %793 = vmatpush1.bf16.msra.mxu0 %v775
      %794 = vmatprep.subr.bf16.mxu0 0
      %795 = vmatpush1.bf16.msra.mxu0 %v776
      %796 = vmatprep.subr.bf16.mxu0 0
      %797 = vmatpush1.bf16.msra.mxu0 %v777
      %798 = vmatprep.subr.bf16.mxu0 0
      %799 = vmatpush1.bf16.msra.mxu0 %v778
      %800 = vmatprep.subr.bf16.mxu0 0
      %801 = vmatpush1.bf16.msra.mxu0 %v779
      %802 = vmatprep.subr.bf16.mxu0 0
      %803 = vmatpush1.bf16.msra.mxu0 %v780
      %804 = vmatprep.subr.bf16.mxu0 0
      %805 = vmatpush1.bf16.msra.mxu0 %v781
      %806 = vmatprep.subr.bf16.mxu0 0
      %807 = vmatpush1.bf16.msra.mxu0 0
      %808 = vmatprep.subr.bf16.mxu0 0
      %809 = vmatpush1.bf16.msra.mxu0 0
      %810 = vmatprep.subr.bf16.mxu0 0
      %811 = vmatpush1.bf16.msra.mxu0 0
      %812 = vmatprep.subr.bf16.mxu0 0
      %813 = vmatpush1.bf16.msra.mxu0 0
      %814 = vmatprep.subr.bf16.mxu0 0
      %815 = vmatpush1.bf16.msra.mxu0 0
      %816 = vmatprep.subr.bf16.mxu0 0
      %817 = vmatpush1.bf16.msra.mxu0 0
      %818 = vmatprep.subr.bf16.mxu0 0
      %819 = vmatpush1.bf16.msra.mxu0 0
      %820 = vmatprep.subr.bf16.mxu0 0
      %821 = vmatpush1.bf16.msra.mxu0 0
      %822 = vmatprep.mubr.bf16.mxu0 0
      %823 = vmatmul.mubr.bf16.gmra.mrb[0].mxu0 %v734
      %v824 = vpop.f32.mrb[0].mxu0
      %v825 = vadd.f32 0.0, %v824
      %v826 = vpop.f32.mrb[0].mxu0
      %v827 = vpop.f32.mrb[0].mxu0
      %v828 = vadd.f32 0.0, %v827
      %v829 = vpop.f32.mrb[0].mxu0
      %830 = vmatprep.mubr.bf16.mxu0 0
      %831 = vmatmul.mubr.bf16.gmra.mrb[0].mxu0 %v735
      %v832 = vpop.f32.mrb[0].mxu0
      %v833 = vadd.f32 0.0, %v832
      %v834 = vpop.f32.mrb[0].mxu0
      %v835 = vpop.f32.mrb[0].mxu0
      %v836 = vadd.f32 0.0, %v835
      %v837 = vpop.f32.mrb[0].mxu0
      %838 = vmatprep.mubr.bf16.mxu0 0
      %839 = vmatmul.mubr.bf16.gmra.mrb[0].mxu0 %v736
      %v840 = vpop.f32.mrb[0].mxu0
      %v841 = vadd.f32 0.0, %v840
      %v842 = vpop.f32.mrb[0].mxu0
      %v843 = vpop.f32.mrb[0].mxu0
      %v844 = vadd.f32 0.0, %v843
      %v845 = vpop.f32.mrb[0].mxu0
      %846 = vmatprep.mubr.bf16.mxu0 0
      %847 = vmatmul.mubr.bf16.gmra.mrb[0].mxu0 %v737
      %v848 = vpop.f32.mrb[0].mxu0
      %v849 = vadd.f32 0.0, %v848
      %v850 = vpop.f32.mrb[0].mxu0
      %v851 = vpop.f32.mrb[0].mxu0
      %v852 = vadd.f32 0.0, %v851
      %v853 = vpop.f32.mrb[0].mxu0
      %854 = vdwg.mxu0
      %v855 = vld [vmem:[#allocation2] sm:$0xff]
      %v856 = vld [vmem:[#allocation2 + $0x8] sm:$0xff]
      %v857 = vld [vmem:[#allocation2 + $0x10] sm:$0xff]
      %v858 = vld [vmem:[#allocation2 + $0x18] sm:$0xff]
      %v859 = vld [vmem:[#allocation2 + $0x20] sm:$0xff]
      %v860 = vld [vmem:[#allocation2 + $0x28] sm:$0xff]
      %v861 = vld [vmem:[#allocation2 + $0x30] sm:$0xff]
      %v862 = vld [vmem:[#allocation2 + $0x38] sm:$0xff]
      %v863 = vadd.f32 %v855, %v825
      %v864 = vadd.f32 %v856, %v828
      %v865 = vadd.f32 %v857, %v833
      %v866 = vadd.f32 %v858, %v836
      %v867 = vadd.f32 %v859, %v841
      %v868 = vadd.f32 %v860, %v844
      %v869 = vadd.f32 %v861, %v849
      %v870 = vadd.f32 %v862, %v852
      %871 = vst [vmem:[#allocation2] sm:$0xff] %v863
      %872 = vst [vmem:[#allocation2 + $0x8] sm:$0xff] %v864
      %873 = vst [vmem:[#allocation2 + $0x10] sm:$0xff] %v865
      %874 = vst [vmem:[#allocation2 + $0x18] sm:$0xff] %v866
      %875 = vst [vmem:[#allocation2 + $0x20] sm:$0xff] %v867
      %876 = vst [vmem:[#allocation2 + $0x28] sm:$0xff] %v868
      %877 = vst [vmem:[#allocation2 + $0x30] sm:$0xff] %v869
      %878 = vst [vmem:[#allocation2 + $0x38] sm:$0xff] %v870
      %s879 = sadd.s32 %s168, 1
      %s880 = smul.u32 %s879, 2
      %s881 = smul.addr %s880, 4
      %s882 = scalar_lea.vmem %s156, %s881
      %v883 = vld [vmem:[%s882] sm:$0xf]
      %v884 = vld [vmem:[%s882 + $0x8] sm:$0xf]
      %v885 = vld [vmem:[%s882 + $0x10] sm:$0xf]
      %v886 = vld [vmem:[%s882 + $0x18] sm:$0xf]
      %v887 = vld [vmem:[%s882 + $0x20] sm:$0xf]
      %v888 = vld [vmem:[%s882 + $0x28] sm:$0xf]
      %v889 = vld [vmem:[%s882 + $0x30] sm:$0xf]
      %v890 = vld [vmem:[%s882 + $0x38] sm:$0xf]
      %s891 = scalar_lea.vmem %s1, 192
      %v892 = vld [vmem:[%s891] sm:$0xf]
      %v893 = vld [vmem:[%s891 + $0x4] sm:$0xf]
      %v894 = vld [vmem:[%s891 + $0x8] sm:$0xf]
      %v895 = vld [vmem:[%s891 + $0xc] sm:$0xf]
      %v896 = vld [vmem:[%s891 + $0x10] sm:$0xf]
      %v897 = vld [vmem:[%s891 + $0x14] sm:$0xf]
      %v898 = vld [vmem:[%s891 + $0x18] sm:$0xf]
      %v899 = vld [vmem:[%s891 + $0x1c] sm:$0xf]
      %v900 = vld [vmem:[%s891 + $0x20] sm:$0xf]
      %v901 = vld [vmem:[%s891 + $0x24] sm:$0xf]
      %v902 = vld [vmem:[%s891 + $0x28] sm:$0xf]
      %v903 = vld [vmem:[%s891 + $0x2c] sm:$0xf]
      %v904 = vld [vmem:[%s891 + $0x30] sm:$0xf]
      %v905 = vld [vmem:[%s891 + $0x34] sm:$0xf]
      %v906 = vld [vmem:[%s891 + $0x38] sm:$0xf]
      %v907 = vld [vmem:[%s891 + $0x3c] sm:$0xf]
      %v916 = vunpack.c.l.b16 %v883
      %v917 = vunpack.c.l.b16 %v884
      %v918 = vunpack.c.l.b16 %v885
      %v919 = vunpack.c.l.b16 %v886
      %v920 = vunpack.c.l.b16 %v887
      %v921 = vunpack.c.l.b16 %v888
      %v922 = vunpack.c.l.b16 %v889
      %v923 = vunpack.c.l.b16 %v890
      %v924 = vpack.c.b16 %v917, %v916
      %v925 = vpack.c.b16 %v919, %v918
      %v926 = vpack.c.b16 %v921, %v920
      %v927 = vpack.c.b16 %v923, %v922
      %v948 = vunpack.c.l.b16 %v892
      %v949 = vunpack.c.l.b16 %v893
      %v950 = vunpack.c.l.b16 %v894
      %v951 = vunpack.c.l.b16 %v895
      %v952 = vunpack.c.l.b16 %v896
      %v953 = vunpack.c.l.b16 %v897
      %v954 = vunpack.c.l.b16 %v898
      %v955 = vunpack.c.l.b16 %v899
      %v956 = vunpack.c.l.b16 %v900
      %v957 = vunpack.c.l.b16 %v901
      %v958 = vunpack.c.l.b16 %v902
      %v959 = vunpack.c.l.b16 %v903
      %v960 = vunpack.c.l.b16 %v904
      %v961 = vunpack.c.l.b16 %v905
      %v962 = vunpack.c.l.b16 %v906
      %v963 = vunpack.c.l.b16 %v907
      %v964 = vpack.c.b16 %v949, %v948
      %v965 = vpack.c.b16 %v951, %v950
      %v966 = vpack.c.b16 %v953, %v952
      %v967 = vpack.c.b16 %v955, %v954
      %v968 = vpack.c.b16 %v957, %v956
      %v969 = vpack.c.b16 %v959, %v958
      %v970 = vpack.c.b16 %v961, %v960
      %v971 = vpack.c.b16 %v963, %v962
      %980 = vmatprep.subr.bf16.mxu0 0
      %981 = vmatpush1.bf16.msra.mxu0 %v964
      %982 = vmatprep.subr.bf16.mxu0 0
      %983 = vmatpush1.bf16.msra.mxu0 %v965
      %984 = vmatprep.subr.bf16.mxu0 0
      %985 = vmatpush1.bf16.msra.mxu0 %v966
      %986 = vmatprep.subr.bf16.mxu0 0
      %987 = vmatpush1.bf16.msra.mxu0 %v967
      %988 = vmatprep.subr.bf16.mxu0 0
      %989 = vmatpush1.bf16.msra.mxu0 %v968
      %990 = vmatprep.subr.bf16.mxu0 0
      %991 = vmatpush1.bf16.msra.mxu0 %v969
      %992 = vmatprep.subr.bf16.mxu0 0
      %993 = vmatpush1.bf16.msra.mxu0 %v970
      %994 = vmatprep.subr.bf16.mxu0 0
      %995 = vmatpush1.bf16.msra.mxu0 %v971
      %996 = vmatprep.subr.bf16.mxu0 0
      %997 = vmatpush1.bf16.msra.mxu0 0
      %998 = vmatprep.subr.bf16.mxu0 0
      %999 = vmatpush1.bf16.msra.mxu0 0
      %1000 = vmatprep.subr.bf16.mxu0 0
      %1001 = vmatpush1.bf16.msra.mxu0 0
      %1002 = vmatprep.subr.bf16.mxu0 0
      %1003 = vmatpush1.bf16.msra.mxu0 0
      %1004 = vmatprep.subr.bf16.mxu0 0
      %1005 = vmatpush1.bf16.msra.mxu0 0
      %1006 = vmatprep.subr.bf16.mxu0 0
      %1007 = vmatpush1.bf16.msra.mxu0 0
      %1008 = vmatprep.subr.bf16.mxu0 0
      %1009 = vmatpush1.bf16.msra.mxu0 0
      %1010 = vmatprep.subr.bf16.mxu0 0
      %1011 = vmatpush1.bf16.msra.mxu0 0
      %1012 = vmatprep.mubr.bf16.mxu0 0
      %1013 = vmatmul.mubr.bf16.gmra.mrb[0].mxu0 %v924
      %v1014 = vpop.f32.mrb[0].mxu0
      %v1015 = vadd.f32 0.0, %v1014
      %v1016 = vpop.f32.mrb[0].mxu0
      %v1017 = vpop.f32.mrb[0].mxu0
      %v1018 = vadd.f32 0.0, %v1017
      %v1019 = vpop.f32.mrb[0].mxu0
      %1020 = vmatprep.mubr.bf16.mxu0 0
      %1021 = vmatmul.mubr.bf16.gmra.mrb[0].mxu0 %v925
      %v1022 = vpop.f32.mrb[0].mxu0
      %v1023 = vadd.f32 0.0, %v1022
      %v1024 = vpop.f32.mrb[0].mxu0
      %v1025 = vpop.f32.mrb[0].mxu0
      %v1026 = vadd.f32 0.0, %v1025
      %v1027 = vpop.f32.mrb[0].mxu0
      %1028 = vmatprep.mubr.bf16.mxu0 0
      %1029 = vmatmul.mubr.bf16.gmra.mrb[0].mxu0 %v926
      %v1030 = vpop.f32.mrb[0].mxu0
      %v1031 = vadd.f32 0.0, %v1030
      %v1032 = vpop.f32.mrb[0].mxu0
      %v1033 = vpop.f32.mrb[0].mxu0
      %v1034 = vadd.f32 0.0, %v1033
      %v1035 = vpop.f32.mrb[0].mxu0
      %1036 = vmatprep.mubr.bf16.mxu0 0
      %1037 = vmatmul.mubr.bf16.gmra.mrb[0].mxu0 %v927
      %v1038 = vpop.f32.mrb[0].mxu0
      %v1039 = vadd.f32 0.0, %v1038
      %v1040 = vpop.f32.mrb[0].mxu0
      %v1041 = vpop.f32.mrb[0].mxu0
      %v1042 = vadd.f32 0.0, %v1041
      %v1043 = vpop.f32.mrb[0].mxu0
      %1044 = vdwg.mxu0
      %v1045 = vld [vmem:[#allocation2] sm:$0xff]
      %v1046 = vld [vmem:[#allocation2 + $0x8] sm:$0xff]
      %v1047 = vld [vmem:[#allocation2 + $0x10] sm:$0xff]
      %v1048 = vld [vmem:[#allocation2 + $0x18] sm:$0xff]
      %v1049 = vld [vmem:[#allocation2 + $0x20] sm:$0xff]
      %v1050 = vld [vmem:[#allocation2 + $0x28] sm:$0xff]
      %v1051 = vld [vmem:[#allocation2 + $0x30] sm:$0xff]
      %v1052 = vld [vmem:[#allocation2 + $0x38] sm:$0xff]
      %v1053 = vadd.f32 %v1045, %v1015
      %v1054 = vadd.f32 %v1046, %v1018
      %v1055 = vadd.f32 %v1047, %v1023
      %v1056 = vadd.f32 %v1048, %v1026
      %v1057 = vadd.f32 %v1049, %v1031
      %v1058 = vadd.f32 %v1050, %v1034
      %v1059 = vadd.f32 %v1051, %v1039
      %v1060 = vadd.f32 %v1052, %v1042
      %1061 = vst [vmem:[#allocation2] sm:$0xff] %v1053
      %1062 = vst [vmem:[#allocation2 + $0x8] sm:$0xff] %v1054
      %1063 = vst [vmem:[#allocation2 + $0x10] sm:$0xff] %v1055
      %1064 = vst [vmem:[#allocation2 + $0x18] sm:$0xff] %v1056
      %1065 = vst [vmem:[#allocation2 + $0x20] sm:$0xff] %v1057
      %1066 = vst [vmem:[#allocation2 + $0x28] sm:$0xff] %v1058
      %1067 = vst [vmem:[#allocation2 + $0x30] sm:$0xff] %v1059
      %1068 = vst [vmem:[#allocation2 + $0x38] sm:$0xff] %v1060
      %v1069 = vld [vmem:[%s882] sm:$0xf]
      %v1070 = vld [vmem:[%s882 + $0x4] sm:$0x1]
      %v1071 = vld [vmem:[%s882 + $0x8] sm:$0xf]
      %v1072 = vld [vmem:[%s882 + $0xc] sm:$0x1]
      %v1073 = vld [vmem:[%s882 + $0x10] sm:$0xf]
      %v1074 = vld [vmem:[%s882 + $0x14] sm:$0x1]
      %v1075 = vld [vmem:[%s882 + $0x18] sm:$0xf]
      %v1076 = vld [vmem:[%s882 + $0x1c] sm:$0x1]
      %v1077 = vld [vmem:[%s882 + $0x20] sm:$0xf]
      %v1078 = vld [vmem:[%s882 + $0x24] sm:$0x1]
      %v1079 = vld [vmem:[%s882 + $0x28] sm:$0xf]
      %v1080 = vld [vmem:[%s882 + $0x2c] sm:$0x1]
      %v1081 = vld [vmem:[%s882 + $0x30] sm:$0xf]
      %v1082 = vld [vmem:[%s882 + $0x34] sm:$0x1]
      %v1083 = vld [vmem:[%s882 + $0x38] sm:$0xf]
      %v1084 = vld [vmem:[%s882 + $0x3c] sm:$0x1]
      %v1086 = vshrl.u32 %v1069, 16
      %v1088 = vrot.slane %v1086, 4
      %v1089 = vshll.u32 %v1069, 16
      %v1091 = vrot.slane %v1089, 5
      %v1092 = vor.u32 %v1088, %v1091
      %v1093 = vrot.slane %v1092, 4
      %v1095 = vshll.u32 %v1070, 16
      %v1097 = vrot.slane %v1095, 5
      %v1098 = vsel %vm359, %v1093, %v1097
      %v1100 = vshrl.u32 %v1071, 16
      %v1102 = vrot.slane %v1100, 4
      %v1103 = vshll.u32 %v1071, 16
      %v1105 = vrot.slane %v1103, 5
      %v1106 = vor.u32 %v1102, %v1105
      %v1107 = vrot.slane %v1106, 4
      %v1109 = vshll.u32 %v1072, 16
      %v1111 = vrot.slane %v1109, 5
      %v1112 = vsel %vm359, %v1107, %v1111
      %v1114 = vshrl.u32 %v1073, 16
      %v1116 = vrot.slane %v1114, 4
      %v1117 = vshll.u32 %v1073, 16
      %v1119 = vrot.slane %v1117, 5
      %v1120 = vor.u32 %v1116, %v1119
      %v1121 = vrot.slane %v1120, 4
      %v1123 = vshll.u32 %v1074, 16
      %v1125 = vrot.slane %v1123, 5
      %v1126 = vsel %vm359, %v1121, %v1125
      %v1128 = vshrl.u32 %v1075, 16
      %v1130 = vrot.slane %v1128, 4
      %v1131 = vshll.u32 %v1075, 16
      %v1133 = vrot.slane %v1131, 5
      %v1134 = vor.u32 %v1130, %v1133
      %v1135 = vrot.slane %v1134, 4
      %v1137 = vshll.u32 %v1076, 16
      %v1139 = vrot.slane %v1137, 5
      %v1140 = vsel %vm359, %v1135, %v1139
      %v1142 = vshrl.u32 %v1077, 16
      %v1144 = vrot.slane %v1142, 4
      %v1145 = vshll.u32 %v1077, 16
      %v1147 = vrot.slane %v1145, 5
      %v1148 = vor.u32 %v1144, %v1147
      %v1149 = vrot.slane %v1148, 4
      %v1151 = vshll.u32 %v1078, 16
      %v1153 = vrot.slane %v1151, 5
      %v1154 = vsel %vm359, %v1149, %v1153
      %v1156 = vshrl.u32 %v1079, 16
      %v1158 = vrot.slane %v1156, 4
      %v1159 = vshll.u32 %v1079, 16
      %v1161 = vrot.slane %v1159, 5
      %v1162 = vor.u32 %v1158, %v1161
      %v1163 = vrot.slane %v1162, 4
      %v1165 = vshll.u32 %v1080, 16
      %v1167 = vrot.slane %v1165, 5
      %v1168 = vsel %vm359, %v1163, %v1167
      %v1170 = vshrl.u32 %v1081, 16
      %v1172 = vrot.slane %v1170, 4
      %v1173 = vshll.u32 %v1081, 16
      %v1175 = vrot.slane %v1173, 5
      %v1176 = vor.u32 %v1172, %v1175
      %v1177 = vrot.slane %v1176, 4
      %v1179 = vshll.u32 %v1082, 16
      %v1181 = vrot.slane %v1179, 5
      %v1182 = vsel %vm359, %v1177, %v1181
      %v1184 = vshrl.u32 %v1083, 16
      %v1186 = vrot.slane %v1184, 4
      %v1187 = vshll.u32 %v1083, 16
      %v1189 = vrot.slane %v1187, 5
      %v1190 = vor.u32 %v1186, %v1189
      %v1191 = vrot.slane %v1190, 4
      %v1193 = vshll.u32 %v1084, 16
      %v1195 = vrot.slane %v1193, 5
      %v1196 = vsel %vm359, %v1191, %v1195
      %s1197 = scalar_lea.vmem %s1, 256
      %v1198 = vld [vmem:[%s1197] sm:$0xf]
      %v1199 = vld [vmem:[%s1197 + $0x4] sm:$0xf]
      %v1200 = vld [vmem:[%s1197 + $0x8] sm:$0xf]
      %v1201 = vld [vmem:[%s1197 + $0xc] sm:$0xf]
      %v1202 = vld [vmem:[%s1197 + $0x10] sm:$0xf]
      %v1203 = vld [vmem:[%s1197 + $0x14] sm:$0xf]
      %v1204 = vld [vmem:[%s1197 + $0x18] sm:$0xf]
      %v1205 = vld [vmem:[%s1197 + $0x1c] sm:$0xf]
      %v1206 = vld [vmem:[%s1197 + $0x20] sm:$0xf]
      %v1207 = vld [vmem:[%s1197 + $0x24] sm:$0xf]
      %v1208 = vld [vmem:[%s1197 + $0x28] sm:$0xf]
      %v1209 = vld [vmem:[%s1197 + $0x2c] sm:$0xf]
      %v1210 = vld [vmem:[%s1197 + $0x30] sm:$0xf]
      %v1211 = vld [vmem:[%s1197 + $0x34] sm:$0xf]
      %v1212 = vld [vmem:[%s1197 + $0x38] sm:$0xf]
      %v1213 = vld [vmem:[%s1197 + $0x3c] sm:$0xf]
      %v1214 = vunpack.c.l.b16 %v1098
      %v1215 = vunpack.c.l.b16 %v1112
      %v1216 = vunpack.c.l.b16 %v1126
      %v1217 = vunpack.c.l.b16 %v1140
      %v1218 = vunpack.c.l.b16 %v1154
      %v1219 = vunpack.c.l.b16 %v1168
      %v1220 = vunpack.c.l.b16 %v1182
      %v1221 = vunpack.c.l.b16 %v1196
      %v1222 = vpack.c.b16 %v1215, %v1214
      %v1223 = vpack.c.b16 %v1217, %v1216
      %v1224 = vpack.c.b16 %v1219, %v1218
      %v1225 = vpack.c.b16 %v1221, %v1220
      %v1246 = vunpack.c.l.b16 %v1198
      %v1247 = vunpack.c.l.b16 %v1199
      %v1248 = vunpack.c.l.b16 %v1200
      %v1249 = vunpack.c.l.b16 %v1201
      %v1250 = vunpack.c.l.b16 %v1202
      %v1251 = vunpack.c.l.b16 %v1203
      %v1252 = vunpack.c.l.b16 %v1204
      %v1253 = vunpack.c.l.b16 %v1205
      %v1254 = vunpack.c.l.b16 %v1206
      %v1255 = vunpack.c.l.b16 %v1207
      %v1256 = vunpack.c.l.b16 %v1208
      %v1257 = vunpack.c.l.b16 %v1209
      %v1258 = vunpack.c.l.b16 %v1210
      %v1259 = vunpack.c.l.b16 %v1211
      %v1260 = vunpack.c.l.b16 %v1212
      %v1261 = vunpack.c.l.b16 %v1213
      %v1262 = vpack.c.b16 %v1247, %v1246
      %v1263 = vpack.c.b16 %v1249, %v1248
      %v1264 = vpack.c.b16 %v1251, %v1250
      %v1265 = vpack.c.b16 %v1253, %v1252
      %v1266 = vpack.c.b16 %v1255, %v1254
      %v1267 = vpack.c.b16 %v1257, %v1256
      %v1268 = vpack.c.b16 %v1259, %v1258
      %v1269 = vpack.c.b16 %v1261, %v1260
      %1278 = vmatprep.subr.bf16.mxu0 0
      %1279 = vmatpush1.bf16.msra.mxu0 %v1262
      %1280 = vmatprep.subr.bf16.mxu0 0
      %1281 = vmatpush1.bf16.msra.mxu0 %v1263
      %1282 = vmatprep.subr.bf16.mxu0 0
      %1283 = vmatpush1.bf16.msra.mxu0 %v1264
      %1284 = vmatprep.subr.bf16.mxu0 0
      %1285 = vmatpush1.bf16.msra.mxu0 %v1265
      %1286 = vmatprep.subr.bf16.mxu0 0
      %1287 = vmatpush1.bf16.msra.mxu0 %v1266
      %1288 = vmatprep.subr.bf16.mxu0 0
      %1289 = vmatpush1.bf16.msra.mxu0 %v1267
      %1290 = vmatprep.subr.bf16.mxu0 0
      %1291 = vmatpush1.bf16.msra.mxu0 %v1268
      %1292 = vmatprep.subr.bf16.mxu0 0
      %1293 = vmatpush1.bf16.msra.mxu0 %v1269
      %1294 = vmatprep.subr.bf16.mxu0 0
      %1295 = vmatpush1.bf16.msra.mxu0 0
      %1296 = vmatprep.subr.bf16.mxu0 0
      %1297 = vmatpush1.bf16.msra.mxu0 0
      %1298 = vmatprep.subr.bf16.mxu0 0
      %1299 = vmatpush1.bf16.msra.mxu0 0
      %1300 = vmatprep.subr.bf16.mxu0 0
      %1301 = vmatpush1.bf16.msra.mxu0 0
      %1302 = vmatprep.subr.bf16.mxu0 0
      %1303 = vmatpush1.bf16.msra.mxu0 0
      %1304 = vmatprep.subr.bf16.mxu0 0
      %1305 = vmatpush1.bf16.msra.mxu0 0
      %1306 = vmatprep.subr.bf16.mxu0 0
      %1307 = vmatpush1.bf16.msra.mxu0 0
      %1308 = vmatprep.subr.bf16.mxu0 0
      %1309 = vmatpush1.bf16.msra.mxu0 0
      %1310 = vmatprep.mubr.bf16.mxu0 0
      %1311 = vmatmul.mubr.bf16.gmra.mrb[0].mxu0 %v1222
      %v1312 = vpop.f32.mrb[0].mxu0
      %v1313 = vadd.f32 0.0, %v1312
      %v1314 = vpop.f32.mrb[0].mxu0
      %v1315 = vpop.f32.mrb[0].mxu0
      %v1316 = vadd.f32 0.0, %v1315
      %v1317 = vpop.f32.mrb[0].mxu0
      %1318 = vmatprep.mubr.bf16.mxu0 0
      %1319 = vmatmul.mubr.bf16.gmra.mrb[0].mxu0 %v1223
      %v1320 = vpop.f32.mrb[0].mxu0
      %v1321 = vadd.f32 0.0, %v1320
      %v1322 = vpop.f32.mrb[0].mxu0
      %v1323 = vpop.f32.mrb[0].mxu0
      %v1324 = vadd.f32 0.0, %v1323
      %v1325 = vpop.f32.mrb[0].mxu0
      %1326 = vmatprep.mubr.bf16.mxu0 0
      %1327 = vmatmul.mubr.bf16.gmra.mrb[0].mxu0 %v1224
      %v1328 = vpop.f32.mrb[0].mxu0
      %v1329 = vadd.f32 0.0, %v1328
      %v1330 = vpop.f32.mrb[0].mxu0
      %v1331 = vpop.f32.mrb[0].mxu0
      %v1332 = vadd.f32 0.0, %v1331
      %v1333 = vpop.f32.mrb[0].mxu0
      %1334 = vmatprep.mubr.bf16.mxu0 0
      %1335 = vmatmul.mubr.bf16.gmra.mrb[0].mxu0 %v1225
      %v1336 = vpop.f32.mrb[0].mxu0
      %v1337 = vadd.f32 0.0, %v1336
      %v1338 = vpop.f32.mrb[0].mxu0
      %v1339 = vpop.f32.mrb[0].mxu0
      %v1340 = vadd.f32 0.0, %v1339
      %v1341 = vpop.f32.mrb[0].mxu0
      %1342 = vdwg.mxu0
      %v1343 = vld [vmem:[#allocation2] sm:$0xff]
      %v1344 = vld [vmem:[#allocation2 + $0x8] sm:$0xff]
      %v1345 = vld [vmem:[#allocation2 + $0x10] sm:$0xff]
      %v1346 = vld [vmem:[#allocation2 + $0x18] sm:$0xff]
      %v1347 = vld [vmem:[#allocation2 + $0x20] sm:$0xff]
      %v1348 = vld [vmem:[#allocation2 + $0x28] sm:$0xff]
      %v1349 = vld [vmem:[#allocation2 + $0x30] sm:$0xff]
      %v1350 = vld [vmem:[#allocation2 + $0x38] sm:$0xff]
      %v1351 = vadd.f32 %v1343, %v1313
      %v1352 = vadd.f32 %v1344, %v1316
      %v1353 = vadd.f32 %v1345, %v1321
      %v1354 = vadd.f32 %v1346, %v1324
      %v1355 = vadd.f32 %v1347, %v1329
      %v1356 = vadd.f32 %v1348, %v1332
      %v1357 = vadd.f32 %v1349, %v1337
      %v1358 = vadd.f32 %v1350, %v1340
      %1359 = vst [vmem:[#allocation2] sm:$0xff] %v1351
      %1360 = vst [vmem:[#allocation2 + $0x8] sm:$0xff] %v1352
      %1361 = vst [vmem:[#allocation2 + $0x10] sm:$0xff] %v1353
      %1362 = vst [vmem:[#allocation2 + $0x18] sm:$0xff] %v1354
      %1363 = vst [vmem:[#allocation2 + $0x20] sm:$0xff] %v1355
      %1364 = vst [vmem:[#allocation2 + $0x28] sm:$0xff] %v1356
      %1365 = vst [vmem:[#allocation2 + $0x30] sm:$0xff] %v1357
      %1366 = vst [vmem:[#allocation2 + $0x38] sm:$0xff] %v1358
      %v1367 = vld [vmem:[%s882] sm:$0xe]
      %v1368 = vld [vmem:[%s882 + $0x4] sm:$0x1]
      %v1369 = vld [vmem:[%s882 + $0x8] sm:$0xe]
      %v1370 = vld [vmem:[%s882 + $0xc] sm:$0x1]
      %v1371 = vld [vmem:[%s882 + $0x10] sm:$0xe]
      %v1372 = vld [vmem:[%s882 + $0x14] sm:$0x1]
      %v1373 = vld [vmem:[%s882 + $0x18] sm:$0xe]
      %v1374 = vld [vmem:[%s882 + $0x1c] sm:$0x1]
      %v1375 = vld [vmem:[%s882 + $0x20] sm:$0xe]
      %v1376 = vld [vmem:[%s882 + $0x24] sm:$0x1]
      %v1377 = vld [vmem:[%s882 + $0x28] sm:$0xe]
      %v1378 = vld [vmem:[%s882 + $0x2c] sm:$0x1]
      %v1379 = vld [vmem:[%s882 + $0x30] sm:$0xe]
      %v1380 = vld [vmem:[%s882 + $0x34] sm:$0x1]
      %v1381 = vld [vmem:[%s882 + $0x38] sm:$0xe]
      %v1382 = vld [vmem:[%s882 + $0x3c] sm:$0x1]
      %v1399 = vrot.slane %v1367, 5
      %v1400 = vrot.slane %v1399, 4
      %v1401 = vrot.slane %v1368, 5
      %v1402 = vsel %vm676, %v1400, %v1401
      %v1403 = vrot.slane %v1369, 5
      %v1404 = vrot.slane %v1403, 4
      %v1405 = vrot.slane %v1370, 5
      %v1406 = vsel %vm676, %v1404, %v1405
      %v1407 = vrot.slane %v1371, 5
      %v1408 = vrot.slane %v1407, 4
      %v1409 = vrot.slane %v1372, 5
      %v1410 = vsel %vm676, %v1408, %v1409
      %v1411 = vrot.slane %v1373, 5
      %v1412 = vrot.slane %v1411, 4
      %v1413 = vrot.slane %v1374, 5
      %v1414 = vsel %vm676, %v1412, %v1413
      %v1415 = vrot.slane %v1375, 5
      %v1416 = vrot.slane %v1415, 4
      %v1417 = vrot.slane %v1376, 5
      %v1418 = vsel %vm676, %v1416, %v1417
      %v1419 = vrot.slane %v1377, 5
      %v1420 = vrot.slane %v1419, 4
      %v1421 = vrot.slane %v1378, 5
      %v1422 = vsel %vm676, %v1420, %v1421
      %v1423 = vrot.slane %v1379, 5
      %v1424 = vrot.slane %v1423, 4
      %v1425 = vrot.slane %v1380, 5
      %v1426 = vsel %vm676, %v1424, %v1425
      %v1427 = vrot.slane %v1381, 5
      %v1428 = vrot.slane %v1427, 4
      %v1429 = vrot.slane %v1382, 5
      %v1430 = vsel %vm676, %v1428, %v1429
      %s1431 = scalar_lea.vmem %s1, 320
      %v1432 = vld [vmem:[%s1431] sm:$0xf]
      %v1433 = vld [vmem:[%s1431 + $0x4] sm:$0xf]
      %v1434 = vld [vmem:[%s1431 + $0x8] sm:$0xf]
      %v1435 = vld [vmem:[%s1431 + $0xc] sm:$0xf]
      %v1436 = vld [vmem:[%s1431 + $0x10] sm:$0xf]
      %v1437 = vld [vmem:[%s1431 + $0x14] sm:$0xf]
      %v1438 = vld [vmem:[%s1431 + $0x18] sm:$0xf]
      %v1439 = vld [vmem:[%s1431 + $0x1c] sm:$0xf]
      %v1440 = vld [vmem:[%s1431 + $0x20] sm:$0xf]
      %v1441 = vld [vmem:[%s1431 + $0x24] sm:$0xf]
      %v1442 = vld [vmem:[%s1431 + $0x28] sm:$0xf]
      %v1443 = vld [vmem:[%s1431 + $0x2c] sm:$0xf]
      %v1444 = vld [vmem:[%s1431 + $0x30] sm:$0xf]
      %v1445 = vld [vmem:[%s1431 + $0x34] sm:$0xf]
      %v1446 = vld [vmem:[%s1431 + $0x38] sm:$0xf]
      %v1447 = vld [vmem:[%s1431 + $0x3c] sm:$0xf]
      %v1448 = vunpack.c.l.b16 %v1402
      %v1449 = vunpack.c.l.b16 %v1406
      %v1450 = vunpack.c.l.b16 %v1410
      %v1451 = vunpack.c.l.b16 %v1414
      %v1452 = vunpack.c.l.b16 %v1418
      %v1453 = vunpack.c.l.b16 %v1422
      %v1454 = vunpack.c.l.b16 %v1426
      %v1455 = vunpack.c.l.b16 %v1430
      %v1456 = vpack.c.b16 %v1449, %v1448
      %v1457 = vpack.c.b16 %v1451, %v1450
      %v1458 = vpack.c.b16 %v1453, %v1452
      %v1459 = vpack.c.b16 %v1455, %v1454
      %v1480 = vunpack.c.l.b16 %v1432
      %v1481 = vunpack.c.l.b16 %v1433
      %v1482 = vunpack.c.l.b16 %v1434
      %v1483 = vunpack.c.l.b16 %v1435
      %v1484 = vunpack.c.l.b16 %v1436
      %v1485 = vunpack.c.l.b16 %v1437
      %v1486 = vunpack.c.l.b16 %v1438
      %v1487 = vunpack.c.l.b16 %v1439
      %v1488 = vunpack.c.l.b16 %v1440
      %v1489 = vunpack.c.l.b16 %v1441
      %v1490 = vunpack.c.l.b16 %v1442
      %v1491 = vunpack.c.l.b16 %v1443
      %v1492 = vunpack.c.l.b16 %v1444
      %v1493 = vunpack.c.l.b16 %v1445
      %v1494 = vunpack.c.l.b16 %v1446
      %v1495 = vunpack.c.l.b16 %v1447
      %v1496 = vpack.c.b16 %v1481, %v1480
      %v1497 = vpack.c.b16 %v1483, %v1482
      %v1498 = vpack.c.b16 %v1485, %v1484
      %v1499 = vpack.c.b16 %v1487, %v1486
      %v1500 = vpack.c.b16 %v1489, %v1488
      %v1501 = vpack.c.b16 %v1491, %v1490
      %v1502 = vpack.c.b16 %v1493, %v1492
      %v1503 = vpack.c.b16 %v1495, %v1494
      %1512 = vmatprep.subr.bf16.mxu0 0
      %1513 = vmatpush1.bf16.msra.mxu0 %v1496
      %1514 = vmatprep.subr.bf16.mxu0 0
      %1515 = vmatpush1.bf16.msra.mxu0 %v1497
      %1516 = vmatprep.subr.bf16.mxu0 0
      %1517 = vmatpush1.bf16.msra.mxu0 %v1498
      %1518 = vmatprep.subr.bf16.mxu0 0
      %1519 = vmatpush1.bf16.msra.mxu0 %v1499
      %1520 = vmatprep.subr.bf16.mxu0 0
      %1521 = vmatpush1.bf16.msra.mxu0 %v1500
      %1522 = vmatprep.subr.bf16.mxu0 0
      %1523 = vmatpush1.bf16.msra.mxu0 %v1501
      %1524 = vmatprep.subr.bf16.mxu0 0
      %1525 = vmatpush1.bf16.msra.mxu0 %v1502
      %1526 = vmatprep.subr.bf16.mxu0 0
      %1527 = vmatpush1.bf16.msra.mxu0 %v1503
      %1528 = vmatprep.subr.bf16.mxu0 0
      %1529 = vmatpush1.bf16.msra.mxu0 0
      %1530 = vmatprep.subr.bf16.mxu0 0
      %1531 = vmatpush1.bf16.msra.mxu0 0
      %1532 = vmatprep.subr.bf16.mxu0 0
      %1533 = vmatpush1.bf16.msra.mxu0 0
      %1534 = vmatprep.subr.bf16.mxu0 0
      %1535 = vmatpush1.bf16.msra.mxu0 0
      %1536 = vmatprep.subr.bf16.mxu0 0
      %1537 = vmatpush1.bf16.msra.mxu0 0
      %1538 = vmatprep.subr.bf16.mxu0 0
      %1539 = vmatpush1.bf16.msra.mxu0 0
      %1540 = vmatprep.subr.bf16.mxu0 0
      %1541 = vmatpush1.bf16.msra.mxu0 0
      %1542 = vmatprep.subr.bf16.mxu0 0
      %1543 = vmatpush1.bf16.msra.mxu0 0
      %1544 = vmatprep.mubr.bf16.mxu0 0
      %1545 = vmatmul.mubr.bf16.gmra.mrb[0].mxu0 %v1456
      %v1546 = vpop.f32.mrb[0].mxu0
      %v1547 = vadd.f32 0.0, %v1546
      %v1548 = vpop.f32.mrb[0].mxu0
      %v1549 = vpop.f32.mrb[0].mxu0
      %v1550 = vadd.f32 0.0, %v1549
      %v1551 = vpop.f32.mrb[0].mxu0
      %1552 = vmatprep.mubr.bf16.mxu0 0
      %1553 = vmatmul.mubr.bf16.gmra.mrb[0].mxu0 %v1457
      %v1554 = vpop.f32.mrb[0].mxu0
      %v1555 = vadd.f32 0.0, %v1554
      %v1556 = vpop.f32.mrb[0].mxu0
      %v1557 = vpop.f32.mrb[0].mxu0
      %v1558 = vadd.f32 0.0, %v1557
      %v1559 = vpop.f32.mrb[0].mxu0
      %1560 = vmatprep.mubr.bf16.mxu0 0
      %1561 = vmatmul.mubr.bf16.gmra.mrb[0].mxu0 %v1458
      %v1562 = vpop.f32.mrb[0].mxu0
      %v1563 = vadd.f32 0.0, %v1562
      %v1564 = vpop.f32.mrb[0].mxu0
      %v1565 = vpop.f32.mrb[0].mxu0
      %v1566 = vadd.f32 0.0, %v1565
      %v1567 = vpop.f32.mrb[0].mxu0
      %1568 = vmatprep.mubr.bf16.mxu0 0
      %1569 = vmatmul.mubr.bf16.gmra.mrb[0].mxu0 %v1459
      %v1570 = vpop.f32.mrb[0].mxu0
      %v1571 = vadd.f32 0.0, %v1570
      %v1572 = vpop.f32.mrb[0].mxu0
      %v1573 = vpop.f32.mrb[0].mxu0
      %v1574 = vadd.f32 0.0, %v1573
      %v1575 = vpop.f32.mrb[0].mxu0
      %1576 = vdwg.mxu0
      %v1577 = vld [vmem:[#allocation2] sm:$0xff]
      %v1578 = vld [vmem:[#allocation2 + $0x8] sm:$0xff]
      %v1579 = vld [vmem:[#allocation2 + $0x10] sm:$0xff]
      %v1580 = vld [vmem:[#allocation2 + $0x18] sm:$0xff]
      %v1581 = vld [vmem:[#allocation2 + $0x20] sm:$0xff]
      %v1582 = vld [vmem:[#allocation2 + $0x28] sm:$0xff]
      %v1583 = vld [vmem:[#allocation2 + $0x30] sm:$0xff]
      %v1584 = vld [vmem:[#allocation2 + $0x38] sm:$0xff]
      %v1585 = vadd.f32 %v1577, %v1547
      %v1586 = vadd.f32 %v1578, %v1550
      %v1587 = vadd.f32 %v1579, %v1555
      %v1588 = vadd.f32 %v1580, %v1558
      %v1589 = vadd.f32 %v1581, %v1563
      %v1590 = vadd.f32 %v1582, %v1566
      %v1591 = vadd.f32 %v1583, %v1571
      %v1592 = vadd.f32 %v1584, %v1574
      %1593 = vst [vmem:[#allocation2] sm:$0xff] %v1585
      %1594 = vst [vmem:[#allocation2 + $0x8] sm:$0xff] %v1586
      %1595 = vst [vmem:[#allocation2 + $0x10] sm:$0xff] %v1587
      %1596 = vst [vmem:[#allocation2 + $0x18] sm:$0xff] %v1588
      %1597 = vst [vmem:[#allocation2 + $0x20] sm:$0xff] %v1589
      %1598 = vst [vmem:[#allocation2 + $0x28] sm:$0xff] %v1590
      %1599 = vst [vmem:[#allocation2 + $0x30] sm:$0xff] %v1591
      %1600 = vst [vmem:[#allocation2 + $0x38] sm:$0xff] %v1592
      %s1601 = sadd.s32 %s168, 2
      %s1602 = smul.u32 %s1601, 2
      %s1603 = smul.addr %s1602, 4
      %s1604 = scalar_lea.vmem %s156, %s1603
      %v1605 = vld [vmem:[%s1604] sm:$0xf]
      %v1606 = vld [vmem:[%s1604 + $0x8] sm:$0xf]
      %v1607 = vld [vmem:[%s1604 + $0x10] sm:$0xf]
      %v1608 = vld [vmem:[%s1604 + $0x18] sm:$0xf]
      %v1609 = vld [vmem:[%s1604 + $0x20] sm:$0xf]
      %v1610 = vld [vmem:[%s1604 + $0x28] sm:$0xf]
      %v1611 = vld [vmem:[%s1604 + $0x30] sm:$0xf]
      %v1612 = vld [vmem:[%s1604 + $0x38] sm:$0xf]
      %s1613 = scalar_lea.vmem %s1, 384
      %v1614 = vld [vmem:[%s1613] sm:$0xf]
      %v1615 = vld [vmem:[%s1613 + $0x4] sm:$0xf]
      %v1616 = vld [vmem:[%s1613 + $0x8] sm:$0xf]
      %v1617 = vld [vmem:[%s1613 + $0xc] sm:$0xf]
      %v1618 = vld [vmem:[%s1613 + $0x10] sm:$0xf]
      %v1619 = vld [vmem:[%s1613 + $0x14] sm:$0xf]
      %v1620 = vld [vmem:[%s1613 + $0x18] sm:$0xf]
      %v1621 = vld [vmem:[%s1613 + $0x1c] sm:$0xf]
      %v1622 = vld [vmem:[%s1613 + $0x20] sm:$0xf]
      %v1623 = vld [vmem:[%s1613 + $0x24] sm:$0xf]
      %v1624 = vld [vmem:[%s1613 + $0x28] sm:$0xf]
      %v1625 = vld [vmem:[%s1613 + $0x2c] sm:$0xf]
      %v1626 = vld [vmem:[%s1613 + $0x30] sm:$0xf]
      %v1627 = vld [vmem:[%s1613 + $0x34] sm:$0xf]
      %v1628 = vld [vmem:[%s1613 + $0x38] sm:$0xf]
      %v1629 = vld [vmem:[%s1613 + $0x3c] sm:$0xf]
      %v1638 = vunpack.c.l.b16 %v1605
      %v1639 = vunpack.c.l.b16 %v1606
      %v1640 = vunpack.c.l.b16 %v1607
      %v1641 = vunpack.c.l.b16 %v1608
      %v1642 = vunpack.c.l.b16 %v1609
      %v1643 = vunpack.c.l.b16 %v1610
      %v1644 = vunpack.c.l.b16 %v1611
      %v1645 = vunpack.c.l.b16 %v1612
      %v1646 = vpack.c.b16 %v1639, %v1638
      %v1647 = vpack.c.b16 %v1641, %v1640
      %v1648 = vpack.c.b16 %v1643, %v1642
      %v1649 = vpack.c.b16 %v1645, %v1644
      %v1670 = vunpack.c.l.b16 %v1614
      %v1671 = vunpack.c.l.b16 %v1615
      %v1672 = vunpack.c.l.b16 %v1616
      %v1673 = vunpack.c.l.b16 %v1617
      %v1674 = vunpack.c.l.b16 %v1618
      %v1675 = vunpack.c.l.b16 %v1619
      %v1676 = vunpack.c.l.b16 %v1620
      %v1677 = vunpack.c.l.b16 %v1621
      %v1678 = vunpack.c.l.b16 %v1622
      %v1679 = vunpack.c.l.b16 %v1623
      %v1680 = vunpack.c.l.b16 %v1624
      %v1681 = vunpack.c.l.b16 %v1625
      %v1682 = vunpack.c.l.b16 %v1626
      %v1683 = vunpack.c.l.b16 %v1627
      %v1684 = vunpack.c.l.b16 %v1628
      %v1685 = vunpack.c.l.b16 %v1629
      %v1686 = vpack.c.b16 %v1671, %v1670
      %v1687 = vpack.c.b16 %v1673, %v1672
      %v1688 = vpack.c.b16 %v1675, %v1674
      %v1689 = vpack.c.b16 %v1677, %v1676
      %v1690 = vpack.c.b16 %v1679, %v1678
      %v1691 = vpack.c.b16 %v1681, %v1680
      %v1692 = vpack.c.b16 %v1683, %v1682
      %v1693 = vpack.c.b16 %v1685, %v1684
      %1702 = vmatprep.subr.bf16.mxu0 0
      %1703 = vmatpush1.bf16.msra.mxu0 %v1686
      %1704 = vmatprep.subr.bf16.mxu0 0
      %1705 = vmatpush1.bf16.msra.mxu0 %v1687
      %1706 = vmatprep.subr.bf16.mxu0 0
      %1707 = vmatpush1.bf16.msra.mxu0 %v1688
      %1708 = vmatprep.subr.bf16.mxu0 0
      %1709 = vmatpush1.bf16.msra.mxu0 %v1689
      %1710 = vmatprep.subr.bf16.mxu0 0
      %1711 = vmatpush1.bf16.msra.mxu0 %v1690
      %1712 = vmatprep.subr.bf16.mxu0 0
      %1713 = vmatpush1.bf16.msra.mxu0 %v1691
      %1714 = vmatprep.subr.bf16.mxu0 0
      %1715 = vmatpush1.bf16.msra.mxu0 %v1692
      %1716 = vmatprep.subr.bf16.mxu0 0
      %1717 = vmatpush1.bf16.msra.mxu0 %v1693
      %1718 = vmatprep.subr.bf16.mxu0 0
      %1719 = vmatpush1.bf16.msra.mxu0 0
      %1720 = vmatprep.subr.bf16.mxu0 0
      %1721 = vmatpush1.bf16.msra.mxu0 0
      %1722 = vmatprep.subr.bf16.mxu0 0
      %1723 = vmatpush1.bf16.msra.mxu0 0
      %1724 = vmatprep.subr.bf16.mxu0 0
      %1725 = vmatpush1.bf16.msra.mxu0 0
      %1726 = vmatprep.subr.bf16.mxu0 0
      %1727 = vmatpush1.bf16.msra.mxu0 0
      %1728 = vmatprep.subr.bf16.mxu0 0
      %1729 = vmatpush1.bf16.msra.mxu0 0
      %1730 = vmatprep.subr.bf16.mxu0 0
      %1731 = vmatpush1.bf16.msra.mxu0 0
      %1732 = vmatprep.subr.bf16.mxu0 0
      %1733 = vmatpush1.bf16.msra.mxu0 0
      %1734 = vmatprep.mubr.bf16.mxu0 0
      %1735 = vmatmul.mubr.bf16.gmra.mrb[0].mxu0 %v1646
      %v1736 = vpop.f32.mrb[0].mxu0
      %v1737 = vadd.f32 0.0, %v1736
      %v1738 = vpop.f32.mrb[0].mxu0
      %v1739 = vpop.f32.mrb[0].mxu0
      %v1740 = vadd.f32 0.0, %v1739
      %v1741 = vpop.f32.mrb[0].mxu0
      %1742 = vmatprep.mubr.bf16.mxu0 0
      %1743 = vmatmul.mubr.bf16.gmra.mrb[0].mxu0 %v1647
      %v1744 = vpop.f32.mrb[0].mxu0
      %v1745 = vadd.f32 0.0, %v1744
      %v1746 = vpop.f32.mrb[0].mxu0
      %v1747 = vpop.f32.mrb[0].mxu0
      %v1748 = vadd.f32 0.0, %v1747
      %v1749 = vpop.f32.mrb[0].mxu0
      %1750 = vmatprep.mubr.bf16.mxu0 0
      %1751 = vmatmul.mubr.bf16.gmra.mrb[0].mxu0 %v1648
      %v1752 = vpop.f32.mrb[0].mxu0
      %v1753 = vadd.f32 0.0, %v1752
      %v1754 = vpop.f32.mrb[0].mxu0
      %v1755 = vpop.f32.mrb[0].mxu0
      %v1756 = vadd.f32 0.0, %v1755
      %v1757 = vpop.f32.mrb[0].mxu0
      %1758 = vmatprep.mubr.bf16.mxu0 0
      %1759 = vmatmul.mubr.bf16.gmra.mrb[0].mxu0 %v1649
      %v1760 = vpop.f32.mrb[0].mxu0
      %v1761 = vadd.f32 0.0, %v1760
      %v1762 = vpop.f32.mrb[0].mxu0
      %v1763 = vpop.f32.mrb[0].mxu0
      %v1764 = vadd.f32 0.0, %v1763
      %v1765 = vpop.f32.mrb[0].mxu0
      %1766 = vdwg.mxu0
      %v1767 = vld [vmem:[#allocation2] sm:$0xff]
      %v1768 = vld [vmem:[#allocation2 + $0x8] sm:$0xff]
      %v1769 = vld [vmem:[#allocation2 + $0x10] sm:$0xff]
      %v1770 = vld [vmem:[#allocation2 + $0x18] sm:$0xff]
      %v1771 = vld [vmem:[#allocation2 + $0x20] sm:$0xff]
      %v1772 = vld [vmem:[#allocation2 + $0x28] sm:$0xff]
      %v1773 = vld [vmem:[#allocation2 + $0x30] sm:$0xff]
      %v1774 = vld [vmem:[#allocation2 + $0x38] sm:$0xff]
      %v1775 = vadd.f32 %v1767, %v1737
      %v1776 = vadd.f32 %v1768, %v1740
      %v1777 = vadd.f32 %v1769, %v1745
      %v1778 = vadd.f32 %v1770, %v1748
      %v1779 = vadd.f32 %v1771, %v1753
      %v1780 = vadd.f32 %v1772, %v1756
      %v1781 = vadd.f32 %v1773, %v1761
      %v1782 = vadd.f32 %v1774, %v1764
      %1783 = vst [vmem:[#allocation2] sm:$0xff] %v1775
      %1784 = vst [vmem:[#allocation2 + $0x8] sm:$0xff] %v1776
      %1785 = vst [vmem:[#allocation2 + $0x10] sm:$0xff] %v1777
      %1786 = vst [vmem:[#allocation2 + $0x18] sm:$0xff] %v1778
      %1787 = vst [vmem:[#allocation2 + $0x20] sm:$0xff] %v1779
      %1788 = vst [vmem:[#allocation2 + $0x28] sm:$0xff] %v1780
      %1789 = vst [vmem:[#allocation2 + $0x30] sm:$0xff] %v1781
      %1790 = vst [vmem:[#allocation2 + $0x38] sm:$0xff] %v1782
      %v1791 = vld [vmem:[%s1604] sm:$0xf]
      %v1792 = vld [vmem:[%s1604 + $0x4] sm:$0x1]
      %v1793 = vld [vmem:[%s1604 + $0x8] sm:$0xf]
      %v1794 = vld [vmem:[%s1604 + $0xc] sm:$0x1]
      %v1795 = vld [vmem:[%s1604 + $0x10] sm:$0xf]
      %v1796 = vld [vmem:[%s1604 + $0x14] sm:$0x1]
      %v1797 = vld [vmem:[%s1604 + $0x18] sm:$0xf]
      %v1798 = vld [vmem:[%s1604 + $0x1c] sm:$0x1]
      %v1799 = vld [vmem:[%s1604 + $0x20] sm:$0xf]
      %v1800 = vld [vmem:[%s1604 + $0x24] sm:$0x1]
      %v1801 = vld [vmem:[%s1604 + $0x28] sm:$0xf]
      %v1802 = vld [vmem:[%s1604 + $0x2c] sm:$0x1]
      %v1803 = vld [vmem:[%s1604 + $0x30] sm:$0xf]
      %v1804 = vld [vmem:[%s1604 + $0x34] sm:$0x1]
      %v1805 = vld [vmem:[%s1604 + $0x38] sm:$0xf]
      %v1806 = vld [vmem:[%s1604 + $0x3c] sm:$0x1]
      %v1808 = vshrl.u32 %v1791, 16
      %v1810 = vrot.slane %v1808, 4
      %v1811 = vshll.u32 %v1791, 16
      %v1813 = vrot.slane %v1811, 5
      %v1814 = vor.u32 %v1810, %v1813
      %v1815 = vrot.slane %v1814, 4
      %v1817 = vshll.u32 %v1792, 16
      %v1819 = vrot.slane %v1817, 5
      %v1820 = vsel %vm359, %v1815, %v1819
      %v1822 = vshrl.u32 %v1793, 16
      %v1824 = vrot.slane %v1822, 4
      %v1825 = vshll.u32 %v1793, 16
      %v1827 = vrot.slane %v1825, 5
      %v1828 = vor.u32 %v1824, %v1827
      %v1829 = vrot.slane %v1828, 4
      %v1831 = vshll.u32 %v1794, 16
      %v1833 = vrot.slane %v1831, 5
      %v1834 = vsel %vm359, %v1829, %v1833
      %v1836 = vshrl.u32 %v1795, 16
      %v1838 = vrot.slane %v1836, 4
      %v1839 = vshll.u32 %v1795, 16
      %v1841 = vrot.slane %v1839, 5
      %v1842 = vor.u32 %v1838, %v1841
      %v1843 = vrot.slane %v1842, 4
      %v1845 = vshll.u32 %v1796, 16
      %v1847 = vrot.slane %v1845, 5
      %v1848 = vsel %vm359, %v1843, %v1847
      %v1850 = vshrl.u32 %v1797, 16
      %v1852 = vrot.slane %v1850, 4
      %v1853 = vshll.u32 %v1797, 16
      %v1855 = vrot.slane %v1853, 5
      %v1856 = vor.u32 %v1852, %v1855
      %v1857 = vrot.slane %v1856, 4
      %v1859 = vshll.u32 %v1798, 16
      %v1861 = vrot.slane %v1859, 5
      %v1862 = vsel %vm359, %v1857, %v1861
      %v1864 = vshrl.u32 %v1799, 16
      %v1866 = vrot.slane %v1864, 4
      %v1867 = vshll.u32 %v1799, 16
      %v1869 = vrot.slane %v1867, 5
      %v1870 = vor.u32 %v1866, %v1869
      %v1871 = vrot.slane %v1870, 4
      %v1873 = vshll.u32 %v1800, 16
      %v1875 = vrot.slane %v1873, 5
      %v1876 = vsel %vm359, %v1871, %v1875
      %v1878 = vshrl.u32 %v1801, 16
      %v1880 = vrot.slane %v1878, 4
      %v1881 = vshll.u32 %v1801, 16
      %v1883 = vrot.slane %v1881, 5
      %v1884 = vor.u32 %v1880, %v1883
      %v1885 = vrot.slane %v1884, 4
      %v1887 = vshll.u32 %v1802, 16
      %v1889 = vrot.slane %v1887, 5
      %v1890 = vsel %vm359, %v1885, %v1889
      %v1892 = vshrl.u32 %v1803, 16
      %v1894 = vrot.slane %v1892, 4
      %v1895 = vshll.u32 %v1803, 16
      %v1897 = vrot.slane %v1895, 5
      %v1898 = vor.u32 %v1894, %v1897
      %v1899 = vrot.slane %v1898, 4
      %v1901 = vshll.u32 %v1804, 16
      %v1903 = vrot.slane %v1901, 5
      %v1904 = vsel %vm359, %v1899, %v1903
      %v1906 = vshrl.u32 %v1805, 16
      %v1908 = vrot.slane %v1906, 4
      %v1909 = vshll.u32 %v1805, 16
      %v1911 = vrot.slane %v1909, 5
      %v1912 = vor.u32 %v1908, %v1911
      %v1913 = vrot.slane %v1912, 4
      %v1915 = vshll.u32 %v1806, 16
      %v1917 = vrot.slane %v1915, 5
      %v1918 = vsel %vm359, %v1913, %v1917
      %s1919 = scalar_lea.vmem %s1, 448
      %v1920 = vld [vmem:[%s1919] sm:$0xf]
      %v1921 = vld [vmem:[%s1919 + $0x4] sm:$0xf]
      %v1922 = vld [vmem:[%s1919 + $0x8] sm:$0xf]
      %v1923 = vld [vmem:[%s1919 + $0xc] sm:$0xf]
      %v1924 = vld [vmem:[%s1919 + $0x10] sm:$0xf]
      %v1925 = vld [vmem:[%s1919 + $0x14] sm:$0xf]
      %v1926 = vld [vmem:[%s1919 + $0x18] sm:$0xf]
      %v1927 = vld [vmem:[%s1919 + $0x1c] sm:$0xf]
      %v1928 = vld [vmem:[%s1919 + $0x20] sm:$0xf]
      %v1929 = vld [vmem:[%s1919 + $0x24] sm:$0xf]
      %v1930 = vld [vmem:[%s1919 + $0x28] sm:$0xf]
      %v1931 = vld [vmem:[%s1919 + $0x2c] sm:$0xf]
      %v1932 = vld [vmem:[%s1919 + $0x30] sm:$0xf]
      %v1933 = vld [vmem:[%s1919 + $0x34] sm:$0xf]
      %v1934 = vld [vmem:[%s1919 + $0x38] sm:$0xf]
      %v1935 = vld [vmem:[%s1919 + $0x3c] sm:$0xf]
      %v1936 = vunpack.c.l.b16 %v1820
      %v1937 = vunpack.c.l.b16 %v1834
      %v1938 = vunpack.c.l.b16 %v1848
      %v1939 = vunpack.c.l.b16 %v1862
      %v1940 = vunpack.c.l.b16 %v1876
      %v1941 = vunpack.c.l.b16 %v1890
      %v1942 = vunpack.c.l.b16 %v1904
      %v1943 = vunpack.c.l.b16 %v1918
      %v1944 = vpack.c.b16 %v1937, %v1936
      %v1945 = vpack.c.b16 %v1939, %v1938
      %v1946 = vpack.c.b16 %v1941, %v1940
      %v1947 = vpack.c.b16 %v1943, %v1942
      %v1968 = vunpack.c.l.b16 %v1920
      %v1969 = vunpack.c.l.b16 %v1921
      %v1970 = vunpack.c.l.b16 %v1922
      %v1971 = vunpack.c.l.b16 %v1923
      %v1972 = vunpack.c.l.b16 %v1924
      %v1973 = vunpack.c.l.b16 %v1925
      %v1974 = vunpack.c.l.b16 %v1926
      %v1975 = vunpack.c.l.b16 %v1927
      %v1976 = vunpack.c.l.b16 %v1928
      %v1977 = vunpack.c.l.b16 %v1929
      %v1978 = vunpack.c.l.b16 %v1930
      %v1979 = vunpack.c.l.b16 %v1931
      %v1980 = vunpack.c.l.b16 %v1932
      %v1981 = vunpack.c.l.b16 %v1933
      %v1982 = vunpack.c.l.b16 %v1934
      %v1983 = vunpack.c.l.b16 %v1935
      %v1984 = vpack.c.b16 %v1969, %v1968
      %v1985 = vpack.c.b16 %v1971, %v1970
      %v1986 = vpack.c.b16 %v1973, %v1972
      %v1987 = vpack.c.b16 %v1975, %v1974
      %v1988 = vpack.c.b16 %v1977, %v1976
      %v1989 = vpack.c.b16 %v1979, %v1978
      %v1990 = vpack.c.b16 %v1981, %v1980
      %v1991 = vpack.c.b16 %v1983, %v1982
      %2000 = vmatprep.subr.bf16.mxu0 0
      %2001 = vmatpush1.bf16.msra.mxu0 %v1984
      %2002 = vmatprep.subr.bf16.mxu0 0
      %2003 = vmatpush1.bf16.msra.mxu0 %v1985
      %2004 = vmatprep.subr.bf16.mxu0 0
      %2005 = vmatpush1.bf16.msra.mxu0 %v1986
      %2006 = vmatprep.subr.bf16.mxu0 0
      %2007 = vmatpush1.bf16.msra.mxu0 %v1987
      %2008 = vmatprep.subr.bf16.mxu0 0
      %2009 = vmatpush1.bf16.msra.mxu0 %v1988
      %2010 = vmatprep.subr.bf16.mxu0 0
      %2011 = vmatpush1.bf16.msra.mxu0 %v1989
      %2012 = vmatprep.subr.bf16.mxu0 0
      %2013 = vmatpush1.bf16.msra.mxu0 %v1990
      %2014 = vmatprep.subr.bf16.mxu0 0
      %2015 = vmatpush1.bf16.msra.mxu0 %v1991
      %2016 = vmatprep.subr.bf16.mxu0 0
      %2017 = vmatpush1.bf16.msra.mxu0 0
      %2018 = vmatprep.subr.bf16.mxu0 0
      %2019 = vmatpush1.bf16.msra.mxu0 0
      %2020 = vmatprep.subr.bf16.mxu0 0
      %2021 = vmatpush1.bf16.msra.mxu0 0
      %2022 = vmatprep.subr.bf16.mxu0 0
      %2023 = vmatpush1.bf16.msra.mxu0 0
      %2024 = vmatprep.subr.bf16.mxu0 0
      %2025 = vmatpush1.bf16.msra.mxu0 0
      %2026 = vmatprep.subr.bf16.mxu0 0
      %2027 = vmatpush1.bf16.msra.mxu0 0
      %2028 = vmatprep.subr.bf16.mxu0 0
      %2029 = vmatpush1.bf16.msra.mxu0 0
      %2030 = vmatprep.subr.bf16.mxu0 0
      %2031 = vmatpush1.bf16.msra.mxu0 0
      %2032 = vmatprep.mubr.bf16.mxu0 0
      %2033 = vmatmul.mubr.bf16.gmra.mrb[0].mxu0 %v1944
      %v2034 = vpop.f32.mrb[0].mxu0
      %v2035 = vadd.f32 0.0, %v2034
      %v2036 = vpop.f32.mrb[0].mxu0
      %v2037 = vpop.f32.mrb[0].mxu0
      %v2038 = vadd.f32 0.0, %v2037
      %v2039 = vpop.f32.mrb[0].mxu0
      %2040 = vmatprep.mubr.bf16.mxu0 0
      %2041 = vmatmul.mubr.bf16.gmra.mrb[0].mxu0 %v1945
      %v2042 = vpop.f32.mrb[0].mxu0
      %v2043 = vadd.f32 0.0, %v2042
      %v2044 = vpop.f32.mrb[0].mxu0
      %v2045 = vpop.f32.mrb[0].mxu0
      %v2046 = vadd.f32 0.0, %v2045
      %v2047 = vpop.f32.mrb[0].mxu0
      %2048 = vmatprep.mubr.bf16.mxu0 0
      %2049 = vmatmul.mubr.bf16.gmra.mrb[0].mxu0 %v1946
      %v2050 = vpop.f32.mrb[0].mxu0
      %v2051 = vadd.f32 0.0, %v2050
      %v2052 = vpop.f32.mrb[0].mxu0
      %v2053 = vpop.f32.mrb[0].mxu0
      %v2054 = vadd.f32 0.0, %v2053
      %v2055 = vpop.f32.mrb[0].mxu0
      %2056 = vmatprep.mubr.bf16.mxu0 0
      %2057 = vmatmul.mubr.bf16.gmra.mrb[0].mxu0 %v1947
      %v2058 = vpop.f32.mrb[0].mxu0
      %v2059 = vadd.f32 0.0, %v2058
      %v2060 = vpop.f32.mrb[0].mxu0
      %v2061 = vpop.f32.mrb[0].mxu0
      %v2062 = vadd.f32 0.0, %v2061
      %v2063 = vpop.f32.mrb[0].mxu0
      %2064 = vdwg.mxu0
      %v2065 = vld [vmem:[#allocation2] sm:$0xff]
      %v2066 = vld [vmem:[#allocation2 + $0x8] sm:$0xff]
      %v2067 = vld [vmem:[#allocation2 + $0x10] sm:$0xff]
      %v2068 = vld [vmem:[#allocation2 + $0x18] sm:$0xff]
      %v2069 = vld [vmem:[#allocation2 + $0x20] sm:$0xff]
      %v2070 = vld [vmem:[#allocation2 + $0x28] sm:$0xff]
      %v2071 = vld [vmem:[#allocation2 + $0x30] sm:$0xff]
      %v2072 = vld [vmem:[#allocation2 + $0x38] sm:$0xff]
      %v2073 = vadd.f32 %v2065, %v2035
      %v2074 = vadd.f32 %v2066, %v2038
      %v2075 = vadd.f32 %v2067, %v2043
      %v2076 = vadd.f32 %v2068, %v2046
      %v2077 = vadd.f32 %v2069, %v2051
      %v2078 = vadd.f32 %v2070, %v2054
      %v2079 = vadd.f32 %v2071, %v2059
      %v2080 = vadd.f32 %v2072, %v2062
      %2081 = vst [vmem:[#allocation2] sm:$0xff] %v2073
      %2082 = vst [vmem:[#allocation2 + $0x8] sm:$0xff] %v2074
      %2083 = vst [vmem:[#allocation2 + $0x10] sm:$0xff] %v2075
      %2084 = vst [vmem:[#allocation2 + $0x18] sm:$0xff] %v2076
      %2085 = vst [vmem:[#allocation2 + $0x20] sm:$0xff] %v2077
      %2086 = vst [vmem:[#allocation2 + $0x28] sm:$0xff] %v2078
      %2087 = vst [vmem:[#allocation2 + $0x30] sm:$0xff] %v2079
      %2088 = vst [vmem:[#allocation2 + $0x38] sm:$0xff] %v2080
      %v2089 = vld [vmem:[%s1604] sm:$0xe]
      %v2090 = vld [vmem:[%s1604 + $0x4] sm:$0x1]
      %v2091 = vld [vmem:[%s1604 + $0x8] sm:$0xe]
      %v2092 = vld [vmem:[%s1604 + $0xc] sm:$0x1]
      %v2093 = vld [vmem:[%s1604 + $0x10] sm:$0xe]
      %v2094 = vld [vmem:[%s1604 + $0x14] sm:$0x1]
      %v2095 = vld [vmem:[%s1604 + $0x18] sm:$0xe]
      %v2096 = vld [vmem:[%s1604 + $0x1c] sm:$0x1]
      %v2097 = vld [vmem:[%s1604 + $0x20] sm:$0xe]
      %v2098 = vld [vmem:[%s1604 + $0x24] sm:$0x1]
      %v2099 = vld [vmem:[%s1604 + $0x28] sm:$0xe]
      %v2100 = vld [vmem:[%s1604 + $0x2c] sm:$0x1]
      %v2101 = vld [vmem:[%s1604 + $0x30] sm:$0xe]
      %v2102 = vld [vmem:[%s1604 + $0x34] sm:$0x1]
      %v2103 = vld [vmem:[%s1604 + $0x38] sm:$0xe]
      %v2104 = vld [vmem:[%s1604 + $0x3c] sm:$0x1]
      %v2121 = vrot.slane %v2089, 5
      %v2122 = vrot.slane %v2121, 4
      %v2123 = vrot.slane %v2090, 5
      %v2124 = vsel %vm676, %v2122, %v2123
      %v2125 = vrot.slane %v2091, 5
      %v2126 = vrot.slane %v2125, 4
      %v2127 = vrot.slane %v2092, 5
      %v2128 = vsel %vm676, %v2126, %v2127
      %v2129 = vrot.slane %v2093, 5
      %v2130 = vrot.slane %v2129, 4
      %v2131 = vrot.slane %v2094, 5
      %v2132 = vsel %vm676, %v2130, %v2131
      %v2133 = vrot.slane %v2095, 5
      %v2134 = vrot.slane %v2133, 4
      %v2135 = vrot.slane %v2096, 5
      %v2136 = vsel %vm676, %v2134, %v2135
      %v2137 = vrot.slane %v2097, 5
      %v2138 = vrot.slane %v2137, 4
      %v2139 = vrot.slane %v2098, 5
      %v2140 = vsel %vm676, %v2138, %v2139
      %v2141 = vrot.slane %v2099, 5
      %v2142 = vrot.slane %v2141, 4
      %v2143 = vrot.slane %v2100, 5
      %v2144 = vsel %vm676, %v2142, %v2143
      %v2145 = vrot.slane %v2101, 5
      %v2146 = vrot.slane %v2145, 4
      %v2147 = vrot.slane %v2102, 5
      %v2148 = vsel %vm676, %v2146, %v2147
      %v2149 = vrot.slane %v2103, 5
      %v2150 = vrot.slane %v2149, 4
      %v2151 = vrot.slane %v2104, 5
      %v2152 = vsel %vm676, %v2150, %v2151
      %s2153 = scalar_lea.vmem %s1, 512
      %v2154 = vld [vmem:[%s2153] sm:$0xf]
      %v2155 = vld [vmem:[%s2153 + $0x4] sm:$0xf]
      %v2156 = vld [vmem:[%s2153 + $0x8] sm:$0xf]
      %v2157 = vld [vmem:[%s2153 + $0xc] sm:$0xf]
      %v2158 = vld [vmem:[%s2153 + $0x10] sm:$0xf]
      %v2159 = vld [vmem:[%s2153 + $0x14] sm:$0xf]
      %v2160 = vld [vmem:[%s2153 + $0x18] sm:$0xf]
      %v2161 = vld [vmem:[%s2153 + $0x1c] sm:$0xf]
      %v2162 = vld [vmem:[%s2153 + $0x20] sm:$0xf]
      %v2163 = vld [vmem:[%s2153 + $0x24] sm:$0xf]
      %v2164 = vld [vmem:[%s2153 + $0x28] sm:$0xf]
      %v2165 = vld [vmem:[%s2153 + $0x2c] sm:$0xf]
      %v2166 = vld [vmem:[%s2153 + $0x30] sm:$0xf]
      %v2167 = vld [vmem:[%s2153 + $0x34] sm:$0xf]
      %v2168 = vld [vmem:[%s2153 + $0x38] sm:$0xf]
      %v2169 = vld [vmem:[%s2153 + $0x3c] sm:$0xf]
      %v2170 = vunpack.c.l.b16 %v2124
      %v2171 = vunpack.c.l.b16 %v2128
      %v2172 = vunpack.c.l.b16 %v2132
      %v2173 = vunpack.c.l.b16 %v2136
      %v2174 = vunpack.c.l.b16 %v2140
      %v2175 = vunpack.c.l.b16 %v2144
      %v2176 = vunpack.c.l.b16 %v2148
      %v2177 = vunpack.c.l.b16 %v2152
      %v2178 = vpack.c.b16 %v2171, %v2170
      %v2179 = vpack.c.b16 %v2173, %v2172
      %v2180 = vpack.c.b16 %v2175, %v2174
      %v2181 = vpack.c.b16 %v2177, %v2176
      %v2202 = vunpack.c.l.b16 %v2154
      %v2203 = vunpack.c.l.b16 %v2155
      %v2204 = vunpack.c.l.b16 %v2156
      %v2205 = vunpack.c.l.b16 %v2157
      %v2206 = vunpack.c.l.b16 %v2158
      %v2207 = vunpack.c.l.b16 %v2159
      %v2208 = vunpack.c.l.b16 %v2160
      %v2209 = vunpack.c.l.b16 %v2161
      %v2210 = vunpack.c.l.b16 %v2162
      %v2211 = vunpack.c.l.b16 %v2163
      %v2212 = vunpack.c.l.b16 %v2164
      %v2213 = vunpack.c.l.b16 %v2165
      %v2214 = vunpack.c.l.b16 %v2166
      %v2215 = vunpack.c.l.b16 %v2167
      %v2216 = vunpack.c.l.b16 %v2168
      %v2217 = vunpack.c.l.b16 %v2169
      %v2218 = vpack.c.b16 %v2203, %v2202
      %v2219 = vpack.c.b16 %v2205, %v2204
      %v2220 = vpack.c.b16 %v2207, %v2206
      %v2221 = vpack.c.b16 %v2209, %v2208
      %v2222 = vpack.c.b16 %v2211, %v2210
      %v2223 = vpack.c.b16 %v2213, %v2212
      %v2224 = vpack.c.b16 %v2215, %v2214
      %v2225 = vpack.c.b16 %v2217, %v2216
      %2234 = vmatprep.subr.bf16.mxu0 0
      %2235 = vmatpush1.bf16.msra.mxu0 %v2218
      %2236 = vmatprep.subr.bf16.mxu0 0
      %2237 = vmatpush1.bf16.msra.mxu0 %v2219
      %2238 = vmatprep.subr.bf16.mxu0 0
      %2239 = vmatpush1.bf16.msra.mxu0 %v2220
      %2240 = vmatprep.subr.bf16.mxu0 0
      %2241 = vmatpush1.bf16.msra.mxu0 %v2221
      %2242 = vmatprep.subr.bf16.mxu0 0
      %2243 = vmatpush1.bf16.msra.mxu0 %v2222
      %2244 = vmatprep.subr.bf16.mxu0 0
      %2245 = vmatpush1.bf16.msra.mxu0 %v2223
      %2246 = vmatprep.subr.bf16.mxu0 0
      %2247 = vmatpush1.bf16.msra.mxu0 %v2224
      %2248 = vmatprep.subr.bf16.mxu0 0
      %2249 = vmatpush1.bf16.msra.mxu0 %v2225
      %2250 = vmatprep.subr.bf16.mxu0 0
      %2251 = vmatpush1.bf16.msra.mxu0 0
      %2252 = vmatprep.subr.bf16.mxu0 0
      %2253 = vmatpush1.bf16.msra.mxu0 0
      %2254 = vmatprep.subr.bf16.mxu0 0
      %2255 = vmatpush1.bf16.msra.mxu0 0
      %2256 = vmatprep.subr.bf16.mxu0 0
      %2257 = vmatpush1.bf16.msra.mxu0 0
      %2258 = vmatprep.subr.bf16.mxu0 0
      %2259 = vmatpush1.bf16.msra.mxu0 0
      %2260 = vmatprep.subr.bf16.mxu0 0
      %2261 = vmatpush1.bf16.msra.mxu0 0
      %2262 = vmatprep.subr.bf16.mxu0 0
      %2263 = vmatpush1.bf16.msra.mxu0 0
      %2264 = vmatprep.subr.bf16.mxu0 0
      %2265 = vmatpush1.bf16.msra.mxu0 0
      %2266 = vmatprep.mubr.bf16.mxu0 0
      %2267 = vmatmul.mubr.bf16.gmra.mrb[0].mxu0 %v2178
      %v2268 = vpop.f32.mrb[0].mxu0
      %v2269 = vadd.f32 0.0, %v2268
      %v2270 = vpop.f32.mrb[0].mxu0
      %v2271 = vpop.f32.mrb[0].mxu0
      %v2272 = vadd.f32 0.0, %v2271
      %v2273 = vpop.f32.mrb[0].mxu0
      %2274 = vmatprep.mubr.bf16.mxu0 0
      %2275 = vmatmul.mubr.bf16.gmra.mrb[0].mxu0 %v2179
      %v2276 = vpop.f32.mrb[0].mxu0
      %v2277 = vadd.f32 0.0, %v2276
      %v2278 = vpop.f32.mrb[0].mxu0
      %v2279 = vpop.f32.mrb[0].mxu0
      %v2280 = vadd.f32 0.0, %v2279
      %v2281 = vpop.f32.mrb[0].mxu0
      %2282 = vmatprep.mubr.bf16.mxu0 0
      %2283 = vmatmul.mubr.bf16.gmra.mrb[0].mxu0 %v2180
      %v2284 = vpop.f32.mrb[0].mxu0
      %v2285 = vadd.f32 0.0, %v2284
      %v2286 = vpop.f32.mrb[0].mxu0
      %v2287 = vpop.f32.mrb[0].mxu0
      %v2288 = vadd.f32 0.0, %v2287
      %v2289 = vpop.f32.mrb[0].mxu0
      %2290 = vmatprep.mubr.bf16.mxu0 0
      %2291 = vmatmul.mubr.bf16.gmra.mrb[0].mxu0 %v2181
      %v2292 = vpop.f32.mrb[0].mxu0
      %v2293 = vadd.f32 0.0, %v2292
      %v2294 = vpop.f32.mrb[0].mxu0
      %v2295 = vpop.f32.mrb[0].mxu0
      %v2296 = vadd.f32 0.0, %v2295
      %v2297 = vpop.f32.mrb[0].mxu0
      %2298 = vdwg.mxu0
      %v2299 = vld [vmem:[#allocation2] sm:$0xff]
      %v2300 = vld [vmem:[#allocation2 + $0x8] sm:$0xff]
      %v2301 = vld [vmem:[#allocation2 + $0x10] sm:$0xff]
      %v2302 = vld [vmem:[#allocation2 + $0x18] sm:$0xff]
      %v2303 = vld [vmem:[#allocation2 + $0x20] sm:$0xff]
      %v2304 = vld [vmem:[#allocation2 + $0x28] sm:$0xff]
      %v2305 = vld [vmem:[#allocation2 + $0x30] sm:$0xff]
      %v2306 = vld [vmem:[#allocation2 + $0x38] sm:$0xff]
      %v2307 = vadd.f32 %v2299, %v2269
      %v2308 = vadd.f32 %v2300, %v2272
      %v2309 = vadd.f32 %v2301, %v2277
      %v2310 = vadd.f32 %v2302, %v2280
      %v2311 = vadd.f32 %v2303, %v2285
      %v2312 = vadd.f32 %v2304, %v2288
      %v2313 = vadd.f32 %v2305, %v2293
      %v2314 = vadd.f32 %v2306, %v2296
      %2315 = vst [vmem:[#allocation2] sm:$0xff] %v2307
      %2316 = vst [vmem:[#allocation2 + $0x8] sm:$0xff] %v2308
      %2317 = vst [vmem:[#allocation2 + $0x10] sm:$0xff] %v2309
      %2318 = vst [vmem:[#allocation2 + $0x18] sm:$0xff] %v2310
      %2319 = vst [vmem:[#allocation2 + $0x20] sm:$0xff] %v2311
      %2320 = vst [vmem:[#allocation2 + $0x28] sm:$0xff] %v2312
      %2321 = vst [vmem:[#allocation2 + $0x30] sm:$0xff] %v2313
      %2322 = vst [vmem:[#allocation2 + $0x38] sm:$0xff] %v2314
      %v2323 = vld [vmem:[#allocation2] sm:$0xff]
      %v2324 = vld [vmem:[#allocation2 + $0x8] sm:$0xff]
      %v2325 = vld [vmem:[#allocation2 + $0x10] sm:$0xff]
      %v2326 = vld [vmem:[#allocation2 + $0x18] sm:$0xff]
      %v2327 = vld [vmem:[#allocation2 + $0x20] sm:$0xff]
      %v2328 = vld [vmem:[#allocation2 + $0x28] sm:$0xff]
      %v2329 = vld [vmem:[#allocation2 + $0x30] sm:$0xff]
      %v2330 = vld [vmem:[#allocation2 + $0x38] sm:$0xff]
      %v2331 = vpack.c.bf16 %v2323, %v2323
      %v2332 = vpack.c.bf16 %v2324, %v2324
      %v2333 = vpack.c.bf16 %v2325, %v2325
      %v2334 = vpack.c.bf16 %v2326, %v2326
      %v2335 = vpack.c.bf16 %v2327, %v2327
      %v2336 = vpack.c.bf16 %v2328, %v2328
      %v2337 = vpack.c.bf16 %v2329, %v2329
      %v2338 = vpack.c.bf16 %v2330, %v2330
      %2339 = vst [vmem:[%s165] sm:$0xf] %v2331
      %2340 = vst [vmem:[%s165 + $0x4] sm:$0xf] %v2332
      %2341 = vst [vmem:[%s165 + $0x8] sm:$0xf] %v2333
      %2342 = vst [vmem:[%s165 + $0xc] sm:$0xf] %v2334
      %2343 = vst [vmem:[%s165 + $0x10] sm:$0xf] %v2335
      %2344 = vst [vmem:[%s165 + $0x14] sm:$0xf] %v2336
      %2345 = vst [vmem:[%s165 + $0x18] sm:$0xf] %v2337
      %2346 = vst [vmem:[%s165 + $0x1c] sm:$0xf] %v2338
      %s2347 = smul.u32 8, %s18
      %p2348 = scmp.lt.s32.totalorder %s17, 1
      %s2349 = scalar_select %p2348, %s17, 1
      %p2350 = scmp.lt.s32.totalorder %s2347, 7
      %s2351 = scalar_select %p2350, %s2347, 7
      %s2352 = smul.addr %s2349, 8
      %s2353 = sadd.s32 %s2351, %s2352
      %s2354 = smul.addr %s2353, 4
      %s2355 = scalar_lea.vmem %s2, %s2354
      // Predicated region
      $region29: #{block_group_forward.18} parent=27 // pred_check
        %p2356 = pneg %p92
      $region30: #{block_group_forward.18} parent=27 // pred_check_branch
        %2358 = sbr.rel (%p2356) target = $region32
      $region31: #{block_group_forward.18} parent=27 // pred_region
        %s2359 = smul.u32 8, %s18
      $region32: #{block_group_forward.18} parent=27 // pred_fallthru
        _
    $region28: #{block_group_forward.18} parent=5 // pred_fallthru
      _
    %p2360 = scmp.le.s32.totalorder 2, %s8
    // Predicated region
    $region33: #{block_group_forward.18} parent=5 // pred_check
      %p2361 = pneg %p2360
    $region34: #{block_group_forward.18} parent=5 // pred_check_branch
      %2363 = sbr.rel (%p2361) target = $region36
    $region35: #{block_group_forward.18} parent=5 // pred_region
      %s2364 = ssub.s32 %s8, 2
      // Predicated region
      $region37: #{block_group_forward.18} parent=35 // pred_check
        %p2365 = pneg %p98
      $region38: #{block_group_forward.18} parent=35 // pred_check_branch
        %2367 = sbr.rel (%p2365) target = $region40
      $region39: #{block_group_forward.18} parent=35 // pred_region
        %s2368 = smul.u32 8, %s20
        %p2369 = scmp.lt.s32.totalorder %s19, 1
        %s2370 = scalar_select %p2369, %s19, 1
        %p2371 = scmp.lt.s32.totalorder %s2368, 7
        %s2372 = scalar_select %p2371, %s2368, 7
        %s2373 = smul.addr %s2370, 8
        %s2374 = sadd.s32 %s2372, %s2373
        %s2375 = smul.addr %s2374, 4
        %s2376 = scalar_lea.vmem %s2, %s2375
      $region40: #{block_group_forward.18} parent=35 // pred_fallthru
        _
    $region36: #{block_group_forward.18} parent=5 // pred_fallthru
      _
  $region6: #{block_group_forward.18} parent=0 // loop_footer
    %s12 = sadd.s32 1, %s8
  $region7: #{block_group_forward.18} parent=0 // loop_footer_branch
    %7 = sbr.rel target = $region3
  $region8: #{block_group_forward.18} parent=0 // loop_exit
    _

// kernel: block_group_forward.21
$region0: #{block_group_forward.21}
  #allocation0 [shape = 'u32[]', space=smem, size = 0x4, offset = 0x4, fixed_abs, tag = 'smem constant byte address 0x4 - core index']
  #allocation1 [shape = 'u32[144,128]{1,0:T(1,128)}', space=vmem, size = 0x12000, scoped, tag = 'internal scratch']
  %s0 = inlined_call_operand.vmem [shape: bf16[128,128], index: 0, kind: input, shape index: {}]
  %s1 = inlined_call_operand.vmem [shape: f32[1,128], index: 1, kind: input, shape index: {}]
  %s2 = inlined_call_operand.vmem [shape: f32[1,128], index: 2, kind: input, shape index: {}]
  %s3 = inlined_call_operand.vmem [shape: bf16[128,128], index: 3, kind: output, shape index: {}]
  %s4 = sld [smem:[#allocation0]]
  $region22: #{block_group_forward.21} parent=0
    _
  %s6 = ssub.s32 1, %s4
  %s7 = scalar_select 0, %s6, %s4
  // Predicated region
  $region2: #{block_group_forward.21} parent=0 // pred_check
    _
  $region3: #{block_group_forward.21} parent=0 // pred_check_branch
    %9 = sbr.rel (0) target = $region5
  $region4: #{block_group_forward.21} parent=0 // pred_region
    _
  $region5: #{block_group_forward.21} parent=0 // pred_fallthru
    _
  // Predicated region
  $region6: #{block_group_forward.21} parent=0 // pred_check
    _
  $region7: #{block_group_forward.21} parent=0 // pred_check_branch
    %11 = sbr.rel (0) target = $region9
  $region8: #{block_group_forward.21} parent=0 // pred_region
    _
  $region9: #{block_group_forward.21} parent=0 // pred_fallthru
    _
  // Predicated region
  $region10: #{block_group_forward.21} parent=0 // pred_check
    _
  $region11: #{block_group_forward.21} parent=0 // pred_check_branch
    %13 = sbr.rel (0) target = $region13
  $region12: #{block_group_forward.21} parent=0 // pred_region
    _
  $region13: #{block_group_forward.21} parent=0 // pred_fallthru
    _
  %v14 = vld [vmem:[%s0] sm:$0xf]
  %v15 = vld [vmem:[%s0 + $0x4] sm:$0xf]
  %v16 = vld [vmem:[%s0 + $0x8] sm:$0xf]
  %v17 = vld [vmem:[%s0 + $0xc] sm:$0xf]
  %v18 = vld [vmem:[%s0 + $0x10] sm:$0xf]
  %v19 = vld [vmem:[%s0 + $0x14] sm:$0xf]
  %v20 = vld [vmem:[%s0 + $0x18] sm:$0xf]
  %v21 = vld [vmem:[%s0 + $0x1c] sm:$0xf]
  %v22 = vld [vmem:[%s0 + $0x20] sm:$0xf]
  %v23 = vld [vmem:[%s0 + $0x24] sm:$0xf]
  %v24 = vld [vmem:[%s0 + $0x28] sm:$0xf]
  %v25 = vld [vmem:[%s0 + $0x2c] sm:$0xf]
  %v26 = vld [vmem:[%s0 + $0x30] sm:$0xf]
  %v27 = vld [vmem:[%s0 + $0x34] sm:$0xf]
  %v28 = vld [vmem:[%s0 + $0x38] sm:$0xf]
  %v29 = vld [vmem:[%s0 + $0x3c] sm:$0xf]
  %v30 = vunpack.c.l.bf16 %v14
  %v31 = vunpack.c.l.bf16 %v15
  %v32 = vunpack.c.l.bf16 %v16
  %v33 = vunpack.c.l.bf16 %v17
  %v34 = vunpack.c.l.bf16 %v18
  %v35 = vunpack.c.l.bf16 %v19
  %v36 = vunpack.c.l.bf16 %v20
  %v37 = vunpack.c.l.bf16 %v21
  %v38 = vunpack.c.l.bf16 %v22
  %v39 = vunpack.c.l.bf16 %v23
  %v40 = vunpack.c.l.bf16 %v24
  %v41 = vunpack.c.l.bf16 %v25
  %v42 = vunpack.c.l.bf16 %v26
  %v43 = vunpack.c.l.bf16 %v27
  %v44 = vunpack.c.l.bf16 %v28
  %v45 = vunpack.c.l.bf16 %v29
  %v46 = vld [vmem:[%s1] sm:$0x1]
  %v48 = vlaneseq
  %v49 = vshrl.u32 %v48, 7
  %v50 = vsub.s32 0, %v49
  %v51 = vrot.slane %v46, %v50
  %v53 = vmul.f32 %v30, %v51
  %v54 = vmul.f32 %v31, %v51
  %v55 = vmul.f32 %v32, %v51
  %v56 = vmul.f32 %v33, %v51
  %v57 = vmul.f32 %v34, %v51
  %v58 = vmul.f32 %v35, %v51
  %v59 = vmul.f32 %v36, %v51
  %v60 = vmul.f32 %v37, %v51
  %v61 = vmul.f32 %v38, %v51
  %v62 = vmul.f32 %v39, %v51
  %v63 = vmul.f32 %v40, %v51
  %v64 = vmul.f32 %v41, %v51
  %v65 = vmul.f32 %v42, %v51
  %v66 = vmul.f32 %v43, %v51
  %v67 = vmul.f32 %v44, %v51
  %v68 = vmul.f32 %v45, %v51
  %v69 = vld [vmem:[%s2] sm:$0x1]
  %v71 = vlaneseq
  %v72 = vshrl.u32 %v71, 7
  %v73 = vsub.s32 0, %v72
  %v74 = vrot.slane %v69, %v73
  %v76 = vadd.f32 %v53, %v74
  %v77 = vadd.f32 %v54, %v74
  %v78 = vadd.f32 %v55, %v74
  %v79 = vadd.f32 %v56, %v74
  %v80 = vadd.f32 %v57, %v74
  %v81 = vadd.f32 %v58, %v74
  %v82 = vadd.f32 %v59, %v74
  %v83 = vadd.f32 %v60, %v74
  %v84 = vadd.f32 %v61, %v74
  %v85 = vadd.f32 %v62, %v74
  %v86 = vadd.f32 %v63, %v74
  %v87 = vadd.f32 %v64, %v74
  %v88 = vadd.f32 %v65, %v74
  %v89 = vadd.f32 %v66, %v74
  %v90 = vadd.f32 %v67, %v74
  %v91 = vadd.f32 %v68, %v74
  %v92 = vpack.c.bf16 %v77, %v76
  %v93 = vpack.c.bf16 %v79, %v78
  %v94 = vpack.c.bf16 %v81, %v80
  %v95 = vpack.c.bf16 %v83, %v82
  %v96 = vpack.c.bf16 %v85, %v84
  %v97 = vpack.c.bf16 %v87, %v86
  %v98 = vpack.c.bf16 %v89, %v88
  %v99 = vpack.c.bf16 %v91, %v90
  %v108 = vunpack.c.l.b16 %v92
  %v109 = vunpack.c.h.b16 %v92
  %v110 = vunpack.c.l.b16 %v93
  %v111 = vunpack.c.h.b16 %v93
  %v112 = vunpack.c.l.b16 %v94
  %v113 = vunpack.c.h.b16 %v94
  %v114 = vunpack.c.l.b16 %v95
  %v115 = vunpack.c.h.b16 %v95
  %v116 = vunpack.c.l.b16 %v96
  %v117 = vunpack.c.h.b16 %v96
  %v118 = vunpack.c.l.b16 %v97
  %v119 = vunpack.c.h.b16 %v97
  %v120 = vunpack.c.l.b16 %v98
  %v121 = vunpack.c.h.b16 %v98
  %v122 = vunpack.c.l.b16 %v99
  %v123 = vunpack.c.h.b16 %v99
  %v124 = vpack.c.b16 %v108, %v108
  %v125 = vpack.c.b16 %v109, %v109
  %v126 = vpack.c.b16 %v110, %v110
  %v127 = vpack.c.b16 %v111, %v111
  %v128 = vpack.c.b16 %v112, %v112
  %v129 = vpack.c.b16 %v113, %v113
  %v130 = vpack.c.b16 %v114, %v114
  %v131 = vpack.c.b16 %v115, %v115
  %v132 = vpack.c.b16 %v116, %v116
  %v133 = vpack.c.b16 %v117, %v117
  %v134 = vpack.c.b16 %v118, %v118
  %v135 = vpack.c.b16 %v119, %v119
  %v136 = vpack.c.b16 %v120, %v120
  %v137 = vpack.c.b16 %v121, %v121
  %v138 = vpack.c.b16 %v122, %v122
  %v139 = vpack.c.b16 %v123, %v123
  %156 = vst [vmem:[%s3] sm:$0xf] %v124
  %157 = vst [vmem:[%s3 + $0x4] sm:$0xf] %v125
  %158 = vst [vmem:[%s3 + $0x8] sm:$0xf] %v126
  %159 = vst [vmem:[%s3 + $0xc] sm:$0xf] %v127
  %160 = vst [vmem:[%s3 + $0x10] sm:$0xf] %v128
  %161 = vst [vmem:[%s3 + $0x14] sm:$0xf] %v129
  %162 = vst [vmem:[%s3 + $0x18] sm:$0xf] %v130
  %163 = vst [vmem:[%s3 + $0x1c] sm:$0xf] %v131
  %164 = vst [vmem:[%s3 + $0x20] sm:$0xf] %v132
  %165 = vst [vmem:[%s3 + $0x24] sm:$0xf] %v133
  %166 = vst [vmem:[%s3 + $0x28] sm:$0xf] %v134
  %167 = vst [vmem:[%s3 + $0x2c] sm:$0xf] %v135
  %168 = vst [vmem:[%s3 + $0x30] sm:$0xf] %v136
  %169 = vst [vmem:[%s3 + $0x34] sm:$0xf] %v137
  %170 = vst [vmem:[%s3 + $0x38] sm:$0xf] %v138
  %171 = vst [vmem:[%s3 + $0x3c] sm:$0xf] %v139
  // Predicated region
  $region14: #{block_group_forward.21} parent=0 // pred_check
    _
  $region15: #{block_group_forward.21} parent=0 // pred_check_branch
    %173 = sbr.rel (0) target = $region17
  $region16: #{block_group_forward.21} parent=0 // pred_region
    _
  $region17: #{block_group_forward.21} parent=0 // pred_fallthru
    _
  // Predicated region
  $region18: #{block_group_forward.21} parent=0 // pred_check
    _
  $region19: #{block_group_forward.21} parent=0 // pred_check_branch
    %175 = sbr.rel (0) target = $region21
  $region20: #{block_group_forward.21} parent=0 // pred_region
    _
  $region21: #{block_group_forward.21} parent=0 // pred_fallthru
    _

// kernel: block_group_forward.19
$region0: #{block_group_forward.19}
  #allocation0 [shape = 'u32[]', space=smem, size = 0x4, offset = 0x4, fixed_abs, tag = 'smem constant byte address 0x4 - core index']
  #allocation1 [shape = 'u32[144,128]{1,0:T(1,128)}', space=vmem, size = 0x12000, scoped, tag = 'internal scratch']
  #allocation2 [shape = 'f32[128,128]{1,0:T(8,128)}', space=vmem, size = 0x10000, scoped, tag = 'scratch operand']
  %s0 = inlined_call_operand.vmem [shape: bf16[128,128], index: 0, kind: input, shape index: {}]
  %s1 = inlined_call_operand.vmem [shape: bf16[128,128], index: 1, kind: input, shape index: {}]
  %s2 = inlined_call_operand.vmem [shape: bf16[128,128], index: 2, kind: output, shape index: {}]
  %s3 = sld [smem:[#allocation0]]
  $region26: #{block_group_forward.19} parent=0
    _
  %s5 = ssub.s32 1, %s3
  %s6 = scalar_select 0, %s5, %s3
  // Predicated region
  $region2: #{block_group_forward.19} parent=0 // pred_check
    _
  $region3: #{block_group_forward.19} parent=0 // pred_check_branch
    %8 = sbr.rel (0) target = $region5
  $region4: #{block_group_forward.19} parent=0 // pred_region
    _
  $region5: #{block_group_forward.19} parent=0 // pred_fallthru
    _
  // Predicated region
  $region6: #{block_group_forward.19} parent=0 // pred_check
    _
  $region7: #{block_group_forward.19} parent=0 // pred_check_branch
    %10 = sbr.rel (0) target = $region9
  $region8: #{block_group_forward.19} parent=0 // pred_region
    _
  $region9: #{block_group_forward.19} parent=0 // pred_fallthru
    _
  %p12 = scmp.eq.s32.totalorder 0, 0
  // Predicated region
  $region10: #{block_group_forward.19} parent=0 // pred_check
    %p13 = pneg %p12
  $region11: #{block_group_forward.19} parent=0 // pred_check_branch
    %15 = sbr.rel (%p13) target = $region13
  $region12: #{block_group_forward.19} parent=0 // pred_region
    %16 = vst [vmem:[#allocation2] sm:$0xff] 0.0
    %17 = vst [vmem:[#allocation2 + $0x8] sm:$0xff] 0.0
    %18 = vst [vmem:[#allocation2 + $0x10] sm:$0xff] 0.0
    %19 = vst [vmem:[#allocation2 + $0x18] sm:$0xff] 0.0
    %20 = vst [vmem:[#allocation2 + $0x20] sm:$0xff] 0.0
    %21 = vst [vmem:[#allocation2 + $0x28] sm:$0xff] 0.0
    %22 = vst [vmem:[#allocation2 + $0x30] sm:$0xff] 0.0
    %23 = vst [vmem:[#allocation2 + $0x38] sm:$0xff] 0.0
    %24 = vst [vmem:[#allocation2 + $0x40] sm:$0xff] 0.0
    %25 = vst [vmem:[#allocation2 + $0x48] sm:$0xff] 0.0
    %26 = vst [vmem:[#allocation2 + $0x50] sm:$0xff] 0.0
    %27 = vst [vmem:[#allocation2 + $0x58] sm:$0xff] 0.0
    %28 = vst [vmem:[#allocation2 + $0x60] sm:$0xff] 0.0
    %29 = vst [vmem:[#allocation2 + $0x68] sm:$0xff] 0.0
    %30 = vst [vmem:[#allocation2 + $0x70] sm:$0xff] 0.0
    %31 = vst [vmem:[#allocation2 + $0x78] sm:$0xff] 0.0
  $region13: #{block_group_forward.19} parent=0 // pred_fallthru
    _
  %v32 = vld [vmem:[#allocation2] sm:$0xff]
  %v33 = vld [vmem:[#allocation2 + $0x8] sm:$0xff]
  %v34 = vld [vmem:[#allocation2 + $0x10] sm:$0xff]
  %v35 = vld [vmem:[#allocation2 + $0x18] sm:$0xff]
  %v36 = vld [vmem:[#allocation2 + $0x20] sm:$0xff]
  %v37 = vld [vmem:[#allocation2 + $0x28] sm:$0xff]
  %v38 = vld [vmem:[#allocation2 + $0x30] sm:$0xff]
  %v39 = vld [vmem:[#allocation2 + $0x38] sm:$0xff]
  %v40 = vld [vmem:[#allocation2 + $0x40] sm:$0xff]
  %v41 = vld [vmem:[#allocation2 + $0x48] sm:$0xff]
  %v42 = vld [vmem:[#allocation2 + $0x50] sm:$0xff]
  %v43 = vld [vmem:[#allocation2 + $0x58] sm:$0xff]
  %v44 = vld [vmem:[#allocation2 + $0x60] sm:$0xff]
  %v45 = vld [vmem:[#allocation2 + $0x68] sm:$0xff]
  %v46 = vld [vmem:[#allocation2 + $0x70] sm:$0xff]
  %v47 = vld [vmem:[#allocation2 + $0x78] sm:$0xff]
  %v48 = vld [vmem:[%s0] sm:$0xf]
  %v49 = vld [vmem:[%s0 + $0x4] sm:$0xf]
  %v50 = vld [vmem:[%s0 + $0x8] sm:$0xf]
  %v51 = vld [vmem:[%s0 + $0xc] sm:$0xf]
  %v52 = vld [vmem:[%s0 + $0x10] sm:$0xf]
  %v53 = vld [vmem:[%s0 + $0x14] sm:$0xf]
  %v54 = vld [vmem:[%s0 + $0x18] sm:$0xf]
  %v55 = vld [vmem:[%s0 + $0x1c] sm:$0xf]
  %v56 = vld [vmem:[%s0 + $0x20] sm:$0xf]
  %v57 = vld [vmem:[%s0 + $0x24] sm:$0xf]
  %v58 = vld [vmem:[%s0 + $0x28] sm:$0xf]
  %v59 = vld [vmem:[%s0 + $0x2c] sm:$0xf]
  %v60 = vld [vmem:[%s0 + $0x30] sm:$0xf]
  %v61 = vld [vmem:[%s0 + $0x34] sm:$0xf]
  %v62 = vld [vmem:[%s0 + $0x38] sm:$0xf]
  %v63 = vld [vmem:[%s0 + $0x3c] sm:$0xf]
  %v64 = vld [vmem:[%s1] sm:$0xf]
  %v65 = vld [vmem:[%s1 + $0x4] sm:$0xf]
  %v66 = vld [vmem:[%s1 + $0x8] sm:$0xf]
  %v67 = vld [vmem:[%s1 + $0xc] sm:$0xf]
  %v68 = vld [vmem:[%s1 + $0x10] sm:$0xf]
  %v69 = vld [vmem:[%s1 + $0x14] sm:$0xf]
  %v70 = vld [vmem:[%s1 + $0x18] sm:$0xf]
  %v71 = vld [vmem:[%s1 + $0x1c] sm:$0xf]
  %v72 = vld [vmem:[%s1 + $0x20] sm:$0xf]
  %v73 = vld [vmem:[%s1 + $0x24] sm:$0xf]
  %v74 = vld [vmem:[%s1 + $0x28] sm:$0xf]
  %v75 = vld [vmem:[%s1 + $0x2c] sm:$0xf]
  %v76 = vld [vmem:[%s1 + $0x30] sm:$0xf]
  %v77 = vld [vmem:[%s1 + $0x34] sm:$0xf]
  %v78 = vld [vmem:[%s1 + $0x38] sm:$0xf]
  %v79 = vld [vmem:[%s1 + $0x3c] sm:$0xf]
  %v96 = vunpack.c.l.b16 %v48
  %v97 = vunpack.c.l.b16 %v49
  %v98 = vunpack.c.l.b16 %v50
  %v99 = vunpack.c.l.b16 %v51
  %v100 = vunpack.c.l.b16 %v52
  %v101 = vunpack.c.l.b16 %v53
  %v102 = vunpack.c.l.b16 %v54
  %v103 = vunpack.c.l.b16 %v55
  %v104 = vunpack.c.l.b16 %v56
  %v105 = vunpack.c.l.b16 %v57
  %v106 = vunpack.c.l.b16 %v58
  %v107 = vunpack.c.l.b16 %v59
  %v108 = vunpack.c.l.b16 %v60
  %v109 = vunpack.c.l.b16 %v61
  %v110 = vunpack.c.l.b16 %v62
  %v111 = vunpack.c.l.b16 %v63
  %v112 = vpack.c.b16 %v97, %v96
  %v113 = vpack.c.b16 %v99, %v98
  %v114 = vpack.c.b16 %v101, %v100
  %v115 = vpack.c.b16 %v103, %v102
  %v116 = vpack.c.b16 %v105, %v104
  %v117 = vpack.c.b16 %v107, %v106
  %v118 = vpack.c.b16 %v109, %v108
  %v119 = vpack.c.b16 %v111, %v110
  %v144 = vunpack.c.l.b16 %v64
  %v145 = vunpack.c.l.b16 %v65
  %v146 = vunpack.c.l.b16 %v66
  %v147 = vunpack.c.l.b16 %v67
  %v148 = vunpack.c.l.b16 %v68
  %v149 = vunpack.c.l.b16 %v69
  %v150 = vunpack.c.l.b16 %v70
  %v151 = vunpack.c.l.b16 %v71
  %v152 = vunpack.c.l.b16 %v72
  %v153 = vunpack.c.l.b16 %v73
  %v154 = vunpack.c.l.b16 %v74
  %v155 = vunpack.c.l.b16 %v75
  %v156 = vunpack.c.l.b16 %v76
  %v157 = vunpack.c.l.b16 %v77
  %v158 = vunpack.c.l.b16 %v78
  %v159 = vunpack.c.l.b16 %v79
  %v160 = vpack.c.b16 %v145, %v144
  %v161 = vpack.c.b16 %v147, %v146
  %v162 = vpack.c.b16 %v149, %v148
  %v163 = vpack.c.b16 %v151, %v150
  %v164 = vpack.c.b16 %v153, %v152
  %v165 = vpack.c.b16 %v155, %v154
  %v166 = vpack.c.b16 %v157, %v156
  %v167 = vpack.c.b16 %v159, %v158
  %176 = vmatprep.subr.bf16.mxu0 0
  %177 = vmatpush1.bf16.msra.mxu0 %v160
  %178 = vmatprep.subr.bf16.mxu0 0
  %179 = vmatpush1.bf16.msra.mxu0 %v161
  %180 = vmatprep.subr.bf16.mxu0 0
  %181 = vmatpush1.bf16.msra.mxu0 %v162
  %182 = vmatprep.subr.bf16.mxu0 0
  %183 = vmatpush1.bf16.msra.mxu0 %v163
  %184 = vmatprep.subr.bf16.mxu0 0
  %185 = vmatpush1.bf16.msra.mxu0 %v164
  %186 = vmatprep.subr.bf16.mxu0 0
  %187 = vmatpush1.bf16.msra.mxu0 %v165
  %188 = vmatprep.subr.bf16.mxu0 0
  %189 = vmatpush1.bf16.msra.mxu0 %v166
  %190 = vmatprep.subr.bf16.mxu0 0
  %191 = vmatpush1.bf16.msra.mxu0 %v167
  %192 = vmatprep.subr.bf16.mxu0 0
  %193 = vmatpush1.bf16.msra.mxu0 0
  %194 = vmatprep.subr.bf16.mxu0 0
  %195 = vmatpush1.bf16.msra.mxu0 0
  %196 = vmatprep.subr.bf16.mxu0 0
  %197 = vmatpush1.bf16.msra.mxu0 0
  %198 = vmatprep.subr.bf16.mxu0 0
  %199 = vmatpush1.bf16.msra.mxu0 0
  %200 = vmatprep.subr.bf16.mxu0 0
  %201 = vmatpush1.bf16.msra.mxu0 0
  %202 = vmatprep.subr.bf16.mxu0 0
  %203 = vmatpush1.bf16.msra.mxu0 0
  %204 = vmatprep.subr.bf16.mxu0 0
  %205 = vmatpush1.bf16.msra.mxu0 0
  %206 = vmatprep.subr.bf16.mxu0 0
  %207 = vmatpush1.bf16.msra.mxu0 0
  %208 = vmatprep.mubr.bf16.mxu0 0
  %209 = vmatmul.mubr.bf16.gmra.mrb[0].mxu0 %v112
  %v210 = vpop.f32.mrb[0].mxu0
  %v211 = vadd.f32 0.0, %v210
  %v212 = vpop.f32.mrb[0].mxu0
  %v213 = vpop.f32.mrb[0].mxu0
  %v214 = vadd.f32 0.0, %v213
  %v215 = vpop.f32.mrb[0].mxu0
  %216 = vmatprep.mubr.bf16.mxu0 0
  %217 = vmatmul.mubr.bf16.gmra.mrb[0].mxu0 %v113
  %v218 = vpop.f32.mrb[0].mxu0
  %v219 = vadd.f32 0.0, %v218
  %v220 = vpop.f32.mrb[0].mxu0
  %v221 = vpop.f32.mrb[0].mxu0
  %v222 = vadd.f32 0.0, %v221
  %v223 = vpop.f32.mrb[0].mxu0
  %224 = vmatprep.mubr.bf16.mxu0 0
  %225 = vmatmul.mubr.bf16.gmra.mrb[0].mxu0 %v114
  %v226 = vpop.f32.mrb[0].mxu0
  %v227 = vadd.f32 0.0, %v226
  %v228 = vpop.f32.mrb[0].mxu0
  %v229 = vpop.f32.mrb[0].mxu0
  %v230 = vadd.f32 0.0, %v229
  %v231 = vpop.f32.mrb[0].mxu0
  %232 = vmatprep.mubr.bf16.mxu0 0
  %233 = vmatmul.mubr.bf16.gmra.mrb[0].mxu0 %v115
  %v234 = vpop.f32.mrb[0].mxu0
  %v235 = vadd.f32 0.0, %v234
  %v236 = vpop.f32.mrb[0].mxu0
  %v237 = vpop.f32.mrb[0].mxu0
  %v238 = vadd.f32 0.0, %v237
  %v239 = vpop.f32.mrb[0].mxu0
  %240 = vmatprep.mubr.bf16.mxu0 0
  %241 = vmatmul.mubr.bf16.gmra.mrb[0].mxu0 %v116
  %v242 = vpop.f32.mrb[0].mxu0
  %v243 = vadd.f32 0.0, %v242
  %v244 = vpop.f32.mrb[0].mxu0
  %v245 = vpop.f32.mrb[0].mxu0
  %v246 = vadd.f32 0.0, %v245
  %v247 = vpop.f32.mrb[0].mxu0
  %248 = vmatprep.mubr.bf16.mxu0 0
  %249 = vmatmul.mubr.bf16.gmra.mrb[0].mxu0 %v117
  %v250 = vpop.f32.mrb[0].mxu0
  %v251 = vadd.f32 0.0, %v250
  %v252 = vpop.f32.mrb[0].mxu0
  %v253 = vpop.f32.mrb[0].mxu0
  %v254 = vadd.f32 0.0, %v253
  %v255 = vpop.f32.mrb[0].mxu0
  %256 = vmatprep.mubr.bf16.mxu0 0
  %257 = vmatmul.mubr.bf16.gmra.mrb[0].mxu0 %v118
  %v258 = vpop.f32.mrb[0].mxu0
  %v259 = vadd.f32 0.0, %v258
  %v260 = vpop.f32.mrb[0].mxu0
  %v261 = vpop.f32.mrb[0].mxu0
  %v262 = vadd.f32 0.0, %v261
  %v263 = vpop.f32.mrb[0].mxu0
  %264 = vmatprep.mubr.bf16.mxu0 0
  %265 = vmatmul.mubr.bf16.gmra.mrb[0].mxu0 %v119
  %v266 = vpop.f32.mrb[0].mxu0
  %v267 = vadd.f32 0.0, %v266
  %v268 = vpop.f32.mrb[0].mxu0
  %v269 = vpop.f32.mrb[0].mxu0
  %v270 = vadd.f32 0.0, %v269
  %v271 = vpop.f32.mrb[0].mxu0
  %272 = vdwg.mxu0
  %v273 = vadd.f32 %v32, %v211
  %v274 = vadd.f32 %v33, %v214
  %v275 = vadd.f32 %v34, %v219
  %v276 = vadd.f32 %v35, %v222
  %v277 = vadd.f32 %v36, %v227
  %v278 = vadd.f32 %v37, %v230
  %v279 = vadd.f32 %v38, %v235
  %v280 = vadd.f32 %v39, %v238
  %v281 = vadd.f32 %v40, %v243
  %v282 = vadd.f32 %v41, %v246
  %v283 = vadd.f32 %v42, %v251
  %v284 = vadd.f32 %v43, %v254
  %v285 = vadd.f32 %v44, %v259
  %v286 = vadd.f32 %v45, %v262
  %v287 = vadd.f32 %v46, %v267
  %v288 = vadd.f32 %v47, %v270
  %289 = vst [vmem:[#allocation2] sm:$0xff] %v273
  %290 = vst [vmem:[#allocation2 + $0x8] sm:$0xff] %v274
  %291 = vst [vmem:[#allocation2 + $0x10] sm:$0xff] %v275
  %292 = vst [vmem:[#allocation2 + $0x18] sm:$0xff] %v276
  %293 = vst [vmem:[#allocation2 + $0x20] sm:$0xff] %v277
  %294 = vst [vmem:[#allocation2 + $0x28] sm:$0xff] %v278
  %295 = vst [vmem:[#allocation2 + $0x30] sm:$0xff] %v279
  %296 = vst [vmem:[#allocation2 + $0x38] sm:$0xff] %v280
  %297 = vst [vmem:[#allocation2 + $0x40] sm:$0xff] %v281
  %298 = vst [vmem:[#allocation2 + $0x48] sm:$0xff] %v282
  %299 = vst [vmem:[#allocation2 + $0x50] sm:$0xff] %v283
  %300 = vst [vmem:[#allocation2 + $0x58] sm:$0xff] %v284
  %301 = vst [vmem:[#allocation2 + $0x60] sm:$0xff] %v285
  %302 = vst [vmem:[#allocation2 + $0x68] sm:$0xff] %v286
  %303 = vst [vmem:[#allocation2 + $0x70] sm:$0xff] %v287
  %304 = vst [vmem:[#allocation2 + $0x78] sm:$0xff] %v288
  // Predicated region
  $region14: #{block_group_forward.19} parent=0 // pred_check
    %p305 = pneg %p12
  $region15: #{block_group_forward.19} parent=0 // pred_check_branch
    %307 = sbr.rel (%p305) target = $region17
  $region16: #{block_group_forward.19} parent=0 // pred_region
    %v308 = vld [vmem:[#allocation2] sm:$0xff]
    %v309 = vld [vmem:[#allocation2 + $0x8] sm:$0xff]
    %v310 = vld [vmem:[#allocation2 + $0x10] sm:$0xff]
    %v311 = vld [vmem:[#allocation2 + $0x18] sm:$0xff]
    %v312 = vld [vmem:[#allocation2 + $0x20] sm:$0xff]
    %v313 = vld [vmem:[#allocation2 + $0x28] sm:$0xff]
    %v314 = vld [vmem:[#allocation2 + $0x30] sm:$0xff]
    %v315 = vld [vmem:[#allocation2 + $0x38] sm:$0xff]
    %v316 = vld [vmem:[#allocation2 + $0x40] sm:$0xff]
    %v317 = vld [vmem:[#allocation2 + $0x48] sm:$0xff]
    %v318 = vld [vmem:[#allocation2 + $0x50] sm:$0xff]
    %v319 = vld [vmem:[#allocation2 + $0x58] sm:$0xff]
    %v320 = vld [vmem:[#allocation2 + $0x60] sm:$0xff]
    %v321 = vld [vmem:[#allocation2 + $0x68] sm:$0xff]
    %v322 = vld [vmem:[#allocation2 + $0x70] sm:$0xff]
    %v323 = vld [vmem:[#allocation2 + $0x78] sm:$0xff]
    %v324 = vpack.c.bf16 %v309, %v308
    %v325 = vpack.c.bf16 %v311, %v310
    %v326 = vpack.c.bf16 %v313, %v312
    %v327 = vpack.c.bf16 %v315, %v314
    %v328 = vpack.c.bf16 %v317, %v316
    %v329 = vpack.c.bf16 %v319, %v318
    %v330 = vpack.c.bf16 %v321, %v320
    %v331 = vpack.c.bf16 %v323, %v322
    %v340 = vunpack.c.l.b16 %v324
    %v341 = vunpack.c.h.b16 %v324
    %v342 = vunpack.c.l.b16 %v325
    %v343 = vunpack.c.h.b16 %v325
    %v344 = vunpack.c.l.b16 %v326
    %v345 = vunpack.c.h.b16 %v326
    %v346 = vunpack.c.l.b16 %v327
    %v347 = vunpack.c.h.b16 %v327
    %v348 = vunpack.c.l.b16 %v328
    %v349 = vunpack.c.h.b16 %v328
    %v350 = vunpack.c.l.b16 %v329
    %v351 = vunpack.c.h.b16 %v329
    %v352 = vunpack.c.l.b16 %v330
    %v353 = vunpack.c.h.b16 %v330
    %v354 = vunpack.c.l.b16 %v331
    %v355 = vunpack.c.h.b16 %v331
    %v356 = vpack.c.b16 %v340, %v340
    %v357 = vpack.c.b16 %v341, %v341
    %v358 = vpack.c.b16 %v342, %v342
    %v359 = vpack.c.b16 %v343, %v343
    %v360 = vpack.c.b16 %v344, %v344
    %v361 = vpack.c.b16 %v345, %v345
    %v362 = vpack.c.b16 %v346, %v346
    %v363 = vpack.c.b16 %v347, %v347
    %v364 = vpack.c.b16 %v348, %v348
    %v365 = vpack.c.b16 %v349, %v349
    %v366 = vpack.c.b16 %v350, %v350
    %v367 = vpack.c.b16 %v351, %v351
    %v368 = vpack.c.b16 %v352, %v352
    %v369 = vpack.c.b16 %v353, %v353
    %v370 = vpack.c.b16 %v354, %v354
    %v371 = vpack.c.b16 %v355, %v355
    %388 = vst [vmem:[%s2] sm:$0xf] %v356
    %389 = vst [vmem:[%s2 + $0x4] sm:$0xf] %v357
    %390 = vst [vmem:[%s2 + $0x8] sm:$0xf] %v358
    %391 = vst [vmem:[%s2 + $0xc] sm:$0xf] %v359
    %392 = vst [vmem:[%s2 + $0x10] sm:$0xf] %v360
    %393 = vst [vmem:[%s2 + $0x14] sm:$0xf] %v361
    %394 = vst [vmem:[%s2 + $0x18] sm:$0xf] %v362
    %395 = vst [vmem:[%s2 + $0x1c] sm:$0xf] %v363
    %396 = vst [vmem:[%s2 + $0x20] sm:$0xf] %v364
    %397 = vst [vmem:[%s2 + $0x24] sm:$0xf] %v365
    %398 = vst [vmem:[%s2 + $0x28] sm:$0xf] %v366
    %399 = vst [vmem:[%s2 + $0x2c] sm:$0xf] %v367
    %400 = vst [vmem:[%s2 + $0x30] sm:$0xf] %v368
    %401 = vst [vmem:[%s2 + $0x34] sm:$0xf] %v369
    %402 = vst [vmem:[%s2 + $0x38] sm:$0xf] %v370
    %403 = vst [vmem:[%s2 + $0x3c] sm:$0xf] %v371
  $region17: #{block_group_forward.19} parent=0 // pred_fallthru
    _
  // Predicated region
  $region18: #{block_group_forward.19} parent=0 // pred_check
    _
  $region19: #{block_group_forward.19} parent=0 // pred_check_branch
    %405 = sbr.rel (0) target = $region21
  $region20: #{block_group_forward.19} parent=0 // pred_region
    _
  $region21: #{block_group_forward.19} parent=0 // pred_fallthru
    _
  // Predicated region
  $region22: #{block_group_forward.19} parent=0 // pred_check
    _
  $region23: #{block_group_forward.19} parent=0 // pred_check_branch
    %407 = sbr.rel (0) target = $region25
  $region24: #{block_group_forward.19} parent=0 // pred_region
    _
  $region25: #{block_group_forward.19} parent=0 // pred_fallthru
    _

// kernel: block_group_forward.23
$region0: #{block_group_forward.23}
  #allocation0 [shape = 'u32[]', space=smem, size = 0x4, offset = 0x4, fixed_abs, tag = 'smem constant byte address 0x4 - core index']
  #allocation1 [shape = 'u32[144,128]{1,0:T(1,128)}', space=vmem, size = 0x12000, scoped, tag = 'internal scratch']
  %s0 = inlined_call_operand.vmem [shape: bf16[128,128], index: 0, kind: input, shape index: {}]
  %s1 = inlined_call_operand.vmem [shape: bf16[128,128], index: 1, kind: input, shape index: {}]
  %s2 = inlined_call_operand.vmem [shape: f32[1,128], index: 2, kind: input, shape index: {}]
  %s3 = inlined_call_operand.vmem [shape: f32[1,128], index: 3, kind: input, shape index: {}]
  %s4 = inlined_call_operand.vmem [shape: bf16[128,128], index: 4, kind: output, shape index: {}]
  %s5 = sld [smem:[#allocation0]]
  $region26: #{block_group_forward.23} parent=0
    _
  %s7 = ssub.s32 1, %s5
  %s8 = scalar_select 0, %s7, %s5
  // Predicated region
  $region2: #{block_group_forward.23} parent=0 // pred_check
    _
  $region3: #{block_group_forward.23} parent=0 // pred_check_branch
    %10 = sbr.rel (0) target = $region5
  $region4: #{block_group_forward.23} parent=0 // pred_region
    _
  $region5: #{block_group_forward.23} parent=0 // pred_fallthru
    _
  // Predicated region
  $region6: #{block_group_forward.23} parent=0 // pred_check
    _
  $region7: #{block_group_forward.23} parent=0 // pred_check_branch
    %12 = sbr.rel (0) target = $region9
  $region8: #{block_group_forward.23} parent=0 // pred_region
    _
  $region9: #{block_group_forward.23} parent=0 // pred_fallthru
    _
  // Predicated region
  $region10: #{block_group_forward.23} parent=0 // pred_check
    _
  $region11: #{block_group_forward.23} parent=0 // pred_check_branch
    %14 = sbr.rel (0) target = $region13
  $region12: #{block_group_forward.23} parent=0 // pred_region
    _
  $region13: #{block_group_forward.23} parent=0 // pred_fallthru
    _
  // Predicated region
  $region14: #{block_group_forward.23} parent=0 // pred_check
    _
  $region15: #{block_group_forward.23} parent=0 // pred_check_branch
    %16 = sbr.rel (0) target = $region17
  $region16: #{block_group_forward.23} parent=0 // pred_region
    _
  $region17: #{block_group_forward.23} parent=0 // pred_fallthru
    _
  %v17 = vld [vmem:[%s0] sm:$0xf]
  %v18 = vld [vmem:[%s0 + $0x4] sm:$0xf]
  %v19 = vld [vmem:[%s0 + $0x8] sm:$0xf]
  %v20 = vld [vmem:[%s0 + $0xc] sm:$0xf]
  %v21 = vld [vmem:[%s0 + $0x10] sm:$0xf]
  %v22 = vld [vmem:[%s0 + $0x14] sm:$0xf]
  %v23 = vld [vmem:[%s0 + $0x18] sm:$0xf]
  %v24 = vld [vmem:[%s0 + $0x1c] sm:$0xf]
  %v25 = vld [vmem:[%s0 + $0x20] sm:$0xf]
  %v26 = vld [vmem:[%s0 + $0x24] sm:$0xf]
  %v27 = vld [vmem:[%s0 + $0x28] sm:$0xf]
  %v28 = vld [vmem:[%s0 + $0x2c] sm:$0xf]
  %v29 = vld [vmem:[%s0 + $0x30] sm:$0xf]
  %v30 = vld [vmem:[%s0 + $0x34] sm:$0xf]
  %v31 = vld [vmem:[%s0 + $0x38] sm:$0xf]
  %v32 = vld [vmem:[%s0 + $0x3c] sm:$0xf]
  %v33 = vunpack.c.l.bf16 %v17
  %v34 = vunpack.c.l.bf16 %v18
  %v35 = vunpack.c.l.bf16 %v19
  %v36 = vunpack.c.l.bf16 %v20
  %v37 = vunpack.c.l.bf16 %v21
  %v38 = vunpack.c.l.bf16 %v22
  %v39 = vunpack.c.l.bf16 %v23
  %v40 = vunpack.c.l.bf16 %v24
  %v41 = vunpack.c.l.bf16 %v25
  %v42 = vunpack.c.l.bf16 %v26
  %v43 = vunpack.c.l.bf16 %v27
  %v44 = vunpack.c.l.bf16 %v28
  %v45 = vunpack.c.l.bf16 %v29
  %v46 = vunpack.c.l.bf16 %v30
  %v47 = vunpack.c.l.bf16 %v31
  %v48 = vunpack.c.l.bf16 %v32
  %v49 = vld [vmem:[%s2] sm:$0x1]
  %v51 = vlaneseq
  %v52 = vshrl.u32 %v51, 7
  %v53 = vsub.s32 0, %v52
  %v54 = vrot.slane %v49, %v53
  %v56 = vmul.f32 %v33, %v54
  %v57 = vmul.f32 %v34, %v54
  %v58 = vmul.f32 %v35, %v54
  %v59 = vmul.f32 %v36, %v54
  %v60 = vmul.f32 %v37, %v54
  %v61 = vmul.f32 %v38, %v54
  %v62 = vmul.f32 %v39, %v54
  %v63 = vmul.f32 %v40, %v54
  %v64 = vmul.f32 %v41, %v54
  %v65 = vmul.f32 %v42, %v54
  %v66 = vmul.f32 %v43, %v54
  %v67 = vmul.f32 %v44, %v54
  %v68 = vmul.f32 %v45, %v54
  %v69 = vmul.f32 %v46, %v54
  %v70 = vmul.f32 %v47, %v54
  %v71 = vmul.f32 %v48, %v54
  %v72 = vld [vmem:[%s3] sm:$0x1]
  %v74 = vlaneseq
  %v75 = vshrl.u32 %v74, 7
  %v76 = vsub.s32 0, %v75
  %v77 = vrot.slane %v72, %v76
  %v79 = vadd.f32 %v56, %v77
  %v80 = vadd.f32 %v57, %v77
  %v81 = vadd.f32 %v58, %v77
  %v82 = vadd.f32 %v59, %v77
  %v83 = vadd.f32 %v60, %v77
  %v84 = vadd.f32 %v61, %v77
  %v85 = vadd.f32 %v62, %v77
  %v86 = vadd.f32 %v63, %v77
  %v87 = vadd.f32 %v64, %v77
  %v88 = vadd.f32 %v65, %v77
  %v89 = vadd.f32 %v66, %v77
  %v90 = vadd.f32 %v67, %v77
  %v91 = vadd.f32 %v68, %v77
  %v92 = vadd.f32 %v69, %v77
  %v93 = vadd.f32 %v70, %v77
  %v94 = vadd.f32 %v71, %v77
  %v95 = vld [vmem:[%s1] sm:$0xf]
  %v96 = vld [vmem:[%s1 + $0x4] sm:$0xf]
  %v97 = vld [vmem:[%s1 + $0x8] sm:$0xf]
  %v98 = vld [vmem:[%s1 + $0xc] sm:$0xf]
  %v99 = vld [vmem:[%s1 + $0x10] sm:$0xf]
  %v100 = vld [vmem:[%s1 + $0x14] sm:$0xf]
  %v101 = vld [vmem:[%s1 + $0x18] sm:$0xf]
  %v102 = vld [vmem:[%s1 + $0x1c] sm:$0xf]
  %v103 = vld [vmem:[%s1 + $0x20] sm:$0xf]
  %v104 = vld [vmem:[%s1 + $0x24] sm:$0xf]
  %v105 = vld [vmem:[%s1 + $0x28] sm:$0xf]
  %v106 = vld [vmem:[%s1 + $0x2c] sm:$0xf]
  %v107 = vld [vmem:[%s1 + $0x30] sm:$0xf]
  %v108 = vld [vmem:[%s1 + $0x34] sm:$0xf]
  %v109 = vld [vmem:[%s1 + $0x38] sm:$0xf]
  %v110 = vld [vmem:[%s1 + $0x3c] sm:$0xf]
  %v111 = vunpack.c.l.bf16 %v95
  %v112 = vunpack.c.l.bf16 %v96
  %v113 = vunpack.c.l.bf16 %v97
  %v114 = vunpack.c.l.bf16 %v98
  %v115 = vunpack.c.l.bf16 %v99
  %v116 = vunpack.c.l.bf16 %v100
  %v117 = vunpack.c.l.bf16 %v101
  %v118 = vunpack.c.l.bf16 %v102
  %v119 = vunpack.c.l.bf16 %v103
  %v120 = vunpack.c.l.bf16 %v104
  %v121 = vunpack.c.l.bf16 %v105
  %v122 = vunpack.c.l.bf16 %v106
  %v123 = vunpack.c.l.bf16 %v107
  %v124 = vunpack.c.l.bf16 %v108
  %v125 = vunpack.c.l.bf16 %v109
  %v126 = vunpack.c.l.bf16 %v110
  %v127 = vadd.f32 %v79, %v111
  %v128 = vadd.f32 %v80, %v112
  %v129 = vadd.f32 %v81, %v113
  %v130 = vadd.f32 %v82, %v114
  %v131 = vadd.f32 %v83, %v115
  %v132 = vadd.f32 %v84, %v116
  %v133 = vadd.f32 %v85, %v117
  %v134 = vadd.f32 %v86, %v118
  %v135 = vadd.f32 %v87, %v119
  %v136 = vadd.f32 %v88, %v120
  %v137 = vadd.f32 %v89, %v121
  %v138 = vadd.f32 %v90, %v122
  %v139 = vadd.f32 %v91, %v123
  %v140 = vadd.f32 %v92, %v124
  %v141 = vadd.f32 %v93, %v125
  %v142 = vadd.f32 %v94, %v126
  %v143 = vmax.f32 %v127, 0.0
  %v144 = vmax.f32 %v128, 0.0
  %v145 = vmax.f32 %v129, 0.0
  %v146 = vmax.f32 %v130, 0.0
  %v147 = vmax.f32 %v131, 0.0
  %v148 = vmax.f32 %v132, 0.0
  %v149 = vmax.f32 %v133, 0.0
  %v150 = vmax.f32 %v134, 0.0
  %v151 = vmax.f32 %v135, 0.0
  %v152 = vmax.f32 %v136, 0.0
  %v153 = vmax.f32 %v137, 0.0
  %v154 = vmax.f32 %v138, 0.0
  %v155 = vmax.f32 %v139, 0.0
  %v156 = vmax.f32 %v140, 0.0
  %v157 = vmax.f32 %v141, 0.0
  %v158 = vmax.f32 %v142, 0.0
  %v159 = vpack.c.bf16 %v144, %v143
  %v160 = vpack.c.bf16 %v146, %v145
  %v161 = vpack.c.bf16 %v148, %v147
  %v162 = vpack.c.bf16 %v150, %v149
  %v163 = vpack.c.bf16 %v152, %v151
  %v164 = vpack.c.bf16 %v154, %v153
  %v165 = vpack.c.bf16 %v156, %v155
  %v166 = vpack.c.bf16 %v158, %v157
  %v175 = vunpack.c.l.b16 %v159
  %v176 = vunpack.c.h.b16 %v159
  %v177 = vunpack.c.l.b16 %v160
  %v178 = vunpack.c.h.b16 %v160
  %v179 = vunpack.c.l.b16 %v161
  %v180 = vunpack.c.h.b16 %v161
  %v181 = vunpack.c.l.b16 %v162
  %v182 = vunpack.c.h.b16 %v162
  %v183 = vunpack.c.l.b16 %v163
  %v184 = vunpack.c.h.b16 %v163
  %v185 = vunpack.c.l.b16 %v164
  %v186 = vunpack.c.h.b16 %v164
  %v187 = vunpack.c.l.b16 %v165
  %v188 = vunpack.c.h.b16 %v165
  %v189 = vunpack.c.l.b16 %v166
  %v190 = vunpack.c.h.b16 %v166
  %v191 = vpack.c.b16 %v175, %v175
  %v192 = vpack.c.b16 %v176, %v176
  %v193 = vpack.c.b16 %v177, %v177
  %v194 = vpack.c.b16 %v178, %v178
  %v195 = vpack.c.b16 %v179, %v179
  %v196 = vpack.c.b16 %v180, %v180
  %v197 = vpack.c.b16 %v181, %v181
  %v198 = vpack.c.b16 %v182, %v182
  %v199 = vpack.c.b16 %v183, %v183
  %v200 = vpack.c.b16 %v184, %v184
  %v201 = vpack.c.b16 %v185, %v185
  %v202 = vpack.c.b16 %v186, %v186
  %v203 = vpack.c.b16 %v187, %v187
  %v204 = vpack.c.b16 %v188, %v188
  %v205 = vpack.c.b16 %v189, %v189
  %v206 = vpack.c.b16 %v190, %v190
  %223 = vst [vmem:[%s4] sm:$0xf] %v191
  %224 = vst [vmem:[%s4 + $0x4] sm:$0xf] %v192
  %225 = vst [vmem:[%s4 + $0x8] sm:$0xf] %v193
  %226 = vst [vmem:[%s4 + $0xc] sm:$0xf] %v194
  %227 = vst [vmem:[%s4 + $0x10] sm:$0xf] %v195
  %228 = vst [vmem:[%s4 + $0x14] sm:$0xf] %v196
  %229 = vst [vmem:[%s4 + $0x18] sm:$0xf] %v197
  %230 = vst [vmem:[%s4 + $0x1c] sm:$0xf] %v198
  %231 = vst [vmem:[%s4 + $0x20] sm:$0xf] %v199
  %232 = vst [vmem:[%s4 + $0x24] sm:$0xf] %v200
  %233 = vst [vmem:[%s4 + $0x28] sm:$0xf] %v201
  %234 = vst [vmem:[%s4 + $0x2c] sm:$0xf] %v202
  %235 = vst [vmem:[%s4 + $0x30] sm:$0xf] %v203
  %236 = vst [vmem:[%s4 + $0x34] sm:$0xf] %v204
  %237 = vst [vmem:[%s4 + $0x38] sm:$0xf] %v205
  %238 = vst [vmem:[%s4 + $0x3c] sm:$0xf] %v206
  // Predicated region
  $region18: #{block_group_forward.23} parent=0 // pred_check
    _
  $region19: #{block_group_forward.23} parent=0 // pred_check_branch
    %240 = sbr.rel (0) target = $region21
  $region20: #{block_group_forward.23} parent=0 // pred_region
    _
  $region21: #{block_group_forward.23} parent=0 // pred_fallthru
    _
  // Predicated region
  $region22: #{block_group_forward.23} parent=0 // pred_check
    _
  $region23: #{block_group_forward.23} parent=0 // pred_check_branch
    %242 = sbr.rel (0) target = $region25
  $region24: #{block_group_forward.23} parent=0 // pred_region
    _
  $region25: #{block_group_forward.23} parent=0 // pred_fallthru
    _

</llo_original>
